<compile_context>
chip_gen: v6e
topology: v6e:2x2x1
jax: 0.10.0
libtpu: 0.0.40
codegen_flags: <defaults>
</compile_context>

<pallas_src>
import functools

import jax
import jax.numpy as jnp
from jax.experimental import pallas as pl
from jax.experimental.pallas import tpu as pltpu

_EPS = 1e-5


# ----------------------------- math helpers -----------------------------------

def _hswish(x):
    return x * (jnp.clip(x + 3.0, 0.0, 6.0) / 6.0)


def _hsigmoid(x):
    return jnp.clip(x + 3.0, 0.0, 6.0) / 6.0


def _make_divisible(v, divisor, min_value=None):
    if min_value is None:
        min_value = divisor
    new_v = max(min_value, int(v + divisor / 2) // divisor * divisor)
    if new_v < 0.9 * v:
        new_v += divisor
    return new_v


def _expand_pack_factor(E):
    """How many rows to fold into the lane axis so the expand output is >=128 lanes."""
    if E < 128 and 128 % E == 0:
        return 128 // E
    return 1


def _pick_row_tile(m, cap):
    """Largest divisor of m that is <= cap, preferring multiples of 8.
    NOTE: for awkward (e.g. prime) m this can fall back to m itself (one block)."""
    cap = max(8, min(cap, m))
    t = cap - cap % 8
    while t >= 8:
        if m % t == 0:
            return t
        t -= 8
    for t in range(min(cap, m), 0, -1):
        if m % t == 0:
            return t
    return m


def _fold_bn(stats, gamma, beta, count, c):
    """Fold [sum, sumsq] partials (lane dim may hold k packed copies of the c
    channels) into training-mode BN (scale, bias) rows of shape (1, c)."""
    k = stats.shape[-1] // c
    s = jnp.sum(stats.reshape(-1, 2, k, c), axis=(0, 2))          # (2, c)
    mean = s[0] / count
    var = jnp.maximum(s[1] / count - mean * mean, 0.0)
    inv = jax.lax.rsqrt(var + _EPS)
    scale = gamma.reshape(-1) * inv
    bias = beta.reshape(-1) - mean * scale
    return scale.reshape(1, -1), bias.reshape(1, -1)


def _fold_bn_cmajor(stats, gamma, beta, count):
    """Same, but stats are (N, C, 2) and the result is (C, 1) columns
    (for the channels-major / NCHW-layout stages)."""
    s = jnp.sum(stats, axis=0)                                    # (C, 2)
    mean = s[:, 0] / count
    var = jnp.maximum(s[:, 1] / count - mean * mean, 0.0)
    inv = jax.lax.rsqrt(var + _EPS)
    scale = gamma.reshape(-1) * inv
    bias = beta.reshape(-1) - mean * scale
    return scale.reshape(-1, 1), bias.reshape(-1, 1)


# ----------------------------- Pallas kernels ----------------------------------

def expand_kernel(x_ref, w_ref, b_ref, y_ref, st_ref):
    # (TM, r*nin)bf16 @ (r*nin, r*E)bf16 block-diag -> f32, + bias.
    y = jnp.dot(x_ref[...], w_ref[...],
                preferred_element_type=jnp.float32) + b_ref[...]
    y_ref[...] = y.astype(jnp.bfloat16)
    su = jnp.sum(y, axis=0, keepdims=True)
    sq = jnp.sum(y * y, axis=0, keepdims=True)
    st_ref[0] = jnp.concatenate([su, sq], axis=0)                 # (2, r*E)


def dw_kernel(y_ref, s1_ref, b1_ref, w_ref, bdw_ref, z_ref, st_ref, xp_ref,
              *, H, W, Ho, Wo, nin, cg, stride, WP):
    E = nin * cg
    x = _hswish(y_ref[0].astype(jnp.float32) * s1_ref[...] + b1_ref[...])   # (H,W,E)

    # Halo-padded copy in VMEM.  Image interior starts at (row 1, col 8) so the big
    # store is sublane-aligned.  Only the 1-wide border that the 3x3 taps actually
    # read is zeroed (every step, so correctness does not depend on scratch state
    # surviving a grid split across TensorCores).
    zrow = jnp.zeros((1, WP, E), jnp.float32)
    xp_ref[0:1, :, :] = zrow
    xp_ref[H + 1:H + 2, :, :] = zrow
    zcol = jnp.zeros((H, 1, E), jnp.float32)
    xp_ref[1:H + 1, 7:8, :] = zcol
    xp_ref[1:H + 1, 8 + W:9 + W, :] = zcol
    xp_ref[1:H + 1, 8:8 + W, :] = x

    acc = jnp.zeros((Ho, Wo, E), jnp.float32)
    for kh in range(3):
        for kw in range(3):
            if stride == 1:
                tap = xp_ref[kh:kh + Ho, 7 + kw:7 + kw + Wo, :]
            else:
                tap = xp_ref[pl.ds(kh, Ho, stride), pl.ds(7 + kw, Wo, stride), :]
            base = (kh * 3 + kw) * cg
            for d in range(cg):
                if d == 0:
                    rt = tap
                else:
                    # Lane rotation by d*nin: output lane j*nin+g reads the input
                    # lane ((j+d)%cg)*nin+g, so each term is one full-E VPU FMA.
                    # (pltpu.roll could move this shuffle onto the XLU.)
                    rt = jnp.concatenate([tap[:, :, d * nin:], tap[:, :, :d * nin]],
                                         axis=-1)
                acc = acc + rt * w_ref[base + d:base + d + 1, :]
    z = acc + bdw_ref[...]                                                  # (Ho,Wo,E)

    z_ref[0] = z.astype(jnp.bfloat16)
    zs = jnp.sum(jnp.sum(z, axis=0), axis=0, keepdims=True)
    zq = jnp.sum(jnp.sum(z * z, axis=0), axis=0, keepdims=True)
    st_ref[0] = jnp.concatenate([zs, zq], axis=0)                           # (2, E)


def _bn2_hswish_rows(z_ref, s2_ref, b2_ref):
    feat = _hswish(z_ref[0].astype(jnp.float32) * s2_ref[...] + b2_ref[...])
    Ho, Wo, E = feat.shape
    return feat.reshape(Ho * Wo, E)


def _pw_emit(feat2, wpwt_ref, bpw_ref, y_ref, st_ref):
    # Pointwise conv computed channels-major: y_t[c, p] = sum_e w_pw[e, c]*feat2[p, e]
    # -> the (nout, HWo) store is lane-dense and the output is already NCHW-shaped.
    y_t = jax.lax.dot_general(
        wpwt_ref[...], feat2.astype(jnp.bfloat16),
        (((1,), (1,)), ((), ())), preferred_element_type=jnp.float32) + bpw_ref[...]
    y_ref[0] = y_t.astype(jnp.bfloat16)
    su = jnp.sum(y_t, axis=1, keepdims=True)
    sq = jnp.sum(y_t * y_t, axis=1, keepdims=True)
    st_ref[0] = jnp.concatenate([su, sq], axis=1)                           # (nout, 2)


def se_pw_kernel(z_ref, s2_ref, b2_ref, w1_ref, b1_ref, w2_ref, b2se_ref,
                 wpwt_ref, bpw_ref, y_ref, st_ref):
    # Per image: BN2+HSwish once; SE scale computed from the same VMEM-resident feat;
    # pointwise matmul on the scaled feat (no HBM re-read of z, no se_scale round-trip).
    feat2 = _bn2_hswish_rows(z_ref, s2_ref, b2_ref)                          # (HWo, E)
    pooled = jnp.sum(feat2, axis=0, keepdims=True) * (1.0 / feat2.shape[0])  # (1, E)
    h = _hswish(jnp.dot(pooled.astype(jnp.bfloat16), w1_ref[...],
                        preferred_element_type=jnp.float32) + b1_ref[...])
    s = jnp.dot(h.astype(jnp.bfloat16), w2_ref[...],
                preferred_element_type=jnp.float32) + b2se_ref[...]
    _pw_emit(feat2 * _hsigmoid(s), wpwt_ref, bpw_ref, y_ref, st_ref)


def pw_kernel(z_ref, s2_ref, b2_ref, wpwt_ref, bpw_ref, y_ref, st_ref):
    _pw_emit(_bn2_hswish_rows(z_ref, s2_ref, b2_ref), wpwt_ref, bpw_ref, y_ref, st_ref)


def final_none_kernel(y_ref, s_ref, b_ref, o_ref):
    o_ref[0] = y_ref[0].astype(jnp.float32) * s_ref[...] + b_ref[...]


def final_identity_kernel(y_ref, s_ref, b_ref, x_ref, o_ref):
    # nin == nout: f32 residual add directly in the NCHW layout.
    o_ref[0] = y_ref[0].astype(jnp.float32) * s_ref[...] + b_ref[...] + x_ref[0]


def final_proj_kernel(y_ref, s_ref, b_ref, x_ref, wm_ref, o_ref):
    ident = jnp.dot(wm_ref[...], x_ref[0], preferred_element_type=jnp.float32)
    o_ref[0] = y_ref[0].astype(jnp.float32) * s_ref[...] + b_ref[...] + ident


# ----------------------------- parameters --------------------------------------

def init_mbconv_params(key, nin, nout, expansion_ratio=4, se=True):
    """Random params in (transposed) PyTorch layouts, f32."""
    E = expansion_ratio * nout
    assert E % nin == 0, "grouped conv requires expand_ % nin == 0 (as in PyTorch)"
    cg = E // nin
    S = _make_divisible(E // 4, 8)
    ks = jax.random.split(key, 16)

    def nrm(k, shape, s=0.1):
        return s * jax.random.normal(k, shape, jnp.float32)

    p = {}
    p['w_exp'] = nrm(ks[0], (nin, E))            # 1x1 expansion (c_in, c_out)
    p['b_exp'] = nrm(ks[1], (1, E))
    p['g1'] = 1.0 + nrm(ks[2], (1, E))
    p['be1'] = nrm(ks[3], (1, E))
    p['w_dw'] = nrm(ks[4], (E, cg, 3, 3))        # grouped 3x3, PyTorch OIHW layout
    p['b_dw'] = nrm(ks[5], (1, E))
    p['g2'] = 1.0 + nrm(ks[6], (1, E))
    p['be2'] = nrm(ks[7], (1, E))
    if se:
        p['w_se1'] = nrm(ks[8], (E, S))
        p['b_se1'] = nrm(ks[9], (1, S))
        p['w_se2'] = nrm(ks[10], (S, E))
        p['b_se2'] = nrm(ks[11], (1, E))
    p['w_pw'] = nrm(ks[12], (E, nout))           # 1x1 pointwise (c_in, c_out)
    p['b_pw'] = nrm(ks[13], (1, nout))
    p['g3'] = 1.0 + nrm(ks[14], (1, nout))
    p['be3'] = nrm(ks[15], (1, nout))
    if nin != nout:
        p['w_map'] = nrm(jax.random.fold_in(key, 99), (nin, nout))
    return p


def prepare_mbconv_params(p, nin, nout, expansion_ratio=4, se=True):
    """One-time host-side prep: channel permutation (group index on lanes), the
    lane-rotation depthwise weight, the packed block-diagonal expand weight, and
    bf16 casts of all matmul operands."""
    E = expansion_ratio * nout
    cg = E // nin
    # new lane q = j*nin + g  <->  original channel g*cg + j
    perm = jnp.asarray([(q % nin) * cg + (q // nin) for q in range(E)], jnp.int32)
    permc = lambda v: v[:, perm]
    dp = {}

    w_exp_p = p['w_exp'][:, perm]
    b_exp_p = permc(p['b_exp'])
    dp['w_exp'] = w_exp_p.astype(jnp.bfloat16)
    dp['b_exp'] = b_exp_p
    r = _expand_pack_factor(E)
    if r > 1:
        wpk = jnp.zeros((r * nin, r * E), jnp.float32)
        for j in range(r):
            wpk = wpk.at[j * nin:(j + 1) * nin, j * E:(j + 1) * E].set(w_exp_p)
        dp['w_exp_pk'] = wpk.astype(jnp.bfloat16)
        dp['b_exp_pk'] = jnp.tile(b_exp_p, (1, r))
    dp['g1'], dp['be1'] = permc(p['g1']), permc(p['be1'])

    # Depthwise weight, one row per (tap, within-group offset d); lane q = j*nin + g
    # holds w_dw[out = g*cg + j, in = (j + d) % cg, kh, kw].
    q = jnp.arange(E)
    j_of_q = q // nin
    g_of_q = q % nin
    o_of_q = g_of_q * cg + j_of_q
    rows = []
    for kh in range(3):
        for kw in range(3):
            for d in range(cg):
                i_of_q = (j_of_q + d) % cg
                rows.append(p['w_dw'][o_of_q, i_of_q, kh, kw])
    dp['w_dw_roll'] = jnp.stack(rows, axis=0)                      # (9*cg, E) f32
    dp['b_dw'] = permc(p['b_dw'])
    dp['g2'], dp['be2'] = permc(p['g2']), permc(p['be2'])

    if se:
        dp['w_se1'] = p['w_se1'][perm, :].astype(jnp.bfloat16)
        dp['b_se1'] = p['b_se1']
        dp['w_se2'] = p['w_se2'][:, perm].astype(jnp.bfloat16)
        dp['b_se2'] = permc(p['b_se2'])

    dp['w_pw_t'] = jnp.transpose(p['w_pw'][perm, :]).astype(jnp.bfloat16)   # (nout, E)
    dp['b_pw_col'] = p['b_pw'].reshape(-1, 1)                               # (nout, 1)
    dp['g3'], dp['be3'] = p['g3'], p['be3']
    if 'w_map' in p:
        dp['w_map_t'] = jnp.transpose(p['w_map'])                           # (nout, nin) f32
    return dp


# ----------------------------- forward ------------------------------------------

def mbconv_forward(x_nchw, dp, *, nin, nout, stride, expansion_ratio=4, se=True,
                   row_tile_cap=2048):
    N, C, H, W = x_nchw.shape
    assert C == nin
    E = expansion_ratio * nout
    cg = E // nin
    S = _make_divisible(E // 4, 8)
    Ho = (H - 1) // stride + 1
    Wo = (W - 1) // stride + 1
    M = N * H * W
    HWo = Ho * Wo
    par = pltpu.CompilerParams(dimension_semantics=("parallel",))

    x2d = jnp.transpose(x_nchw, (0, 2, 3, 1)).reshape(M, nin).astype(jnp.bfloat16)

    # ---- 1) expansion 1x1 conv (packed block-diagonal) + BN1 stats ----
    r = _expand_pack_factor(E)
    if r > 1 and M % r == 0 and 'w_exp_pk' in dp:
        xin, w_e, b_e = x2d.reshape(M // r, r * nin), dp['w_exp_pk'], dp['b_exp_pk']
    else:
        r = 1
        xin, w_e, b_e = x2d, dp['w_exp'], dp['b_exp']
    M2, Kp = xin.shape
    Ep = r * E
    TM1 = _pick_row_tile(M2, row_tile_cap)
    G1 = M2 // TM1
    y1p, st1 = pl.pallas_call(
        expand_kernel,
        grid=(G1,),
        in_specs=[pl.BlockSpec((TM1, Kp), lambda i: (i, 0)),
                  pl.BlockSpec((Kp, Ep), lambda i: (0, 0)),
                  pl.BlockSpec((1, Ep), lambda i: (0, 0))],
        out_specs=(pl.BlockSpec((TM1, Ep), lambda i: (i, 0)),
                   pl.BlockSpec((1, 2, Ep), lambda i: (i, 0, 0))),
        out_shape=(jax.ShapeDtypeStruct((M2, Ep), jnp.bfloat16),
                   jax.ShapeDtypeStruct((G1, 2, Ep), jnp.float32)),
        compiler_params=par,
    )(xin, w_e, b_e)
    scale1, bias1 = _fold_bn(st1, dp['g1'], dp['be1'], M, E)

    # ---- 2) grouped 3x3 conv (BN1-apply + HSwish fused on input) + BN2 stats ----
    y1_4d = y1p.reshape(N, H, W, E)                 # same HBM bytes as the packed view
    WP = ((W + 9 + 7) // 8) * 8                     # image at cols [8, 8+W), halos 7 / 8+W
    z, st2 = pl.pallas_call(
        functools.partial(dw_kernel, H=H, W=W, Ho=Ho, Wo=Wo, nin=nin, cg=cg,
                          stride=stride, WP=WP),
        grid=(N,),
        in_specs=[pl.BlockSpec((1, H, W, E), lambda n: (n, 0, 0, 0)),
                  pl.BlockSpec((1, E), lambda n: (0, 0)),
                  pl.BlockSpec((1, E), lambda n: (0, 0)),
                  pl.BlockSpec((9 * cg, E), lambda n: (0, 0)),
                  pl.BlockSpec((1, E), lambda n: (0, 0))],
        out_specs=(pl.BlockSpec((1, Ho, Wo, E), lambda n: (n, 0, 0, 0)),
                   pl.BlockSpec((1, 2, E), lambda n: (n, 0, 0))),
        out_shape=(jax.ShapeDtypeStruct((N, Ho, Wo, E), jnp.bfloat16),
                   jax.ShapeDtypeStruct((N, 2, E), jnp.float32)),
        scratch_shapes=[pltpu.VMEM((H + 2, WP, E), jnp.float32)],
        compiler_params=par,
    )(y1_4d, scale1, bias1, dp['w_dw_roll'], dp['b_dw'])
    scale2, bias2 = _fold_bn(st2, dp['g2'], dp['be2'], N * HWo, E)

    # ---- 3+4) fused SE + pointwise 1x1 conv + BN3 stats (one image per step) ----
    if se:
        kern34 = se_pw_kernel
        extra_specs = [pl.BlockSpec((E, S), lambda n: (0, 0)),
                       pl.BlockSpec((1, S), lambda n: (0, 0)),
                       pl.BlockSpec((S, E), lambda n: (0, 0)),
                       pl.BlockSpec((1, E), lambda n: (0, 0))]
        extra_args = [dp['w_se1'], dp['b_se1'], dp['w_se2'], dp['b_se2']]
    else:
        kern34, extra_specs, extra_args = pw_kernel, [], []
    y3t, st3 = pl.pallas_call(
        kern34,
        grid=(N,),
        in_specs=[pl.BlockSpec((1, Ho, Wo, E), lambda n: (n, 0, 0, 0)),
                  pl.BlockSpec((1, E), lambda n: (0, 0)),
                  pl.BlockSpec((1, E), lambda n: (0, 0))]
                 + extra_specs
                 + [pl.BlockSpec((nout, E), lambda n: (0, 0)),
                    pl.BlockSpec((nout, 1), lambda n: (0, 0))],
        out_specs=(pl.BlockSpec((1, nout, HWo), lambda n: (n, 0, 0)),
                   pl.BlockSpec((1, nout, 2), lambda n: (n, 0, 0))),
        out_shape=(jax.ShapeDtypeStruct((N, nout, HWo), jnp.bfloat16),
                   jax.ShapeDtypeStruct((N, nout, 2), jnp.float32)),
        compiler_params=par,
    )(z, scale2, bias2, *extra_args, dp['w_pw_t'], dp['b_pw_col'])
    scale3, bias3 = _fold_bn_cmajor(st3, dp['g3'], dp['be3'], N * HWo)

    # ---- 5) BN3-apply + residual, emitted directly in NCHW ----
    if stride == 1:
        mode = "identity" if nin == nout else "proj"
    else:
        mode = "none"
    in_specs = [pl.BlockSpec((1, nout, HWo), lambda n: (n, 0, 0)),
                pl.BlockSpec((nout, 1), lambda n: (0, 0)),
                pl.BlockSpec((nout, 1), lambda n: (0, 0))]
    args = [y3t, scale3, bias3]
    if mode != "none":
        in_specs.append(pl.BlockSpec((1, nin, H * W), lambda n: (n, 0, 0)))
        args.append(x_nchw.reshape(N, nin, H * W))   # stride==1 => H*W == Ho*Wo
    if mode == "proj":
        in_specs.append(pl.BlockSpec((nout, nin), lambda n: (0, 0)))
        args.append(dp['w_map_t'])
    kern5 = {"none": final_none_kernel, "identity": final_identity_kernel,
             "proj": final_proj_kernel}[mode]
    out = pl.pallas_call(
        kern5,
        grid=(N,),
        in_specs=in_specs,
        out_specs=pl.BlockSpec((1, nout, HWo), lambda n: (n, 0, 0)),
        out_shape=jax.ShapeDtypeStruct((N, nout, HWo), jnp.float32),
        compiler_params=par,
    )(*args)
    return out.reshape(N, nout, Ho, Wo)              # already NCHW, reshape is free


# ----------------------------- pure-JAX reference --------------------------------

def mbconv_reference(x, p, *, nin, nout, stride, expansion_ratio=4, se=True):
    """f32 reference mirroring the PyTorch module in training mode (batch-stat BN)."""
    def bn(y, g, b):
        mean = jnp.mean(y, axis=(0, 2, 3), keepdims=True)
        var = jnp.mean((y - mean) ** 2, axis=(0, 2, 3), keepdims=True)
        return ((y - mean) * jax.lax.rsqrt(var + _EPS) * g.reshape(1, -1, 1, 1)
                + b.reshape(1, -1, 1, 1))

    hsw = lambda v: v * jnp.clip(v + 3.0, 0.0, 6.0) / 6.0
    hsg = lambda v: jnp.clip(v + 3.0, 0.0, 6.0) / 6.0

    y1 = jnp.einsum('nchw,ce->nehw', x, p['w_exp']) + p['b_exp'].reshape(1, -1, 1, 1)
    a1 = hsw(bn(y1, p['g1'], p['be1']))
    z = jax.lax.conv_general_dilated(
        a1, p['w_dw'], window_strides=(stride, stride), padding=((1, 1), (1, 1)),
        feature_group_count=nin, dimension_numbers=('NCHW', 'OIHW', 'NCHW'))
    z = z + p['b_dw'].reshape(1, -1, 1, 1)
    a2 = hsw(bn(z, p['g2'], p['be2']))
    if se:
        pooled = jnp.mean(a2, axis=(2, 3))
        h = hsw(pooled @ p['w_se1'] + p['b_se1'])
        s = hsg(h @ p['w_se2'] + p['b_se2'])
        a2 = a2 * s[:, :, None, None]
    y3 = jnp.einsum('nehw,eo->nohw', a2, p['w_pw']) + p['b_pw'].reshape(1, -1, 1, 1)
    out = bn(y3, p['g3'], p['be3'])
    if stride == 1:
        ident = x if nin == nout else jnp.einsum('nchw,co->nohw', x, p['w_map'])
        out = out + ident
    return out


if __name__ == "__main__":
    key = jax.random.PRNGKey(0)
    kx, kp = jax.random.split(key)

    # MBConv(nin=16, nout=8, stride=1, expansion_ratio=4, se=True)
    # -> exercises SE and the 1x1 projection residual (nin != nout).
    N, nin, H, W = 2, 16, 16, 16
    nout, stride, er, se = 8, 1, 4, True

    x = jax.random.normal(kx, (N, nin, H, W), jnp.float32)
    raw = init_mbconv_params(kp, nin, nout, expansion_ratio=er, se=se)
    params = prepare_mbconv_params(raw, nin, nout, expansion_ratio=er, se=se)

    fwd = jax.jit(functools.partial(mbconv_forward, nin=nin, nout=nout, stride=stride,
                                    expansion_ratio=er, se=se,
                                    row_tile_cap=64))   # small cap -> multi-tile BN1 fold at toy size
    out = jax.block_until_ready(fwd(x, params))

    assert out.shape == (N, nout, H, W), out.shape
    assert bool(jnp.all(jnp.isfinite(out)))

    ref = mbconv_reference(x, raw, nin=nin, nout=nout, stride=stride,
                           expansion_ratio=er, se=se)
    diff = jnp.abs(out - ref)
    tol = 0.2 + 0.1 * jnp.abs(ref)   # loose: kernel uses bf16 matmuls / bf16 activations
    assert bool(jnp.all(diff <= tol)), float(jnp.max(diff))
    print("KERNEL_OK")
</pallas_src>

<mosaic_0001>
module attributes {stable_mosaic.version = 11 : i64} {
  func.func @expand_kernel(%arg0: i32, %arg1: memref<64x64xbf16, #tpu.memory_space<vmem>>, %arg2: memref<64x128xbf16, #tpu.memory_space<vmem>>, %arg3: memref<1x128xf32, #tpu.memory_space<vmem>>, %arg4: memref<64x128xbf16, #tpu.memory_space<vmem>>, %arg5: memref<1x2x128xf32, #tpu.memory_space<vmem>>) attributes {dimension_semantics = [#tpu.dimension_semantics<parallel>], iteration_bounds = array<i64: 2>, scalar_prefetch = 0 : i64, scratch_operands = 0 : i64, tpu.core_type = #tpu.core_type<tc>, window_params = [{transform_indices = @transform_0, window_bounds = array<i64: 64, 64>}, {pipeline_mode = #tpu.pipeline_mode<synchronous>, transform_indices = @transform_1, window_bounds = array<i64: 64, 128>}, {pipeline_mode = #tpu.pipeline_mode<synchronous>, transform_indices = @transform_2, window_bounds = array<i64: 1, 128>}, {transform_indices = @transform_3, window_bounds = array<i64: 64, 128>}, {transform_indices = @transform_4, window_bounds = array<i64: 1, 2, 128>}]} {
    %c0 = arith.constant 0 : index
    %c0_0 = arith.constant 0 : index
    %0 = vector.load %arg1[%c0, %c0_0] : memref<64x64xbf16, #tpu.memory_space<vmem>>, vector<64x64xbf16>
    %c0_1 = arith.constant 0 : index
    %c0_2 = arith.constant 0 : index
    %1 = vector.load %arg2[%c0_1, %c0_2] : memref<64x128xbf16, #tpu.memory_space<vmem>>, vector<64x128xbf16>
    %cst = arith.constant dense<0.000000e+00> : vector<64x128xf32>
    %2 = tpu.matmul %0, %1, %cst {dimension_numbers = #tpu.dot_dimension_numbers<[1], [0], [0], [1], [0, 0, 1, 1], [], []>} : vector<64x64xbf16>, vector<64x128xbf16>, vector<64x128xf32> -> vector<64x128xf32>
    %c0_3 = arith.constant 0 : index
    %c0_4 = arith.constant 0 : index
    %3 = vector.load %arg3[%c0_3, %c0_4] : memref<1x128xf32, #tpu.memory_space<vmem>>, vector<1x128xf32>
    %4 = vector.broadcast %3 : vector<1x128xf32> to vector<64x128xf32>
    %5 = arith.addf %2, %4 : vector<64x128xf32>
    %6 = arith.truncf %5 : vector<64x128xf32> to vector<64x128xbf16>
    %c0_5 = arith.constant 0 : index
    %c0_6 = arith.constant 0 : index
    %7 = vector.load %arg4[%c0_5, %c0_6] : memref<64x128xbf16, #tpu.memory_space<vmem>>, vector<64x128xbf16>
    tpu.vector_store %arg4[%c0_5, %c0_6], %6 {strides = array<i32>} : memref<64x128xbf16, #tpu.memory_space<vmem>>, vector<64x128xbf16>,
    %cst_7 = arith.constant dense<0.000000e+00> : vector<128xf32>
    %8 = vector.multi_reduction <add>, %5, %cst_7 [0] : vector<64x128xf32> to vector<128xf32>
    %9 = vector.shape_cast %8 : vector<128xf32> to vector<1x128xf32>
    %10 = arith.mulf %5, %5 : vector<64x128xf32>
    %cst_8 = arith.constant dense<0.000000e+00> : vector<128xf32>
    %11 = vector.multi_reduction <add>, %10, %cst_8 [0] : vector<64x128xf32> to vector<128xf32>
    %12 = vector.shape_cast %11 : vector<128xf32> to vector<1x128xf32>
    %13 = tpu.concatenate %9, %12 in 0 : vector<1x128xf32>, vector<1x128xf32> -> vector<2x128xf32>
    %c0_9 = arith.constant 0 : index
    %c0_10 = arith.constant 0 : index
    %c0_11 = arith.constant 0 : index
    %14 = vector.load %arg5[%c0_9, %c0_10, %c0_11] : memref<1x2x128xf32, #tpu.memory_space<vmem>>, vector<1x2x128xf32>
    %15 = vector.shape_cast %14 : vector<1x2x128xf32> to vector<2x128xf32>
    %16 = vector.shape_cast %13 : vector<2x128xf32> to vector<1x2x128xf32>
    tpu.vector_store %arg5[%c0_9, %c0_10, %c0_11], %16 {strides = array<i32>} : memref<1x2x128xf32, #tpu.memory_space<vmem>>, vector<1x2x128xf32>,
    return
  }
  func.func @transform_0(%arg0: i32) -> (i32, i32) {
    %c0_i32 = arith.constant 0 : i32
    %c0_i32_0 = arith.constant 0 : i32
    return %arg0, %c0_i32 : i32, i32
  }
  func.func @transform_1(%arg0: i32) -> (i32, i32) {
    %c0_i32 = arith.constant 0 : i32
    %c0_i32_0 = arith.constant 0 : i32
    %c0_i32_1 = arith.constant 0 : i32
    return %c0_i32, %c0_i32_0 : i32, i32
  }
  func.func @transform_2(%arg0: i32) -> (i32, i32) {
    %c0_i32 = arith.constant 0 : i32
    %c0_i32_0 = arith.constant 0 : i32
    %c0_i32_1 = arith.constant 0 : i32
    return %c0_i32, %c0_i32_0 : i32, i32
  }
  func.func @transform_3(%arg0: i32) -> (i32, i32) {
    %c0_i32 = arith.constant 0 : i32
    %c0_i32_0 = arith.constant 0 : i32
    return %arg0, %c0_i32 : i32, i32
  }
  func.func @transform_4(%arg0: i32) -> (i32, i32, i32) {
    %c0_i32 = arith.constant 0 : i32
    %c0_i32_0 = arith.constant 0 : i32
    %c0_i32_1 = arith.constant 0 : i32
    return %arg0, %c0_i32, %c0_i32_0 : i32, i32, i32
  }
}

module attributes {stable_mosaic.version = 11 : i64} {
  func.func @dw_kernel(%arg0: i32, %arg1: memref<1x16x16x32xbf16, #tpu.memory_space<vmem>>, %arg2: memref<1x32xf32, #tpu.memory_space<vmem>>, %arg3: memref<1x32xf32, #tpu.memory_space<vmem>>, %arg4: memref<18x32xf32, #tpu.memory_space<vmem>>, %arg5: memref<1x32xf32, #tpu.memory_space<vmem>>, %arg6: memref<1x16x16x32xbf16, #tpu.memory_space<vmem>>, %arg7: memref<1x2x32xf32, #tpu.memory_space<vmem>>, %arg8: memref<18x32x32xf32, #tpu.memory_space<vmem>>) attributes {dimension_semantics = [#tpu.dimension_semantics<parallel>], iteration_bounds = array<i64: 2>, scalar_prefetch = 0 : i64, scratch_operands = 1 : i64, tpu.core_type = #tpu.core_type<tc>, window_params = [{transform_indices = @transform_0, window_bounds = array<i64: 1, 16, 16, 32>}, {pipeline_mode = #tpu.pipeline_mode<synchronous>, transform_indices = @transform_1, window_bounds = array<i64: 1, 32>}, {pipeline_mode = #tpu.pipeline_mode<synchronous>, transform_indices = @transform_2, window_bounds = array<i64: 1, 32>}, {pipeline_mode = #tpu.pipeline_mode<synchronous>, transform_indices = @transform_3, window_bounds = array<i64: 18, 32>}, {pipeline_mode = #tpu.pipeline_mode<synchronous>, transform_indices = @transform_4, window_bounds = array<i64: 1, 32>}, {transform_indices = @transform_5, window_bounds = array<i64: 1, 16, 16, 32>}, {transform_indices = @transform_6, window_bounds = array<i64: 1, 2, 32>}]} {
    %c0 = arith.constant 0 : index
    %c0_0 = arith.constant 0 : index
    %c0_1 = arith.constant 0 : index
    %c0_2 = arith.constant 0 : index
    %0 = vector.load %arg1[%c0, %c0_0, %c0_1, %c0_2] : memref<1x16x16x32xbf16, #tpu.memory_space<vmem>>, vector<1x16x16x32xbf16>
    %1 = vector.shape_cast %0 : vector<1x16x16x32xbf16> to vector<16x16x32xbf16>
    %2 = arith.extf %1 : vector<16x16x32xbf16> to vector<16x16x32xf32>
    %c0_3 = arith.constant 0 : index
    %c0_4 = arith.constant 0 : index
    %3 = vector.load %arg2[%c0_3, %c0_4] : memref<1x32xf32, #tpu.memory_space<vmem>>, vector<1x32xf32>
    %4 = vector.shape_cast %3 : vector<1x32xf32> to vector<1x1x32xf32>
    %5 = vector.broadcast %4 : vector<1x1x32xf32> to vector<16x16x32xf32>
    %6 = arith.mulf %2, %5 : vector<16x16x32xf32>
    %c0_5 = arith.constant 0 : index
    %c0_6 = arith.constant 0 : index
    %7 = vector.load %arg3[%c0_5, %c0_6] : memref<1x32xf32, #tpu.memory_space<vmem>>, vector<1x32xf32>
    %8 = vector.shape_cast %7 : vector<1x32xf32> to vector<1x1x32xf32>
    %9 = vector.broadcast %8 : vector<1x1x32xf32> to vector<16x16x32xf32>
    %10 = arith.addf %6, %9 : vector<16x16x32xf32>
    %cst = arith.constant 3.000000e+00 : f32
    %11 = vector.broadcast %cst : f32 to vector<16x16x32xf32>
    %12 = arith.addf %10, %11 : vector<16x16x32xf32>
    %cst_7 = arith.constant 0.000000e+00 : f32
    %cst_8 = arith.constant 6.000000e+00 : f32
    %13 = vector.broadcast %cst_7 : f32 to vector<16x16x32xf32>
    %14 = arith.maximumf %13, %12 : vector<16x16x32xf32>
    %15 = vector.broadcast %cst_8 : f32 to vector<16x16x32xf32>
    %16 = arith.minimumf %15, %14 : vector<16x16x32xf32>
    %cst_9 = arith.constant 6.000000e+00 : f32
    %17 = vector.broadcast %cst_9 : f32 to vector<16x16x32xf32>
    %18 = arith.divf %16, %17 : vector<16x16x32xf32>
    %19 = arith.mulf %10, %18 : vector<16x16x32xf32>
    %cst_10 = arith.constant 0.000000e+00 : f32
    %20 = vector.broadcast %cst_10 : f32 to vector<1x32x32xf32>
    %c0_11 = arith.constant 0 : index
    %c0_12 = arith.constant 0 : index
    %c0_13 = arith.constant 0 : index
    %21 = vector.load %arg8[%c0_11, %c0_12, %c0_13] : memref<18x32x32xf32, #tpu.memory_space<vmem>>, vector<1x32x32xf32>
    tpu.vector_store %arg8[%c0_11, %c0_12, %c0_13], %20 {strides = array<i32>} : memref<18x32x32xf32, #tpu.memory_space<vmem>>, vector<1x32x32xf32>,
    %c17 = arith.constant 17 : index
    %c0_14 = arith.constant 0 : index
    %c0_15 = arith.constant 0 : index
    %22 = vector.load %arg8[%c17, %c0_14, %c0_15] : memref<18x32x32xf32, #tpu.memory_space<vmem>>, vector<1x32x32xf32>
    tpu.vector_store %arg8[%c17, %c0_14, %c0_15], %20 {strides = array<i32>} : memref<18x32x32xf32, #tpu.memory_space<vmem>>, vector<1x32x32xf32>,
    %cst_16 = arith.constant 0.000000e+00 : f32
    %23 = vector.broadcast %cst_16 : f32 to vector<16x1x32xf32>
    %c1 = arith.constant 1 : index
    %c7 = arith.constant 7 : index
    %c0_17 = arith.constant 0 : index
    %24 = vector.load %arg8[%c1, %c7, %c0_17] : memref<18x32x32xf32, #tpu.memory_space<vmem>>, vector<16x1x32xf32>
    tpu.vector_store %arg8[%c1, %c7, %c0_17], %23 {strides = array<i32>} : memref<18x32x32xf32, #tpu.memory_space<vmem>>, vector<16x1x32xf32>,
    %c1_18 = arith.constant 1 : index
    %c24 = arith.constant 24 : index
    %c0_19 = arith.constant 0 : index
    %25 = vector.load %arg8[%c1_18, %c24, %c0_19] : memref<18x32x32xf32, #tpu.memory_space<vmem>>, vector<16x1x32xf32>
    tpu.vector_store %arg8[%c1_18, %c24, %c0_19], %23 {strides = array<i32>} : memref<18x32x32xf32, #tpu.memory_space<vmem>>, vector<16x1x32xf32>,
    %c1_20 = arith.constant 1 : index
    %c8 = arith.constant 8 : index
    %c0_21 = arith.constant 0 : index
    %26 = vector.load %arg8[%c1_20, %c8, %c0_21] : memref<18x32x32xf32, #tpu.memory_space<vmem>>, vector<16x16x32xf32>
    tpu.vector_store %arg8[%c1_20, %c8, %c0_21], %19 {strides = array<i32>} : memref<18x32x32xf32, #tpu.memory_space<vmem>>, vector<16x16x32xf32>,
    %cst_22 = arith.constant 0.000000e+00 : f32
    %27 = vector.broadcast %cst_22 : f32 to vector<16x16x32xf32>
    %c0_23 = arith.constant 0 : index
    %c7_24 = arith.constant 7 : index
    %c0_25 = arith.constant 0 : index
    %28 = vector.load %arg8[%c0_23, %c7_24, %c0_25] : memref<18x32x32xf32, #tpu.memory_space<vmem>>, vector<16x16x32xf32>
    %c0_26 = arith.constant 0 : index
    %c0_27 = arith.constant 0 : index
    %29 = vector.load %arg4[%c0_26, %c0_27] : memref<18x32xf32, #tpu.memory_space<vmem>>, vector<1x32xf32>
    %30 = vector.shape_cast %29 : vector<1x32xf32> to vector<1x1x32xf32>
    %31 = vector.broadcast %30 : vector<1x1x32xf32> to vector<16x16x32xf32>
    %32 = arith.mulf %28, %31 : vector<16x16x32xf32>
    %33 = arith.addf %27, %32 : vector<16x16x32xf32>
    %34 = vector.extract_strided_slice %28 {offsets = [0, 0, 16], sizes = [16, 16, 16], strides = [1, 1, 1]} : vector<16x16x32xf32> to vector<16x16x16xf32>
    %35 = vector.extract_strided_slice %28 {offsets = [0, 0, 0], sizes = [16, 16, 16], strides = [1, 1, 1]} : vector<16x16x32xf32> to vector<16x16x16xf32>
    %36 = tpu.concatenate %34, %35 in 2 : vector<16x16x16xf32>, vector<16x16x16xf32> -> vector<16x16x32xf32>
    %c1_28 = arith.constant 1 : index
    %c0_29 = arith.constant 0 : index
    %37 = vector.load %arg4[%c1_28, %c0_29] : memref<18x32xf32, #tpu.memory_space<vmem>>, vector<1x32xf32>
    %38 = vector.shape_cast %37 : vector<1x32xf32> to vector<1x1x32xf32>
    %39 = vector.broadcast %38 : vector<1x1x32xf32> to vector<16x16x32xf32>
    %40 = arith.mulf %36, %39 : vector<16x16x32xf32>
    %41 = arith.addf %33, %40 : vector<16x16x32xf32>
    %c0_30 = arith.constant 0 : index
    %c8_31 = arith.constant 8 : index
    %c0_32 = arith.constant 0 : index
    %42 = vector.load %arg8[%c0_30, %c8_31, %c0_32] : memref<18x32x32xf32, #tpu.memory_space<vmem>>, vector<16x16x32xf32>
    %c2 = arith.constant 2 : index
    %c0_33 = arith.constant 0 : index
    %43 = vector.load %arg4[%c2, %c0_33] : memref<18x32xf32, #tpu.memory_space<vmem>>, vector<1x32xf32>
    %44 = vector.shape_cast %43 : vector<1x32xf32> to vector<1x1x32xf32>
    %45 = vector.broadcast %44 : vector<1x1x32xf32> to vector<16x16x32xf32>
    %46 = arith.mulf %42, %45 : vector<16x16x32xf32>
    %47 = arith.addf %41, %46 : vector<16x16x32xf32>
    %48 = vector.extract_strided_slice %42 {offsets = [0, 0, 16], sizes = [16, 16, 16], strides = [1, 1, 1]} : vector<16x16x32xf32> to vector<16x16x16xf32>
    %49 = vector.extract_strided_slice %42 {offsets = [0, 0, 0], sizes = [16, 16, 16], strides = [1, 1, 1]} : vector<16x16x32xf32> to vector<16x16x16xf32>
    %50 = tpu.concatenate %48, %49 in 2 : vector<16x16x16xf32>, vector<16x16x16xf32> -> vector<16x16x32xf32>
    %c3 = arith.constant 3 : index
    %c0_34 = arith.constant 0 : index
    %51 = vector.load %arg4[%c3, %c0_34] : memref<18x32xf32, #tpu.memory_space<vmem>>, vector<1x32xf32>
    %52 = vector.shape_cast %51 : vector<1x32xf32> to vector<1x1x32xf32>
    %53 = vector.broadcast %52 : vector<1x1x32xf32> to vector<16x16x32xf32>
    %54 = arith.mulf %50, %53 : vector<16x16x32xf32>
    %55 = arith.addf %47, %54 : vector<16x16x32xf32>
    %c0_35 = arith.constant 0 : index
    %c9 = arith.constant 9 : index
    %c0_36 = arith.constant 0 : index
    %56 = vector.load %arg8[%c0_35, %c9, %c0_36] : memref<18x32x32xf32, #tpu.memory_space<vmem>>, vector<16x16x32xf32>
    %c4 = arith.constant 4 : index
    %c0_37 = arith.constant 0 : index
    %57 = vector.load %arg4[%c4, %c0_37] : memref<18x32xf32, #tpu.memory_space<vmem>>, vector<1x32xf32>
    %58 = vector.shape_cast %57 : vector<1x32xf32> to vector<1x1x32xf32>
    %59 = vector.broadcast %58 : vector<1x1x32xf32> to vector<16x16x32xf32>
    %60 = arith.mulf %56, %59 : vector<16x16x32xf32>
    %61 = arith.addf %55, %60 : vector<16x16x32xf32>
    %62 = vector.extract_strided_slice %56 {offsets = [0, 0, 16], sizes = [16, 16, 16], strides = [1, 1, 1]} : vector<16x16x32xf32> to vector<16x16x16xf32>
    %63 = vector.extract_strided_slice %56 {offsets = [0, 0, 0], sizes = [16, 16, 16], strides = [1, 1, 1]} : vector<16x16x32xf32> to vector<16x16x16xf32>
    %64 = tpu.concatenate %62, %63 in 2 : vector<16x16x16xf32>, vector<16x16x16xf32> -> vector<16x16x32xf32>
    %c5 = arith.constant 5 : index
    %c0_38 = arith.constant 0 : index
    %65 = vector.load %arg4[%c5, %c0_38] : memref<18x32xf32, #tpu.memory_space<vmem>>, vector<1x32xf32>
    %66 = vector.shape_cast %65 : vector<1x32xf32> to vector<1x1x32xf32>
    %67 = vector.broadcast %66 : vector<1x1x32xf32> to vector<16x16x32xf32>
    %68 = arith.mulf %64, %67 : vector<16x16x32xf32>
    %69 = arith.addf %61, %68 : vector<16x16x32xf32>
    %c1_39 = arith.constant 1 : index
    %c7_40 = arith.constant 7 : index
    %c0_41 = arith.constant 0 : index
    %70 = vector.load %arg8[%c1_39, %c7_40, %c0_41] : memref<18x32x32xf32, #tpu.memory_space<vmem>>, vector<16x16x32xf32>
    %c6 = arith.constant 6 : index
    %c0_42 = arith.constant 0 : index
    %71 = vector.load %arg4[%c6, %c0_42] : memref<18x32xf32, #tpu.memory_space<vmem>>, vector<1x32xf32>
    %72 = vector.shape_cast %71 : vector<1x32xf32> to vector<1x1x32xf32>
    %73 = vector.broadcast %72 : vector<1x1x32xf32> to vector<16x16x32xf32>
    %74 = arith.mulf %70, %73 : vector<16x16x32xf32>
    %75 = arith.addf %69, %74 : vector<16x16x32xf32>
    %76 = vector.extract_strided_slice %70 {offsets = [0, 0, 16], sizes = [16, 16, 16], strides = [1, 1, 1]} : vector<16x16x32xf32> to vector<16x16x16xf32>
    %77 = vector.extract_strided_slice %70 {offsets = [0, 0, 0], sizes = [16, 16, 16], strides = [1, 1, 1]} : vector<16x16x32xf32> to vector<16x16x16xf32>
    %78 = tpu.concatenate %76, %77 in 2 : vector<16x16x16xf32>, vector<16x16x16xf32> -> vector<16x16x32xf32>
    %c7_43 = arith.constant 7 : index
    %c0_44 = arith.constant 0 : index
    %79 = vector.load %arg4[%c7_43, %c0_44] : memref<18x32xf32, #tpu.memory_space<vmem>>, vector<1x32xf32>
    %80 = vector.shape_cast %79 : vector<1x32xf32> to vector<1x1x32xf32>
    %81 = vector.broadcast %80 : vector<1x1x32xf32> to vector<16x16x32xf32>
    %82 = arith.mulf %78, %81 : vector<16x16x32xf32>
    %83 = arith.addf %75, %82 : vector<16x16x32xf32>
    %c1_45 = arith.constant 1 : index
    %c8_46 = arith.constant 8 : index
    %c0_47 = arith.constant 0 : index
    %84 = vector.load %arg8[%c1_45, %c8_46, %c0_47] : memref<18x32x32xf32, #tpu.memory_space<vmem>>, vector<16x16x32xf32>
    %c8_48 = arith.constant 8 : index
    %c0_49 = arith.constant 0 : index
    %85 = vector.load %arg4[%c8_48, %c0_49] : memref<18x32xf32, #tpu.memory_space<vmem>>, vector<1x32xf32>
    %86 = vector.shape_cast %85 : vector<1x32xf32> to vector<1x1x32xf32>
    %87 = vector.broadcast %86 : vector<1x1x32xf32> to vector<16x16x32xf32>
    %88 = arith.mulf %84, %87 : vector<16x16x32xf32>
    %89 = arith.addf %83, %88 : vector<16x16x32xf32>
    %90 = vector.extract_strided_slice %84 {offsets = [0, 0, 16], sizes = [16, 16, 16], strides = [1, 1, 1]} : vector<16x16x32xf32> to vector<16x16x16xf32>
    %91 = vector.extract_strided_slice %84 {offsets = [0, 0, 0], sizes = [16, 16, 16], strides = [1, 1, 1]} : vector<16x16x32xf32> to vector<16x16x16xf32>
    %92 = tpu.concatenate %90, %91 in 2 : vector<16x16x16xf32>, vector<16x16x16xf32> -> vector<16x16x32xf32>
    %c9_50 = arith.constant 9 : index
    %c0_51 = arith.constant 0 : index
    %93 = vector.load %arg4[%c9_50, %c0_51] : memref<18x32xf32, #tpu.memory_space<vmem>>, vector<1x32xf32>
    %94 = vector.shape_cast %93 : vector<1x32xf32> to vector<1x1x32xf32>
    %95 = vector.broadcast %94 : vector<1x1x32xf32> to vector<16x16x32xf32>
    %96 = arith.mulf %92, %95 : vector<16x16x32xf32>
    %97 = arith.addf %89, %96 : vector<16x16x32xf32>
    %c1_52 = arith.constant 1 : index
    %c9_53 = arith.constant 9 : index
    %c0_54 = arith.constant 0 : index
    %98 = vector.load %arg8[%c1_52, %c9_53, %c0_54] : memref<18x32x32xf32, #tpu.memory_space<vmem>>, vector<16x16x32xf32>
    %c10 = arith.constant 10 : index
    %c0_55 = arith.constant 0 : index
    %99 = vector.load %arg4[%c10, %c0_55] : memref<18x32xf32, #tpu.memory_space<vmem>>, vector<1x32xf32>
    %100 = vector.shape_cast %99 : vector<1x32xf32> to vector<1x1x32xf32>
    %101 = vector.broadcast %100 : vector<1x1x32xf32> to vector<16x16x32xf32>
    %102 = arith.mulf %98, %101 : vector<16x16x32xf32>
    %103 = arith.addf %97, %102 : vector<16x16x32xf32>
    %104 = vector.extract_strided_slice %98 {offsets = [0, 0, 16], sizes = [16, 16, 16], strides = [1, 1, 1]} : vector<16x16x32xf32> to vector<16x16x16xf32>
    %105 = vector.extract_strided_slice %98 {offsets = [0, 0, 0], sizes = [16, 16, 16], strides = [1, 1, 1]} : vector<16x16x32xf32> to vector<16x16x16xf32>
    %106 = tpu.concatenate %104, %105 in 2 : vector<16x16x16xf32>, vector<16x16x16xf32> -> vector<16x16x32xf32>
    %c11 = arith.constant 11 : index
    %c0_56 = arith.constant 0 : index
    %107 = vector.load %arg4[%c11, %c0_56] : memref<18x32xf32, #tpu.memory_space<vmem>>, vector<1x32xf32>
    %108 = vector.shape_cast %107 : vector<1x32xf32> to vector<1x1x32xf32>
    %109 = vector.broadcast %108 : vector<1x1x32xf32> to vector<16x16x32xf32>
    %110 = arith.mulf %106, %109 : vector<16x16x32xf32>
    %111 = arith.addf %103, %110 : vector<16x16x32xf32>
    %c2_57 = arith.constant 2 : index
    %c7_58 = arith.constant 7 : index
    %c0_59 = arith.constant 0 : index
    %112 = vector.load %arg8[%c2_57, %c7_58, %c0_59] : memref<18x32x32xf32, #tpu.memory_space<vmem>>, vector<16x16x32xf32>
    %c12 = arith.constant 12 : index
    %c0_60 = arith.constant 0 : index
    %113 = vector.load %arg4[%c12, %c0_60] : memref<18x32xf32, #tpu.memory_space<vmem>>, vector<1x32xf32>
    %114 = vector.shape_cast %113 : vector<1x32xf32> to vector<1x1x32xf32>
    %115 = vector.broadcast %114 : vector<1x1x32xf32> to vector<16x16x32xf32>
    %116 = arith.mulf %112, %115 : vector<16x16x32xf32>
    %117 = arith.addf %111, %116 : vector<16x16x32xf32>
    %118 = vector.extract_strided_slice %112 {offsets = [0, 0, 16], sizes = [16, 16, 16], strides = [1, 1, 1]} : vector<16x16x32xf32> to vector<16x16x16xf32>
    %119 = vector.extract_strided_slice %112 {offsets = [0, 0, 0], sizes = [16, 16, 16], strides = [1, 1, 1]} : vector<16x16x32xf32> to vector<16x16x16xf32>
    %120 = tpu.concatenate %118, %119 in 2 : vector<16x16x16xf32>, vector<16x16x16xf32> -> vector<16x16x32xf32>
    %c13 = arith.constant 13 : index
    %c0_61 = arith.constant 0 : index
    %121 = vector.load %arg4[%c13, %c0_61] : memref<18x32xf32, #tpu.memory_space<vmem>>, vector<1x32xf32>
    %122 = vector.shape_cast %121 : vector<1x32xf32> to vector<1x1x32xf32>
    %123 = vector.broadcast %122 : vector<1x1x32xf32> to vector<16x16x32xf32>
    %124 = arith.mulf %120, %123 : vector<16x16x32xf32>
    %125 = arith.addf %117, %124 : vector<16x16x32xf32>
    %c2_62 = arith.constant 2 : index
    %c8_63 = arith.constant 8 : index
    %c0_64 = arith.constant 0 : index
    %126 = vector.load %arg8[%c2_62, %c8_63, %c0_64] : memref<18x32x32xf32, #tpu.memory_space<vmem>>, vector<16x16x32xf32>
    %c14 = arith.constant 14 : index
    %c0_65 = arith.constant 0 : index
    %127 = vector.load %arg4[%c14, %c0_65] : memref<18x32xf32, #tpu.memory_space<vmem>>, vector<1x32xf32>
    %128 = vector.shape_cast %127 : vector<1x32xf32> to vector<1x1x32xf32>
    %129 = vector.broadcast %128 : vector<1x1x32xf32> to vector<16x16x32xf32>
    %130 = arith.mulf %126, %129 : vector<16x16x32xf32>
    %131 = arith.addf %125, %130 : vector<16x16x32xf32>
    %132 = vector.extract_strided_slice %126 {offsets = [0, 0, 16], sizes = [16, 16, 16], strides = [1, 1, 1]} : vector<16x16x32xf32> to vector<16x16x16xf32>
    %133 = vector.extract_strided_slice %126 {offsets = [0, 0, 0], sizes = [16, 16, 16], strides = [1, 1, 1]} : vector<16x16x32xf32> to vector<16x16x16xf32>
    %134 = tpu.concatenate %132, %133 in 2 : vector<16x16x16xf32>, vector<16x16x16xf32> -> vector<16x16x32xf32>
    %c15 = arith.constant 15 : index
    %c0_66 = arith.constant 0 : index
    %135 = vector.load %arg4[%c15, %c0_66] : memref<18x32xf32, #tpu.memory_space<vmem>>, vector<1x32xf32>
    %136 = vector.shape_cast %135 : vector<1x32xf32> to vector<1x1x32xf32>
    %137 = vector.broadcast %136 : vector<1x1x32xf32> to vector<16x16x32xf32>
    %138 = arith.mulf %134, %137 : vector<16x16x32xf32>
    %139 = arith.addf %131, %138 : vector<16x16x32xf32>
    %c2_67 = arith.constant 2 : index
    %c9_68 = arith.constant 9 : index
    %c0_69 = arith.constant 0 : index
    %140 = vector.load %arg8[%c2_67, %c9_68, %c0_69] : memref<18x32x32xf32, #tpu.memory_space<vmem>>, vector<16x16x32xf32>
    %c16 = arith.constant 16 : index
    %c0_70 = arith.constant 0 : index
    %141 = vector.load %arg4[%c16, %c0_70] : memref<18x32xf32, #tpu.memory_space<vmem>>, vector<1x32xf32>
    %142 = vector.shape_cast %141 : vector<1x32xf32> to vector<1x1x32xf32>
    %143 = vector.broadcast %142 : vector<1x1x32xf32> to vector<16x16x32xf32>
    %144 = arith.mulf %140, %143 : vector<16x16x32xf32>
    %145 = arith.addf %139, %144 : vector<16x16x32xf32>
    %146 = vector.extract_strided_slice %140 {offsets = [0, 0, 16], sizes = [16, 16, 16], strides = [1, 1, 1]} : vector<16x16x32xf32> to vector<16x16x16xf32>
    %147 = vector.extract_strided_slice %140 {offsets = [0, 0, 0], sizes = [16, 16, 16], strides = [1, 1, 1]} : vector<16x16x32xf32> to vector<16x16x16xf32>
    %148 = tpu.concatenate %146, %147 in 2 : vector<16x16x16xf32>, vector<16x16x16xf32> -> vector<16x16x32xf32>
    %c17_71 = arith.constant 17 : index
    %c0_72 = arith.constant 0 : index
    %149 = vector.load %arg4[%c17_71, %c0_72] : memref<18x32xf32, #tpu.memory_space<vmem>>, vector<1x32xf32>
    %150 = vector.shape_cast %149 : vector<1x32xf32> to vector<1x1x32xf32>
    %151 = vector.broadcast %150 : vector<1x1x32xf32> to vector<16x16x32xf32>
    %152 = arith.mulf %148, %151 : vector<16x16x32xf32>
    %153 = arith.addf %145, %152 : vector<16x16x32xf32>
    %c0_73 = arith.constant 0 : index
    %c0_74 = arith.constant 0 : index
    %154 = vector.load %arg5[%c0_73, %c0_74] : memref<1x32xf32, #tpu.memory_space<vmem>>, vector<1x32xf32>
    %155 = vector.shape_cast %154 : vector<1x32xf32> to vector<1x1x32xf32>
    %156 = vector.broadcast %155 : vector<1x1x32xf32> to vector<16x16x32xf32>
    %157 = arith.addf %153, %156 : vector<16x16x32xf32>
    %158 = arith.truncf %157 : vector<16x16x32xf32> to vector<16x16x32xbf16>
    %c0_75 = arith.constant 0 : index
    %c0_76 = arith.constant 0 : index
    %c0_77 = arith.constant 0 : index
    %c0_78 = arith.constant 0 : index
    %159 = vector.load %arg6[%c0_75, %c0_76, %c0_77, %c0_78] : memref<1x16x16x32xbf16, #tpu.memory_space<vmem>>, vector<1x16x16x32xbf16>
    %160 = vector.shape_cast %159 : vector<1x16x16x32xbf16> to vector<16x16x32xbf16>
    %161 = vector.shape_cast %158 : vector<16x16x32xbf16> to vector<1x16x16x32xbf16>
    tpu.vector_store %arg6[%c0_75, %c0_76, %c0_77, %c0_78], %161 {strides = array<i32>} : memref<1x16x16x32xbf16, #tpu.memory_space<vmem>>, vector<1x16x16x32xbf16>,
    %cst_79 = arith.constant dense<0.000000e+00> : vector<16x32xf32>
    %162 = vector.multi_reduction <add>, %157, %cst_79 [0] : vector<16x16x32xf32> to vector<16x32xf32>
    %cst_80 = arith.constant dense<0.000000e+00> : vector<32xf32>
    %163 = vector.multi_reduction <add>, %162, %cst_80 [0] : vector<16x32xf32> to vector<32xf32>
    %164 = vector.shape_cast %163 : vector<32xf32> to vector<1x32xf32>
    %165 = arith.mulf %157, %157 : vector<16x16x32xf32>
    %cst_81 = arith.constant dense<0.000000e+00> : vector<16x32xf32>
    %166 = vector.multi_reduction <add>, %165, %cst_81 [0] : vector<16x16x32xf32> to vector<16x32xf32>
    %cst_82 = arith.constant dense<0.000000e+00> : vector<32xf32>
    %167 = vector.multi_reduction <add>, %166, %cst_82 [0] : vector<16x32xf32> to vector<32xf32>
    %168 = vector.shape_cast %167 : vector<32xf32> to vector<1x32xf32>
    %169 = tpu.concatenate %164, %168 in 0 : vector<1x32xf32>, vector<1x32xf32> -> vector<2x32xf32>
    %c0_83 = arith.constant 0 : index
    %c0_84 = arith.constant 0 : index
    %c0_85 = arith.constant 0 : index
    %170 = vector.load %arg7[%c0_83, %c0_84, %c0_85] : memref<1x2x32xf32, #tpu.memory_space<vmem>>, vector<1x2x32xf32>
    %171 = vector.shape_cast %170 : vector<1x2x32xf32> to vector<2x32xf32>
    %172 = vector.shape_cast %169 : vector<2x32xf32> to vector<1x2x32xf32>
    tpu.vector_store %arg7[%c0_83, %c0_84, %c0_85], %172 {strides = array<i32>} : memref<1x2x32xf32, #tpu.memory_space<vmem>>, vector<1x2x32xf32>,
    return
  }
  func.func @transform_0(%arg0: i32) -> (i32, i32, i32, i32) {
    %c0_i32 = arith.constant 0 : i32
    %c0_i32_0 = arith.constant 0 : i32
    %c0_i32_1 = arith.constant 0 : i32
    %c0_i32_2 = arith.constant 0 : i32
    return %arg0, %c0_i32, %c0_i32_0, %c0_i32_1 : i32, i32, i32, i32
  }
  func.func @transform_1(%arg0: i32) -> (i32, i32) {
    %c0_i32 = arith.constant 0 : i32
    %c0_i32_0 = arith.constant 0 : i32
    %c0_i32_1 = arith.constant 0 : i32
    return %c0_i32, %c0_i32_0 : i32, i32
  }
  func.func @transform_2(%arg0: i32) -> (i32, i32) {
    %c0_i32 = arith.constant 0 : i32
    %c0_i32_0 = arith.constant 0 : i32
    %c0_i32_1 = arith.constant 0 : i32
    return %c0_i32, %c0_i32_0 : i32, i32
  }
  func.func @transform_3(%arg0: i32) -> (i32, i32) {
    %c0_i32 = arith.constant 0 : i32
    %c0_i32_0 = arith.constant 0 : i32
    %c0_i32_1 = arith.constant 0 : i32
    return %c0_i32, %c0_i32_0 : i32, i32
  }
  func.func @transform_4(%arg0: i32) -> (i32, i32) {
    %c0_i32 = arith.constant 0 : i32
    %c0_i32_0 = arith.constant 0 : i32
    %c0_i32_1 = arith.constant 0 : i32
    return %c0_i32, %c0_i32_0 : i32, i32
  }
  func.func @transform_5(%arg0: i32) -> (i32, i32, i32, i32) {
    %c0_i32 = arith.constant 0 : i32
    %c0_i32_0 = arith.constant 0 : i32
    %c0_i32_1 = arith.constant 0 : i32
    %c0_i32_2 = arith.constant 0 : i32
    return %arg0, %c0_i32, %c0_i32_0, %c0_i32_1 : i32, i32, i32, i32
  }
  func.func @transform_6(%arg0: i32) -> (i32, i32, i32) {
    %c0_i32 = arith.constant 0 : i32
    %c0_i32_0 = arith.constant 0 : i32
    %c0_i32_1 = arith.constant 0 : i32
    return %arg0, %c0_i32, %c0_i32_0 : i32, i32, i32
  }
}

module attributes {stable_mosaic.version = 11 : i64} {
  func.func @se_pw_kernel(%arg0: i32, %arg1: memref<1x16x16x32xbf16, #tpu.memory_space<vmem>>, %arg2: memref<1x32xf32, #tpu.memory_space<vmem>>, %arg3: memref<1x32xf32, #tpu.memory_space<vmem>>, %arg4: memref<32x8xbf16, #tpu.memory_space<vmem>>, %arg5: memref<1x8xf32, #tpu.memory_space<vmem>>, %arg6: memref<8x32xbf16, #tpu.memory_space<vmem>>, %arg7: memref<1x32xf32, #tpu.memory_space<vmem>>, %arg8: memref<8x32xbf16, #tpu.memory_space<vmem>>, %arg9: memref<8x1xf32, #tpu.memory_space<vmem>>, %arg10: memref<1x8x256xbf16, #tpu.memory_space<vmem>>, %arg11: memref<1x8x2xf32, #tpu.memory_space<vmem>>) attributes {dimension_semantics = [#tpu.dimension_semantics<parallel>], iteration_bounds = array<i64: 2>, scalar_prefetch = 0 : i64, scratch_operands = 0 : i64, tpu.core_type = #tpu.core_type<tc>, window_params = [{transform_indices = @transform_0, window_bounds = array<i64: 1, 16, 16, 32>}, {pipeline_mode = #tpu.pipeline_mode<synchronous>, transform_indices = @transform_1, window_bounds = array<i64: 1, 32>}, {pipeline_mode = #tpu.pipeline_mode<synchronous>, transform_indices = @transform_2, window_bounds = array<i64: 1, 32>}, {pipeline_mode = #tpu.pipeline_mode<synchronous>, transform_indices = @transform_3, window_bounds = array<i64: 32, 8>}, {pipeline_mode = #tpu.pipeline_mode<synchronous>, transform_indices = @transform_4, window_bounds = array<i64: 1, 8>}, {pipeline_mode = #tpu.pipeline_mode<synchronous>, transform_indices = @transform_5, window_bounds = array<i64: 8, 32>}, {pipeline_mode = #tpu.pipeline_mode<synchronous>, transform_indices = @transform_6, window_bounds = array<i64: 1, 32>}, {pipeline_mode = #tpu.pipeline_mode<synchronous>, transform_indices = @transform_7, window_bounds = array<i64: 8, 32>}, {pipeline_mode = #tpu.pipeline_mode<synchronous>, transform_indices = @transform_8, window_bounds = array<i64: 8, 1>}, {transform_indices = @transform_9, window_bounds = array<i64: 1, 8, 256>}, {transform_indices = @transform_10, window_bounds = array<i64: 1, 8, 2>}]} {
    %c0 = arith.constant 0 : index
    %c0_0 = arith.constant 0 : index
    %c0_1 = arith.constant 0 : index
    %c0_2 = arith.constant 0 : index
    %0 = vector.load %arg1[%c0, %c0_0, %c0_1, %c0_2] : memref<1x16x16x32xbf16, #tpu.memory_space<vmem>>, vector<1x16x16x32xbf16>
    %1 = vector.shape_cast %0 : vector<1x16x16x32xbf16> to vector<16x16x32xbf16>
    %2 = arith.extf %1 : vector<16x16x32xbf16> to vector<16x16x32xf32>
    %c0_3 = arith.constant 0 : index
    %c0_4 = arith.constant 0 : index
    %3 = vector.load %arg2[%c0_3, %c0_4] : memref<1x32xf32, #tpu.memory_space<vmem>>, vector<1x32xf32>
    %4 = vector.shape_cast %3 : vector<1x32xf32> to vector<1x1x32xf32>
    %5 = vector.broadcast %4 : vector<1x1x32xf32> to vector<16x16x32xf32>
    %6 = arith.mulf %2, %5 : vector<16x16x32xf32>
    %c0_5 = arith.constant 0 : index
    %c0_6 = arith.constant 0 : index
    %7 = vector.load %arg3[%c0_5, %c0_6] : memref<1x32xf32, #tpu.memory_space<vmem>>, vector<1x32xf32>
    %8 = vector.shape_cast %7 : vector<1x32xf32> to vector<1x1x32xf32>
    %9 = vector.broadcast %8 : vector<1x1x32xf32> to vector<16x16x32xf32>
    %10 = arith.addf %6, %9 : vector<16x16x32xf32>
    %cst = arith.constant 3.000000e+00 : f32
    %11 = vector.broadcast %cst : f32 to vector<16x16x32xf32>
    %12 = arith.addf %10, %11 : vector<16x16x32xf32>
    %cst_7 = arith.constant 0.000000e+00 : f32
    %cst_8 = arith.constant 6.000000e+00 : f32
    %13 = vector.broadcast %cst_7 : f32 to vector<16x16x32xf32>
    %14 = arith.maximumf %13, %12 : vector<16x16x32xf32>
    %15 = vector.broadcast %cst_8 : f32 to vector<16x16x32xf32>
    %16 = arith.minimumf %15, %14 : vector<16x16x32xf32>
    %cst_9 = arith.constant 6.000000e+00 : f32
    %17 = vector.broadcast %cst_9 : f32 to vector<16x16x32xf32>
    %18 = arith.divf %16, %17 : vector<16x16x32xf32>
    %19 = arith.mulf %10, %18 : vector<16x16x32xf32>
    %20 = vector.shape_cast %19 : vector<16x16x32xf32> to vector<256x32xf32>
    %cst_10 = arith.constant dense<0.000000e+00> : vector<32xf32>
    %21 = vector.multi_reduction <add>, %20, %cst_10 [0] : vector<256x32xf32> to vector<32xf32>
    %22 = vector.shape_cast %21 : vector<32xf32> to vector<1x32xf32>
    %cst_11 = arith.constant 3.906250e-03 : f32
    %23 = vector.broadcast %cst_11 : f32 to vector<1x32xf32>
    %24 = arith.mulf %22, %23 : vector<1x32xf32>
    %25 = arith.truncf %24 : vector<1x32xf32> to vector<1x32xbf16>
    %c0_12 = arith.constant 0 : index
    %c0_13 = arith.constant 0 : index
    %26 = vector.load %arg4[%c0_12, %c0_13] : memref<32x8xbf16, #tpu.memory_space<vmem>>, vector<32x8xbf16>
    %cst_14 = arith.constant dense<0.000000e+00> : vector<1x8xf32>
    %27 = tpu.matmul %25, %26, %cst_14 {dimension_numbers = #tpu.dot_dimension_numbers<[1], [0], [0], [1], [0, 0, 1, 1], [], []>} : vector<1x32xbf16>, vector<32x8xbf16>, vector<1x8xf32> -> vector<1x8xf32>
    %c0_15 = arith.constant 0 : index
    %c0_16 = arith.constant 0 : index
    %28 = vector.load %arg5[%c0_15, %c0_16] : memref<1x8xf32, #tpu.memory_space<vmem>>, vector<1x8xf32>
    %29 = arith.addf %27, %28 : vector<1x8xf32>
    %cst_17 = arith.constant 3.000000e+00 : f32
    %30 = vector.broadcast %cst_17 : f32 to vector<1x8xf32>
    %31 = arith.addf %29, %30 : vector<1x8xf32>
    %cst_18 = arith.constant 0.000000e+00 : f32
    %cst_19 = arith.constant 6.000000e+00 : f32
    %32 = vector.broadcast %cst_18 : f32 to vector<1x8xf32>
    %33 = arith.maximumf %32, %31 : vector<1x8xf32>
    %34 = vector.broadcast %cst_19 : f32 to vector<1x8xf32>
    %35 = arith.minimumf %34, %33 : vector<1x8xf32>
    %cst_20 = arith.constant 6.000000e+00 : f32
    %36 = vector.broadcast %cst_20 : f32 to vector<1x8xf32>
    %37 = arith.divf %35, %36 : vector<1x8xf32>
    %38 = arith.mulf %29, %37 : vector<1x8xf32>
    %39 = arith.truncf %38 : vector<1x8xf32> to vector<1x8xbf16>
    %c0_21 = arith.constant 0 : index
    %c0_22 = arith.constant 0 : index
    %40 = vector.load %arg6[%c0_21, %c0_22] : memref<8x32xbf16, #tpu.memory_space<vmem>>, vector<8x32xbf16>
    %cst_23 = arith.constant dense<0.000000e+00> : vector<1x32xf32>
    %41 = tpu.matmul %39, %40, %cst_23 {dimension_numbers = #tpu.dot_dimension_numbers<[1], [0], [0], [1], [0, 0, 1, 1], [], []>} : vector<1x8xbf16>, vector<8x32xbf16>, vector<1x32xf32> -> vector<1x32xf32>
    %c0_24 = arith.constant 0 : index
    %c0_25 = arith.constant 0 : index
    %42 = vector.load %arg7[%c0_24, %c0_25] : memref<1x32xf32, #tpu.memory_space<vmem>>, vector<1x32xf32>
    %43 = arith.addf %41, %42 : vector<1x32xf32>
    %cst_26 = arith.constant 3.000000e+00 : f32
    %44 = vector.broadcast %cst_26 : f32 to vector<1x32xf32>
    %45 = arith.addf %43, %44 : vector<1x32xf32>
    %cst_27 = arith.constant 0.000000e+00 : f32
    %cst_28 = arith.constant 6.000000e+00 : f32
    %46 = vector.broadcast %cst_27 : f32 to vector<1x32xf32>
    %47 = arith.maximumf %46, %45 : vector<1x32xf32>
    %48 = vector.broadcast %cst_28 : f32 to vector<1x32xf32>
    %49 = arith.minimumf %48, %47 : vector<1x32xf32>
    %cst_29 = arith.constant 6.000000e+00 : f32
    %50 = vector.broadcast %cst_29 : f32 to vector<1x32xf32>
    %51 = arith.divf %49, %50 : vector<1x32xf32>
    %52 = vector.broadcast %51 : vector<1x32xf32> to vector<256x32xf32>
    %53 = arith.mulf %20, %52 : vector<256x32xf32>
    %c0_30 = arith.constant 0 : index
    %c0_31 = arith.constant 0 : index
    %54 = vector.load %arg8[%c0_30, %c0_31] : memref<8x32xbf16, #tpu.memory_space<vmem>>, vector<8x32xbf16>
    %55 = arith.truncf %53 : vector<256x32xf32> to vector<256x32xbf16>
    %cst_32 = arith.constant dense<0.000000e+00> : vector<8x256xf32>
    %56 = tpu.matmul %54, %55, %cst_32 {dimension_numbers = #tpu.dot_dimension_numbers<[1], [1], [0], [0], [0, 0, 1, 0], [], []>} : vector<8x32xbf16>, vector<256x32xbf16>, vector<8x256xf32> -> vector<8x256xf32>
    %c0_33 = arith.constant 0 : index
    %c0_34 = arith.constant 0 : index
    %57 = vector.load %arg9[%c0_33, %c0_34] : memref<8x1xf32, #tpu.memory_space<vmem>>, vector<8x1xf32>
    %58 = vector.broadcast %57 : vector<8x1xf32> to vector<8x256xf32>
    %59 = arith.addf %56, %58 : vector<8x256xf32>
    %60 = arith.truncf %59 : vector<8x256xf32> to vector<8x256xbf16>
    %c0_35 = arith.constant 0 : index
    %c0_36 = arith.constant 0 : index
    %c0_37 = arith.constant 0 : index
    %61 = vector.load %arg10[%c0_35, %c0_36, %c0_37] : memref<1x8x256xbf16, #tpu.memory_space<vmem>>, vector<1x8x256xbf16>
    %62 = vector.shape_cast %61 : vector<1x8x256xbf16> to vector<8x256xbf16>
    %63 = vector.shape_cast %60 : vector<8x256xbf16> to vector<1x8x256xbf16>
    tpu.vector_store %arg10[%c0_35, %c0_36, %c0_37], %63 {strides = array<i32>} : memref<1x8x256xbf16, #tpu.memory_space<vmem>>, vector<1x8x256xbf16>,
    %cst_38 = arith.constant dense<0.000000e+00> : vector<8xf32>
    %64 = vector.multi_reduction <add>, %59, %cst_38 [1] : vector<8x256xf32> to vector<8xf32>
    %65 = vector.shape_cast %64 : vector<8xf32> to vector<8x1xf32>
    %66 = arith.mulf %59, %59 : vector<8x256xf32>
    %cst_39 = arith.constant dense<0.000000e+00> : vector<8xf32>
    %67 = vector.multi_reduction <add>, %66, %cst_39 [1] : vector<8x256xf32> to vector<8xf32>
    %68 = vector.shape_cast %67 : vector<8xf32> to vector<8x1xf32>
    %69 = tpu.concatenate %65, %68 in 1 : vector<8x1xf32>, vector<8x1xf32> -> vector<8x2xf32>
    %c0_40 = arith.constant 0 : index
    %c0_41 = arith.constant 0 : index
    %c0_42 = arith.constant 0 : index
    %70 = vector.load %arg11[%c0_40, %c0_41, %c0_42] : memref<1x8x2xf32, #tpu.memory_space<vmem>>, vector<1x8x2xf32>
    %71 = vector.shape_cast %70 : vector<1x8x2xf32> to vector<8x2xf32>
    %72 = vector.shape_cast %69 : vector<8x2xf32> to vector<1x8x2xf32>
    tpu.vector_store %arg11[%c0_40, %c0_41, %c0_42], %72 {strides = array<i32>} : memref<1x8x2xf32, #tpu.memory_space<vmem>>, vector<1x8x2xf32>,
    return
  }
  func.func @transform_0(%arg0: i32) -> (i32, i32, i32, i32) {
    %c0_i32 = arith.constant 0 : i32
    %c0_i32_0 = arith.constant 0 : i32
    %c0_i32_1 = arith.constant 0 : i32
    %c0_i32_2 = arith.constant 0 : i32
    return %arg0, %c0_i32, %c0_i32_0, %c0_i32_1 : i32, i32, i32, i32
  }
  func.func @transform_1(%arg0: i32) -> (i32, i32) {
    %c0_i32 = arith.constant 0 : i32
    %c0_i32_0 = arith.constant 0 : i32
    %c0_i32_1 = arith.constant 0 : i32
    return %c0_i32, %c0_i32_0 : i32, i32
  }
  func.func @transform_2(%arg0: i32) -> (i32, i32) {
    %c0_i32 = arith.constant 0 : i32
    %c0_i32_0 = arith.constant 0 : i32
    %c0_i32_1 = arith.constant 0 : i32
    return %c0_i32, %c0_i32_0 : i32, i32
  }
  func.func @transform_3(%arg0: i32) -> (i32, i32) {
    %c0_i32 = arith.constant 0 : i32
    %c0_i32_0 = arith.constant 0 : i32
    %c0_i32_1 = arith.constant 0 : i32
    return %c0_i32, %c0_i32_0 : i32, i32
  }
  func.func @transform_4(%arg0: i32) -> (i32, i32) {
    %c0_i32 = arith.constant 0 : i32
    %c0_i32_0 = arith.constant 0 : i32
    %c0_i32_1 = arith.constant 0 : i32
    return %c0_i32, %c0_i32_0 : i32, i32
  }
  func.func @transform_5(%arg0: i32) -> (i32, i32) {
    %c0_i32 = arith.constant 0 : i32
    %c0_i32_0 = arith.constant 0 : i32
    %c0_i32_1 = arith.constant 0 : i32
    return %c0_i32, %c0_i32_0 : i32, i32
  }
  func.func @transform_6(%arg0: i32) -> (i32, i32) {
    %c0_i32 = arith.constant 0 : i32
    %c0_i32_0 = arith.constant 0 : i32
    %c0_i32_1 = arith.constant 0 : i32
    return %c0_i32, %c0_i32_0 : i32, i32
  }
  func.func @transform_7(%arg0: i32) -> (i32, i32) {
    %c0_i32 = arith.constant 0 : i32
    %c0_i32_0 = arith.constant 0 : i32
    %c0_i32_1 = arith.constant 0 : i32
    return %c0_i32, %c0_i32_0 : i32, i32
  }
  func.func @transform_8(%arg0: i32) -> (i32, i32) {
    %c0_i32 = arith.constant 0 : i32
    %c0_i32_0 = arith.constant 0 : i32
    %c0_i32_1 = arith.constant 0 : i32
    return %c0_i32, %c0_i32_0 : i32, i32
  }
  func.func @transform_9(%arg0: i32) -> (i32, i32, i32) {
    %c0_i32 = arith.constant 0 : i32
    %c0_i32_0 = arith.constant 0 : i32
    %c0_i32_1 = arith.constant 0 : i32
    return %arg0, %c0_i32, %c0_i32_0 : i32, i32, i32
  }
  func.func @transform_10(%arg0: i32) -> (i32, i32, i32) {
    %c0_i32 = arith.constant 0 : i32
    %c0_i32_0 = arith.constant 0 : i32
    %c0_i32_1 = arith.constant 0 : i32
    return %arg0, %c0_i32, %c0_i32_0 : i32, i32, i32
  }
}

module attributes {stable_mosaic.version = 11 : i64} {
  func.func @final_proj_kernel(%arg0: i32, %arg1: memref<1x8x256xbf16, #tpu.memory_space<vmem>>, %arg2: memref<8x1xf32, #tpu.memory_space<vmem>>, %arg3: memref<8x1xf32, #tpu.memory_space<vmem>>, %arg4: memref<1x16x256xf32, #tpu.memory_space<vmem>>, %arg5: memref<8x16xf32, #tpu.memory_space<vmem>>, %arg6: memref<1x8x256xf32, #tpu.memory_space<vmem>>) attributes {dimension_semantics = [#tpu.dimension_semantics<parallel>], iteration_bounds = array<i64: 2>, scalar_prefetch = 0 : i64, scratch_operands = 0 : i64, tpu.core_type = #tpu.core_type<tc>, window_params = [{transform_indices = @transform_0, window_bounds = array<i64: 1, 8, 256>}, {pipeline_mode = #tpu.pipeline_mode<synchronous>, transform_indices = @transform_1, window_bounds = array<i64: 8, 1>}, {pipeline_mode = #tpu.pipeline_mode<synchronous>, transform_indices = @transform_2, window_bounds = array<i64: 8, 1>}, {transform_indices = @transform_3, window_bounds = array<i64: 1, 16, 256>}, {pipeline_mode = #tpu.pipeline_mode<synchronous>, transform_indices = @transform_4, window_bounds = array<i64: 8, 16>}, {transform_indices = @transform_5, window_bounds = array<i64: 1, 8, 256>}]} {
    %c0 = arith.constant 0 : index
    %c0_0 = arith.constant 0 : index
    %0 = vector.load %arg5[%c0, %c0_0] : memref<8x16xf32, #tpu.memory_space<vmem>>, vector<8x16xf32>
    %c0_1 = arith.constant 0 : index
    %c0_2 = arith.constant 0 : index
    %c0_3 = arith.constant 0 : index
    %1 = vector.load %arg4[%c0_1, %c0_2, %c0_3] : memref<1x16x256xf32, #tpu.memory_space<vmem>>, vector<1x16x256xf32>
    %2 = vector.shape_cast %1 : vector<1x16x256xf32> to vector<16x256xf32>
    %cst = arith.constant dense<0.000000e+00> : vector<8x256xf32>
    %3 = tpu.matmul %0, %2, %cst {dimension_numbers = #tpu.dot_dimension_numbers<[1], [0], [0], [1], [0, 0, 1, 1], [], []>} : vector<8x16xf32>, vector<16x256xf32>, vector<8x256xf32> -> vector<8x256xf32>
    %c0_4 = arith.constant 0 : index
    %c0_5 = arith.constant 0 : index
    %c0_6 = arith.constant 0 : index
    %4 = vector.load %arg1[%c0_4, %c0_5, %c0_6] : memref<1x8x256xbf16, #tpu.memory_space<vmem>>, vector<1x8x256xbf16>
    %5 = vector.shape_cast %4 : vector<1x8x256xbf16> to vector<8x256xbf16>
    %6 = arith.extf %5 : vector<8x256xbf16> to vector<8x256xf32>
    %c0_7 = arith.constant 0 : index
    %c0_8 = arith.constant 0 : index
    %7 = vector.load %arg2[%c0_7, %c0_8] : memref<8x1xf32, #tpu.memory_space<vmem>>, vector<8x1xf32>
    %8 = vector.broadcast %7 : vector<8x1xf32> to vector<8x256xf32>
    %9 = arith.mulf %6, %8 : vector<8x256xf32>
    %c0_9 = arith.constant 0 : index
    %c0_10 = arith.constant 0 : index
    %10 = vector.load %arg3[%c0_9, %c0_10] : memref<8x1xf32, #tpu.memory_space<vmem>>, vector<8x1xf32>
    %11 = vector.broadcast %10 : vector<8x1xf32> to vector<8x256xf32>
    %12 = arith.addf %9, %11 : vector<8x256xf32>
    %13 = arith.addf %12, %3 : vector<8x256xf32>
    %c0_11 = arith.constant 0 : index
    %c0_12 = arith.constant 0 : index
    %c0_13 = arith.constant 0 : index
    %14 = vector.load %arg6[%c0_11, %c0_12, %c0_13] : memref<1x8x256xf32, #tpu.memory_space<vmem>>, vector<1x8x256xf32>
    %15 = vector.shape_cast %14 : vector<1x8x256xf32> to vector<8x256xf32>
    %16 = vector.shape_cast %13 : vector<8x256xf32> to vector<1x8x256xf32>
    tpu.vector_store %arg6[%c0_11, %c0_12, %c0_13], %16 {strides = array<i32>} : memref<1x8x256xf32, #tpu.memory_space<vmem>>, vector<1x8x256xf32>,
    return
  }
  func.func @transform_0(%arg0: i32) -> (i32, i32, i32) {
    %c0_i32 = arith.constant 0 : i32
    %c0_i32_0 = arith.constant 0 : i32
    %c0_i32_1 = arith.constant 0 : i32
    return %arg0, %c0_i32, %c0_i32_0 : i32, i32, i32
  }
  func.func @transform_1(%arg0: i32) -> (i32, i32) {
    %c0_i32 = arith.constant 0 : i32
    %c0_i32_0 = arith.constant 0 : i32
    %c0_i32_1 = arith.constant 0 : i32
    return %c0_i32, %c0_i32_0 : i32, i32
  }
  func.func @transform_2(%arg0: i32) -> (i32, i32) {
    %c0_i32 = arith.constant 0 : i32
    %c0_i32_0 = arith.constant 0 : i32
    %c0_i32_1 = arith.constant 0 : i32
    return %c0_i32, %c0_i32_0 : i32, i32
  }
  func.func @transform_3(%arg0: i32) -> (i32, i32, i32) {
    %c0_i32 = arith.constant 0 : i32
    %c0_i32_0 = arith.constant 0 : i32
    %c0_i32_1 = arith.constant 0 : i32
    return %arg0, %c0_i32, %c0_i32_0 : i32, i32, i32
  }
  func.func @transform_4(%arg0: i32) -> (i32, i32) {
    %c0_i32 = arith.constant 0 : i32
    %c0_i32_0 = arith.constant 0 : i32
    %c0_i32_1 = arith.constant 0 : i32
    return %c0_i32, %c0_i32_0 : i32, i32
  }
  func.func @transform_5(%arg0: i32) -> (i32, i32, i32) {
    %c0_i32 = arith.constant 0 : i32
    %c0_i32_0 = arith.constant 0 : i32
    %c0_i32_1 = arith.constant 0 : i32
    return %arg0, %c0_i32, %c0_i32_0 : i32, i32, i32
  }
}

</mosaic_0001>

<llo_original>
// kernel: mbconv_forward.4
$region0: #{mbconv_forward.4}
  #allocation0 [shape = 'u32[]', space=smem, size = 0x4, offset = 0x4, fixed_abs, tag = 'smem constant byte address 0x4 - core index']
  #allocation1 [shape = 'u32[144,128]{1,0:T(1,128)}', space=vmem, size = 0x12000, scoped, tag = 'internal scratch']
  %s0 = inlined_call_operand.vmem [shape: bf16[128,64], index: 0, kind: input, shape index: {}]
  %s1 = inlined_call_operand.vmem [shape: bf16[64,128], index: 1, kind: input, shape index: {}]
  %s2 = inlined_call_operand.vmem [shape: f32[1,128], index: 2, kind: input, shape index: {}]
  %s3 = inlined_call_operand.vmem [shape: bf16[128,128], index: 3, kind: output, shape index: {0}]
  %s4 = inlined_call_operand.vmem [shape: f32[2,2,128], index: 4, kind: output, shape index: {1}]
  %5 = xla_tuple %s3, %s4
  %s6 = sld [smem:[#allocation0]]
  $region53: #{mbconv_forward.4} parent=0
    _
  %s8 = ssub.s32 1, %s6
  %s9 = scalar_select 0, %s8, %s6
  loop: start=0, step=1, limit=4
  $region2: #{mbconv_forward.4} parent=0 // loop_pre_header
    _
  $region3: #{mbconv_forward.4} parent=0 // loop_header
    %s11 = sphi 0, %s15
    %p12 = scmp.ge.s32.totalorder %s11, 4
    %s21 = sphi 0, %s23
    %s24 = sphi 0, %s21
    %s25 = sphi 0, %s24
    %s41 = sphi 0, %s25
    %s45 = sphi 0, %s45
    %s47 = sphi 0, %s45
    %s48 = sphi 0, %s47
    %s62 = sphi 0, %s48
    %s66 = sphi 0, %s66
    %s68 = sphi 0, %s66
    %s69 = sphi 0, %s68
    %s83 = sphi 0, %s69
    %s89 = sphi 0, %s91
    %s92 = sphi 0, %s89
    %s93 = sphi 0, %s92
    %s109 = sphi 0, %s93
    %s115 = sphi 0, %s117
    %s118 = sphi 0, %s115
    %s119 = sphi 0, %s118
    %s135 = sphi 0, %s119
  $region4: #{mbconv_forward.4} parent=0 // loop_header_branch
    %14 = sbr.rel (%p12) target = $region8
  $region5: #{mbconv_forward.4} parent=0 // loop_body
    %s16 = ssub.s32 %s11, 1
    %s17 = ssub.s32 %s11, 2
    %s18 = sadd.s32 %s11, 1
    %s19 = ssub.s32 %s11, %s18
    %p20 = scmp.eq.s32.totalorder %s19, 0
    %s22 = sadd.s32 %s21, 1
    %s23 = scalar_select %p20, %s21, %s22
    %p26 = pneg %p20
    %p27 = scmp.eq.s32.totalorder %s11, 1
    %p28 = por %p26, %p27
    %p29 = scmp.ne.s32.totalorder %s21, %s24
    %p30 = scmp.eq.s32.totalorder %s11, 0
    %p31 = por %p29, %p30
    %p32 = scmp.ne.s32.totalorder %s21, %s24
    %p33 = scmp.eq.s32.totalorder %s16, 1
    %p34 = por %p32, %p33
    %p35 = scmp.ne.s32.totalorder %s24, %s25
    %p36 = scmp.eq.s32.totalorder %s16, 0
    %p37 = por %p35, %p36
    %p38 = scmp.ne.s32.totalorder %s24, %s25
    %p39 = scmp.eq.s32.totalorder %s17, 1
    %p40 = por %p38, %p39
    %p42 = scmp.ne.s32.totalorder %s25, %s41
    %p43 = scmp.eq.s32.totalorder %s17, 0
    %p44 = por %p42, %p43
    %s46 = sadd.s32 %s45, 1
    %p49 = scmp.eq.s32.totalorder %s11, 1
    %p50 = scmp.ne.s32.totalorder %s45, %s47
    %p51 = scmp.eq.s32.totalorder %s11, 0
    %p52 = por %p50, %p51
    %p53 = scmp.ne.s32.totalorder %s45, %s47
    %p54 = scmp.eq.s32.totalorder %s16, 1
    %p55 = por %p53, %p54
    %p56 = scmp.ne.s32.totalorder %s47, %s48
    %p57 = scmp.eq.s32.totalorder %s16, 0
    %p58 = por %p56, %p57
    %p59 = scmp.ne.s32.totalorder %s47, %s48
    %p60 = scmp.eq.s32.totalorder %s17, 1
    %p61 = por %p59, %p60
    %p63 = scmp.ne.s32.totalorder %s48, %s62
    %p64 = scmp.eq.s32.totalorder %s17, 0
    %p65 = por %p63, %p64
    %s67 = sadd.s32 %s66, 1
    %p70 = scmp.eq.s32.totalorder %s11, 1
    %p71 = scmp.ne.s32.totalorder %s66, %s68
    %p72 = scmp.eq.s32.totalorder %s11, 0
    %p73 = por %p71, %p72
    %p74 = scmp.ne.s32.totalorder %s66, %s68
    %p75 = scmp.eq.s32.totalorder %s16, 1
    %p76 = por %p74, %p75
    %p77 = scmp.ne.s32.totalorder %s68, %s69
    %p78 = scmp.eq.s32.totalorder %s16, 0
    %p79 = por %p77, %p78
    %p80 = scmp.ne.s32.totalorder %s68, %s69
    %p81 = scmp.eq.s32.totalorder %s17, 1
    %p82 = por %p80, %p81
    %p84 = scmp.ne.s32.totalorder %s69, %s83
    %p85 = scmp.eq.s32.totalorder %s17, 0
    %p86 = por %p84, %p85
    %s87 = ssub.s32 %s11, %s18
    %p88 = scmp.eq.s32.totalorder %s87, 0
    %s90 = sadd.s32 %s89, 1
    %s91 = scalar_select %p88, %s89, %s90
    %p94 = pneg %p88
    %p95 = scmp.eq.s32.totalorder %s11, 1
    %p96 = por %p94, %p95
    %p97 = scmp.ne.s32.totalorder %s89, %s92
    %p98 = scmp.eq.s32.totalorder %s11, 0
    %p99 = por %p97, %p98
    %p100 = scmp.ne.s32.totalorder %s89, %s92
    %p101 = scmp.eq.s32.totalorder %s16, 1
    %p102 = por %p100, %p101
    %p103 = scmp.ne.s32.totalorder %s92, %s93
    %p104 = scmp.eq.s32.totalorder %s16, 0
    %p105 = por %p103, %p104
    %p106 = scmp.ne.s32.totalorder %s92, %s93
    %p107 = scmp.eq.s32.totalorder %s17, 1
    %p108 = por %p106, %p107
    %p110 = scmp.ne.s32.totalorder %s93, %s109
    %p111 = scmp.eq.s32.totalorder %s17, 0
    %p112 = por %p110, %p111
    %s113 = ssub.s32 %s11, %s18
    %p114 = scmp.eq.s32.totalorder %s113, 0
    %s116 = sadd.s32 %s115, 1
    %s117 = scalar_select %p114, %s115, %s116
    %p120 = pneg %p114
    %p121 = scmp.eq.s32.totalorder %s11, 1
    %p122 = por %p120, %p121
    %p123 = scmp.ne.s32.totalorder %s115, %s118
    %p124 = scmp.eq.s32.totalorder %s11, 0
    %p125 = por %p123, %p124
    %p126 = scmp.ne.s32.totalorder %s115, %s118
    %p127 = scmp.eq.s32.totalorder %s16, 1
    %p128 = por %p126, %p127
    %p129 = scmp.ne.s32.totalorder %s118, %s119
    %p130 = scmp.eq.s32.totalorder %s16, 0
    %p131 = por %p129, %p130
    %p132 = scmp.ne.s32.totalorder %s118, %s119
    %p133 = scmp.eq.s32.totalorder %s17, 1
    %p134 = por %p132, %p133
    %p136 = scmp.ne.s32.totalorder %s119, %s135
    %p137 = scmp.eq.s32.totalorder %s17, 0
    %p138 = por %p136, %p137
    %p139 = scmp.le.s32.totalorder 1, %s11
    %p140 = scmp.lt.s32.totalorder %s11, 3
    %p141 = pnand %p139, %p140
    %p142 = pneg %p141
    // Predicated region
    $region9: #{mbconv_forward.4} parent=5 // pred_check
      _
    $region10: #{mbconv_forward.4} parent=5 // pred_check_branch
      %144 = sbr.rel (%p141) target = $region12
    $region11: #{mbconv_forward.4} parent=5 // pred_region
      %s145 = ssub.s32 %s11, 1
      // Predicated region
      $region13: #{mbconv_forward.4} parent=11 // pred_check
        %p146 = pneg %p58
      $region14: #{mbconv_forward.4} parent=11 // pred_check_branch
        %148 = sbr.rel (%p146) target = $region16
      $region15: #{mbconv_forward.4} parent=11 // pred_region
        _
      $region16: #{mbconv_forward.4} parent=11 // pred_fallthru
        _
      // Predicated region
      $region17: #{mbconv_forward.4} parent=11 // pred_check
        %p149 = pneg %p79
      $region18: #{mbconv_forward.4} parent=11 // pred_check_branch
        %151 = sbr.rel (%p149) target = $region20
      $region19: #{mbconv_forward.4} parent=11 // pred_region
        _
      $region20: #{mbconv_forward.4} parent=11 // pred_fallthru
        _
    $region12: #{mbconv_forward.4} parent=5 // pred_fallthru
      _
    %p152 = scmp.lt.s32.totalorder %s11, 2
    // Predicated region
    $region21: #{mbconv_forward.4} parent=5 // pred_check
      %p153 = pneg %p152
    $region22: #{mbconv_forward.4} parent=5 // pred_check_branch
      %155 = sbr.rel (%p153) target = $region24
    $region23: #{mbconv_forward.4} parent=5 // pred_region
      // Predicated region
      $region25: #{mbconv_forward.4} parent=23 // pred_check
        %p156 = pneg %p31
      $region26: #{mbconv_forward.4} parent=23 // pred_check_branch
        %158 = sbr.rel (%p156) target = $region28
      $region27: #{mbconv_forward.4} parent=23 // pred_region
        %s159 = smul.u32 8, %s11
        %p160 = scmp.lt.s32.totalorder %s159, 15
        %s161 = scalar_select %p160, %s159, 15
        %s162 = smul.addr %s161, 4
        %s163 = scalar_lea.vmem %s0, %s162
        %s164 = smul.u32 8, %s11
      $region28: #{mbconv_forward.4} parent=23 // pred_fallthru
        _
    $region24: #{mbconv_forward.4} parent=5 // pred_fallthru
      _
    %p165 = scmp.le.s32.totalorder 1, %s11
    %p166 = scmp.lt.s32.totalorder %s11, 3
    %p167 = pnand %p165, %p166
    %p168 = pneg %p167
    // Predicated region
    $region29: #{mbconv_forward.4} parent=5 // pred_check
      _
    $region30: #{mbconv_forward.4} parent=5 // pred_check_branch
      %170 = sbr.rel (%p167) target = $region32
    $region31: #{mbconv_forward.4} parent=5 // pred_region
      %s171 = ssub.s32 %s11, 1
      %s172 = smul.u32 8, %s16
      %p173 = scmp.lt.s32.totalorder %s172, 15
      %s174 = scalar_select %p173, %s172, 15
      %s175 = smul.addr %s174, 4
      %s176 = scalar_lea.vmem %s0, %s175
      %p177 = pneg %p37
      %p178 = pneg %p34
      %p179 = pneg %p58
      %p180 = pneg %p55
      %p181 = pneg %p79
      %p182 = pneg %p76
      %p183 = pneg %p105
      %p184 = pneg %p102
      %s185 = smul.u32 8, %s16
      %p186 = scmp.lt.s32.totalorder %s185, 15
      %s187 = scalar_select %p186, %s185, 15
      %s188 = smul.addr %s187, 4
      %s189 = scalar_lea.vmem %s3, %s188
      %p190 = pneg %p131
      %p191 = pneg %p128
      %p192 = scmp.lt.s32.totalorder %s16, 1
      %s193 = scalar_select %p192, %s16, 1
      %s194 = smul.addr %s193, 2
      %s195 = scalar_lea.vmem %s4, %s194
      %s196 = smul.u32 8, %s16
      %p197 = scmp.lt.s32.totalorder %s196, 15
      %s198 = scalar_select %p197, %s196, 15
      %s199 = smul.addr %s198, 4
      %s200 = scalar_lea.vmem %s0, %s199
      %s201 = smul.u32 8, %s16
      %s202 = smul.u32 8, %s16
      %p203 = scmp.lt.s32.totalorder %s202, 15
      %s204 = scalar_select %p203, %s202, 15
      %s205 = smul.addr %s204, 4
      %s206 = scalar_lea.vmem %s3, %s205
      %s207 = smul.u32 8, %s16
      %p208 = scmp.lt.s32.totalorder %s16, 1
      %s209 = scalar_select %p208, %s16, 1
      %s210 = smul.addr %s209, 2
      %s211 = scalar_lea.vmem %s4, %s210
      %v213 = vld [vmem:[%s200] sm:$0xf]
      %v214 = vld [vmem:[%s200 + $0x4] sm:$0xf]
      %v215 = vld [vmem:[%s200 + $0x8] sm:$0xf]
      %v216 = vld [vmem:[%s200 + $0xc] sm:$0xf]
      %v217 = vld [vmem:[%s200 + $0x10] sm:$0xf]
      %v218 = vld [vmem:[%s200 + $0x14] sm:$0xf]
      %v219 = vld [vmem:[%s200 + $0x18] sm:$0xf]
      %v220 = vld [vmem:[%s200 + $0x1c] sm:$0xf]
      %v221 = vld [vmem:[%s1] sm:$0xf]
      %v222 = vld [vmem:[%s1 + $0x4] sm:$0xf]
      %v223 = vld [vmem:[%s1 + $0x8] sm:$0xf]
      %v224 = vld [vmem:[%s1 + $0xc] sm:$0xf]
      %v225 = vld [vmem:[%s1 + $0x10] sm:$0xf]
      %v226 = vld [vmem:[%s1 + $0x14] sm:$0xf]
      %v227 = vld [vmem:[%s1 + $0x18] sm:$0xf]
      %v228 = vld [vmem:[%s1 + $0x1c] sm:$0xf]
      %v229 = vld [vmem:[%s2] sm:$0x1]
      %v231 = vlaneseq
      %v232 = vshrl.u32 %v231, 7
      %v233 = vsub.s32 0, %v232
      %v234 = vrot.slane %v229, %v233
      %v244 = vunpack.c.l.b16 %v213
      %v245 = vunpack.c.l.b16 %v214
      %v246 = vunpack.c.l.b16 %v215
      %v247 = vunpack.c.l.b16 %v216
      %v248 = vunpack.c.l.b16 %v217
      %v249 = vunpack.c.l.b16 %v218
      %v250 = vunpack.c.l.b16 %v219
      %v251 = vunpack.c.l.b16 %v220
      %v252 = vpack.c.b16 %v245, %v244
      %v253 = vpack.c.b16 %v247, %v246
      %v254 = vpack.c.b16 %v249, %v248
      %v255 = vpack.c.b16 %v251, %v250
      %v264 = vunpack.c.l.b16 %v221
      %v265 = vunpack.c.l.b16 %v222
      %v266 = vunpack.c.l.b16 %v223
      %v267 = vunpack.c.l.b16 %v224
      %v268 = vunpack.c.l.b16 %v225
      %v269 = vunpack.c.l.b16 %v226
      %v270 = vunpack.c.l.b16 %v227
      %v271 = vunpack.c.l.b16 %v228
      %v272 = vpack.c.b16 %v265, %v264
      %v273 = vpack.c.b16 %v267, %v266
      %v274 = vpack.c.b16 %v269, %v268
      %v275 = vpack.c.b16 %v271, %v270
      %vm280 = vcmask 523264
      %v282 = vsel %vm280, %v252, 0
      %v285 = vsel %vm280, %v253, 0
      %v288 = vsel %vm280, %v254, 0
      %v291 = vsel %vm280, %v255, 0
      %293 = vmatprep.subr.bf16.mxu0 0
      %294 = vmatpush1.bf16.msra.mxu0 0
      %295 = vmatprep.subr.bf16.mxu0 0
      %296 = vmatpush1.bf16.msra.mxu0 0
      %297 = vmatprep.subr.bf16.mxu0 0
      %298 = vmatpush1.bf16.msra.mxu0 0
      %299 = vmatprep.subr.bf16.mxu0 0
      %300 = vmatpush1.bf16.msra.mxu0 0
      %301 = vmatprep.subr.bf16.mxu0 0
      %302 = vmatpush1.bf16.msra.mxu0 %v275
      %303 = vmatprep.subr.bf16.mxu0 0
      %304 = vmatpush1.bf16.msra.mxu0 %v274
      %305 = vmatprep.subr.bf16.mxu0 0
      %306 = vmatpush1.bf16.msra.mxu0 %v273
      %307 = vmatprep.subr.bf16.mxu0 0
      %308 = vmatpush1.bf16.msra.mxu0 %v272
      %309 = vmatprep.subr.bf16.mxu0 0
      %310 = vmatpush2.bf16.msra.mxu0 0
      %311 = vmatprep.subr.bf16.mxu0 0
      %312 = vmatpush2.bf16.msra.mxu0 0
      %313 = vmatprep.subr.bf16.mxu0 0
      %314 = vmatpush2.bf16.msra.mxu0 0
      %315 = vmatprep.subr.bf16.mxu0 0
      %316 = vmatpush2.bf16.msra.mxu0 0
      %317 = vmatprep.subr.bf16.mxu0 0
      %318 = vmatpush2.bf16.msra.mxu0 0
      %319 = vmatprep.subr.bf16.mxu0 0
      %320 = vmatpush2.bf16.msra.mxu0 0
      %321 = vmatprep.subr.bf16.mxu0 0
      %322 = vmatpush2.bf16.msra.mxu0 0
      %323 = vmatprep.subr.bf16.mxu0 0
      %324 = vmatpush2.bf16.msra.mxu0 0
      %325 = vmatprep.mubr.bf16.mxu0 0
      %326 = vmatmul.mubr.bf16.gmra.mxu0 %v282
      %v327 = vpop.f32.mrf.mxu0
      %v328 = vadd.f32 %v234, %v327
      %v329 = vpop.f32.mrf.mxu0
      %v330 = vpop.f32.mrf.mxu0
      %v331 = vadd.f32 %v234, %v330
      %v332 = vpop.f32.mrf.mxu0
      %333 = vmatprep.mubr.bf16.mxu0 0
      %334 = vmatmul.mubr.bf16.gmra.mxu0 %v285
      %v335 = vpop.f32.mrf.mxu0
      %v336 = vadd.f32 %v234, %v335
      %v337 = vpop.f32.mrf.mxu0
      %v338 = vpop.f32.mrf.mxu0
      %v339 = vadd.f32 %v234, %v338
      %v340 = vpop.f32.mrf.mxu0
      %341 = vmatprep.mubr.bf16.mxu0 0
      %342 = vmatmul.mubr.bf16.gmra.mxu0 %v288
      %v343 = vpop.f32.mrf.mxu0
      %v344 = vadd.f32 %v234, %v343
      %v345 = vpop.f32.mrf.mxu0
      %v346 = vpop.f32.mrf.mxu0
      %v347 = vadd.f32 %v234, %v346
      %v348 = vpop.f32.mrf.mxu0
      %349 = vmatprep.mubr.bf16.mxu0 0
      %350 = vmatmul.mubr.bf16.gmra.mxu0 %v291
      %v351 = vpop.f32.mrf.mxu0
      %v352 = vadd.f32 %v234, %v351
      %v353 = vpop.f32.mrf.mxu0
      %v354 = vpop.f32.mrf.mxu0
      %v355 = vadd.f32 %v234, %v354
      %v356 = vpop.f32.mrf.mxu0
      %357 = vdwg.mxu0
      %v358 = vpack.c.bf16 %v331, %v328
      %v359 = vpack.c.bf16 %v339, %v336
      %v360 = vpack.c.bf16 %v347, %v344
      %v361 = vpack.c.bf16 %v355, %v352
      %v366 = vunpack.c.l.b16 %v358
      %v367 = vunpack.c.h.b16 %v358
      %v368 = vunpack.c.l.b16 %v359
      %v369 = vunpack.c.h.b16 %v359
      %v370 = vunpack.c.l.b16 %v360
      %v371 = vunpack.c.h.b16 %v360
      %v372 = vunpack.c.l.b16 %v361
      %v373 = vunpack.c.h.b16 %v361
      %v374 = vpack.c.b16 %v366, %v366
      %v375 = vpack.c.b16 %v367, %v367
      %v376 = vpack.c.b16 %v368, %v368
      %v377 = vpack.c.b16 %v369, %v369
      %v378 = vpack.c.b16 %v370, %v370
      %v379 = vpack.c.b16 %v371, %v371
      %v380 = vpack.c.b16 %v372, %v372
      %v381 = vpack.c.b16 %v373, %v373
      %390 = vst [vmem:[%s206] sm:$0xf] %v374
      %391 = vst [vmem:[%s206 + $0x4] sm:$0xf] %v375
      %392 = vst [vmem:[%s206 + $0x8] sm:$0xf] %v376
      %393 = vst [vmem:[%s206 + $0xc] sm:$0xf] %v377
      %394 = vst [vmem:[%s206 + $0x10] sm:$0xf] %v378
      %395 = vst [vmem:[%s206 + $0x14] sm:$0xf] %v379
      %396 = vst [vmem:[%s206 + $0x18] sm:$0xf] %v380
      %397 = vst [vmem:[%s206 + $0x1c] sm:$0xf] %v381
      %v398 = vadd.f32 %v328, %v331
      %v399 = vadd.f32 %v398, %v336
      %v400 = vadd.f32 %v399, %v339
      %v401 = vadd.f32 %v400, %v344
      %v402 = vadd.f32 %v401, %v347
      %v403 = vadd.f32 %v402, %v352
      %v404 = vadd.f32 %v403, %v355
      %v405 = vrot.slane %v404, 4
      %v406 = vadd.f32 %v404, %v405
      %v407 = vrot.slane %v406, 2
      %v408 = vadd.f32 %v406, %v407
      %v409 = vrot.slane %v408, 1
      %v410 = vadd.f32 %v408, %v409
      %v411 = vmul.f32 %v328, %v328
      %v412 = vmul.f32 %v331, %v331
      %v413 = vmul.f32 %v336, %v336
      %v414 = vmul.f32 %v339, %v339
      %v415 = vmul.f32 %v344, %v344
      %v416 = vmul.f32 %v347, %v347
      %v417 = vmul.f32 %v352, %v352
      %v418 = vmul.f32 %v355, %v355
      %v419 = vadd.f32 %v411, %v412
      %v420 = vadd.f32 %v419, %v413
      %v421 = vadd.f32 %v420, %v414
      %v422 = vadd.f32 %v421, %v415
      %v423 = vadd.f32 %v422, %v416
      %v424 = vadd.f32 %v423, %v417
      %v425 = vadd.f32 %v424, %v418
      %v426 = vrot.slane %v425, 4
      %v427 = vadd.f32 %v425, %v426
      %v428 = vrot.slane %v427, 2
      %v429 = vadd.f32 %v427, %v428
      %v430 = vrot.slane %v429, 1
      %v431 = vadd.f32 %v429, %v430
      %vm432 = vcmask 1040384
      %v433 = vsel %vm432, %v410, %v431
      %434 = vst [vmem:[%s211] sm:$0x3] %v433
      %s435 = smul.u32 8, %s16
      %p436 = scmp.lt.s32.totalorder %s435, 15
      %s437 = scalar_select %p436, %s435, 15
      %s438 = smul.addr %s437, 4
      %s439 = scalar_lea.vmem %s3, %s438
      %p440 = scmp.lt.s32.totalorder %s16, 1
      %s441 = scalar_select %p440, %s16, 1
      %s442 = smul.addr %s441, 2
      %s443 = scalar_lea.vmem %s4, %s442
      // Predicated region
      $region33: #{mbconv_forward.4} parent=31 // pred_check
        %p444 = pneg %p102
      $region34: #{mbconv_forward.4} parent=31 // pred_check_branch
        %446 = sbr.rel (%p444) target = $region36
      $region35: #{mbconv_forward.4} parent=31 // pred_region
        %s447 = smul.u32 8, %s16
      $region36: #{mbconv_forward.4} parent=31 // pred_fallthru
        _
      // Predicated region
      $region37: #{mbconv_forward.4} parent=31 // pred_check
        %p448 = pneg %p128
      $region38: #{mbconv_forward.4} parent=31 // pred_check_branch
        %450 = sbr.rel (%p448) target = $region40
      $region39: #{mbconv_forward.4} parent=31 // pred_region
        _
      $region40: #{mbconv_forward.4} parent=31 // pred_fallthru
        _
    $region32: #{mbconv_forward.4} parent=5 // pred_fallthru
      _
    %p451 = scmp.le.s32.totalorder 2, %s11
    // Predicated region
    $region41: #{mbconv_forward.4} parent=5 // pred_check
      %p452 = pneg %p451
    $region42: #{mbconv_forward.4} parent=5 // pred_check_branch
      %454 = sbr.rel (%p452) target = $region44
    $region43: #{mbconv_forward.4} parent=5 // pred_region
      %s455 = ssub.s32 %s11, 2
      // Predicated region
      $region45: #{mbconv_forward.4} parent=43 // pred_check
        %p456 = pneg %p108
      $region46: #{mbconv_forward.4} parent=43 // pred_check_branch
        %458 = sbr.rel (%p456) target = $region48
      $region47: #{mbconv_forward.4} parent=43 // pred_region
        %s459 = smul.u32 8, %s17
        %p460 = scmp.lt.s32.totalorder %s459, 15
        %s461 = scalar_select %p460, %s459, 15
        %s462 = smul.addr %s461, 4
        %s463 = scalar_lea.vmem %s3, %s462
      $region48: #{mbconv_forward.4} parent=43 // pred_fallthru
        _
      // Predicated region
      $region49: #{mbconv_forward.4} parent=43 // pred_check
        %p464 = pneg %p134
      $region50: #{mbconv_forward.4} parent=43 // pred_check_branch
        %466 = sbr.rel (%p464) target = $region52
      $region51: #{mbconv_forward.4} parent=43 // pred_region
        %p467 = scmp.lt.s32.totalorder %s17, 1
        %s468 = scalar_select %p467, %s17, 1
        %s469 = smul.addr %s468, 2
        %s470 = scalar_lea.vmem %s4, %s469
      $region52: #{mbconv_forward.4} parent=43 // pred_fallthru
        _
    $region44: #{mbconv_forward.4} parent=5 // pred_fallthru
      _
  $region6: #{mbconv_forward.4} parent=0 // loop_footer
    %s15 = sadd.s32 1, %s11
  $region7: #{mbconv_forward.4} parent=0 // loop_footer_branch
    %10 = sbr.rel target = $region3
  $region8: #{mbconv_forward.4} parent=0 // loop_exit
    _

// kernel: mbconv_forward.7
$region0: #{mbconv_forward.7}
  #allocation0 [shape = 'u32[]', space=smem, size = 0x4, offset = 0x4, fixed_abs, tag = 'smem constant byte address 0x4 - core index']
  #allocation1 [shape = 'u32[144,128]{1,0:T(1,128)}', space=vmem, size = 0x12000, scoped, tag = 'internal scratch']
  %s0 = inlined_call_operand.vmem [shape: bf16[2,8,256], index: 0, kind: input, shape index: {}]
  %s1 = inlined_call_operand.vmem [shape: f32[8,1], index: 1, kind: input, shape index: {}]
  %s2 = inlined_call_operand.vmem [shape: f32[8,1], index: 2, kind: input, shape index: {}]
  %s3 = inlined_call_operand.vmem [shape: f32[2,16,256], index: 3, kind: input, shape index: {}]
  %s4 = inlined_call_operand.vmem [shape: f32[8,16], index: 4, kind: input, shape index: {}]
  %s5 = inlined_call_operand.vmem [shape: f32[2,8,256], index: 5, kind: output, shape index: {}]
  %s6 = sld [smem:[#allocation0]]
  $region53: #{mbconv_forward.7} parent=0
    _
  %s8 = ssub.s32 1, %s6
  %s9 = scalar_select 0, %s8, %s6
  loop: start=0, step=1, limit=4
  $region2: #{mbconv_forward.7} parent=0 // loop_pre_header
    _
  $region3: #{mbconv_forward.7} parent=0 // loop_header
    %s11 = sphi 0, %s15
    %p12 = scmp.ge.s32.totalorder %s11, 4
    %s21 = sphi 0, %s23
    %s24 = sphi 0, %s21
    %s25 = sphi 0, %s24
    %s41 = sphi 0, %s25
    %s45 = sphi 0, %s45
    %s47 = sphi 0, %s45
    %s48 = sphi 0, %s47
    %s62 = sphi 0, %s48
    %s66 = sphi 0, %s66
    %s68 = sphi 0, %s66
    %s69 = sphi 0, %s68
    %s83 = sphi 0, %s69
    %s89 = sphi 0, %s91
    %s92 = sphi 0, %s89
    %s93 = sphi 0, %s92
    %s109 = sphi 0, %s93
    %s113 = sphi 0, %s113
    %s115 = sphi 0, %s113
    %s116 = sphi 0, %s115
    %s130 = sphi 0, %s116
    %s136 = sphi 0, %s138
    %s139 = sphi 0, %s136
    %s140 = sphi 0, %s139
    %s156 = sphi 0, %s140
  $region4: #{mbconv_forward.7} parent=0 // loop_header_branch
    %14 = sbr.rel (%p12) target = $region8
  $region5: #{mbconv_forward.7} parent=0 // loop_body
    %s16 = ssub.s32 %s11, 1
    %s17 = ssub.s32 %s11, 2
    %s18 = sadd.s32 %s11, 1
    %s19 = ssub.s32 %s11, %s18
    %p20 = scmp.eq.s32.totalorder %s19, 0
    %s22 = sadd.s32 %s21, 1
    %s23 = scalar_select %p20, %s21, %s22
    %p26 = pneg %p20
    %p27 = scmp.eq.s32.totalorder %s11, 1
    %p28 = por %p26, %p27
    %p29 = scmp.ne.s32.totalorder %s21, %s24
    %p30 = scmp.eq.s32.totalorder %s11, 0
    %p31 = por %p29, %p30
    %p32 = scmp.ne.s32.totalorder %s21, %s24
    %p33 = scmp.eq.s32.totalorder %s16, 1
    %p34 = por %p32, %p33
    %p35 = scmp.ne.s32.totalorder %s24, %s25
    %p36 = scmp.eq.s32.totalorder %s16, 0
    %p37 = por %p35, %p36
    %p38 = scmp.ne.s32.totalorder %s24, %s25
    %p39 = scmp.eq.s32.totalorder %s17, 1
    %p40 = por %p38, %p39
    %p42 = scmp.ne.s32.totalorder %s25, %s41
    %p43 = scmp.eq.s32.totalorder %s17, 0
    %p44 = por %p42, %p43
    %s46 = sadd.s32 %s45, 1
    %p49 = scmp.eq.s32.totalorder %s11, 1
    %p50 = scmp.ne.s32.totalorder %s45, %s47
    %p51 = scmp.eq.s32.totalorder %s11, 0
    %p52 = por %p50, %p51
    %p53 = scmp.ne.s32.totalorder %s45, %s47
    %p54 = scmp.eq.s32.totalorder %s16, 1
    %p55 = por %p53, %p54
    %p56 = scmp.ne.s32.totalorder %s47, %s48
    %p57 = scmp.eq.s32.totalorder %s16, 0
    %p58 = por %p56, %p57
    %p59 = scmp.ne.s32.totalorder %s47, %s48
    %p60 = scmp.eq.s32.totalorder %s17, 1
    %p61 = por %p59, %p60
    %p63 = scmp.ne.s32.totalorder %s48, %s62
    %p64 = scmp.eq.s32.totalorder %s17, 0
    %p65 = por %p63, %p64
    %s67 = sadd.s32 %s66, 1
    %p70 = scmp.eq.s32.totalorder %s11, 1
    %p71 = scmp.ne.s32.totalorder %s66, %s68
    %p72 = scmp.eq.s32.totalorder %s11, 0
    %p73 = por %p71, %p72
    %p74 = scmp.ne.s32.totalorder %s66, %s68
    %p75 = scmp.eq.s32.totalorder %s16, 1
    %p76 = por %p74, %p75
    %p77 = scmp.ne.s32.totalorder %s68, %s69
    %p78 = scmp.eq.s32.totalorder %s16, 0
    %p79 = por %p77, %p78
    %p80 = scmp.ne.s32.totalorder %s68, %s69
    %p81 = scmp.eq.s32.totalorder %s17, 1
    %p82 = por %p80, %p81
    %p84 = scmp.ne.s32.totalorder %s69, %s83
    %p85 = scmp.eq.s32.totalorder %s17, 0
    %p86 = por %p84, %p85
    %s87 = ssub.s32 %s11, %s18
    %p88 = scmp.eq.s32.totalorder %s87, 0
    %s90 = sadd.s32 %s89, 1
    %s91 = scalar_select %p88, %s89, %s90
    %p94 = pneg %p88
    %p95 = scmp.eq.s32.totalorder %s11, 1
    %p96 = por %p94, %p95
    %p97 = scmp.ne.s32.totalorder %s89, %s92
    %p98 = scmp.eq.s32.totalorder %s11, 0
    %p99 = por %p97, %p98
    %p100 = scmp.ne.s32.totalorder %s89, %s92
    %p101 = scmp.eq.s32.totalorder %s16, 1
    %p102 = por %p100, %p101
    %p103 = scmp.ne.s32.totalorder %s92, %s93
    %p104 = scmp.eq.s32.totalorder %s16, 0
    %p105 = por %p103, %p104
    %p106 = scmp.ne.s32.totalorder %s92, %s93
    %p107 = scmp.eq.s32.totalorder %s17, 1
    %p108 = por %p106, %p107
    %p110 = scmp.ne.s32.totalorder %s93, %s109
    %p111 = scmp.eq.s32.totalorder %s17, 0
    %p112 = por %p110, %p111
    %s114 = sadd.s32 %s113, 1
    %p117 = scmp.eq.s32.totalorder %s11, 1
    %p118 = scmp.ne.s32.totalorder %s113, %s115
    %p119 = scmp.eq.s32.totalorder %s11, 0
    %p120 = por %p118, %p119
    %p121 = scmp.ne.s32.totalorder %s113, %s115
    %p122 = scmp.eq.s32.totalorder %s16, 1
    %p123 = por %p121, %p122
    %p124 = scmp.ne.s32.totalorder %s115, %s116
    %p125 = scmp.eq.s32.totalorder %s16, 0
    %p126 = por %p124, %p125
    %p127 = scmp.ne.s32.totalorder %s115, %s116
    %p128 = scmp.eq.s32.totalorder %s17, 1
    %p129 = por %p127, %p128
    %p131 = scmp.ne.s32.totalorder %s116, %s130
    %p132 = scmp.eq.s32.totalorder %s17, 0
    %p133 = por %p131, %p132
    %s134 = ssub.s32 %s11, %s18
    %p135 = scmp.eq.s32.totalorder %s134, 0
    %s137 = sadd.s32 %s136, 1
    %s138 = scalar_select %p135, %s136, %s137
    %p141 = pneg %p135
    %p142 = scmp.eq.s32.totalorder %s11, 1
    %p143 = por %p141, %p142
    %p144 = scmp.ne.s32.totalorder %s136, %s139
    %p145 = scmp.eq.s32.totalorder %s11, 0
    %p146 = por %p144, %p145
    %p147 = scmp.ne.s32.totalorder %s136, %s139
    %p148 = scmp.eq.s32.totalorder %s16, 1
    %p149 = por %p147, %p148
    %p150 = scmp.ne.s32.totalorder %s139, %s140
    %p151 = scmp.eq.s32.totalorder %s16, 0
    %p152 = por %p150, %p151
    %p153 = scmp.ne.s32.totalorder %s139, %s140
    %p154 = scmp.eq.s32.totalorder %s17, 1
    %p155 = por %p153, %p154
    %p157 = scmp.ne.s32.totalorder %s140, %s156
    %p158 = scmp.eq.s32.totalorder %s17, 0
    %p159 = por %p157, %p158
    %p160 = scmp.le.s32.totalorder 1, %s11
    %p161 = scmp.lt.s32.totalorder %s11, 3
    %p162 = pnand %p160, %p161
    %p163 = pneg %p162
    // Predicated region
    $region9: #{mbconv_forward.7} parent=5 // pred_check
      _
    $region10: #{mbconv_forward.7} parent=5 // pred_check_branch
      %165 = sbr.rel (%p162) target = $region12
    $region11: #{mbconv_forward.7} parent=5 // pred_region
      %s166 = ssub.s32 %s11, 1
      // Predicated region
      $region13: #{mbconv_forward.7} parent=11 // pred_check
        %p167 = pneg %p58
      $region14: #{mbconv_forward.7} parent=11 // pred_check_branch
        %169 = sbr.rel (%p167) target = $region16
      $region15: #{mbconv_forward.7} parent=11 // pred_region
        _
      $region16: #{mbconv_forward.7} parent=11 // pred_fallthru
        _
      // Predicated region
      $region17: #{mbconv_forward.7} parent=11 // pred_check
        %p170 = pneg %p79
      $region18: #{mbconv_forward.7} parent=11 // pred_check_branch
        %172 = sbr.rel (%p170) target = $region20
      $region19: #{mbconv_forward.7} parent=11 // pred_region
        _
      $region20: #{mbconv_forward.7} parent=11 // pred_fallthru
        _
      // Predicated region
      $region21: #{mbconv_forward.7} parent=11 // pred_check
        %p173 = pneg %p126
      $region22: #{mbconv_forward.7} parent=11 // pred_check_branch
        %175 = sbr.rel (%p173) target = $region24
      $region23: #{mbconv_forward.7} parent=11 // pred_region
        _
      $region24: #{mbconv_forward.7} parent=11 // pred_fallthru
        _
    $region12: #{mbconv_forward.7} parent=5 // pred_fallthru
      _
    %p176 = scmp.lt.s32.totalorder %s11, 2
    // Predicated region
    $region25: #{mbconv_forward.7} parent=5 // pred_check
      %p177 = pneg %p176
    $region26: #{mbconv_forward.7} parent=5 // pred_check_branch
      %179 = sbr.rel (%p177) target = $region28
    $region27: #{mbconv_forward.7} parent=5 // pred_region
      // Predicated region
      $region29: #{mbconv_forward.7} parent=27 // pred_check
        %p180 = pneg %p31
      $region30: #{mbconv_forward.7} parent=27 // pred_check_branch
        %182 = sbr.rel (%p180) target = $region32
      $region31: #{mbconv_forward.7} parent=27 // pred_region
        %p183 = scmp.lt.s32.totalorder %s11, 1
        %s184 = scalar_select %p183, %s11, 1
        %s185 = smul.addr %s184, 2
        %s186 = smul.addr %s185, 4
        %s187 = scalar_lea.vmem %s0, %s186
      $region32: #{mbconv_forward.7} parent=27 // pred_fallthru
        _
      // Predicated region
      $region33: #{mbconv_forward.7} parent=27 // pred_check
        %p188 = pneg %p99
      $region34: #{mbconv_forward.7} parent=27 // pred_check_branch
        %190 = sbr.rel (%p188) target = $region36
      $region35: #{mbconv_forward.7} parent=27 // pred_region
        %p191 = scmp.lt.s32.totalorder %s11, 1
        %s192 = scalar_select %p191, %s11, 1
        %s193 = smul.addr %s192, 4
        %s194 = smul.addr %s193, 8
        %s195 = scalar_lea.vmem %s3, %s194
      $region36: #{mbconv_forward.7} parent=27 // pred_fallthru
        _
    $region28: #{mbconv_forward.7} parent=5 // pred_fallthru
      _
    %p196 = scmp.le.s32.totalorder 1, %s11
    %p197 = scmp.lt.s32.totalorder %s11, 3
    %p198 = pnand %p196, %p197
    %p199 = pneg %p198
    // Predicated region
    $region37: #{mbconv_forward.7} parent=5 // pred_check
      _
    $region38: #{mbconv_forward.7} parent=5 // pred_check_branch
      %201 = sbr.rel (%p198) target = $region40
    $region39: #{mbconv_forward.7} parent=5 // pred_region
      %s202 = ssub.s32 %s11, 1
      %p203 = scmp.lt.s32.totalorder %s16, 1
      %s204 = scalar_select %p203, %s16, 1
      %s205 = smul.addr %s204, 2
      %s206 = smul.addr %s205, 4
      %s207 = scalar_lea.vmem %s0, %s206
      %p208 = pneg %p37
      %p209 = pneg %p34
      %p210 = pneg %p58
      %p211 = pneg %p55
      %p212 = pneg %p79
      %p213 = pneg %p76
      %p214 = scmp.lt.s32.totalorder %s16, 1
      %s215 = scalar_select %p214, %s16, 1
      %s216 = smul.addr %s215, 4
      %s217 = smul.addr %s216, 8
      %s218 = scalar_lea.vmem %s3, %s217
      %p219 = pneg %p105
      %p220 = pneg %p102
      %p221 = pneg %p126
      %p222 = pneg %p123
      %p223 = pneg %p152
      %p224 = pneg %p149
      %p225 = scmp.lt.s32.totalorder %s16, 1
      %s226 = scalar_select %p225, %s16, 1
      %s227 = smul.addr %s226, 2
      %s228 = smul.addr %s227, 8
      %s229 = scalar_lea.vmem %s5, %s228
      %p230 = scmp.lt.s32.totalorder %s16, 1
      %s231 = scalar_select %p230, %s16, 1
      %s232 = smul.addr %s231, 2
      %s233 = smul.addr %s232, 4
      %s234 = scalar_lea.vmem %s0, %s233
      %p235 = scmp.lt.s32.totalorder %s16, 1
      %s236 = scalar_select %p235, %s16, 1
      %s237 = smul.addr %s236, 4
      %s238 = smul.addr %s237, 8
      %s239 = scalar_lea.vmem %s3, %s238
      %p240 = scmp.lt.s32.totalorder %s16, 1
      %s241 = scalar_select %p240, %s16, 1
      %s242 = smul.addr %s241, 2
      %s243 = smul.addr %s242, 8
      %s244 = scalar_lea.vmem %s5, %s243
      %v245 = vld [vmem:[%s4] sm:$0xff]
      %v246 = vld [vmem:[%s239] sm:$0xff]
      %v247 = vld [vmem:[%s239 + $0x8] sm:$0xff]
      %v248 = vld [vmem:[%s239 + $0x10] sm:$0xff]
      %v249 = vld [vmem:[%s239 + $0x18] sm:$0xff]
      %vm250 = vcmask 130048
      %v252 = vsel %vm250, %v245, 0
      %254 = vmatprep.subr.mxu0 0.0
      %255 = vmatpush1.msra.mxu0 0.0
      %256 = vmatprep.subr.mxu0 0.0
      %257 = vmatpush1.msra.mxu0 0.0
      %258 = vmatprep.subr.mxu0 0.0
      %259 = vmatpush1.msra.mxu0 0.0
      %260 = vmatprep.subr.mxu0 0.0
      %261 = vmatpush1.msra.mxu0 0.0
      %262 = vmatprep.subr.mxu0 0.0
      %263 = vmatpush1.msra.mxu0 0.0
      %264 = vmatprep.subr.mxu0 0.0
      %265 = vmatpush1.msra.mxu0 0.0
      %266 = vmatprep.subr.mxu0 0.0
      %267 = vmatpush1.msra.mxu0 0.0
      %268 = vmatprep.subr.mxu0 0.0
      %269 = vmatpush1.msra.mxu0 0.0
      %270 = vmatprep.subr.mxu0 0.0
      %271 = vmatpush1.msra.mxu0 0.0
      %272 = vmatprep.subr.mxu0 0.0
      %273 = vmatpush1.msra.mxu0 0.0
      %274 = vmatprep.subr.mxu0 0.0
      %275 = vmatpush1.msra.mxu0 0.0
      %276 = vmatprep.subr.mxu0 0.0
      %277 = vmatpush1.msra.mxu0 0.0
      %278 = vmatprep.subr.mxu0 0.0
      %279 = vmatpush1.msra.mxu0 0.0
      %280 = vmatprep.subr.mxu0 0.0
      %281 = vmatpush1.msra.mxu0 0.0
      %282 = vmatprep.subr.mxu0 %v249
      %283 = vmatpush1.msra.mxu0 %v248
      %284 = vmatprep.subr.mxu0 %v247
      %285 = vmatpush1.msra.mxu0 %v246
      %286 = vmatprep.subr.mxu0 0.0
      %287 = vmatpush2.msra.mxu0 0.0
      %288 = vmatprep.subr.mxu0 0.0
      %289 = vmatpush2.msra.mxu0 0.0
      %290 = vmatprep.subr.mxu0 0.0
      %291 = vmatpush2.msra.mxu0 0.0
      %292 = vmatprep.subr.mxu0 0.0
      %293 = vmatpush2.msra.mxu0 0.0
      %294 = vmatprep.subr.mxu0 0.0
      %295 = vmatpush2.msra.mxu0 0.0
      %296 = vmatprep.subr.mxu0 0.0
      %297 = vmatpush2.msra.mxu0 0.0
      %298 = vmatprep.subr.mxu0 0.0
      %299 = vmatpush2.msra.mxu0 0.0
      %300 = vmatprep.subr.mxu0 0.0
      %301 = vmatpush2.msra.mxu0 0.0
      %302 = vmatprep.subr.mxu0 0.0
      %303 = vmatpush2.msra.mxu0 0.0
      %304 = vmatprep.subr.mxu0 0.0
      %305 = vmatpush2.msra.mxu0 0.0
      %306 = vmatprep.subr.mxu0 0.0
      %307 = vmatpush2.msra.mxu0 0.0
      %308 = vmatprep.subr.mxu0 0.0
      %309 = vmatpush2.msra.mxu0 0.0
      %310 = vmatprep.subr.mxu0 0.0
      %311 = vmatpush2.msra.mxu0 0.0
      %312 = vmatprep.subr.mxu0 0.0
      %313 = vmatpush2.msra.mxu0 0.0
      %314 = vmatprep.subr.mxu0 0.0
      %315 = vmatpush2.msra.mxu0 0.0
      %316 = vmatprep.subr.mxu0 0.0
      %317 = vmatpush2.msra.mxu0 0.0
      %318 = vmatprep.mubr.f32.mxu0 0.0
      %319 = vmatmul.mubr.f32.gmra.mxu0 %v252
      %v320 = vpop.f32.mrf.mxu0
      %v321 = vadd.f32 0.0, %v320
      %v322 = vpop.f32.mrf.mxu0
      %v323 = vadd.f32 0.0, %v322
      %324 = vdwg.mxu0
      %v325 = vld [vmem:[%s234] sm:$0xff]
      %v326 = vunpack.c.l.bf16 %v325
      %v327 = vunpack.c.h.bf16 %v325
      %v328 = vld [vmem:[%s1] sm:$0xff]
      %330 = vset.pattern.permute.xlu0 0
      %331 = vperm.xlu0 %330, %v328
      %v332 = vpop.permute.xlu0 %331
      %v334 = vmul.f32 %v326, %v332
      %v335 = vmul.f32 %v327, %v332
      %v336 = vld [vmem:[%s2] sm:$0xff]
      %338 = vset.pattern.permute.xlu0 0
      %339 = vperm.xlu0 %338, %v336
      %v340 = vpop.permute.xlu0 %339
      %v342 = vadd.f32 %v334, %v340
      %v343 = vadd.f32 %v335, %v340
      %v344 = vadd.f32 %v342, %v321
      %v345 = vadd.f32 %v343, %v323
      %346 = vst [vmem:[%s244] sm:$0xff] %v344
      %347 = vst [vmem:[%s244 + $0x8] sm:$0xff] %v345
      %p348 = scmp.lt.s32.totalorder %s16, 1
      %s349 = scalar_select %p348, %s16, 1
      %s350 = smul.addr %s349, 2
      %s351 = smul.addr %s350, 8
      %s352 = scalar_lea.vmem %s5, %s351
      // Predicated region
      $region41: #{mbconv_forward.7} parent=39 // pred_check
        %p353 = pneg %p149
      $region42: #{mbconv_forward.7} parent=39 // pred_check_branch
        %355 = sbr.rel (%p353) target = $region44
      $region43: #{mbconv_forward.7} parent=39 // pred_region
        _
      $region44: #{mbconv_forward.7} parent=39 // pred_fallthru
        _
    $region40: #{mbconv_forward.7} parent=5 // pred_fallthru
      _
    %p356 = scmp.le.s32.totalorder 2, %s11
    // Predicated region
    $region45: #{mbconv_forward.7} parent=5 // pred_check
      %p357 = pneg %p356
    $region46: #{mbconv_forward.7} parent=5 // pred_check_branch
      %359 = sbr.rel (%p357) target = $region48
    $region47: #{mbconv_forward.7} parent=5 // pred_region
      %s360 = ssub.s32 %s11, 2
      // Predicated region
      $region49: #{mbconv_forward.7} parent=47 // pred_check
        %p361 = pneg %p155
      $region50: #{mbconv_forward.7} parent=47 // pred_check_branch
        %363 = sbr.rel (%p361) target = $region52
      $region51: #{mbconv_forward.7} parent=47 // pred_region
        %p364 = scmp.lt.s32.totalorder %s17, 1
        %s365 = scalar_select %p364, %s17, 1
        %s366 = smul.addr %s365, 2
        %s367 = smul.addr %s366, 8
        %s368 = scalar_lea.vmem %s5, %s367
      $region52: #{mbconv_forward.7} parent=47 // pred_fallthru
        _
    $region48: #{mbconv_forward.7} parent=5 // pred_fallthru
      _
  $region6: #{mbconv_forward.7} parent=0 // loop_footer
    %s15 = sadd.s32 1, %s11
  $region7: #{mbconv_forward.7} parent=0 // loop_footer_branch
    %10 = sbr.rel target = $region3
  $region8: #{mbconv_forward.7} parent=0 // loop_exit
    _

// kernel: mbconv_forward.6
$region0: #{mbconv_forward.6}
  #allocation0 [shape = 'u32[]', space=smem, size = 0x4, offset = 0x4, fixed_abs, tag = 'smem constant byte address 0x4 - core index']
  #allocation1 [shape = 'u32[144,128]{1,0:T(1,128)}', space=vmem, size = 0x12000, scoped, tag = 'internal scratch']
  %s0 = inlined_call_operand.vmem [shape: bf16[2,16,16,32], index: 0, kind: input, shape index: {}]
  %s1 = inlined_call_operand.vmem [shape: f32[1,32], index: 1, kind: input, shape index: {}]
  %s2 = inlined_call_operand.vmem [shape: f32[1,32], index: 2, kind: input, shape index: {}]
  %s3 = inlined_call_operand.vmem [shape: bf16[32,8], index: 3, kind: input, shape index: {}]
  %s4 = inlined_call_operand.vmem [shape: f32[1,8], index: 4, kind: input, shape index: {}]
  %s5 = inlined_call_operand.vmem [shape: bf16[8,32], index: 5, kind: input, shape index: {}]
  %s6 = inlined_call_operand.vmem [shape: f32[1,32], index: 6, kind: input, shape index: {}]
  %s7 = inlined_call_operand.vmem [shape: bf16[8,32], index: 7, kind: input, shape index: {}]
  %s8 = inlined_call_operand.vmem [shape: f32[8,1], index: 8, kind: input, shape index: {}]
  %s9 = inlined_call_operand.vmem [shape: bf16[2,8,256], index: 9, kind: output, shape index: {0}]
  %s10 = inlined_call_operand.vmem [shape: f32[2,8,2], index: 10, kind: output, shape index: {1}]
  %11 = xla_tuple %s9, %s10
  %s12 = sld [smem:[#allocation0]]
  $region77: #{mbconv_forward.6} parent=0
    _
  %s14 = ssub.s32 1, %s12
  %s15 = scalar_select 0, %s14, %s12
  loop: start=0, step=1, limit=4
  $region2: #{mbconv_forward.6} parent=0 // loop_pre_header
    _
  $region3: #{mbconv_forward.6} parent=0 // loop_header
    %s17 = sphi 0, %s21
    %p18 = scmp.ge.s32.totalorder %s17, 4
    %s27 = sphi 0, %s29
    %s30 = sphi 0, %s27
    %s31 = sphi 0, %s30
    %s47 = sphi 0, %s31
    %s51 = sphi 0, %s51
    %s53 = sphi 0, %s51
    %s54 = sphi 0, %s53
    %s68 = sphi 0, %s54
    %s72 = sphi 0, %s72
    %s74 = sphi 0, %s72
    %s75 = sphi 0, %s74
    %s89 = sphi 0, %s75
    %s93 = sphi 0, %s93
    %s95 = sphi 0, %s93
    %s96 = sphi 0, %s95
    %s110 = sphi 0, %s96
    %s114 = sphi 0, %s114
    %s116 = sphi 0, %s114
    %s117 = sphi 0, %s116
    %s131 = sphi 0, %s117
    %s135 = sphi 0, %s135
    %s137 = sphi 0, %s135
    %s138 = sphi 0, %s137
    %s152 = sphi 0, %s138
    %s156 = sphi 0, %s156
    %s158 = sphi 0, %s156
    %s159 = sphi 0, %s158
    %s173 = sphi 0, %s159
    %s177 = sphi 0, %s177
    %s179 = sphi 0, %s177
    %s180 = sphi 0, %s179
    %s194 = sphi 0, %s180
    %s198 = sphi 0, %s198
    %s200 = sphi 0, %s198
    %s201 = sphi 0, %s200
    %s215 = sphi 0, %s201
    %s221 = sphi 0, %s223
    %s224 = sphi 0, %s221
    %s225 = sphi 0, %s224
    %s241 = sphi 0, %s225
    %s247 = sphi 0, %s249
    %s250 = sphi 0, %s247
    %s251 = sphi 0, %s250
    %s267 = sphi 0, %s251
  $region4: #{mbconv_forward.6} parent=0 // loop_header_branch
    %20 = sbr.rel (%p18) target = $region8
  $region5: #{mbconv_forward.6} parent=0 // loop_body
    %s22 = ssub.s32 %s17, 1
    %s23 = ssub.s32 %s17, 2
    %s24 = sadd.s32 %s17, 1
    %s25 = ssub.s32 %s17, %s24
    %p26 = scmp.eq.s32.totalorder %s25, 0
    %s28 = sadd.s32 %s27, 1
    %s29 = scalar_select %p26, %s27, %s28
    %p32 = pneg %p26
    %p33 = scmp.eq.s32.totalorder %s17, 1
    %p34 = por %p32, %p33
    %p35 = scmp.ne.s32.totalorder %s27, %s30
    %p36 = scmp.eq.s32.totalorder %s17, 0
    %p37 = por %p35, %p36
    %p38 = scmp.ne.s32.totalorder %s27, %s30
    %p39 = scmp.eq.s32.totalorder %s22, 1
    %p40 = por %p38, %p39
    %p41 = scmp.ne.s32.totalorder %s30, %s31
    %p42 = scmp.eq.s32.totalorder %s22, 0
    %p43 = por %p41, %p42
    %p44 = scmp.ne.s32.totalorder %s30, %s31
    %p45 = scmp.eq.s32.totalorder %s23, 1
    %p46 = por %p44, %p45
    %p48 = scmp.ne.s32.totalorder %s31, %s47
    %p49 = scmp.eq.s32.totalorder %s23, 0
    %p50 = por %p48, %p49
    %s52 = sadd.s32 %s51, 1
    %p55 = scmp.eq.s32.totalorder %s17, 1
    %p56 = scmp.ne.s32.totalorder %s51, %s53
    %p57 = scmp.eq.s32.totalorder %s17, 0
    %p58 = por %p56, %p57
    %p59 = scmp.ne.s32.totalorder %s51, %s53
    %p60 = scmp.eq.s32.totalorder %s22, 1
    %p61 = por %p59, %p60
    %p62 = scmp.ne.s32.totalorder %s53, %s54
    %p63 = scmp.eq.s32.totalorder %s22, 0
    %p64 = por %p62, %p63
    %p65 = scmp.ne.s32.totalorder %s53, %s54
    %p66 = scmp.eq.s32.totalorder %s23, 1
    %p67 = por %p65, %p66
    %p69 = scmp.ne.s32.totalorder %s54, %s68
    %p70 = scmp.eq.s32.totalorder %s23, 0
    %p71 = por %p69, %p70
    %s73 = sadd.s32 %s72, 1
    %p76 = scmp.eq.s32.totalorder %s17, 1
    %p77 = scmp.ne.s32.totalorder %s72, %s74
    %p78 = scmp.eq.s32.totalorder %s17, 0
    %p79 = por %p77, %p78
    %p80 = scmp.ne.s32.totalorder %s72, %s74
    %p81 = scmp.eq.s32.totalorder %s22, 1
    %p82 = por %p80, %p81
    %p83 = scmp.ne.s32.totalorder %s74, %s75
    %p84 = scmp.eq.s32.totalorder %s22, 0
    %p85 = por %p83, %p84
    %p86 = scmp.ne.s32.totalorder %s74, %s75
    %p87 = scmp.eq.s32.totalorder %s23, 1
    %p88 = por %p86, %p87
    %p90 = scmp.ne.s32.totalorder %s75, %s89
    %p91 = scmp.eq.s32.totalorder %s23, 0
    %p92 = por %p90, %p91
    %s94 = sadd.s32 %s93, 1
    %p97 = scmp.eq.s32.totalorder %s17, 1
    %p98 = scmp.ne.s32.totalorder %s93, %s95
    %p99 = scmp.eq.s32.totalorder %s17, 0
    %p100 = por %p98, %p99
    %p101 = scmp.ne.s32.totalorder %s93, %s95
    %p102 = scmp.eq.s32.totalorder %s22, 1
    %p103 = por %p101, %p102
    %p104 = scmp.ne.s32.totalorder %s95, %s96
    %p105 = scmp.eq.s32.totalorder %s22, 0
    %p106 = por %p104, %p105
    %p107 = scmp.ne.s32.totalorder %s95, %s96
    %p108 = scmp.eq.s32.totalorder %s23, 1
    %p109 = por %p107, %p108
    %p111 = scmp.ne.s32.totalorder %s96, %s110
    %p112 = scmp.eq.s32.totalorder %s23, 0
    %p113 = por %p111, %p112
    %s115 = sadd.s32 %s114, 1
    %p118 = scmp.eq.s32.totalorder %s17, 1
    %p119 = scmp.ne.s32.totalorder %s114, %s116
    %p120 = scmp.eq.s32.totalorder %s17, 0
    %p121 = por %p119, %p120
    %p122 = scmp.ne.s32.totalorder %s114, %s116
    %p123 = scmp.eq.s32.totalorder %s22, 1
    %p124 = por %p122, %p123
    %p125 = scmp.ne.s32.totalorder %s116, %s117
    %p126 = scmp.eq.s32.totalorder %s22, 0
    %p127 = por %p125, %p126
    %p128 = scmp.ne.s32.totalorder %s116, %s117
    %p129 = scmp.eq.s32.totalorder %s23, 1
    %p130 = por %p128, %p129
    %p132 = scmp.ne.s32.totalorder %s117, %s131
    %p133 = scmp.eq.s32.totalorder %s23, 0
    %p134 = por %p132, %p133
    %s136 = sadd.s32 %s135, 1
    %p139 = scmp.eq.s32.totalorder %s17, 1
    %p140 = scmp.ne.s32.totalorder %s135, %s137
    %p141 = scmp.eq.s32.totalorder %s17, 0
    %p142 = por %p140, %p141
    %p143 = scmp.ne.s32.totalorder %s135, %s137
    %p144 = scmp.eq.s32.totalorder %s22, 1
    %p145 = por %p143, %p144
    %p146 = scmp.ne.s32.totalorder %s137, %s138
    %p147 = scmp.eq.s32.totalorder %s22, 0
    %p148 = por %p146, %p147
    %p149 = scmp.ne.s32.totalorder %s137, %s138
    %p150 = scmp.eq.s32.totalorder %s23, 1
    %p151 = por %p149, %p150
    %p153 = scmp.ne.s32.totalorder %s138, %s152
    %p154 = scmp.eq.s32.totalorder %s23, 0
    %p155 = por %p153, %p154
    %s157 = sadd.s32 %s156, 1
    %p160 = scmp.eq.s32.totalorder %s17, 1
    %p161 = scmp.ne.s32.totalorder %s156, %s158
    %p162 = scmp.eq.s32.totalorder %s17, 0
    %p163 = por %p161, %p162
    %p164 = scmp.ne.s32.totalorder %s156, %s158
    %p165 = scmp.eq.s32.totalorder %s22, 1
    %p166 = por %p164, %p165
    %p167 = scmp.ne.s32.totalorder %s158, %s159
    %p168 = scmp.eq.s32.totalorder %s22, 0
    %p169 = por %p167, %p168
    %p170 = scmp.ne.s32.totalorder %s158, %s159
    %p171 = scmp.eq.s32.totalorder %s23, 1
    %p172 = por %p170, %p171
    %p174 = scmp.ne.s32.totalorder %s159, %s173
    %p175 = scmp.eq.s32.totalorder %s23, 0
    %p176 = por %p174, %p175
    %s178 = sadd.s32 %s177, 1
    %p181 = scmp.eq.s32.totalorder %s17, 1
    %p182 = scmp.ne.s32.totalorder %s177, %s179
    %p183 = scmp.eq.s32.totalorder %s17, 0
    %p184 = por %p182, %p183
    %p185 = scmp.ne.s32.totalorder %s177, %s179
    %p186 = scmp.eq.s32.totalorder %s22, 1
    %p187 = por %p185, %p186
    %p188 = scmp.ne.s32.totalorder %s179, %s180
    %p189 = scmp.eq.s32.totalorder %s22, 0
    %p190 = por %p188, %p189
    %p191 = scmp.ne.s32.totalorder %s179, %s180
    %p192 = scmp.eq.s32.totalorder %s23, 1
    %p193 = por %p191, %p192
    %p195 = scmp.ne.s32.totalorder %s180, %s194
    %p196 = scmp.eq.s32.totalorder %s23, 0
    %p197 = por %p195, %p196
    %s199 = sadd.s32 %s198, 1
    %p202 = scmp.eq.s32.totalorder %s17, 1
    %p203 = scmp.ne.s32.totalorder %s198, %s200
    %p204 = scmp.eq.s32.totalorder %s17, 0
    %p205 = por %p203, %p204
    %p206 = scmp.ne.s32.totalorder %s198, %s200
    %p207 = scmp.eq.s32.totalorder %s22, 1
    %p208 = por %p206, %p207
    %p209 = scmp.ne.s32.totalorder %s200, %s201
    %p210 = scmp.eq.s32.totalorder %s22, 0
    %p211 = por %p209, %p210
    %p212 = scmp.ne.s32.totalorder %s200, %s201
    %p213 = scmp.eq.s32.totalorder %s23, 1
    %p214 = por %p212, %p213
    %p216 = scmp.ne.s32.totalorder %s201, %s215
    %p217 = scmp.eq.s32.totalorder %s23, 0
    %p218 = por %p216, %p217
    %s219 = ssub.s32 %s17, %s24
    %p220 = scmp.eq.s32.totalorder %s219, 0
    %s222 = sadd.s32 %s221, 1
    %s223 = scalar_select %p220, %s221, %s222
    %p226 = pneg %p220
    %p227 = scmp.eq.s32.totalorder %s17, 1
    %p228 = por %p226, %p227
    %p229 = scmp.ne.s32.totalorder %s221, %s224
    %p230 = scmp.eq.s32.totalorder %s17, 0
    %p231 = por %p229, %p230
    %p232 = scmp.ne.s32.totalorder %s221, %s224
    %p233 = scmp.eq.s32.totalorder %s22, 1
    %p234 = por %p232, %p233
    %p235 = scmp.ne.s32.totalorder %s224, %s225
    %p236 = scmp.eq.s32.totalorder %s22, 0
    %p237 = por %p235, %p236
    %p238 = scmp.ne.s32.totalorder %s224, %s225
    %p239 = scmp.eq.s32.totalorder %s23, 1
    %p240 = por %p238, %p239
    %p242 = scmp.ne.s32.totalorder %s225, %s241
    %p243 = scmp.eq.s32.totalorder %s23, 0
    %p244 = por %p242, %p243
    %s245 = ssub.s32 %s17, %s24
    %p246 = scmp.eq.s32.totalorder %s245, 0
    %s248 = sadd.s32 %s247, 1
    %s249 = scalar_select %p246, %s247, %s248
    %p252 = pneg %p246
    %p253 = scmp.eq.s32.totalorder %s17, 1
    %p254 = por %p252, %p253
    %p255 = scmp.ne.s32.totalorder %s247, %s250
    %p256 = scmp.eq.s32.totalorder %s17, 0
    %p257 = por %p255, %p256
    %p258 = scmp.ne.s32.totalorder %s247, %s250
    %p259 = scmp.eq.s32.totalorder %s22, 1
    %p260 = por %p258, %p259
    %p261 = scmp.ne.s32.totalorder %s250, %s251
    %p262 = scmp.eq.s32.totalorder %s22, 0
    %p263 = por %p261, %p262
    %p264 = scmp.ne.s32.totalorder %s250, %s251
    %p265 = scmp.eq.s32.totalorder %s23, 1
    %p266 = por %p264, %p265
    %p268 = scmp.ne.s32.totalorder %s251, %s267
    %p269 = scmp.eq.s32.totalorder %s23, 0
    %p270 = por %p268, %p269
    %p271 = scmp.le.s32.totalorder 1, %s17
    %p272 = scmp.lt.s32.totalorder %s17, 3
    %p273 = pnand %p271, %p272
    %p274 = pneg %p273
    // Predicated region
    $region9: #{mbconv_forward.6} parent=5 // pred_check
      _
    $region10: #{mbconv_forward.6} parent=5 // pred_check_branch
      %276 = sbr.rel (%p273) target = $region12
    $region11: #{mbconv_forward.6} parent=5 // pred_region
      %s277 = ssub.s32 %s17, 1
      // Predicated region
      $region13: #{mbconv_forward.6} parent=11 // pred_check
        %p278 = pneg %p64
      $region14: #{mbconv_forward.6} parent=11 // pred_check_branch
        %280 = sbr.rel (%p278) target = $region16
      $region15: #{mbconv_forward.6} parent=11 // pred_region
        _
      $region16: #{mbconv_forward.6} parent=11 // pred_fallthru
        _
      // Predicated region
      $region17: #{mbconv_forward.6} parent=11 // pred_check
        %p281 = pneg %p85
      $region18: #{mbconv_forward.6} parent=11 // pred_check_branch
        %283 = sbr.rel (%p281) target = $region20
      $region19: #{mbconv_forward.6} parent=11 // pred_region
        _
      $region20: #{mbconv_forward.6} parent=11 // pred_fallthru
        _
      // Predicated region
      $region21: #{mbconv_forward.6} parent=11 // pred_check
        %p284 = pneg %p106
      $region22: #{mbconv_forward.6} parent=11 // pred_check_branch
        %286 = sbr.rel (%p284) target = $region24
      $region23: #{mbconv_forward.6} parent=11 // pred_region
        _
      $region24: #{mbconv_forward.6} parent=11 // pred_fallthru
        _
      // Predicated region
      $region25: #{mbconv_forward.6} parent=11 // pred_check
        %p287 = pneg %p127
      $region26: #{mbconv_forward.6} parent=11 // pred_check_branch
        %289 = sbr.rel (%p287) target = $region28
      $region27: #{mbconv_forward.6} parent=11 // pred_region
        _
      $region28: #{mbconv_forward.6} parent=11 // pred_fallthru
        _
      // Predicated region
      $region29: #{mbconv_forward.6} parent=11 // pred_check
        %p290 = pneg %p148
      $region30: #{mbconv_forward.6} parent=11 // pred_check_branch
        %292 = sbr.rel (%p290) target = $region32
      $region31: #{mbconv_forward.6} parent=11 // pred_region
        _
      $region32: #{mbconv_forward.6} parent=11 // pred_fallthru
        _
      // Predicated region
      $region33: #{mbconv_forward.6} parent=11 // pred_check
        %p293 = pneg %p169
      $region34: #{mbconv_forward.6} parent=11 // pred_check_branch
        %295 = sbr.rel (%p293) target = $region36
      $region35: #{mbconv_forward.6} parent=11 // pred_region
        _
      $region36: #{mbconv_forward.6} parent=11 // pred_fallthru
        _
      // Predicated region
      $region37: #{mbconv_forward.6} parent=11 // pred_check
        %p296 = pneg %p190
      $region38: #{mbconv_forward.6} parent=11 // pred_check_branch
        %298 = sbr.rel (%p296) target = $region40
      $region39: #{mbconv_forward.6} parent=11 // pred_region
        _
      $region40: #{mbconv_forward.6} parent=11 // pred_fallthru
        _
      // Predicated region
      $region41: #{mbconv_forward.6} parent=11 // pred_check
        %p299 = pneg %p211
      $region42: #{mbconv_forward.6} parent=11 // pred_check_branch
        %301 = sbr.rel (%p299) target = $region44
      $region43: #{mbconv_forward.6} parent=11 // pred_region
        _
      $region44: #{mbconv_forward.6} parent=11 // pred_fallthru
        _
    $region12: #{mbconv_forward.6} parent=5 // pred_fallthru
      _
    %p302 = scmp.lt.s32.totalorder %s17, 2
    // Predicated region
    $region45: #{mbconv_forward.6} parent=5 // pred_check
      %p303 = pneg %p302
    $region46: #{mbconv_forward.6} parent=5 // pred_check_branch
      %305 = sbr.rel (%p303) target = $region48
    $region47: #{mbconv_forward.6} parent=5 // pred_region
      // Predicated region
      $region49: #{mbconv_forward.6} parent=47 // pred_check
        %p306 = pneg %p37
      $region50: #{mbconv_forward.6} parent=47 // pred_check_branch
        %308 = sbr.rel (%p306) target = $region52
      $region51: #{mbconv_forward.6} parent=47 // pred_region
        %p309 = scmp.lt.s32.totalorder %s17, 1
        %s310 = scalar_select %p309, %s17, 1
        %s311 = smul.addr %s310, 32
        %s312 = smul.addr %s311, 4
        %s313 = scalar_lea.vmem %s0, %s312
      $region52: #{mbconv_forward.6} parent=47 // pred_fallthru
        _
    $region48: #{mbconv_forward.6} parent=5 // pred_fallthru
      _
    %p314 = scmp.le.s32.totalorder 1, %s17
    %p315 = scmp.lt.s32.totalorder %s17, 3
    %p316 = pnand %p314, %p315
    %p317 = pneg %p316
    // Predicated region
    $region53: #{mbconv_forward.6} parent=5 // pred_check
      _
    $region54: #{mbconv_forward.6} parent=5 // pred_check_branch
      %319 = sbr.rel (%p316) target = $region56
    $region55: #{mbconv_forward.6} parent=5 // pred_region
      %s320 = ssub.s32 %s17, 1
      %p321 = scmp.lt.s32.totalorder %s22, 1
      %s322 = scalar_select %p321, %s22, 1
      %s323 = smul.addr %s322, 32
      %s324 = smul.addr %s323, 4
      %s325 = scalar_lea.vmem %s0, %s324
      %p326 = pneg %p43
      %p327 = pneg %p40
      %p328 = pneg %p64
      %p329 = pneg %p61
      %p330 = pneg %p85
      %p331 = pneg %p82
      %p332 = pneg %p106
      %p333 = pneg %p103
      %p334 = pneg %p127
      %p335 = pneg %p124
      %p336 = pneg %p148
      %p337 = pneg %p145
      %p338 = pneg %p169
      %p339 = pneg %p166
      %p340 = pneg %p190
      %p341 = pneg %p187
      %p342 = pneg %p211
      %p343 = pneg %p208
      %p344 = pneg %p237
      %p345 = pneg %p234
      %p346 = scmp.lt.s32.totalorder %s22, 1
      %s347 = scalar_select %p346, %s22, 1
      %s348 = smul.addr %s347, 2
      %s349 = smul.addr %s348, 4
      %s350 = scalar_lea.vmem %s9, %s349
      %p351 = pneg %p263
      %p352 = pneg %p260
      %p353 = scmp.lt.s32.totalorder %s22, 1
      %s354 = scalar_select %p353, %s22, 1
      %s355 = smul.addr %s354, 8
      %s356 = scalar_lea.vmem %s10, %s355
      %p357 = scmp.lt.s32.totalorder %s22, 1
      %s358 = scalar_select %p357, %s22, 1
      %s359 = smul.addr %s358, 32
      %s360 = smul.addr %s359, 4
      %s361 = scalar_lea.vmem %s0, %s360
      %p362 = scmp.lt.s32.totalorder %s22, 1
      %s363 = scalar_select %p362, %s22, 1
      %s364 = smul.addr %s363, 2
      %s365 = smul.addr %s364, 4
      %s366 = scalar_lea.vmem %s9, %s365
      %p367 = scmp.lt.s32.totalorder %s22, 1
      %s368 = scalar_select %p367, %s22, 1
      %s369 = smul.addr %s368, 8
      %s370 = scalar_lea.vmem %s10, %s369
      %v372 = vld [vmem:[%s361] sm:$0xf]
      %v373 = vld [vmem:[%s361 + $0x4] sm:$0xf]
      %v374 = vld [vmem:[%s361 + $0x8] sm:$0xf]
      %v375 = vld [vmem:[%s361 + $0xc] sm:$0xf]
      %v376 = vld [vmem:[%s361 + $0x10] sm:$0xf]
      %v377 = vld [vmem:[%s361 + $0x14] sm:$0xf]
      %v378 = vld [vmem:[%s361 + $0x18] sm:$0xf]
      %v379 = vld [vmem:[%s361 + $0x1c] sm:$0xf]
      %v380 = vld [vmem:[%s361 + $0x20] sm:$0xf]
      %v381 = vld [vmem:[%s361 + $0x24] sm:$0xf]
      %v382 = vld [vmem:[%s361 + $0x28] sm:$0xf]
      %v383 = vld [vmem:[%s361 + $0x2c] sm:$0xf]
      %v384 = vld [vmem:[%s361 + $0x30] sm:$0xf]
      %v385 = vld [vmem:[%s361 + $0x34] sm:$0xf]
      %v386 = vld [vmem:[%s361 + $0x38] sm:$0xf]
      %v387 = vld [vmem:[%s361 + $0x3c] sm:$0xf]
      %v388 = vld [vmem:[%s361 + $0x40] sm:$0xf]
      %v389 = vld [vmem:[%s361 + $0x44] sm:$0xf]
      %v390 = vld [vmem:[%s361 + $0x48] sm:$0xf]
      %v391 = vld [vmem:[%s361 + $0x4c] sm:$0xf]
      %v392 = vld [vmem:[%s361 + $0x50] sm:$0xf]
      %v393 = vld [vmem:[%s361 + $0x54] sm:$0xf]
      %v394 = vld [vmem:[%s361 + $0x58] sm:$0xf]
      %v395 = vld [vmem:[%s361 + $0x5c] sm:$0xf]
      %v396 = vld [vmem:[%s361 + $0x60] sm:$0xf]
      %v397 = vld [vmem:[%s361 + $0x64] sm:$0xf]
      %v398 = vld [vmem:[%s361 + $0x68] sm:$0xf]
      %v399 = vld [vmem:[%s361 + $0x6c] sm:$0xf]
      %v400 = vld [vmem:[%s361 + $0x70] sm:$0xf]
      %v401 = vld [vmem:[%s361 + $0x74] sm:$0xf]
      %v402 = vld [vmem:[%s361 + $0x78] sm:$0xf]
      %v403 = vld [vmem:[%s361 + $0x7c] sm:$0xf]
      %v404 = vunpack.c.l.bf16 %v372
      %v405 = vunpack.c.l.bf16 %v373
      %v406 = vunpack.c.l.bf16 %v374
      %v407 = vunpack.c.l.bf16 %v375
      %v408 = vunpack.c.l.bf16 %v376
      %v409 = vunpack.c.l.bf16 %v377
      %v410 = vunpack.c.l.bf16 %v378
      %v411 = vunpack.c.l.bf16 %v379
      %v412 = vunpack.c.l.bf16 %v380
      %v413 = vunpack.c.l.bf16 %v381
      %v414 = vunpack.c.l.bf16 %v382
      %v415 = vunpack.c.l.bf16 %v383
      %v416 = vunpack.c.l.bf16 %v384
      %v417 = vunpack.c.l.bf16 %v385
      %v418 = vunpack.c.l.bf16 %v386
      %v419 = vunpack.c.l.bf16 %v387
      %v420 = vunpack.c.l.bf16 %v388
      %v421 = vunpack.c.l.bf16 %v389
      %v422 = vunpack.c.l.bf16 %v390
      %v423 = vunpack.c.l.bf16 %v391
      %v424 = vunpack.c.l.bf16 %v392
      %v425 = vunpack.c.l.bf16 %v393
      %v426 = vunpack.c.l.bf16 %v394
      %v427 = vunpack.c.l.bf16 %v395
      %v428 = vunpack.c.l.bf16 %v396
      %v429 = vunpack.c.l.bf16 %v397
      %v430 = vunpack.c.l.bf16 %v398
      %v431 = vunpack.c.l.bf16 %v399
      %v432 = vunpack.c.l.bf16 %v400
      %v433 = vunpack.c.l.bf16 %v401
      %v434 = vunpack.c.l.bf16 %v402
      %v435 = vunpack.c.l.bf16 %v403
      %v436 = vld [vmem:[%s1] sm:$0x1]
      %v438 = vlaneseq
      %v439 = vshrl.u32 %v438, 7
      %v440 = vsub.s32 0, %v439
      %v441 = vrot.slane %v436, %v440
      %v443 = vmul.f32 %v404, %v441
      %v444 = vmul.f32 %v405, %v441
      %v445 = vmul.f32 %v406, %v441
      %v446 = vmul.f32 %v407, %v441
      %v447 = vmul.f32 %v408, %v441
      %v448 = vmul.f32 %v409, %v441
      %v449 = vmul.f32 %v410, %v441
      %v450 = vmul.f32 %v411, %v441
      %v451 = vmul.f32 %v412, %v441
      %v452 = vmul.f32 %v413, %v441
      %v453 = vmul.f32 %v414, %v441
      %v454 = vmul.f32 %v415, %v441
      %v455 = vmul.f32 %v416, %v441
      %v456 = vmul.f32 %v417, %v441
      %v457 = vmul.f32 %v418, %v441
      %v458 = vmul.f32 %v419, %v441
      %v459 = vmul.f32 %v420, %v441
      %v460 = vmul.f32 %v421, %v441
      %v461 = vmul.f32 %v422, %v441
      %v462 = vmul.f32 %v423, %v441
      %v463 = vmul.f32 %v424, %v441
      %v464 = vmul.f32 %v425, %v441
      %v465 = vmul.f32 %v426, %v441
      %v466 = vmul.f32 %v427, %v441
      %v467 = vmul.f32 %v428, %v441
      %v468 = vmul.f32 %v429, %v441
      %v469 = vmul.f32 %v430, %v441
      %v470 = vmul.f32 %v431, %v441
      %v471 = vmul.f32 %v432, %v441
      %v472 = vmul.f32 %v433, %v441
      %v473 = vmul.f32 %v434, %v441
      %v474 = vmul.f32 %v435, %v441
      %v475 = vld [vmem:[%s2] sm:$0x1]
      %v477 = vlaneseq
      %v478 = vshrl.u32 %v477, 7
      %v479 = vsub.s32 0, %v478
      %v480 = vrot.slane %v475, %v479
      %v482 = vadd.f32 %v443, %v480
      %v483 = vadd.f32 %v444, %v480
      %v484 = vadd.f32 %v445, %v480
      %v485 = vadd.f32 %v446, %v480
      %v486 = vadd.f32 %v447, %v480
      %v487 = vadd.f32 %v448, %v480
      %v488 = vadd.f32 %v449, %v480
      %v489 = vadd.f32 %v450, %v480
      %v490 = vadd.f32 %v451, %v480
      %v491 = vadd.f32 %v452, %v480
      %v492 = vadd.f32 %v453, %v480
      %v493 = vadd.f32 %v454, %v480
      %v494 = vadd.f32 %v455, %v480
      %v495 = vadd.f32 %v456, %v480
      %v496 = vadd.f32 %v457, %v480
      %v497 = vadd.f32 %v458, %v480
      %v498 = vadd.f32 %v459, %v480
      %v499 = vadd.f32 %v460, %v480
      %v500 = vadd.f32 %v461, %v480
      %v501 = vadd.f32 %v462, %v480
      %v502 = vadd.f32 %v463, %v480
      %v503 = vadd.f32 %v464, %v480
      %v504 = vadd.f32 %v465, %v480
      %v505 = vadd.f32 %v466, %v480
      %v506 = vadd.f32 %v467, %v480
      %v507 = vadd.f32 %v468, %v480
      %v508 = vadd.f32 %v469, %v480
      %v509 = vadd.f32 %v470, %v480
      %v510 = vadd.f32 %v471, %v480
      %v511 = vadd.f32 %v472, %v480
      %v512 = vadd.f32 %v473, %v480
      %v513 = vadd.f32 %v474, %v480
      %v514 = vadd.f32 %v482, 3.0
      %v515 = vadd.f32 %v483, 3.0
      %v516 = vadd.f32 %v484, 3.0
      %v517 = vadd.f32 %v485, 3.0
      %v518 = vadd.f32 %v486, 3.0
      %v519 = vadd.f32 %v487, 3.0
      %v520 = vadd.f32 %v488, 3.0
      %v521 = vadd.f32 %v489, 3.0
      %v522 = vadd.f32 %v490, 3.0
      %v523 = vadd.f32 %v491, 3.0
      %v524 = vadd.f32 %v492, 3.0
      %v525 = vadd.f32 %v493, 3.0
      %v526 = vadd.f32 %v494, 3.0
      %v527 = vadd.f32 %v495, 3.0
      %v528 = vadd.f32 %v496, 3.0
      %v529 = vadd.f32 %v497, 3.0
      %v530 = vadd.f32 %v498, 3.0
      %v531 = vadd.f32 %v499, 3.0
      %v532 = vadd.f32 %v500, 3.0
      %v533 = vadd.f32 %v501, 3.0
      %v534 = vadd.f32 %v502, 3.0
      %v535 = vadd.f32 %v503, 3.0
      %v536 = vadd.f32 %v504, 3.0
      %v537 = vadd.f32 %v505, 3.0
      %v538 = vadd.f32 %v506, 3.0
      %v539 = vadd.f32 %v507, 3.0
      %v540 = vadd.f32 %v508, 3.0
      %v541 = vadd.f32 %v509, 3.0
      %v542 = vadd.f32 %v510, 3.0
      %v543 = vadd.f32 %v511, 3.0
      %v544 = vadd.f32 %v512, 3.0
      %v545 = vadd.f32 %v513, 3.0
      %v546 = vmax.f32 %v514, 0.0
      %v547 = vmax.f32 %v515, 0.0
      %v548 = vmax.f32 %v516, 0.0
      %v549 = vmax.f32 %v517, 0.0
      %v550 = vmax.f32 %v518, 0.0
      %v551 = vmax.f32 %v519, 0.0
      %v552 = vmax.f32 %v520, 0.0
      %v553 = vmax.f32 %v521, 0.0
      %v554 = vmax.f32 %v522, 0.0
      %v555 = vmax.f32 %v523, 0.0
      %v556 = vmax.f32 %v524, 0.0
      %v557 = vmax.f32 %v525, 0.0
      %v558 = vmax.f32 %v526, 0.0
      %v559 = vmax.f32 %v527, 0.0
      %v560 = vmax.f32 %v528, 0.0
      %v561 = vmax.f32 %v529, 0.0
      %v562 = vmax.f32 %v530, 0.0
      %v563 = vmax.f32 %v531, 0.0
      %v564 = vmax.f32 %v532, 0.0
      %v565 = vmax.f32 %v533, 0.0
      %v566 = vmax.f32 %v534, 0.0
      %v567 = vmax.f32 %v535, 0.0
      %v568 = vmax.f32 %v536, 0.0
      %v569 = vmax.f32 %v537, 0.0
      %v570 = vmax.f32 %v538, 0.0
      %v571 = vmax.f32 %v539, 0.0
      %v572 = vmax.f32 %v540, 0.0
      %v573 = vmax.f32 %v541, 0.0
      %v574 = vmax.f32 %v542, 0.0
      %v575 = vmax.f32 %v543, 0.0
      %v576 = vmax.f32 %v544, 0.0
      %v577 = vmax.f32 %v545, 0.0
      %v578 = vmin.f32 %v546, 6.0
      %v579 = vmin.f32 %v547, 6.0
      %v580 = vmin.f32 %v548, 6.0
      %v581 = vmin.f32 %v549, 6.0
      %v582 = vmin.f32 %v550, 6.0
      %v583 = vmin.f32 %v551, 6.0
      %v584 = vmin.f32 %v552, 6.0
      %v585 = vmin.f32 %v553, 6.0
      %v586 = vmin.f32 %v554, 6.0
      %v587 = vmin.f32 %v555, 6.0
      %v588 = vmin.f32 %v556, 6.0
      %v589 = vmin.f32 %v557, 6.0
      %v590 = vmin.f32 %v558, 6.0
      %v591 = vmin.f32 %v559, 6.0
      %v592 = vmin.f32 %v560, 6.0
      %v593 = vmin.f32 %v561, 6.0
      %v594 = vmin.f32 %v562, 6.0
      %v595 = vmin.f32 %v563, 6.0
      %v596 = vmin.f32 %v564, 6.0
      %v597 = vmin.f32 %v565, 6.0
      %v598 = vmin.f32 %v566, 6.0
      %v599 = vmin.f32 %v567, 6.0
      %v600 = vmin.f32 %v568, 6.0
      %v601 = vmin.f32 %v569, 6.0
      %v602 = vmin.f32 %v570, 6.0
      %v603 = vmin.f32 %v571, 6.0
      %v604 = vmin.f32 %v572, 6.0
      %v605 = vmin.f32 %v573, 6.0
      %v606 = vmin.f32 %v574, 6.0
      %v607 = vmin.f32 %v575, 6.0
      %v608 = vmin.f32 %v576, 6.0
      %v609 = vmin.f32 %v577, 6.0
      %v610 = vrcp.pop 6.0
      %v611 = vmul.f32 %v578, %v610
      %v612 = vmul.f32 %v579, %v610
      %v613 = vmul.f32 %v580, %v610
      %v614 = vmul.f32 %v581, %v610
      %v615 = vmul.f32 %v582, %v610
      %v616 = vmul.f32 %v583, %v610
      %v617 = vmul.f32 %v584, %v610
      %v618 = vmul.f32 %v585, %v610
      %v619 = vmul.f32 %v586, %v610
      %v620 = vmul.f32 %v587, %v610
      %v621 = vmul.f32 %v588, %v610
      %v622 = vmul.f32 %v589, %v610
      %v623 = vmul.f32 %v590, %v610
      %v624 = vmul.f32 %v591, %v610
      %v625 = vmul.f32 %v592, %v610
      %v626 = vmul.f32 %v593, %v610
      %v627 = vmul.f32 %v594, %v610
      %v628 = vmul.f32 %v595, %v610
      %v629 = vmul.f32 %v596, %v610
      %v630 = vmul.f32 %v597, %v610
      %v631 = vmul.f32 %v598, %v610
      %v632 = vmul.f32 %v599, %v610
      %v633 = vmul.f32 %v600, %v610
      %v634 = vmul.f32 %v601, %v610
      %v635 = vmul.f32 %v602, %v610
      %v636 = vmul.f32 %v603, %v610
      %v637 = vmul.f32 %v604, %v610
      %v638 = vmul.f32 %v605, %v610
      %v639 = vmul.f32 %v606, %v610
      %v640 = vmul.f32 %v607, %v610
      %v641 = vmul.f32 %v608, %v610
      %v642 = vmul.f32 %v609, %v610
      %v643 = vmul.f32 %v482, %v611
      %v644 = vmul.f32 %v483, %v612
      %v645 = vmul.f32 %v484, %v613
      %v646 = vmul.f32 %v485, %v614
      %v647 = vmul.f32 %v486, %v615
      %v648 = vmul.f32 %v487, %v616
      %v649 = vmul.f32 %v488, %v617
      %v650 = vmul.f32 %v489, %v618
      %v651 = vmul.f32 %v490, %v619
      %v652 = vmul.f32 %v491, %v620
      %v653 = vmul.f32 %v492, %v621
      %v654 = vmul.f32 %v493, %v622
      %v655 = vmul.f32 %v494, %v623
      %v656 = vmul.f32 %v495, %v624
      %v657 = vmul.f32 %v496, %v625
      %v658 = vmul.f32 %v497, %v626
      %v659 = vmul.f32 %v498, %v627
      %v660 = vmul.f32 %v499, %v628
      %v661 = vmul.f32 %v500, %v629
      %v662 = vmul.f32 %v501, %v630
      %v663 = vmul.f32 %v502, %v631
      %v664 = vmul.f32 %v503, %v632
      %v665 = vmul.f32 %v504, %v633
      %v666 = vmul.f32 %v505, %v634
      %v667 = vmul.f32 %v506, %v635
      %v668 = vmul.f32 %v507, %v636
      %v669 = vmul.f32 %v508, %v637
      %v670 = vmul.f32 %v509, %v638
      %v671 = vmul.f32 %v510, %v639
      %v672 = vmul.f32 %v511, %v640
      %v673 = vmul.f32 %v512, %v641
      %v674 = vmul.f32 %v513, %v642
      %vm675 = vcmask 261120
      %v676 = vsel %vm675, %v643, 0.0
      %v677 = vsel %vm675, %v644, 0.0
      %v678 = vadd.f32 %v676, %v677
      %v679 = vsel %vm675, %v645, 0.0
      %v680 = vadd.f32 %v678, %v679
      %v681 = vsel %vm675, %v646, 0.0
      %v682 = vadd.f32 %v680, %v681
      %v683 = vsel %vm675, %v647, 0.0
      %v684 = vadd.f32 %v682, %v683
      %v685 = vsel %vm675, %v648, 0.0
      %v686 = vadd.f32 %v684, %v685
      %v687 = vsel %vm675, %v649, 0.0
      %v688 = vadd.f32 %v686, %v687
      %v689 = vsel %vm675, %v650, 0.0
      %v690 = vadd.f32 %v688, %v689
      %v691 = vsel %vm675, %v651, 0.0
      %v692 = vadd.f32 %v690, %v691
      %v693 = vsel %vm675, %v652, 0.0
      %v694 = vadd.f32 %v692, %v693
      %v695 = vsel %vm675, %v653, 0.0
      %v696 = vadd.f32 %v694, %v695
      %v697 = vsel %vm675, %v654, 0.0
      %v698 = vadd.f32 %v696, %v697
      %v699 = vsel %vm675, %v655, 0.0
      %v700 = vadd.f32 %v698, %v699
      %v701 = vsel %vm675, %v656, 0.0
      %v702 = vadd.f32 %v700, %v701
      %v703 = vsel %vm675, %v657, 0.0
      %v704 = vadd.f32 %v702, %v703
      %v705 = vsel %vm675, %v658, 0.0
      %v706 = vadd.f32 %v704, %v705
      %v707 = vsel %vm675, %v659, 0.0
      %v708 = vadd.f32 %v706, %v707
      %v709 = vsel %vm675, %v660, 0.0
      %v710 = vadd.f32 %v708, %v709
      %v711 = vsel %vm675, %v661, 0.0
      %v712 = vadd.f32 %v710, %v711
      %v713 = vsel %vm675, %v662, 0.0
      %v714 = vadd.f32 %v712, %v713
      %v715 = vsel %vm675, %v663, 0.0
      %v716 = vadd.f32 %v714, %v715
      %v717 = vsel %vm675, %v664, 0.0
      %v718 = vadd.f32 %v716, %v717
      %v719 = vsel %vm675, %v665, 0.0
      %v720 = vadd.f32 %v718, %v719
      %v721 = vsel %vm675, %v666, 0.0
      %v722 = vadd.f32 %v720, %v721
      %v723 = vsel %vm675, %v667, 0.0
      %v724 = vadd.f32 %v722, %v723
      %v725 = vsel %vm675, %v668, 0.0
      %v726 = vadd.f32 %v724, %v725
      %v727 = vsel %vm675, %v669, 0.0
      %v728 = vadd.f32 %v726, %v727
      %v729 = vsel %vm675, %v670, 0.0
      %v730 = vadd.f32 %v728, %v729
      %v731 = vsel %vm675, %v671, 0.0
      %v732 = vadd.f32 %v730, %v731
      %v733 = vsel %vm675, %v672, 0.0
      %v734 = vadd.f32 %v732, %v733
      %v735 = vsel %vm675, %v673, 0.0
      %v736 = vadd.f32 %v734, %v735
      %v737 = vsel %vm675, %v674, 0.0
      %v738 = vadd.f32 %v736, %v737
      %v739 = vrot.slane %v738, 4
      %v740 = vadd.f32 %v738, %v739
      %v741 = vrot.slane %v740, 2
      %v742 = vadd.f32 %v740, %v741
      %v743 = vrot.slane %v742, 1
      %v744 = vadd.f32 %v742, %v743
      %v745 = vmul.f32 %v744, 0.00390625
      %v746 = vpack.c.bf16 %v745, %v745
      %v747 = vld [vmem:[%s3] sm:$0xf]
      %v748 = vld [vmem:[%s3 + $0x4] sm:$0xf]
      %v749 = vld [vmem:[%s3 + $0x8] sm:$0xf]
      %v750 = vld [vmem:[%s3 + $0xc] sm:$0xf]
      %v751 = vld [vmem:[%s4] sm:$0x1]
      %v756 = vunpack.c.l.b16 %v747
      %v757 = vunpack.c.l.b16 %v748
      %v758 = vunpack.c.l.b16 %v749
      %v759 = vunpack.c.l.b16 %v750
      %v760 = vpack.c.b16 %v757, %v756
      %v761 = vpack.c.b16 %v759, %v758
      %v765 = vsel %vm675, %v746, 0
      %767 = vmatprep.subr.bf16.mxu0 0
      %768 = vmatpush1.bf16.msra.mxu0 0
      %769 = vmatprep.subr.bf16.mxu0 0
      %770 = vmatpush1.bf16.msra.mxu0 0
      %771 = vmatprep.subr.bf16.mxu0 0
      %772 = vmatpush1.bf16.msra.mxu0 0
      %773 = vmatprep.subr.bf16.mxu0 0
      %774 = vmatpush1.bf16.msra.mxu0 0
      %775 = vmatprep.subr.bf16.mxu0 0
      %776 = vmatpush1.bf16.msra.mxu0 0
      %777 = vmatprep.subr.bf16.mxu0 0
      %778 = vmatpush1.bf16.msra.mxu0 0
      %779 = vmatprep.subr.bf16.mxu0 0
      %780 = vmatpush1.bf16.msra.mxu0 %v761
      %781 = vmatprep.subr.bf16.mxu0 0
      %782 = vmatpush1.bf16.msra.mxu0 %v760
      %783 = vmatprep.subr.bf16.mxu0 0
      %784 = vmatpush2.bf16.msra.mxu0 0
      %785 = vmatprep.subr.bf16.mxu0 0
      %786 = vmatpush2.bf16.msra.mxu0 0
      %787 = vmatprep.subr.bf16.mxu0 0
      %788 = vmatpush2.bf16.msra.mxu0 0
      %789 = vmatprep.subr.bf16.mxu0 0
      %790 = vmatpush2.bf16.msra.mxu0 0
      %791 = vmatprep.subr.bf16.mxu0 0
      %792 = vmatpush2.bf16.msra.mxu0 0
      %793 = vmatprep.subr.bf16.mxu0 0
      %794 = vmatpush2.bf16.msra.mxu0 0
      %795 = vmatprep.subr.bf16.mxu0 0
      %796 = vmatpush2.bf16.msra.mxu0 0
      %797 = vmatprep.subr.bf16.mxu0 0
      %798 = vmatpush2.bf16.msra.mxu0 0
      %799 = vmatprep.mubr.bf16.mxu0 0
      %800 = vmatmul.mubr.bf16.gmra.mxu0 %v765
      %v801 = vpop.f32.mrf.mxu0
      %v802 = vadd.f32 %v751, %v801
      %v803 = vpop.f32.mrf.mxu0
      %v804 = vpop.f32.mrf.mxu0
      %v805 = vpop.f32.mrf.mxu0
      %806 = vdwg.mxu0
      %v807 = vadd.f32 %v802, 3.0
      %v808 = vmax.f32 %v807, 0.0
      %v809 = vmin.f32 %v808, 6.0
      %v810 = vmul.f32 %v809, %v610
      %v811 = vmul.f32 %v802, %v810
      %v812 = vpack.c.bf16 %v811, %v811
      %v813 = vld [vmem:[%s5] sm:$0xf]
      %v814 = vld [vmem:[%s6] sm:$0x1]
      %vm815 = vcmask 64512
      %v817 = vsel %vm815, %v812, 0
      %vm819 = vcmask 1043456
      %v821 = vsel %vm819, %v813, 0
      %823 = vmatprep.subr.bf16.mxu0 0
      %824 = vmatpush1.bf16.msra.mxu0 0
      %825 = vmatprep.subr.bf16.mxu0 0
      %826 = vmatpush1.bf16.msra.mxu0 0
      %827 = vmatprep.subr.bf16.mxu0 0
      %828 = vmatpush1.bf16.msra.mxu0 0
      %829 = vmatprep.subr.bf16.mxu0 0
      %830 = vmatpush1.bf16.msra.mxu0 0
      %831 = vmatprep.subr.bf16.mxu0 0
      %832 = vmatpush1.bf16.msra.mxu0 0
      %833 = vmatprep.subr.bf16.mxu0 0
      %834 = vmatpush1.bf16.msra.mxu0 0
      %835 = vmatprep.subr.bf16.mxu0 0
      %836 = vmatpush1.bf16.msra.mxu0 0
      %837 = vmatprep.subr.bf16.mxu0 0
      %838 = vmatpush1.bf16.msra.mxu0 %v821
      %839 = vmatprep.subr.bf16.mxu0 0
      %840 = vmatpush2.bf16.msra.mxu0 0
      %841 = vmatprep.subr.bf16.mxu0 0
      %842 = vmatpush2.bf16.msra.mxu0 0
      %843 = vmatprep.subr.bf16.mxu0 0
      %844 = vmatpush2.bf16.msra.mxu0 0
      %845 = vmatprep.subr.bf16.mxu0 0
      %846 = vmatpush2.bf16.msra.mxu0 0
      %847 = vmatprep.subr.bf16.mxu0 0
      %848 = vmatpush2.bf16.msra.mxu0 0
      %849 = vmatprep.subr.bf16.mxu0 0
      %850 = vmatpush2.bf16.msra.mxu0 0
      %851 = vmatprep.subr.bf16.mxu0 0
      %852 = vmatpush2.bf16.msra.mxu0 0
      %853 = vmatprep.subr.bf16.mxu0 0
      %854 = vmatpush2.bf16.msra.mxu0 0
      %855 = vmatprep.mubr.bf16.mxu0 0
      %856 = vmatmul.mubr.bf16.gmra.mxu0 %v817
      %v857 = vpop.f32.mrf.mxu0
      %v858 = vadd.f32 %v814, %v857
      %v859 = vpop.f32.mrf.mxu0
      %v860 = vpop.f32.mrf.mxu0
      %v861 = vpop.f32.mrf.mxu0
      %862 = vdwg.mxu0
      %v863 = vadd.f32 %v858, 3.0
      %v864 = vmax.f32 %v863, 0.0
      %v865 = vmin.f32 %v864, 6.0
      %v866 = vmul.f32 %v865, %v610
      %v867 = vlaneseq
      %v868 = vshrl.u32 %v867, 7
      %v869 = vsub.s32 0, %v868
      %v870 = vrot.slane %v866, %v869
      %v871 = vmul.f32 %v643, %v870
      %v872 = vmul.f32 %v644, %v870
      %v873 = vmul.f32 %v645, %v870
      %v874 = vmul.f32 %v646, %v870
      %v875 = vmul.f32 %v647, %v870
      %v876 = vmul.f32 %v648, %v870
      %v877 = vmul.f32 %v649, %v870
      %v878 = vmul.f32 %v650, %v870
      %v879 = vmul.f32 %v651, %v870
      %v880 = vmul.f32 %v652, %v870
      %v881 = vmul.f32 %v653, %v870
      %v882 = vmul.f32 %v654, %v870
      %v883 = vmul.f32 %v655, %v870
      %v884 = vmul.f32 %v656, %v870
      %v885 = vmul.f32 %v657, %v870
      %v886 = vmul.f32 %v658, %v870
      %v887 = vmul.f32 %v659, %v870
      %v888 = vmul.f32 %v660, %v870
      %v889 = vmul.f32 %v661, %v870
      %v890 = vmul.f32 %v662, %v870
      %v891 = vmul.f32 %v663, %v870
      %v892 = vmul.f32 %v664, %v870
      %v893 = vmul.f32 %v665, %v870
      %v894 = vmul.f32 %v666, %v870
      %v895 = vmul.f32 %v667, %v870
      %v896 = vmul.f32 %v668, %v870
      %v897 = vmul.f32 %v669, %v870
      %v898 = vmul.f32 %v670, %v870
      %v899 = vmul.f32 %v671, %v870
      %v900 = vmul.f32 %v672, %v870
      %v901 = vmul.f32 %v673, %v870
      %v902 = vmul.f32 %v674, %v870
      %v903 = vld [vmem:[%s7] sm:$0xf]
      %v904 = vpack.c.bf16 %v872, %v871
      %v905 = vpack.c.bf16 %v874, %v873
      %v906 = vpack.c.bf16 %v876, %v875
      %v907 = vpack.c.bf16 %v878, %v877
      %v908 = vpack.c.bf16 %v880, %v879
      %v909 = vpack.c.bf16 %v882, %v881
      %v910 = vpack.c.bf16 %v884, %v883
      %v911 = vpack.c.bf16 %v886, %v885
      %v912 = vpack.c.bf16 %v888, %v887
      %v913 = vpack.c.bf16 %v890, %v889
      %v914 = vpack.c.bf16 %v892, %v891
      %v915 = vpack.c.bf16 %v894, %v893
      %v916 = vpack.c.bf16 %v896, %v895
      %v917 = vpack.c.bf16 %v898, %v897
      %v918 = vpack.c.bf16 %v900, %v899
      %v919 = vpack.c.bf16 %v902, %v901
      %v920 = vld [vmem:[%s8] sm:$0xff]
      %922 = vset.pattern.permute.xlu0 0
      %923 = vperm.xlu0 %922, %v920
      %v924 = vpop.permute.xlu0 %923
      %v927 = vsel %vm675, %v903, 0
      %v930 = vsel %vm675, %v904, 0
      %v933 = vsel %vm675, %v905, 0
      %v936 = vsel %vm675, %v906, 0
      %v939 = vsel %vm675, %v907, 0
      %v942 = vsel %vm675, %v908, 0
      %v945 = vsel %vm675, %v909, 0
      %v948 = vsel %vm675, %v910, 0
      %v951 = vsel %vm675, %v911, 0
      %v954 = vsel %vm675, %v912, 0
      %v957 = vsel %vm675, %v913, 0
      %v960 = vsel %vm675, %v914, 0
      %v963 = vsel %vm675, %v915, 0
      %v966 = vsel %vm675, %v916, 0
      %v969 = vsel %vm675, %v917, 0
      %v972 = vsel %vm675, %v918, 0
      %v975 = vsel %vm675, %v919, 0
      %977 = vmatprep.subr.bf16.mxu0 0
      %978 = vmatpush1.bf16.xpose.msra.mxu0 %v951
      %979 = vmatprep.subr.bf16.mxu0 0
      %980 = vmatpush1.bf16.xpose.msra.mxu0 %v948
      %981 = vmatprep.subr.bf16.mxu0 0
      %982 = vmatpush1.bf16.xpose.msra.mxu0 %v945
      %983 = vmatprep.subr.bf16.mxu0 0
      %984 = vmatpush1.bf16.xpose.msra.mxu0 %v942
      %985 = vmatprep.subr.bf16.mxu0 0
      %986 = vmatpush1.bf16.xpose.msra.mxu0 %v939
      %987 = vmatprep.subr.bf16.mxu0 0
      %988 = vmatpush1.bf16.xpose.msra.mxu0 %v936
      %989 = vmatprep.subr.bf16.mxu0 0
      %990 = vmatpush1.bf16.xpose.msra.mxu0 %v933
      %991 = vmatprep.subr.bf16.mxu0 0
      %992 = vmatpush1.bf16.xpose.msra.mxu0 %v930
      %993 = vmatprep.subr.bf16.mxu0 0
      %994 = vmatpush2.bf16.xpose.msra.mxu0 %v975
      %995 = vmatprep.subr.bf16.mxu0 0
      %996 = vmatpush2.bf16.xpose.msra.mxu0 %v972
      %997 = vmatprep.subr.bf16.mxu0 0
      %998 = vmatpush2.bf16.xpose.msra.mxu0 %v969
      %999 = vmatprep.subr.bf16.mxu0 0
      %1000 = vmatpush2.bf16.xpose.msra.mxu0 %v966
      %1001 = vmatprep.subr.bf16.mxu0 0
      %1002 = vmatpush2.bf16.xpose.msra.mxu0 %v963
      %1003 = vmatprep.subr.bf16.mxu0 0
      %1004 = vmatpush2.bf16.xpose.msra.mxu0 %v960
      %1005 = vmatprep.subr.bf16.mxu0 0
      %1006 = vmatpush2.bf16.xpose.msra.mxu0 %v957
      %1007 = vmatprep.subr.bf16.mxu0 0
      %1008 = vmatpush2.bf16.xpose.msra.mxu0 %v954
      %1009 = vmatprep.mubr.bf16.mxu0 0
      %1010 = vmatmul.mubr.bf16.gmra.mxu0 %v927
      %v1011 = vpop.f32.mrf.mxu0
      %v1012 = vadd.f32 %v924, %v1011
      %v1013 = vpop.f32.mrf.mxu0
      %v1014 = vadd.f32 %v924, %v1013
      %v1015 = vpop.f32.mrf.mxu0
      %v1016 = vpop.f32.mrf.mxu0
      %1017 = vdwg.mxu0
      %v1018 = vpack.c.bf16 %v1012, %v1012
      %v1019 = vpack.c.bf16 %v1014, %v1014
      %v1022 = vunpack.c.l.b16 %v1018
      %v1023 = vunpack.c.l.b16 %v1019
      %v1024 = vpack.c.b16 %v1023, %v1022
      %1026 = vst [vmem:[%s366] sm:$0xff] %v1024
      %v1027 = vadd.f32 %v1012, %v1014
      %1028 = vadd.xlane.f32.xlu0 %v1027
      %v1029 = vpop.xlane.xlu0 %1028
      %v1030 = vmul.f32 %v1012, %v1012
      %v1031 = vmul.f32 %v1014, %v1014
      %v1032 = vadd.f32 %v1030, %v1031
      %1033 = vadd.xlane.f32.xlu0 %v1032
      %v1034 = vpop.xlane.xlu0 %1033
      %vm1035 = vcmask 7168
      %v1036 = vsel %vm1035, %v1029, %v1034
      %vm1037 = vcmask 15360
      %1038 = vst.msk [vmem:[%s370] sm:$0xff] %vm1037, %v1036
      %p1039 = scmp.lt.s32.totalorder %s22, 1
      %s1040 = scalar_select %p1039, %s22, 1
      %s1041 = smul.addr %s1040, 2
      %s1042 = smul.addr %s1041, 4
      %s1043 = scalar_lea.vmem %s9, %s1042
      %p1044 = scmp.lt.s32.totalorder %s22, 1
      %s1045 = scalar_select %p1044, %s22, 1
      %s1046 = smul.addr %s1045, 8
      %s1047 = scalar_lea.vmem %s10, %s1046
      // Predicated region
      $region57: #{mbconv_forward.6} parent=55 // pred_check
        %p1048 = pneg %p234
      $region58: #{mbconv_forward.6} parent=55 // pred_check_branch
        %1050 = sbr.rel (%p1048) target = $region60
      $region59: #{mbconv_forward.6} parent=55 // pred_region
        _
      $region60: #{mbconv_forward.6} parent=55 // pred_fallthru
        _
      // Predicated region
      $region61: #{mbconv_forward.6} parent=55 // pred_check
        %p1051 = pneg %p260
      $region62: #{mbconv_forward.6} parent=55 // pred_check_branch
        %1053 = sbr.rel (%p1051) target = $region64
      $region63: #{mbconv_forward.6} parent=55 // pred_region
        _
      $region64: #{mbconv_forward.6} parent=55 // pred_fallthru
        _
    $region56: #{mbconv_forward.6} parent=5 // pred_fallthru
      _
    %p1054 = scmp.le.s32.totalorder 2, %s17
    // Predicated region
    $region65: #{mbconv_forward.6} parent=5 // pred_check
      %p1055 = pneg %p1054
    $region66: #{mbconv_forward.6} parent=5 // pred_check_branch
      %1057 = sbr.rel (%p1055) target = $region68
    $region67: #{mbconv_forward.6} parent=5 // pred_region
      %s1058 = ssub.s32 %s17, 2
      // Predicated region
      $region69: #{mbconv_forward.6} parent=67 // pred_check
        %p1059 = pneg %p240
      $region70: #{mbconv_forward.6} parent=67 // pred_check_branch
        %1061 = sbr.rel (%p1059) target = $region72
      $region71: #{mbconv_forward.6} parent=67 // pred_region
        %p1062 = scmp.lt.s32.totalorder %s23, 1
        %s1063 = scalar_select %p1062, %s23, 1
        %s1064 = smul.addr %s1063, 2
        %s1065 = smul.addr %s1064, 4
        %s1066 = scalar_lea.vmem %s9, %s1065
      $region72: #{mbconv_forward.6} parent=67 // pred_fallthru
        _
      // Predicated region
      $region73: #{mbconv_forward.6} parent=67 // pred_check
        %p1067 = pneg %p266
      $region74: #{mbconv_forward.6} parent=67 // pred_check_branch
        %1069 = sbr.rel (%p1067) target = $region76
      $region75: #{mbconv_forward.6} parent=67 // pred_region
        %p1070 = scmp.lt.s32.totalorder %s23, 1
        %s1071 = scalar_select %p1070, %s23, 1
        %s1072 = smul.addr %s1071, 8
        %s1073 = scalar_lea.vmem %s10, %s1072
      $region76: #{mbconv_forward.6} parent=67 // pred_fallthru
        _
    $region68: #{mbconv_forward.6} parent=5 // pred_fallthru
      _
  $region6: #{mbconv_forward.6} parent=0 // loop_footer
    %s21 = sadd.s32 1, %s17
  $region7: #{mbconv_forward.6} parent=0 // loop_footer_branch
    %16 = sbr.rel target = $region3
  $region8: #{mbconv_forward.6} parent=0 // loop_exit
    _

// kernel: mbconv_forward.5
$region0: #{mbconv_forward.5}
  #allocation0 [shape = 'u32[]', space=smem, size = 0x4, offset = 0x4, fixed_abs, tag = 'smem constant byte address 0x4 - core index']
  #allocation1 [shape = 'u32[144,128]{1,0:T(1,128)}', space=vmem, size = 0x12000, scoped, tag = 'internal scratch']
  #allocation2 [shape = 'f32[18,32,32]{2,1,0:T(8,128)}', space=vmem, size = 0x48000, scoped, tag = 'scratch operand']
  %s0 = inlined_call_operand.vmem [shape: bf16[2,16,16,32], index: 0, kind: input, shape index: {}]
  %s1 = inlined_call_operand.vmem [shape: f32[1,32], index: 1, kind: input, shape index: {}]
  %s2 = inlined_call_operand.vmem [shape: f32[1,32], index: 2, kind: input, shape index: {}]
  %s3 = inlined_call_operand.vmem [shape: f32[18,32], index: 3, kind: input, shape index: {}]
  %s4 = inlined_call_operand.vmem [shape: f32[1,32], index: 4, kind: input, shape index: {}]
  %s5 = inlined_call_operand.vmem [shape: bf16[2,16,16,32], index: 5, kind: output, shape index: {0}]
  %s6 = inlined_call_operand.vmem [shape: f32[2,2,32], index: 6, kind: output, shape index: {1}]
  %7 = xla_tuple %s5, %s6
  %s8 = sld [smem:[#allocation0]]
  $region61: #{mbconv_forward.5} parent=0
    _
  %s10 = ssub.s32 1, %s8
  %s11 = scalar_select 0, %s10, %s8
  loop: start=0, step=1, limit=4
  $region2: #{mbconv_forward.5} parent=0 // loop_pre_header
    _
  $region3: #{mbconv_forward.5} parent=0 // loop_header
    %s13 = sphi 0, %s17
    %p14 = scmp.ge.s32.totalorder %s13, 4
    %s23 = sphi 0, %s25
    %s26 = sphi 0, %s23
    %s27 = sphi 0, %s26
    %s43 = sphi 0, %s27
    %s47 = sphi 0, %s47
    %s49 = sphi 0, %s47
    %s50 = sphi 0, %s49
    %s64 = sphi 0, %s50
    %s68 = sphi 0, %s68
    %s70 = sphi 0, %s68
    %s71 = sphi 0, %s70
    %s85 = sphi 0, %s71
    %s89 = sphi 0, %s89
    %s91 = sphi 0, %s89
    %s92 = sphi 0, %s91
    %s106 = sphi 0, %s92
    %s110 = sphi 0, %s110
    %s112 = sphi 0, %s110
    %s113 = sphi 0, %s112
    %s127 = sphi 0, %s113
    %s133 = sphi 0, %s135
    %s136 = sphi 0, %s133
    %s137 = sphi 0, %s136
    %s153 = sphi 0, %s137
    %s159 = sphi 0, %s161
    %s162 = sphi 0, %s159
    %s163 = sphi 0, %s162
    %s179 = sphi 0, %s163
  $region4: #{mbconv_forward.5} parent=0 // loop_header_branch
    %16 = sbr.rel (%p14) target = $region8
  $region5: #{mbconv_forward.5} parent=0 // loop_body
    %s18 = ssub.s32 %s13, 1
    %s19 = ssub.s32 %s13, 2
    %s20 = sadd.s32 %s13, 1
    %s21 = ssub.s32 %s13, %s20
    %p22 = scmp.eq.s32.totalorder %s21, 0
    %s24 = sadd.s32 %s23, 1
    %s25 = scalar_select %p22, %s23, %s24
    %p28 = pneg %p22
    %p29 = scmp.eq.s32.totalorder %s13, 1
    %p30 = por %p28, %p29
    %p31 = scmp.ne.s32.totalorder %s23, %s26
    %p32 = scmp.eq.s32.totalorder %s13, 0
    %p33 = por %p31, %p32
    %p34 = scmp.ne.s32.totalorder %s23, %s26
    %p35 = scmp.eq.s32.totalorder %s18, 1
    %p36 = por %p34, %p35
    %p37 = scmp.ne.s32.totalorder %s26, %s27
    %p38 = scmp.eq.s32.totalorder %s18, 0
    %p39 = por %p37, %p38
    %p40 = scmp.ne.s32.totalorder %s26, %s27
    %p41 = scmp.eq.s32.totalorder %s19, 1
    %p42 = por %p40, %p41
    %p44 = scmp.ne.s32.totalorder %s27, %s43
    %p45 = scmp.eq.s32.totalorder %s19, 0
    %p46 = por %p44, %p45
    %s48 = sadd.s32 %s47, 1
    %p51 = scmp.eq.s32.totalorder %s13, 1
    %p52 = scmp.ne.s32.totalorder %s47, %s49
    %p53 = scmp.eq.s32.totalorder %s13, 0
    %p54 = por %p52, %p53
    %p55 = scmp.ne.s32.totalorder %s47, %s49
    %p56 = scmp.eq.s32.totalorder %s18, 1
    %p57 = por %p55, %p56
    %p58 = scmp.ne.s32.totalorder %s49, %s50
    %p59 = scmp.eq.s32.totalorder %s18, 0
    %p60 = por %p58, %p59
    %p61 = scmp.ne.s32.totalorder %s49, %s50
    %p62 = scmp.eq.s32.totalorder %s19, 1
    %p63 = por %p61, %p62
    %p65 = scmp.ne.s32.totalorder %s50, %s64
    %p66 = scmp.eq.s32.totalorder %s19, 0
    %p67 = por %p65, %p66
    %s69 = sadd.s32 %s68, 1
    %p72 = scmp.eq.s32.totalorder %s13, 1
    %p73 = scmp.ne.s32.totalorder %s68, %s70
    %p74 = scmp.eq.s32.totalorder %s13, 0
    %p75 = por %p73, %p74
    %p76 = scmp.ne.s32.totalorder %s68, %s70
    %p77 = scmp.eq.s32.totalorder %s18, 1
    %p78 = por %p76, %p77
    %p79 = scmp.ne.s32.totalorder %s70, %s71
    %p80 = scmp.eq.s32.totalorder %s18, 0
    %p81 = por %p79, %p80
    %p82 = scmp.ne.s32.totalorder %s70, %s71
    %p83 = scmp.eq.s32.totalorder %s19, 1
    %p84 = por %p82, %p83
    %p86 = scmp.ne.s32.totalorder %s71, %s85
    %p87 = scmp.eq.s32.totalorder %s19, 0
    %p88 = por %p86, %p87
    %s90 = sadd.s32 %s89, 1
    %p93 = scmp.eq.s32.totalorder %s13, 1
    %p94 = scmp.ne.s32.totalorder %s89, %s91
    %p95 = scmp.eq.s32.totalorder %s13, 0
    %p96 = por %p94, %p95
    %p97 = scmp.ne.s32.totalorder %s89, %s91
    %p98 = scmp.eq.s32.totalorder %s18, 1
    %p99 = por %p97, %p98
    %p100 = scmp.ne.s32.totalorder %s91, %s92
    %p101 = scmp.eq.s32.totalorder %s18, 0
    %p102 = por %p100, %p101
    %p103 = scmp.ne.s32.totalorder %s91, %s92
    %p104 = scmp.eq.s32.totalorder %s19, 1
    %p105 = por %p103, %p104
    %p107 = scmp.ne.s32.totalorder %s92, %s106
    %p108 = scmp.eq.s32.totalorder %s19, 0
    %p109 = por %p107, %p108
    %s111 = sadd.s32 %s110, 1
    %p114 = scmp.eq.s32.totalorder %s13, 1
    %p115 = scmp.ne.s32.totalorder %s110, %s112
    %p116 = scmp.eq.s32.totalorder %s13, 0
    %p117 = por %p115, %p116
    %p118 = scmp.ne.s32.totalorder %s110, %s112
    %p119 = scmp.eq.s32.totalorder %s18, 1
    %p120 = por %p118, %p119
    %p121 = scmp.ne.s32.totalorder %s112, %s113
    %p122 = scmp.eq.s32.totalorder %s18, 0
    %p123 = por %p121, %p122
    %p124 = scmp.ne.s32.totalorder %s112, %s113
    %p125 = scmp.eq.s32.totalorder %s19, 1
    %p126 = por %p124, %p125
    %p128 = scmp.ne.s32.totalorder %s113, %s127
    %p129 = scmp.eq.s32.totalorder %s19, 0
    %p130 = por %p128, %p129
    %s131 = ssub.s32 %s13, %s20
    %p132 = scmp.eq.s32.totalorder %s131, 0
    %s134 = sadd.s32 %s133, 1
    %s135 = scalar_select %p132, %s133, %s134
    %p138 = pneg %p132
    %p139 = scmp.eq.s32.totalorder %s13, 1
    %p140 = por %p138, %p139
    %p141 = scmp.ne.s32.totalorder %s133, %s136
    %p142 = scmp.eq.s32.totalorder %s13, 0
    %p143 = por %p141, %p142
    %p144 = scmp.ne.s32.totalorder %s133, %s136
    %p145 = scmp.eq.s32.totalorder %s18, 1
    %p146 = por %p144, %p145
    %p147 = scmp.ne.s32.totalorder %s136, %s137
    %p148 = scmp.eq.s32.totalorder %s18, 0
    %p149 = por %p147, %p148
    %p150 = scmp.ne.s32.totalorder %s136, %s137
    %p151 = scmp.eq.s32.totalorder %s19, 1
    %p152 = por %p150, %p151
    %p154 = scmp.ne.s32.totalorder %s137, %s153
    %p155 = scmp.eq.s32.totalorder %s19, 0
    %p156 = por %p154, %p155
    %s157 = ssub.s32 %s13, %s20
    %p158 = scmp.eq.s32.totalorder %s157, 0
    %s160 = sadd.s32 %s159, 1
    %s161 = scalar_select %p158, %s159, %s160
    %p164 = pneg %p158
    %p165 = scmp.eq.s32.totalorder %s13, 1
    %p166 = por %p164, %p165
    %p167 = scmp.ne.s32.totalorder %s159, %s162
    %p168 = scmp.eq.s32.totalorder %s13, 0
    %p169 = por %p167, %p168
    %p170 = scmp.ne.s32.totalorder %s159, %s162
    %p171 = scmp.eq.s32.totalorder %s18, 1
    %p172 = por %p170, %p171
    %p173 = scmp.ne.s32.totalorder %s162, %s163
    %p174 = scmp.eq.s32.totalorder %s18, 0
    %p175 = por %p173, %p174
    %p176 = scmp.ne.s32.totalorder %s162, %s163
    %p177 = scmp.eq.s32.totalorder %s19, 1
    %p178 = por %p176, %p177
    %p180 = scmp.ne.s32.totalorder %s163, %s179
    %p181 = scmp.eq.s32.totalorder %s19, 0
    %p182 = por %p180, %p181
    %p183 = scmp.le.s32.totalorder 1, %s13
    %p184 = scmp.lt.s32.totalorder %s13, 3
    %p185 = pnand %p183, %p184
    %p186 = pneg %p185
    // Predicated region
    $region9: #{mbconv_forward.5} parent=5 // pred_check
      _
    $region10: #{mbconv_forward.5} parent=5 // pred_check_branch
      %188 = sbr.rel (%p185) target = $region12
    $region11: #{mbconv_forward.5} parent=5 // pred_region
      %s189 = ssub.s32 %s13, 1
      // Predicated region
      $region13: #{mbconv_forward.5} parent=11 // pred_check
        %p190 = pneg %p60
      $region14: #{mbconv_forward.5} parent=11 // pred_check_branch
        %192 = sbr.rel (%p190) target = $region16
      $region15: #{mbconv_forward.5} parent=11 // pred_region
        _
      $region16: #{mbconv_forward.5} parent=11 // pred_fallthru
        _
      // Predicated region
      $region17: #{mbconv_forward.5} parent=11 // pred_check
        %p193 = pneg %p81
      $region18: #{mbconv_forward.5} parent=11 // pred_check_branch
        %195 = sbr.rel (%p193) target = $region20
      $region19: #{mbconv_forward.5} parent=11 // pred_region
        _
      $region20: #{mbconv_forward.5} parent=11 // pred_fallthru
        _
      // Predicated region
      $region21: #{mbconv_forward.5} parent=11 // pred_check
        %p196 = pneg %p102
      $region22: #{mbconv_forward.5} parent=11 // pred_check_branch
        %198 = sbr.rel (%p196) target = $region24
      $region23: #{mbconv_forward.5} parent=11 // pred_region
        _
      $region24: #{mbconv_forward.5} parent=11 // pred_fallthru
        _
      // Predicated region
      $region25: #{mbconv_forward.5} parent=11 // pred_check
        %p199 = pneg %p123
      $region26: #{mbconv_forward.5} parent=11 // pred_check_branch
        %201 = sbr.rel (%p199) target = $region28
      $region27: #{mbconv_forward.5} parent=11 // pred_region
        _
      $region28: #{mbconv_forward.5} parent=11 // pred_fallthru
        _
    $region12: #{mbconv_forward.5} parent=5 // pred_fallthru
      _
    %p202 = scmp.lt.s32.totalorder %s13, 2
    // Predicated region
    $region29: #{mbconv_forward.5} parent=5 // pred_check
      %p203 = pneg %p202
    $region30: #{mbconv_forward.5} parent=5 // pred_check_branch
      %205 = sbr.rel (%p203) target = $region32
    $region31: #{mbconv_forward.5} parent=5 // pred_region
      // Predicated region
      $region33: #{mbconv_forward.5} parent=31 // pred_check
        %p206 = pneg %p33
      $region34: #{mbconv_forward.5} parent=31 // pred_check_branch
        %208 = sbr.rel (%p206) target = $region36
      $region35: #{mbconv_forward.5} parent=31 // pred_region
        %p209 = scmp.lt.s32.totalorder %s13, 1
        %s210 = scalar_select %p209, %s13, 1
        %s211 = smul.addr %s210, 32
        %s212 = smul.addr %s211, 4
        %s213 = scalar_lea.vmem %s0, %s212
      $region36: #{mbconv_forward.5} parent=31 // pred_fallthru
        _
    $region32: #{mbconv_forward.5} parent=5 // pred_fallthru
      _
    %p214 = scmp.le.s32.totalorder 1, %s13
    %p215 = scmp.lt.s32.totalorder %s13, 3
    %p216 = pnand %p214, %p215
    %p217 = pneg %p216
    // Predicated region
    $region37: #{mbconv_forward.5} parent=5 // pred_check
      _
    $region38: #{mbconv_forward.5} parent=5 // pred_check_branch
      %219 = sbr.rel (%p216) target = $region40
    $region39: #{mbconv_forward.5} parent=5 // pred_region
      %s220 = ssub.s32 %s13, 1
      %p221 = scmp.lt.s32.totalorder %s18, 1
      %s222 = scalar_select %p221, %s18, 1
      %s223 = smul.addr %s222, 32
      %s224 = smul.addr %s223, 4
      %s225 = scalar_lea.vmem %s0, %s224
      %p226 = pneg %p39
      %p227 = pneg %p36
      %p228 = pneg %p60
      %p229 = pneg %p57
      %p230 = pneg %p81
      %p231 = pneg %p78
      %p232 = pneg %p102
      %p233 = pneg %p99
      %p234 = pneg %p123
      %p235 = pneg %p120
      %p236 = pneg %p149
      %p237 = pneg %p146
      %p238 = scmp.lt.s32.totalorder %s18, 1
      %s239 = scalar_select %p238, %s18, 1
      %s240 = smul.addr %s239, 32
      %s241 = smul.addr %s240, 4
      %s242 = scalar_lea.vmem %s5, %s241
      %p243 = pneg %p175
      %p244 = pneg %p172
      %p245 = scmp.lt.s32.totalorder %s18, 1
      %s246 = scalar_select %p245, %s18, 1
      %s247 = smul.addr %s246, 2
      %s248 = scalar_lea.vmem %s6, %s247
      %p249 = scmp.lt.s32.totalorder %s18, 1
      %s250 = scalar_select %p249, %s18, 1
      %s251 = smul.addr %s250, 32
      %s252 = smul.addr %s251, 4
      %s253 = scalar_lea.vmem %s0, %s252
      %p254 = scmp.lt.s32.totalorder %s18, 1
      %s255 = scalar_select %p254, %s18, 1
      %s256 = smul.addr %s255, 32
      %s257 = smul.addr %s256, 4
      %s258 = scalar_lea.vmem %s5, %s257
      %p259 = scmp.lt.s32.totalorder %s18, 1
      %s260 = scalar_select %p259, %s18, 1
      %s261 = smul.addr %s260, 2
      %s262 = scalar_lea.vmem %s6, %s261
      %v263 = vld [vmem:[%s253] sm:$0xf]
      %v264 = vld [vmem:[%s253 + $0x4] sm:$0xf]
      %v265 = vld [vmem:[%s253 + $0x8] sm:$0xf]
      %v266 = vld [vmem:[%s253 + $0xc] sm:$0xf]
      %v267 = vld [vmem:[%s253 + $0x10] sm:$0xf]
      %v268 = vld [vmem:[%s253 + $0x14] sm:$0xf]
      %v269 = vld [vmem:[%s253 + $0x18] sm:$0xf]
      %v270 = vld [vmem:[%s253 + $0x1c] sm:$0xf]
      %v271 = vld [vmem:[%s253 + $0x20] sm:$0xf]
      %v272 = vld [vmem:[%s253 + $0x24] sm:$0xf]
      %v273 = vld [vmem:[%s253 + $0x28] sm:$0xf]
      %v274 = vld [vmem:[%s253 + $0x2c] sm:$0xf]
      %v275 = vld [vmem:[%s253 + $0x30] sm:$0xf]
      %v276 = vld [vmem:[%s253 + $0x34] sm:$0xf]
      %v277 = vld [vmem:[%s253 + $0x38] sm:$0xf]
      %v278 = vld [vmem:[%s253 + $0x3c] sm:$0xf]
      %v279 = vld [vmem:[%s253 + $0x40] sm:$0xf]
      %v280 = vld [vmem:[%s253 + $0x44] sm:$0xf]
      %v281 = vld [vmem:[%s253 + $0x48] sm:$0xf]
      %v282 = vld [vmem:[%s253 + $0x4c] sm:$0xf]
      %v283 = vld [vmem:[%s253 + $0x50] sm:$0xf]
      %v284 = vld [vmem:[%s253 + $0x54] sm:$0xf]
      %v285 = vld [vmem:[%s253 + $0x58] sm:$0xf]
      %v286 = vld [vmem:[%s253 + $0x5c] sm:$0xf]
      %v287 = vld [vmem:[%s253 + $0x60] sm:$0xf]
      %v288 = vld [vmem:[%s253 + $0x64] sm:$0xf]
      %v289 = vld [vmem:[%s253 + $0x68] sm:$0xf]
      %v290 = vld [vmem:[%s253 + $0x6c] sm:$0xf]
      %v291 = vld [vmem:[%s253 + $0x70] sm:$0xf]
      %v292 = vld [vmem:[%s253 + $0x74] sm:$0xf]
      %v293 = vld [vmem:[%s253 + $0x78] sm:$0xf]
      %v294 = vld [vmem:[%s253 + $0x7c] sm:$0xf]
      %v295 = vunpack.c.l.bf16 %v263
      %v296 = vunpack.c.l.bf16 %v264
      %v297 = vunpack.c.l.bf16 %v265
      %v298 = vunpack.c.l.bf16 %v266
      %v299 = vunpack.c.l.bf16 %v267
      %v300 = vunpack.c.l.bf16 %v268
      %v301 = vunpack.c.l.bf16 %v269
      %v302 = vunpack.c.l.bf16 %v270
      %v303 = vunpack.c.l.bf16 %v271
      %v304 = vunpack.c.l.bf16 %v272
      %v305 = vunpack.c.l.bf16 %v273
      %v306 = vunpack.c.l.bf16 %v274
      %v307 = vunpack.c.l.bf16 %v275
      %v308 = vunpack.c.l.bf16 %v276
      %v309 = vunpack.c.l.bf16 %v277
      %v310 = vunpack.c.l.bf16 %v278
      %v311 = vunpack.c.l.bf16 %v279
      %v312 = vunpack.c.l.bf16 %v280
      %v313 = vunpack.c.l.bf16 %v281
      %v314 = vunpack.c.l.bf16 %v282
      %v315 = vunpack.c.l.bf16 %v283
      %v316 = vunpack.c.l.bf16 %v284
      %v317 = vunpack.c.l.bf16 %v285
      %v318 = vunpack.c.l.bf16 %v286
      %v319 = vunpack.c.l.bf16 %v287
      %v320 = vunpack.c.l.bf16 %v288
      %v321 = vunpack.c.l.bf16 %v289
      %v322 = vunpack.c.l.bf16 %v290
      %v323 = vunpack.c.l.bf16 %v291
      %v324 = vunpack.c.l.bf16 %v292
      %v325 = vunpack.c.l.bf16 %v293
      %v326 = vunpack.c.l.bf16 %v294
      %v327 = vld [vmem:[%s1] sm:$0x1]
      %v329 = vlaneseq
      %v330 = vshrl.u32 %v329, 7
      %v331 = vsub.s32 0, %v330
      %v332 = vrot.slane %v327, %v331
      %v334 = vmul.f32 %v295, %v332
      %v335 = vmul.f32 %v296, %v332
      %v336 = vmul.f32 %v297, %v332
      %v337 = vmul.f32 %v298, %v332
      %v338 = vmul.f32 %v299, %v332
      %v339 = vmul.f32 %v300, %v332
      %v340 = vmul.f32 %v301, %v332
      %v341 = vmul.f32 %v302, %v332
      %v342 = vmul.f32 %v303, %v332
      %v343 = vmul.f32 %v304, %v332
      %v344 = vmul.f32 %v305, %v332
      %v345 = vmul.f32 %v306, %v332
      %v346 = vmul.f32 %v307, %v332
      %v347 = vmul.f32 %v308, %v332
      %v348 = vmul.f32 %v309, %v332
      %v349 = vmul.f32 %v310, %v332
      %v350 = vmul.f32 %v311, %v332
      %v351 = vmul.f32 %v312, %v332
      %v352 = vmul.f32 %v313, %v332
      %v353 = vmul.f32 %v314, %v332
      %v354 = vmul.f32 %v315, %v332
      %v355 = vmul.f32 %v316, %v332
      %v356 = vmul.f32 %v317, %v332
      %v357 = vmul.f32 %v318, %v332
      %v358 = vmul.f32 %v319, %v332
      %v359 = vmul.f32 %v320, %v332
      %v360 = vmul.f32 %v321, %v332
      %v361 = vmul.f32 %v322, %v332
      %v362 = vmul.f32 %v323, %v332
      %v363 = vmul.f32 %v324, %v332
      %v364 = vmul.f32 %v325, %v332
      %v365 = vmul.f32 %v326, %v332
      %v366 = vld [vmem:[%s2] sm:$0x1]
      %v368 = vlaneseq
      %v369 = vshrl.u32 %v368, 7
      %v370 = vsub.s32 0, %v369
      %v371 = vrot.slane %v366, %v370
      %v373 = vadd.f32 %v334, %v371
      %v374 = vadd.f32 %v335, %v371
      %v375 = vadd.f32 %v336, %v371
      %v376 = vadd.f32 %v337, %v371
      %v377 = vadd.f32 %v338, %v371
      %v378 = vadd.f32 %v339, %v371
      %v379 = vadd.f32 %v340, %v371
      %v380 = vadd.f32 %v341, %v371
      %v381 = vadd.f32 %v342, %v371
      %v382 = vadd.f32 %v343, %v371
      %v383 = vadd.f32 %v344, %v371
      %v384 = vadd.f32 %v345, %v371
      %v385 = vadd.f32 %v346, %v371
      %v386 = vadd.f32 %v347, %v371
      %v387 = vadd.f32 %v348, %v371
      %v388 = vadd.f32 %v349, %v371
      %v389 = vadd.f32 %v350, %v371
      %v390 = vadd.f32 %v351, %v371
      %v391 = vadd.f32 %v352, %v371
      %v392 = vadd.f32 %v353, %v371
      %v393 = vadd.f32 %v354, %v371
      %v394 = vadd.f32 %v355, %v371
      %v395 = vadd.f32 %v356, %v371
      %v396 = vadd.f32 %v357, %v371
      %v397 = vadd.f32 %v358, %v371
      %v398 = vadd.f32 %v359, %v371
      %v399 = vadd.f32 %v360, %v371
      %v400 = vadd.f32 %v361, %v371
      %v401 = vadd.f32 %v362, %v371
      %v402 = vadd.f32 %v363, %v371
      %v403 = vadd.f32 %v364, %v371
      %v404 = vadd.f32 %v365, %v371
      %v405 = vadd.f32 %v373, 3.0
      %v406 = vadd.f32 %v374, 3.0
      %v407 = vadd.f32 %v375, 3.0
      %v408 = vadd.f32 %v376, 3.0
      %v409 = vadd.f32 %v377, 3.0
      %v410 = vadd.f32 %v378, 3.0
      %v411 = vadd.f32 %v379, 3.0
      %v412 = vadd.f32 %v380, 3.0
      %v413 = vadd.f32 %v381, 3.0
      %v414 = vadd.f32 %v382, 3.0
      %v415 = vadd.f32 %v383, 3.0
      %v416 = vadd.f32 %v384, 3.0
      %v417 = vadd.f32 %v385, 3.0
      %v418 = vadd.f32 %v386, 3.0
      %v419 = vadd.f32 %v387, 3.0
      %v420 = vadd.f32 %v388, 3.0
      %v421 = vadd.f32 %v389, 3.0
      %v422 = vadd.f32 %v390, 3.0
      %v423 = vadd.f32 %v391, 3.0
      %v424 = vadd.f32 %v392, 3.0
      %v425 = vadd.f32 %v393, 3.0
      %v426 = vadd.f32 %v394, 3.0
      %v427 = vadd.f32 %v395, 3.0
      %v428 = vadd.f32 %v396, 3.0
      %v429 = vadd.f32 %v397, 3.0
      %v430 = vadd.f32 %v398, 3.0
      %v431 = vadd.f32 %v399, 3.0
      %v432 = vadd.f32 %v400, 3.0
      %v433 = vadd.f32 %v401, 3.0
      %v434 = vadd.f32 %v402, 3.0
      %v435 = vadd.f32 %v403, 3.0
      %v436 = vadd.f32 %v404, 3.0
      %v437 = vmax.f32 %v405, 0.0
      %v438 = vmax.f32 %v406, 0.0
      %v439 = vmax.f32 %v407, 0.0
      %v440 = vmax.f32 %v408, 0.0
      %v441 = vmax.f32 %v409, 0.0
      %v442 = vmax.f32 %v410, 0.0
      %v443 = vmax.f32 %v411, 0.0
      %v444 = vmax.f32 %v412, 0.0
      %v445 = vmax.f32 %v413, 0.0
      %v446 = vmax.f32 %v414, 0.0
      %v447 = vmax.f32 %v415, 0.0
      %v448 = vmax.f32 %v416, 0.0
      %v449 = vmax.f32 %v417, 0.0
      %v450 = vmax.f32 %v418, 0.0
      %v451 = vmax.f32 %v419, 0.0
      %v452 = vmax.f32 %v420, 0.0
      %v453 = vmax.f32 %v421, 0.0
      %v454 = vmax.f32 %v422, 0.0
      %v455 = vmax.f32 %v423, 0.0
      %v456 = vmax.f32 %v424, 0.0
      %v457 = vmax.f32 %v425, 0.0
      %v458 = vmax.f32 %v426, 0.0
      %v459 = vmax.f32 %v427, 0.0
      %v460 = vmax.f32 %v428, 0.0
      %v461 = vmax.f32 %v429, 0.0
      %v462 = vmax.f32 %v430, 0.0
      %v463 = vmax.f32 %v431, 0.0
      %v464 = vmax.f32 %v432, 0.0
      %v465 = vmax.f32 %v433, 0.0
      %v466 = vmax.f32 %v434, 0.0
      %v467 = vmax.f32 %v435, 0.0
      %v468 = vmax.f32 %v436, 0.0
      %v469 = vmin.f32 %v437, 6.0
      %v470 = vmin.f32 %v438, 6.0
      %v471 = vmin.f32 %v439, 6.0
      %v472 = vmin.f32 %v440, 6.0
      %v473 = vmin.f32 %v441, 6.0
      %v474 = vmin.f32 %v442, 6.0
      %v475 = vmin.f32 %v443, 6.0
      %v476 = vmin.f32 %v444, 6.0
      %v477 = vmin.f32 %v445, 6.0
      %v478 = vmin.f32 %v446, 6.0
      %v479 = vmin.f32 %v447, 6.0
      %v480 = vmin.f32 %v448, 6.0
      %v481 = vmin.f32 %v449, 6.0
      %v482 = vmin.f32 %v450, 6.0
      %v483 = vmin.f32 %v451, 6.0
      %v484 = vmin.f32 %v452, 6.0
      %v485 = vmin.f32 %v453, 6.0
      %v486 = vmin.f32 %v454, 6.0
      %v487 = vmin.f32 %v455, 6.0
      %v488 = vmin.f32 %v456, 6.0
      %v489 = vmin.f32 %v457, 6.0
      %v490 = vmin.f32 %v458, 6.0
      %v491 = vmin.f32 %v459, 6.0
      %v492 = vmin.f32 %v460, 6.0
      %v493 = vmin.f32 %v461, 6.0
      %v494 = vmin.f32 %v462, 6.0
      %v495 = vmin.f32 %v463, 6.0
      %v496 = vmin.f32 %v464, 6.0
      %v497 = vmin.f32 %v465, 6.0
      %v498 = vmin.f32 %v466, 6.0
      %v499 = vmin.f32 %v467, 6.0
      %v500 = vmin.f32 %v468, 6.0
      %v501 = vrcp.pop 6.0
      %v502 = vmul.f32 %v469, %v501
      %v503 = vmul.f32 %v470, %v501
      %v504 = vmul.f32 %v471, %v501
      %v505 = vmul.f32 %v472, %v501
      %v506 = vmul.f32 %v473, %v501
      %v507 = vmul.f32 %v474, %v501
      %v508 = vmul.f32 %v475, %v501
      %v509 = vmul.f32 %v476, %v501
      %v510 = vmul.f32 %v477, %v501
      %v511 = vmul.f32 %v478, %v501
      %v512 = vmul.f32 %v479, %v501
      %v513 = vmul.f32 %v480, %v501
      %v514 = vmul.f32 %v481, %v501
      %v515 = vmul.f32 %v482, %v501
      %v516 = vmul.f32 %v483, %v501
      %v517 = vmul.f32 %v484, %v501
      %v518 = vmul.f32 %v485, %v501
      %v519 = vmul.f32 %v486, %v501
      %v520 = vmul.f32 %v487, %v501
      %v521 = vmul.f32 %v488, %v501
      %v522 = vmul.f32 %v489, %v501
      %v523 = vmul.f32 %v490, %v501
      %v524 = vmul.f32 %v491, %v501
      %v525 = vmul.f32 %v492, %v501
      %v526 = vmul.f32 %v493, %v501
      %v527 = vmul.f32 %v494, %v501
      %v528 = vmul.f32 %v495, %v501
      %v529 = vmul.f32 %v496, %v501
      %v530 = vmul.f32 %v497, %v501
      %v531 = vmul.f32 %v498, %v501
      %v532 = vmul.f32 %v499, %v501
      %v533 = vmul.f32 %v500, %v501
      %v534 = vmul.f32 %v373, %v502
      %v535 = vmul.f32 %v374, %v503
      %v536 = vmul.f32 %v375, %v504
      %v537 = vmul.f32 %v376, %v505
      %v538 = vmul.f32 %v377, %v506
      %v539 = vmul.f32 %v378, %v507
      %v540 = vmul.f32 %v379, %v508
      %v541 = vmul.f32 %v380, %v509
      %v542 = vmul.f32 %v381, %v510
      %v543 = vmul.f32 %v382, %v511
      %v544 = vmul.f32 %v383, %v512
      %v545 = vmul.f32 %v384, %v513
      %v546 = vmul.f32 %v385, %v514
      %v547 = vmul.f32 %v386, %v515
      %v548 = vmul.f32 %v387, %v516
      %v549 = vmul.f32 %v388, %v517
      %v550 = vmul.f32 %v389, %v518
      %v551 = vmul.f32 %v390, %v519
      %v552 = vmul.f32 %v391, %v520
      %v553 = vmul.f32 %v392, %v521
      %v554 = vmul.f32 %v393, %v522
      %v555 = vmul.f32 %v394, %v523
      %v556 = vmul.f32 %v395, %v524
      %v557 = vmul.f32 %v396, %v525
      %v558 = vmul.f32 %v397, %v526
      %v559 = vmul.f32 %v398, %v527
      %v560 = vmul.f32 %v399, %v528
      %v561 = vmul.f32 %v400, %v529
      %v562 = vmul.f32 %v401, %v530
      %v563 = vmul.f32 %v402, %v531
      %v564 = vmul.f32 %v403, %v532
      %v565 = vmul.f32 %v404, %v533
      %vm566 = vcmask 261120
      %567 = vst.msk [vmem:[#allocation2] sm:$0xff] %vm566, 0.0
      %568 = vst.msk [vmem:[#allocation2 + $0x8] sm:$0xff] %vm566, 0.0
      %569 = vst.msk [vmem:[#allocation2 + $0x10] sm:$0xff] %vm566, 0.0
      %570 = vst.msk [vmem:[#allocation2 + $0x18] sm:$0xff] %vm566, 0.0
      %s571 = scalar_lea.vmem [#allocation2], 544
      %572 = vst.msk [vmem:[%s571] sm:$0xff] %vm566, 0.0
      %573 = vst.msk [vmem:[%s571 + $0x8] sm:$0xff] %vm566, 0.0
      %574 = vst.msk [vmem:[%s571 + $0x10] sm:$0xff] %vm566, 0.0
      %575 = vst.msk [vmem:[%s571 + $0x18] sm:$0xff] %vm566, 0.0
      %s576 = scalar_lea.vmem [#allocation2], 32
      %vm577 = vcmask 253952
      %578 = vst.msk [vmem:[%s576 + $0x7] sm:$0x1] %vm577, 0.0
      %579 = vst.msk [vmem:[%s576 + $0x27] sm:$0x1] %vm577, 0.0
      %580 = vst.msk [vmem:[%s576 + $0x47] sm:$0x1] %vm577, 0.0
      %581 = vst.msk [vmem:[%s576 + $0x67] sm:$0x1] %vm577, 0.0
      %582 = vst.msk [vmem:[%s576 + $0x87] sm:$0x1] %vm577, 0.0
      %583 = vst.msk [vmem:[%s576 + $0xa7] sm:$0x1] %vm577, 0.0
      %584 = vst.msk [vmem:[%s576 + $0xc7] sm:$0x1] %vm577, 0.0
      %585 = vst.msk [vmem:[%s576 + $0xe7] sm:$0x1] %vm577, 0.0
      %586 = vst.msk [vmem:[%s576 + $0x107] sm:$0x1] %vm577, 0.0
      %587 = vst.msk [vmem:[%s576 + $0x127] sm:$0x1] %vm577, 0.0
      %588 = vst.msk [vmem:[%s576 + $0x147] sm:$0x1] %vm577, 0.0
      %589 = vst.msk [vmem:[%s576 + $0x167] sm:$0x1] %vm577, 0.0
      %590 = vst.msk [vmem:[%s576 + $0x187] sm:$0x1] %vm577, 0.0
      %591 = vst.msk [vmem:[%s576 + $0x1a7] sm:$0x1] %vm577, 0.0
      %592 = vst.msk [vmem:[%s576 + $0x1c7] sm:$0x1] %vm577, 0.0
      %593 = vst.msk [vmem:[%s576 + $0x1e7] sm:$0x1] %vm577, 0.0
      %594 = vst.msk [vmem:[%s576 + $0x18] sm:$0x1] %vm577, 0.0
      %595 = vst.msk [vmem:[%s576 + $0x38] sm:$0x1] %vm577, 0.0
      %596 = vst.msk [vmem:[%s576 + $0x58] sm:$0x1] %vm577, 0.0
      %597 = vst.msk [vmem:[%s576 + $0x78] sm:$0x1] %vm577, 0.0
      %598 = vst.msk [vmem:[%s576 + $0x98] sm:$0x1] %vm577, 0.0
      %599 = vst.msk [vmem:[%s576 + $0xb8] sm:$0x1] %vm577, 0.0
      %600 = vst.msk [vmem:[%s576 + $0xd8] sm:$0x1] %vm577, 0.0
      %601 = vst.msk [vmem:[%s576 + $0xf8] sm:$0x1] %vm577, 0.0
      %602 = vst.msk [vmem:[%s576 + $0x118] sm:$0x1] %vm577, 0.0
      %603 = vst.msk [vmem:[%s576 + $0x138] sm:$0x1] %vm577, 0.0
      %604 = vst.msk [vmem:[%s576 + $0x158] sm:$0x1] %vm577, 0.0
      %605 = vst.msk [vmem:[%s576 + $0x178] sm:$0x1] %vm577, 0.0
      %606 = vst.msk [vmem:[%s576 + $0x198] sm:$0x1] %vm577, 0.0
      %607 = vst.msk [vmem:[%s576 + $0x1b8] sm:$0x1] %vm577, 0.0
      %608 = vst.msk [vmem:[%s576 + $0x1d8] sm:$0x1] %vm577, 0.0
      %609 = vst.msk [vmem:[%s576 + $0x1f8] sm:$0x1] %vm577, 0.0
      %610 = vst.msk [vmem:[%s576 + $0x8] sm:$0xff] %vm566, %v534
      %611 = vst.msk [vmem:[%s576 + $0x10] sm:$0xff] %vm566, %v535
      %612 = vst.msk [vmem:[%s576 + $0x28] sm:$0xff] %vm566, %v536
      %613 = vst.msk [vmem:[%s576 + $0x30] sm:$0xff] %vm566, %v537
      %614 = vst.msk [vmem:[%s576 + $0x48] sm:$0xff] %vm566, %v538
      %615 = vst.msk [vmem:[%s576 + $0x50] sm:$0xff] %vm566, %v539
      %616 = vst.msk [vmem:[%s576 + $0x68] sm:$0xff] %vm566, %v540
      %617 = vst.msk [vmem:[%s576 + $0x70] sm:$0xff] %vm566, %v541
      %618 = vst.msk [vmem:[%s576 + $0x88] sm:$0xff] %vm566, %v542
      %619 = vst.msk [vmem:[%s576 + $0x90] sm:$0xff] %vm566, %v543
      %620 = vst.msk [vmem:[%s576 + $0xa8] sm:$0xff] %vm566, %v544
      %621 = vst.msk [vmem:[%s576 + $0xb0] sm:$0xff] %vm566, %v545
      %622 = vst.msk [vmem:[%s576 + $0xc8] sm:$0xff] %vm566, %v546
      %623 = vst.msk [vmem:[%s576 + $0xd0] sm:$0xff] %vm566, %v547
      %624 = vst.msk [vmem:[%s576 + $0xe8] sm:$0xff] %vm566, %v548
      %625 = vst.msk [vmem:[%s576 + $0xf0] sm:$0xff] %vm566, %v549
      %626 = vst.msk [vmem:[%s576 + $0x108] sm:$0xff] %vm566, %v550
      %627 = vst.msk [vmem:[%s576 + $0x110] sm:$0xff] %vm566, %v551
      %628 = vst.msk [vmem:[%s576 + $0x128] sm:$0xff] %vm566, %v552
      %629 = vst.msk [vmem:[%s576 + $0x130] sm:$0xff] %vm566, %v553
      %630 = vst.msk [vmem:[%s576 + $0x148] sm:$0xff] %vm566, %v554
      %631 = vst.msk [vmem:[%s576 + $0x150] sm:$0xff] %vm566, %v555
      %632 = vst.msk [vmem:[%s576 + $0x168] sm:$0xff] %vm566, %v556
      %633 = vst.msk [vmem:[%s576 + $0x170] sm:$0xff] %vm566, %v557
      %634 = vst.msk [vmem:[%s576 + $0x188] sm:$0xff] %vm566, %v558
      %635 = vst.msk [vmem:[%s576 + $0x190] sm:$0xff] %vm566, %v559
      %636 = vst.msk [vmem:[%s576 + $0x1a8] sm:$0xff] %vm566, %v560
      %637 = vst.msk [vmem:[%s576 + $0x1b0] sm:$0xff] %vm566, %v561
      %638 = vst.msk [vmem:[%s576 + $0x1c8] sm:$0xff] %vm566, %v562
      %639 = vst.msk [vmem:[%s576 + $0x1d0] sm:$0xff] %vm566, %v563
      %640 = vst.msk [vmem:[%s576 + $0x1e8] sm:$0xff] %vm566, %v564
      %641 = vst.msk [vmem:[%s576 + $0x1f0] sm:$0xff] %vm566, %v565
      %v642 = vld [vmem:[#allocation2 + $0x7] sm:$0xff]
      %v643 = vld [vmem:[#allocation2 + $0xf] sm:$0xff]
      %v644 = vld [vmem:[#allocation2 + $0x27] sm:$0xff]
      %v645 = vld [vmem:[#allocation2 + $0x2f] sm:$0xff]
      %v646 = vld [vmem:[#allocation2 + $0x47] sm:$0xff]
      %v647 = vld [vmem:[#allocation2 + $0x4f] sm:$0xff]
      %v648 = vld [vmem:[#allocation2 + $0x67] sm:$0xff]
      %v649 = vld [vmem:[#allocation2 + $0x6f] sm:$0xff]
      %v650 = vld [vmem:[#allocation2 + $0x87] sm:$0xff]
      %v651 = vld [vmem:[#allocation2 + $0x8f] sm:$0xff]
      %v652 = vld [vmem:[#allocation2 + $0xa7] sm:$0xff]
      %v653 = vld [vmem:[#allocation2 + $0xaf] sm:$0xff]
      %v654 = vld [vmem:[#allocation2 + $0xc7] sm:$0xff]
      %v655 = vld [vmem:[#allocation2 + $0xcf] sm:$0xff]
      %v656 = vld [vmem:[#allocation2 + $0xe7] sm:$0xff]
      %v657 = vld [vmem:[#allocation2 + $0xef] sm:$0xff]
      %v658 = vld [vmem:[#allocation2 + $0x107] sm:$0xff]
      %v659 = vld [vmem:[#allocation2 + $0x10f] sm:$0xff]
      %v660 = vld [vmem:[#allocation2 + $0x127] sm:$0xff]
      %v661 = vld [vmem:[#allocation2 + $0x12f] sm:$0xff]
      %v662 = vld [vmem:[#allocation2 + $0x147] sm:$0xff]
      %v663 = vld [vmem:[#allocation2 + $0x14f] sm:$0xff]
      %v664 = vld [vmem:[#allocation2 + $0x167] sm:$0xff]
      %v665 = vld [vmem:[#allocation2 + $0x16f] sm:$0xff]
      %v666 = vld [vmem:[#allocation2 + $0x187] sm:$0xff]
      %v667 = vld [vmem:[#allocation2 + $0x18f] sm:$0xff]
      %v668 = vld [vmem:[#allocation2 + $0x1a7] sm:$0xff]
      %v669 = vld [vmem:[#allocation2 + $0x1af] sm:$0xff]
      %v670 = vld [vmem:[#allocation2 + $0x1c7] sm:$0xff]
      %v671 = vld [vmem:[#allocation2 + $0x1cf] sm:$0xff]
      %v672 = vld [vmem:[#allocation2 + $0x1e7] sm:$0xff]
      %v673 = vld [vmem:[#allocation2 + $0x1ef] sm:$0xff]
      %v674 = vld [vmem:[%s3] sm:$0x1]
      %v675 = vlaneseq
      %v676 = vshrl.u32 %v675, 7
      %v677 = vsub.s32 0, %v676
      %v678 = vrot.slane %v674, %v677
      %v679 = vmul.f32 %v642, %v678
      %v680 = vmul.f32 %v643, %v678
      %v681 = vmul.f32 %v644, %v678
      %v682 = vmul.f32 %v645, %v678
      %v683 = vmul.f32 %v646, %v678
      %v684 = vmul.f32 %v647, %v678
      %v685 = vmul.f32 %v648, %v678
      %v686 = vmul.f32 %v649, %v678
      %v687 = vmul.f32 %v650, %v678
      %v688 = vmul.f32 %v651, %v678
      %v689 = vmul.f32 %v652, %v678
      %v690 = vmul.f32 %v653, %v678
      %v691 = vmul.f32 %v654, %v678
      %v692 = vmul.f32 %v655, %v678
      %v693 = vmul.f32 %v656, %v678
      %v694 = vmul.f32 %v657, %v678
      %v695 = vmul.f32 %v658, %v678
      %v696 = vmul.f32 %v659, %v678
      %v697 = vmul.f32 %v660, %v678
      %v698 = vmul.f32 %v661, %v678
      %v699 = vmul.f32 %v662, %v678
      %v700 = vmul.f32 %v663, %v678
      %v701 = vmul.f32 %v664, %v678
      %v702 = vmul.f32 %v665, %v678
      %v703 = vmul.f32 %v666, %v678
      %v704 = vmul.f32 %v667, %v678
      %v705 = vmul.f32 %v668, %v678
      %v706 = vmul.f32 %v669, %v678
      %v707 = vmul.f32 %v670, %v678
      %v708 = vmul.f32 %v671, %v678
      %v709 = vmul.f32 %v672, %v678
      %v710 = vmul.f32 %v673, %v678
      %v711 = vadd.f32 %v679, 0.0
      %v712 = vadd.f32 %v680, 0.0
      %v713 = vadd.f32 %v681, 0.0
      %v714 = vadd.f32 %v682, 0.0
      %v715 = vadd.f32 %v683, 0.0
      %v716 = vadd.f32 %v684, 0.0
      %v717 = vadd.f32 %v685, 0.0
      %v718 = vadd.f32 %v686, 0.0
      %v719 = vadd.f32 %v687, 0.0
      %v720 = vadd.f32 %v688, 0.0
      %v721 = vadd.f32 %v689, 0.0
      %v722 = vadd.f32 %v690, 0.0
      %v723 = vadd.f32 %v691, 0.0
      %v724 = vadd.f32 %v692, 0.0
      %v725 = vadd.f32 %v693, 0.0
      %v726 = vadd.f32 %v694, 0.0
      %v727 = vadd.f32 %v695, 0.0
      %v728 = vadd.f32 %v696, 0.0
      %v729 = vadd.f32 %v697, 0.0
      %v730 = vadd.f32 %v698, 0.0
      %v731 = vadd.f32 %v699, 0.0
      %v732 = vadd.f32 %v700, 0.0
      %v733 = vadd.f32 %v701, 0.0
      %v734 = vadd.f32 %v702, 0.0
      %v735 = vadd.f32 %v703, 0.0
      %v736 = vadd.f32 %v704, 0.0
      %v737 = vadd.f32 %v705, 0.0
      %v738 = vadd.f32 %v706, 0.0
      %v739 = vadd.f32 %v707, 0.0
      %v740 = vadd.f32 %v708, 0.0
      %v741 = vadd.f32 %v709, 0.0
      %v742 = vadd.f32 %v710, 0.0
      %775 = vrot.lane.b32.xlu0 %v642, 112
      %v776 = vpop.permute.xlu0 %775
      %777 = vrot.lane.b32.xlu0 %v643, 112
      %v778 = vpop.permute.xlu0 %777
      %779 = vrot.lane.b32.xlu0 %v644, 112
      %v780 = vpop.permute.xlu0 %779
      %781 = vrot.lane.b32.xlu0 %v645, 112
      %v782 = vpop.permute.xlu0 %781
      %783 = vrot.lane.b32.xlu0 %v646, 112
      %v784 = vpop.permute.xlu0 %783
      %785 = vrot.lane.b32.xlu0 %v647, 112
      %v786 = vpop.permute.xlu0 %785
      %787 = vrot.lane.b32.xlu0 %v648, 112
      %v788 = vpop.permute.xlu0 %787
      %789 = vrot.lane.b32.xlu0 %v649, 112
      %v790 = vpop.permute.xlu0 %789
      %791 = vrot.lane.b32.xlu0 %v650, 112
      %v792 = vpop.permute.xlu0 %791
      %793 = vrot.lane.b32.xlu0 %v651, 112
      %v794 = vpop.permute.xlu0 %793
      %795 = vrot.lane.b32.xlu0 %v652, 112
      %v796 = vpop.permute.xlu0 %795
      %797 = vrot.lane.b32.xlu0 %v653, 112
      %v798 = vpop.permute.xlu0 %797
      %799 = vrot.lane.b32.xlu0 %v654, 112
      %v800 = vpop.permute.xlu0 %799
      %801 = vrot.lane.b32.xlu0 %v655, 112
      %v802 = vpop.permute.xlu0 %801
      %803 = vrot.lane.b32.xlu0 %v656, 112
      %v804 = vpop.permute.xlu0 %803
      %805 = vrot.lane.b32.xlu0 %v657, 112
      %v806 = vpop.permute.xlu0 %805
      %807 = vrot.lane.b32.xlu0 %v658, 112
      %v808 = vpop.permute.xlu0 %807
      %809 = vrot.lane.b32.xlu0 %v659, 112
      %v810 = vpop.permute.xlu0 %809
      %811 = vrot.lane.b32.xlu0 %v660, 112
      %v812 = vpop.permute.xlu0 %811
      %813 = vrot.lane.b32.xlu0 %v661, 112
      %v814 = vpop.permute.xlu0 %813
      %815 = vrot.lane.b32.xlu0 %v662, 112
      %v816 = vpop.permute.xlu0 %815
      %817 = vrot.lane.b32.xlu0 %v663, 112
      %v818 = vpop.permute.xlu0 %817
      %819 = vrot.lane.b32.xlu0 %v664, 112
      %v820 = vpop.permute.xlu0 %819
      %821 = vrot.lane.b32.xlu0 %v665, 112
      %v822 = vpop.permute.xlu0 %821
      %823 = vrot.lane.b32.xlu0 %v666, 112
      %v824 = vpop.permute.xlu0 %823
      %825 = vrot.lane.b32.xlu0 %v667, 112
      %v826 = vpop.permute.xlu0 %825
      %827 = vrot.lane.b32.xlu0 %v668, 112
      %v828 = vpop.permute.xlu0 %827
      %829 = vrot.lane.b32.xlu0 %v669, 112
      %v830 = vpop.permute.xlu0 %829
      %831 = vrot.lane.b32.xlu0 %v670, 112
      %v832 = vpop.permute.xlu0 %831
      %833 = vrot.lane.b32.xlu0 %v671, 112
      %v834 = vpop.permute.xlu0 %833
      %835 = vrot.lane.b32.xlu0 %v672, 112
      %v836 = vpop.permute.xlu0 %835
      %837 = vrot.lane.b32.xlu0 %v673, 112
      %v838 = vpop.permute.xlu0 %837
      %871 = vrot.lane.b32.xlu0 %v642, 16
      %v872 = vpop.permute.xlu0 %871
      %873 = vrot.lane.b32.xlu0 %v643, 16
      %v874 = vpop.permute.xlu0 %873
      %875 = vrot.lane.b32.xlu0 %v644, 16
      %v876 = vpop.permute.xlu0 %875
      %877 = vrot.lane.b32.xlu0 %v645, 16
      %v878 = vpop.permute.xlu0 %877
      %879 = vrot.lane.b32.xlu0 %v646, 16
      %v880 = vpop.permute.xlu0 %879
      %881 = vrot.lane.b32.xlu0 %v647, 16
      %v882 = vpop.permute.xlu0 %881
      %883 = vrot.lane.b32.xlu0 %v648, 16
      %v884 = vpop.permute.xlu0 %883
      %885 = vrot.lane.b32.xlu0 %v649, 16
      %v886 = vpop.permute.xlu0 %885
      %887 = vrot.lane.b32.xlu0 %v650, 16
      %v888 = vpop.permute.xlu0 %887
      %889 = vrot.lane.b32.xlu0 %v651, 16
      %v890 = vpop.permute.xlu0 %889
      %891 = vrot.lane.b32.xlu0 %v652, 16
      %v892 = vpop.permute.xlu0 %891
      %893 = vrot.lane.b32.xlu0 %v653, 16
      %v894 = vpop.permute.xlu0 %893
      %895 = vrot.lane.b32.xlu0 %v654, 16
      %v896 = vpop.permute.xlu0 %895
      %897 = vrot.lane.b32.xlu0 %v655, 16
      %v898 = vpop.permute.xlu0 %897
      %899 = vrot.lane.b32.xlu0 %v656, 16
      %v900 = vpop.permute.xlu0 %899
      %901 = vrot.lane.b32.xlu0 %v657, 16
      %v902 = vpop.permute.xlu0 %901
      %903 = vrot.lane.b32.xlu0 %v658, 16
      %v904 = vpop.permute.xlu0 %903
      %905 = vrot.lane.b32.xlu0 %v659, 16
      %v906 = vpop.permute.xlu0 %905
      %907 = vrot.lane.b32.xlu0 %v660, 16
      %v908 = vpop.permute.xlu0 %907
      %909 = vrot.lane.b32.xlu0 %v661, 16
      %v910 = vpop.permute.xlu0 %909
      %911 = vrot.lane.b32.xlu0 %v662, 16
      %v912 = vpop.permute.xlu0 %911
      %913 = vrot.lane.b32.xlu0 %v663, 16
      %v914 = vpop.permute.xlu0 %913
      %915 = vrot.lane.b32.xlu0 %v664, 16
      %v916 = vpop.permute.xlu0 %915
      %917 = vrot.lane.b32.xlu0 %v665, 16
      %v918 = vpop.permute.xlu0 %917
      %919 = vrot.lane.b32.xlu0 %v666, 16
      %v920 = vpop.permute.xlu0 %919
      %921 = vrot.lane.b32.xlu0 %v667, 16
      %v922 = vpop.permute.xlu0 %921
      %923 = vrot.lane.b32.xlu0 %v668, 16
      %v924 = vpop.permute.xlu0 %923
      %925 = vrot.lane.b32.xlu0 %v669, 16
      %v926 = vpop.permute.xlu0 %925
      %927 = vrot.lane.b32.xlu0 %v670, 16
      %v928 = vpop.permute.xlu0 %927
      %929 = vrot.lane.b32.xlu0 %v671, 16
      %v930 = vpop.permute.xlu0 %929
      %931 = vrot.lane.b32.xlu0 %v672, 16
      %v932 = vpop.permute.xlu0 %931
      %933 = vrot.lane.b32.xlu0 %v673, 16
      %v934 = vpop.permute.xlu0 %933
      %vm967 = vcmask 130048
      %v968 = vsel %vm967, %v776, %v872
      %v969 = vsel %vm967, %v778, %v874
      %v970 = vsel %vm967, %v780, %v876
      %v971 = vsel %vm967, %v782, %v878
      %v972 = vsel %vm967, %v784, %v880
      %v973 = vsel %vm967, %v786, %v882
      %v974 = vsel %vm967, %v788, %v884
      %v975 = vsel %vm967, %v790, %v886
      %v976 = vsel %vm967, %v792, %v888
      %v977 = vsel %vm967, %v794, %v890
      %v978 = vsel %vm967, %v796, %v892
      %v979 = vsel %vm967, %v798, %v894
      %v980 = vsel %vm967, %v800, %v896
      %v981 = vsel %vm967, %v802, %v898
      %v982 = vsel %vm967, %v804, %v900
      %v983 = vsel %vm967, %v806, %v902
      %v984 = vsel %vm967, %v808, %v904
      %v985 = vsel %vm967, %v810, %v906
      %v986 = vsel %vm967, %v812, %v908
      %v987 = vsel %vm967, %v814, %v910
      %v988 = vsel %vm967, %v816, %v912
      %v989 = vsel %vm967, %v818, %v914
      %v990 = vsel %vm967, %v820, %v916
      %v991 = vsel %vm967, %v822, %v918
      %v992 = vsel %vm967, %v824, %v920
      %v993 = vsel %vm967, %v826, %v922
      %v994 = vsel %vm967, %v828, %v924
      %v995 = vsel %vm967, %v830, %v926
      %v996 = vsel %vm967, %v832, %v928
      %v997 = vsel %vm967, %v834, %v930
      %v998 = vsel %vm967, %v836, %v932
      %v999 = vsel %vm967, %v838, %v934
      %v1000 = vld [vmem:[%s3 + $0x1] sm:$0x1]
      %v1001 = vlaneseq
      %v1002 = vshrl.u32 %v1001, 7
      %v1003 = vsub.s32 0, %v1002
      %v1004 = vrot.slane %v1000, %v1003
      %v1005 = vmul.f32 %v968, %v1004
      %v1006 = vmul.f32 %v969, %v1004
      %v1007 = vmul.f32 %v970, %v1004
      %v1008 = vmul.f32 %v971, %v1004
      %v1009 = vmul.f32 %v972, %v1004
      %v1010 = vmul.f32 %v973, %v1004
      %v1011 = vmul.f32 %v974, %v1004
      %v1012 = vmul.f32 %v975, %v1004
      %v1013 = vmul.f32 %v976, %v1004
      %v1014 = vmul.f32 %v977, %v1004
      %v1015 = vmul.f32 %v978, %v1004
      %v1016 = vmul.f32 %v979, %v1004
      %v1017 = vmul.f32 %v980, %v1004
      %v1018 = vmul.f32 %v981, %v1004
      %v1019 = vmul.f32 %v982, %v1004
      %v1020 = vmul.f32 %v983, %v1004
      %v1021 = vmul.f32 %v984, %v1004
      %v1022 = vmul.f32 %v985, %v1004
      %v1023 = vmul.f32 %v986, %v1004
      %v1024 = vmul.f32 %v987, %v1004
      %v1025 = vmul.f32 %v988, %v1004
      %v1026 = vmul.f32 %v989, %v1004
      %v1027 = vmul.f32 %v990, %v1004
      %v1028 = vmul.f32 %v991, %v1004
      %v1029 = vmul.f32 %v992, %v1004
      %v1030 = vmul.f32 %v993, %v1004
      %v1031 = vmul.f32 %v994, %v1004
      %v1032 = vmul.f32 %v995, %v1004
      %v1033 = vmul.f32 %v996, %v1004
      %v1034 = vmul.f32 %v997, %v1004
      %v1035 = vmul.f32 %v998, %v1004
      %v1036 = vmul.f32 %v999, %v1004
      %v1037 = vadd.f32 %v711, %v1005
      %v1038 = vadd.f32 %v712, %v1006
      %v1039 = vadd.f32 %v713, %v1007
      %v1040 = vadd.f32 %v714, %v1008
      %v1041 = vadd.f32 %v715, %v1009
      %v1042 = vadd.f32 %v716, %v1010
      %v1043 = vadd.f32 %v717, %v1011
      %v1044 = vadd.f32 %v718, %v1012
      %v1045 = vadd.f32 %v719, %v1013
      %v1046 = vadd.f32 %v720, %v1014
      %v1047 = vadd.f32 %v721, %v1015
      %v1048 = vadd.f32 %v722, %v1016
      %v1049 = vadd.f32 %v723, %v1017
      %v1050 = vadd.f32 %v724, %v1018
      %v1051 = vadd.f32 %v725, %v1019
      %v1052 = vadd.f32 %v726, %v1020
      %v1053 = vadd.f32 %v727, %v1021
      %v1054 = vadd.f32 %v728, %v1022
      %v1055 = vadd.f32 %v729, %v1023
      %v1056 = vadd.f32 %v730, %v1024
      %v1057 = vadd.f32 %v731, %v1025
      %v1058 = vadd.f32 %v732, %v1026
      %v1059 = vadd.f32 %v733, %v1027
      %v1060 = vadd.f32 %v734, %v1028
      %v1061 = vadd.f32 %v735, %v1029
      %v1062 = vadd.f32 %v736, %v1030
      %v1063 = vadd.f32 %v737, %v1031
      %v1064 = vadd.f32 %v738, %v1032
      %v1065 = vadd.f32 %v739, %v1033
      %v1066 = vadd.f32 %v740, %v1034
      %v1067 = vadd.f32 %v741, %v1035
      %v1068 = vadd.f32 %v742, %v1036
      %v1069 = vld [vmem:[#allocation2 + $0x8] sm:$0xff]
      %v1070 = vld [vmem:[#allocation2 + $0x10] sm:$0xff]
      %v1071 = vld [vmem:[#allocation2 + $0x28] sm:$0xff]
      %v1072 = vld [vmem:[#allocation2 + $0x30] sm:$0xff]
      %v1073 = vld [vmem:[#allocation2 + $0x48] sm:$0xff]
      %v1074 = vld [vmem:[#allocation2 + $0x50] sm:$0xff]
      %v1075 = vld [vmem:[#allocation2 + $0x68] sm:$0xff]
      %v1076 = vld [vmem:[#allocation2 + $0x70] sm:$0xff]
      %v1077 = vld [vmem:[#allocation2 + $0x88] sm:$0xff]
      %v1078 = vld [vmem:[#allocation2 + $0x90] sm:$0xff]
      %v1079 = vld [vmem:[#allocation2 + $0xa8] sm:$0xff]
      %v1080 = vld [vmem:[#allocation2 + $0xb0] sm:$0xff]
      %v1081 = vld [vmem:[#allocation2 + $0xc8] sm:$0xff]
      %v1082 = vld [vmem:[#allocation2 + $0xd0] sm:$0xff]
      %v1083 = vld [vmem:[#allocation2 + $0xe8] sm:$0xff]
      %v1084 = vld [vmem:[#allocation2 + $0xf0] sm:$0xff]
      %v1085 = vld [vmem:[#allocation2 + $0x108] sm:$0xff]
      %v1086 = vld [vmem:[#allocation2 + $0x110] sm:$0xff]
      %v1087 = vld [vmem:[#allocation2 + $0x128] sm:$0xff]
      %v1088 = vld [vmem:[#allocation2 + $0x130] sm:$0xff]
      %v1089 = vld [vmem:[#allocation2 + $0x148] sm:$0xff]
      %v1090 = vld [vmem:[#allocation2 + $0x150] sm:$0xff]
      %v1091 = vld [vmem:[#allocation2 + $0x168] sm:$0xff]
      %v1092 = vld [vmem:[#allocation2 + $0x170] sm:$0xff]
      %v1093 = vld [vmem:[#allocation2 + $0x188] sm:$0xff]
      %v1094 = vld [vmem:[#allocation2 + $0x190] sm:$0xff]
      %v1095 = vld [vmem:[#allocation2 + $0x1a8] sm:$0xff]
      %v1096 = vld [vmem:[#allocation2 + $0x1b0] sm:$0xff]
      %v1097 = vld [vmem:[#allocation2 + $0x1c8] sm:$0xff]
      %v1098 = vld [vmem:[#allocation2 + $0x1d0] sm:$0xff]
      %v1099 = vld [vmem:[#allocation2 + $0x1e8] sm:$0xff]
      %v1100 = vld [vmem:[#allocation2 + $0x1f0] sm:$0xff]
      %v1101 = vld [vmem:[%s3 + $0x2] sm:$0x1]
      %v1102 = vlaneseq
      %v1103 = vshrl.u32 %v1102, 7
      %v1104 = vsub.s32 0, %v1103
      %v1105 = vrot.slane %v1101, %v1104
      %v1106 = vmul.f32 %v1069, %v1105
      %v1107 = vmul.f32 %v1070, %v1105
      %v1108 = vmul.f32 %v1071, %v1105
      %v1109 = vmul.f32 %v1072, %v1105
      %v1110 = vmul.f32 %v1073, %v1105
      %v1111 = vmul.f32 %v1074, %v1105
      %v1112 = vmul.f32 %v1075, %v1105
      %v1113 = vmul.f32 %v1076, %v1105
      %v1114 = vmul.f32 %v1077, %v1105
      %v1115 = vmul.f32 %v1078, %v1105
      %v1116 = vmul.f32 %v1079, %v1105
      %v1117 = vmul.f32 %v1080, %v1105
      %v1118 = vmul.f32 %v1081, %v1105
      %v1119 = vmul.f32 %v1082, %v1105
      %v1120 = vmul.f32 %v1083, %v1105
      %v1121 = vmul.f32 %v1084, %v1105
      %v1122 = vmul.f32 %v1085, %v1105
      %v1123 = vmul.f32 %v1086, %v1105
      %v1124 = vmul.f32 %v1087, %v1105
      %v1125 = vmul.f32 %v1088, %v1105
      %v1126 = vmul.f32 %v1089, %v1105
      %v1127 = vmul.f32 %v1090, %v1105
      %v1128 = vmul.f32 %v1091, %v1105
      %v1129 = vmul.f32 %v1092, %v1105
      %v1130 = vmul.f32 %v1093, %v1105
      %v1131 = vmul.f32 %v1094, %v1105
      %v1132 = vmul.f32 %v1095, %v1105
      %v1133 = vmul.f32 %v1096, %v1105
      %v1134 = vmul.f32 %v1097, %v1105
      %v1135 = vmul.f32 %v1098, %v1105
      %v1136 = vmul.f32 %v1099, %v1105
      %v1137 = vmul.f32 %v1100, %v1105
      %v1138 = vadd.f32 %v1037, %v1106
      %v1139 = vadd.f32 %v1038, %v1107
      %v1140 = vadd.f32 %v1039, %v1108
      %v1141 = vadd.f32 %v1040, %v1109
      %v1142 = vadd.f32 %v1041, %v1110
      %v1143 = vadd.f32 %v1042, %v1111
      %v1144 = vadd.f32 %v1043, %v1112
      %v1145 = vadd.f32 %v1044, %v1113
      %v1146 = vadd.f32 %v1045, %v1114
      %v1147 = vadd.f32 %v1046, %v1115
      %v1148 = vadd.f32 %v1047, %v1116
      %v1149 = vadd.f32 %v1048, %v1117
      %v1150 = vadd.f32 %v1049, %v1118
      %v1151 = vadd.f32 %v1050, %v1119
      %v1152 = vadd.f32 %v1051, %v1120
      %v1153 = vadd.f32 %v1052, %v1121
      %v1154 = vadd.f32 %v1053, %v1122
      %v1155 = vadd.f32 %v1054, %v1123
      %v1156 = vadd.f32 %v1055, %v1124
      %v1157 = vadd.f32 %v1056, %v1125
      %v1158 = vadd.f32 %v1057, %v1126
      %v1159 = vadd.f32 %v1058, %v1127
      %v1160 = vadd.f32 %v1059, %v1128
      %v1161 = vadd.f32 %v1060, %v1129
      %v1162 = vadd.f32 %v1061, %v1130
      %v1163 = vadd.f32 %v1062, %v1131
      %v1164 = vadd.f32 %v1063, %v1132
      %v1165 = vadd.f32 %v1064, %v1133
      %v1166 = vadd.f32 %v1065, %v1134
      %v1167 = vadd.f32 %v1066, %v1135
      %v1168 = vadd.f32 %v1067, %v1136
      %v1169 = vadd.f32 %v1068, %v1137
      %1202 = vrot.lane.b32.xlu0 %v1069, 112
      %v1203 = vpop.permute.xlu0 %1202
      %1204 = vrot.lane.b32.xlu0 %v1070, 112
      %v1205 = vpop.permute.xlu0 %1204
      %1206 = vrot.lane.b32.xlu0 %v1071, 112
      %v1207 = vpop.permute.xlu0 %1206
      %1208 = vrot.lane.b32.xlu0 %v1072, 112
      %v1209 = vpop.permute.xlu0 %1208
      %1210 = vrot.lane.b32.xlu0 %v1073, 112
      %v1211 = vpop.permute.xlu0 %1210
      %1212 = vrot.lane.b32.xlu0 %v1074, 112
      %v1213 = vpop.permute.xlu0 %1212
      %1214 = vrot.lane.b32.xlu0 %v1075, 112
      %v1215 = vpop.permute.xlu0 %1214
      %1216 = vrot.lane.b32.xlu0 %v1076, 112
      %v1217 = vpop.permute.xlu0 %1216
      %1218 = vrot.lane.b32.xlu0 %v1077, 112
      %v1219 = vpop.permute.xlu0 %1218
      %1220 = vrot.lane.b32.xlu0 %v1078, 112
      %v1221 = vpop.permute.xlu0 %1220
      %1222 = vrot.lane.b32.xlu0 %v1079, 112
      %v1223 = vpop.permute.xlu0 %1222
      %1224 = vrot.lane.b32.xlu0 %v1080, 112
      %v1225 = vpop.permute.xlu0 %1224
      %1226 = vrot.lane.b32.xlu0 %v1081, 112
      %v1227 = vpop.permute.xlu0 %1226
      %1228 = vrot.lane.b32.xlu0 %v1082, 112
      %v1229 = vpop.permute.xlu0 %1228
      %1230 = vrot.lane.b32.xlu0 %v1083, 112
      %v1231 = vpop.permute.xlu0 %1230
      %1232 = vrot.lane.b32.xlu0 %v1084, 112
      %v1233 = vpop.permute.xlu0 %1232
      %1234 = vrot.lane.b32.xlu0 %v1085, 112
      %v1235 = vpop.permute.xlu0 %1234
      %1236 = vrot.lane.b32.xlu0 %v1086, 112
      %v1237 = vpop.permute.xlu0 %1236
      %1238 = vrot.lane.b32.xlu0 %v1087, 112
      %v1239 = vpop.permute.xlu0 %1238
      %1240 = vrot.lane.b32.xlu0 %v1088, 112
      %v1241 = vpop.permute.xlu0 %1240
      %1242 = vrot.lane.b32.xlu0 %v1089, 112
      %v1243 = vpop.permute.xlu0 %1242
      %1244 = vrot.lane.b32.xlu0 %v1090, 112
      %v1245 = vpop.permute.xlu0 %1244
      %1246 = vrot.lane.b32.xlu0 %v1091, 112
      %v1247 = vpop.permute.xlu0 %1246
      %1248 = vrot.lane.b32.xlu0 %v1092, 112
      %v1249 = vpop.permute.xlu0 %1248
      %1250 = vrot.lane.b32.xlu0 %v1093, 112
      %v1251 = vpop.permute.xlu0 %1250
      %1252 = vrot.lane.b32.xlu0 %v1094, 112
      %v1253 = vpop.permute.xlu0 %1252
      %1254 = vrot.lane.b32.xlu0 %v1095, 112
      %v1255 = vpop.permute.xlu0 %1254
      %1256 = vrot.lane.b32.xlu0 %v1096, 112
      %v1257 = vpop.permute.xlu0 %1256
      %1258 = vrot.lane.b32.xlu0 %v1097, 112
      %v1259 = vpop.permute.xlu0 %1258
      %1260 = vrot.lane.b32.xlu0 %v1098, 112
      %v1261 = vpop.permute.xlu0 %1260
      %1262 = vrot.lane.b32.xlu0 %v1099, 112
      %v1263 = vpop.permute.xlu0 %1262
      %1264 = vrot.lane.b32.xlu0 %v1100, 112
      %v1265 = vpop.permute.xlu0 %1264
      %1298 = vrot.lane.b32.xlu0 %v1069, 16
      %v1299 = vpop.permute.xlu0 %1298
      %1300 = vrot.lane.b32.xlu0 %v1070, 16
      %v1301 = vpop.permute.xlu0 %1300
      %1302 = vrot.lane.b32.xlu0 %v1071, 16
      %v1303 = vpop.permute.xlu0 %1302
      %1304 = vrot.lane.b32.xlu0 %v1072, 16
      %v1305 = vpop.permute.xlu0 %1304
      %1306 = vrot.lane.b32.xlu0 %v1073, 16
      %v1307 = vpop.permute.xlu0 %1306
      %1308 = vrot.lane.b32.xlu0 %v1074, 16
      %v1309 = vpop.permute.xlu0 %1308
      %1310 = vrot.lane.b32.xlu0 %v1075, 16
      %v1311 = vpop.permute.xlu0 %1310
      %1312 = vrot.lane.b32.xlu0 %v1076, 16
      %v1313 = vpop.permute.xlu0 %1312
      %1314 = vrot.lane.b32.xlu0 %v1077, 16
      %v1315 = vpop.permute.xlu0 %1314
      %1316 = vrot.lane.b32.xlu0 %v1078, 16
      %v1317 = vpop.permute.xlu0 %1316
      %1318 = vrot.lane.b32.xlu0 %v1079, 16
      %v1319 = vpop.permute.xlu0 %1318
      %1320 = vrot.lane.b32.xlu0 %v1080, 16
      %v1321 = vpop.permute.xlu0 %1320
      %1322 = vrot.lane.b32.xlu0 %v1081, 16
      %v1323 = vpop.permute.xlu0 %1322
      %1324 = vrot.lane.b32.xlu0 %v1082, 16
      %v1325 = vpop.permute.xlu0 %1324
      %1326 = vrot.lane.b32.xlu0 %v1083, 16
      %v1327 = vpop.permute.xlu0 %1326
      %1328 = vrot.lane.b32.xlu0 %v1084, 16
      %v1329 = vpop.permute.xlu0 %1328
      %1330 = vrot.lane.b32.xlu0 %v1085, 16
      %v1331 = vpop.permute.xlu0 %1330
      %1332 = vrot.lane.b32.xlu0 %v1086, 16
      %v1333 = vpop.permute.xlu0 %1332
      %1334 = vrot.lane.b32.xlu0 %v1087, 16
      %v1335 = vpop.permute.xlu0 %1334
      %1336 = vrot.lane.b32.xlu0 %v1088, 16
      %v1337 = vpop.permute.xlu0 %1336
      %1338 = vrot.lane.b32.xlu0 %v1089, 16
      %v1339 = vpop.permute.xlu0 %1338
      %1340 = vrot.lane.b32.xlu0 %v1090, 16
      %v1341 = vpop.permute.xlu0 %1340
      %1342 = vrot.lane.b32.xlu0 %v1091, 16
      %v1343 = vpop.permute.xlu0 %1342
      %1344 = vrot.lane.b32.xlu0 %v1092, 16
      %v1345 = vpop.permute.xlu0 %1344
      %1346 = vrot.lane.b32.xlu0 %v1093, 16
      %v1347 = vpop.permute.xlu0 %1346
      %1348 = vrot.lane.b32.xlu0 %v1094, 16
      %v1349 = vpop.permute.xlu0 %1348
      %1350 = vrot.lane.b32.xlu0 %v1095, 16
      %v1351 = vpop.permute.xlu0 %1350
      %1352 = vrot.lane.b32.xlu0 %v1096, 16
      %v1353 = vpop.permute.xlu0 %1352
      %1354 = vrot.lane.b32.xlu0 %v1097, 16
      %v1355 = vpop.permute.xlu0 %1354
      %1356 = vrot.lane.b32.xlu0 %v1098, 16
      %v1357 = vpop.permute.xlu0 %1356
      %1358 = vrot.lane.b32.xlu0 %v1099, 16
      %v1359 = vpop.permute.xlu0 %1358
      %1360 = vrot.lane.b32.xlu0 %v1100, 16
      %v1361 = vpop.permute.xlu0 %1360
      %v1394 = vsel %vm967, %v1203, %v1299
      %v1395 = vsel %vm967, %v1205, %v1301
      %v1396 = vsel %vm967, %v1207, %v1303
      %v1397 = vsel %vm967, %v1209, %v1305
      %v1398 = vsel %vm967, %v1211, %v1307
      %v1399 = vsel %vm967, %v1213, %v1309
      %v1400 = vsel %vm967, %v1215, %v1311
      %v1401 = vsel %vm967, %v1217, %v1313
      %v1402 = vsel %vm967, %v1219, %v1315
      %v1403 = vsel %vm967, %v1221, %v1317
      %v1404 = vsel %vm967, %v1223, %v1319
      %v1405 = vsel %vm967, %v1225, %v1321
      %v1406 = vsel %vm967, %v1227, %v1323
      %v1407 = vsel %vm967, %v1229, %v1325
      %v1408 = vsel %vm967, %v1231, %v1327
      %v1409 = vsel %vm967, %v1233, %v1329
      %v1410 = vsel %vm967, %v1235, %v1331
      %v1411 = vsel %vm967, %v1237, %v1333
      %v1412 = vsel %vm967, %v1239, %v1335
      %v1413 = vsel %vm967, %v1241, %v1337
      %v1414 = vsel %vm967, %v1243, %v1339
      %v1415 = vsel %vm967, %v1245, %v1341
      %v1416 = vsel %vm967, %v1247, %v1343
      %v1417 = vsel %vm967, %v1249, %v1345
      %v1418 = vsel %vm967, %v1251, %v1347
      %v1419 = vsel %vm967, %v1253, %v1349
      %v1420 = vsel %vm967, %v1255, %v1351
      %v1421 = vsel %vm967, %v1257, %v1353
      %v1422 = vsel %vm967, %v1259, %v1355
      %v1423 = vsel %vm967, %v1261, %v1357
      %v1424 = vsel %vm967, %v1263, %v1359
      %v1425 = vsel %vm967, %v1265, %v1361
      %v1426 = vld [vmem:[%s3 + $0x3] sm:$0x1]
      %v1427 = vlaneseq
      %v1428 = vshrl.u32 %v1427, 7
      %v1429 = vsub.s32 0, %v1428
      %v1430 = vrot.slane %v1426, %v1429
      %v1431 = vmul.f32 %v1394, %v1430
      %v1432 = vmul.f32 %v1395, %v1430
      %v1433 = vmul.f32 %v1396, %v1430
      %v1434 = vmul.f32 %v1397, %v1430
      %v1435 = vmul.f32 %v1398, %v1430
      %v1436 = vmul.f32 %v1399, %v1430
      %v1437 = vmul.f32 %v1400, %v1430
      %v1438 = vmul.f32 %v1401, %v1430
      %v1439 = vmul.f32 %v1402, %v1430
      %v1440 = vmul.f32 %v1403, %v1430
      %v1441 = vmul.f32 %v1404, %v1430
      %v1442 = vmul.f32 %v1405, %v1430
      %v1443 = vmul.f32 %v1406, %v1430
      %v1444 = vmul.f32 %v1407, %v1430
      %v1445 = vmul.f32 %v1408, %v1430
      %v1446 = vmul.f32 %v1409, %v1430
      %v1447 = vmul.f32 %v1410, %v1430
      %v1448 = vmul.f32 %v1411, %v1430
      %v1449 = vmul.f32 %v1412, %v1430
      %v1450 = vmul.f32 %v1413, %v1430
      %v1451 = vmul.f32 %v1414, %v1430
      %v1452 = vmul.f32 %v1415, %v1430
      %v1453 = vmul.f32 %v1416, %v1430
      %v1454 = vmul.f32 %v1417, %v1430
      %v1455 = vmul.f32 %v1418, %v1430
      %v1456 = vmul.f32 %v1419, %v1430
      %v1457 = vmul.f32 %v1420, %v1430
      %v1458 = vmul.f32 %v1421, %v1430
      %v1459 = vmul.f32 %v1422, %v1430
      %v1460 = vmul.f32 %v1423, %v1430
      %v1461 = vmul.f32 %v1424, %v1430
      %v1462 = vmul.f32 %v1425, %v1430
      %v1463 = vadd.f32 %v1138, %v1431
      %v1464 = vadd.f32 %v1139, %v1432
      %v1465 = vadd.f32 %v1140, %v1433
      %v1466 = vadd.f32 %v1141, %v1434
      %v1467 = vadd.f32 %v1142, %v1435
      %v1468 = vadd.f32 %v1143, %v1436
      %v1469 = vadd.f32 %v1144, %v1437
      %v1470 = vadd.f32 %v1145, %v1438
      %v1471 = vadd.f32 %v1146, %v1439
      %v1472 = vadd.f32 %v1147, %v1440
      %v1473 = vadd.f32 %v1148, %v1441
      %v1474 = vadd.f32 %v1149, %v1442
      %v1475 = vadd.f32 %v1150, %v1443
      %v1476 = vadd.f32 %v1151, %v1444
      %v1477 = vadd.f32 %v1152, %v1445
      %v1478 = vadd.f32 %v1153, %v1446
      %v1479 = vadd.f32 %v1154, %v1447
      %v1480 = vadd.f32 %v1155, %v1448
      %v1481 = vadd.f32 %v1156, %v1449
      %v1482 = vadd.f32 %v1157, %v1450
      %v1483 = vadd.f32 %v1158, %v1451
      %v1484 = vadd.f32 %v1159, %v1452
      %v1485 = vadd.f32 %v1160, %v1453
      %v1486 = vadd.f32 %v1161, %v1454
      %v1487 = vadd.f32 %v1162, %v1455
      %v1488 = vadd.f32 %v1163, %v1456
      %v1489 = vadd.f32 %v1164, %v1457
      %v1490 = vadd.f32 %v1165, %v1458
      %v1491 = vadd.f32 %v1166, %v1459
      %v1492 = vadd.f32 %v1167, %v1460
      %v1493 = vadd.f32 %v1168, %v1461
      %v1494 = vadd.f32 %v1169, %v1462
      %v1495 = vld [vmem:[#allocation2 + $0x9] sm:$0xff]
      %v1496 = vld [vmem:[#allocation2 + $0x11] sm:$0xff]
      %v1497 = vld [vmem:[#allocation2 + $0x29] sm:$0xff]
      %v1498 = vld [vmem:[#allocation2 + $0x31] sm:$0xff]
      %v1499 = vld [vmem:[#allocation2 + $0x49] sm:$0xff]
      %v1500 = vld [vmem:[#allocation2 + $0x51] sm:$0xff]
      %v1501 = vld [vmem:[#allocation2 + $0x69] sm:$0xff]
      %v1502 = vld [vmem:[#allocation2 + $0x71] sm:$0xff]
      %v1503 = vld [vmem:[#allocation2 + $0x89] sm:$0xff]
      %v1504 = vld [vmem:[#allocation2 + $0x91] sm:$0xff]
      %v1505 = vld [vmem:[#allocation2 + $0xa9] sm:$0xff]
      %v1506 = vld [vmem:[#allocation2 + $0xb1] sm:$0xff]
      %v1507 = vld [vmem:[#allocation2 + $0xc9] sm:$0xff]
      %v1508 = vld [vmem:[#allocation2 + $0xd1] sm:$0xff]
      %v1509 = vld [vmem:[#allocation2 + $0xe9] sm:$0xff]
      %v1510 = vld [vmem:[#allocation2 + $0xf1] sm:$0xff]
      %v1511 = vld [vmem:[#allocation2 + $0x109] sm:$0xff]
      %v1512 = vld [vmem:[#allocation2 + $0x111] sm:$0xff]
      %v1513 = vld [vmem:[#allocation2 + $0x129] sm:$0xff]
      %v1514 = vld [vmem:[#allocation2 + $0x131] sm:$0xff]
      %v1515 = vld [vmem:[#allocation2 + $0x149] sm:$0xff]
      %v1516 = vld [vmem:[#allocation2 + $0x151] sm:$0xff]
      %v1517 = vld [vmem:[#allocation2 + $0x169] sm:$0xff]
      %v1518 = vld [vmem:[#allocation2 + $0x171] sm:$0xff]
      %v1519 = vld [vmem:[#allocation2 + $0x189] sm:$0xff]
      %v1520 = vld [vmem:[#allocation2 + $0x191] sm:$0xff]
      %v1521 = vld [vmem:[#allocation2 + $0x1a9] sm:$0xff]
      %v1522 = vld [vmem:[#allocation2 + $0x1b1] sm:$0xff]
      %v1523 = vld [vmem:[#allocation2 + $0x1c9] sm:$0xff]
      %v1524 = vld [vmem:[#allocation2 + $0x1d1] sm:$0xff]
      %v1525 = vld [vmem:[#allocation2 + $0x1e9] sm:$0xff]
      %v1526 = vld [vmem:[#allocation2 + $0x1f1] sm:$0xff]
      %v1527 = vld [vmem:[%s3 + $0x4] sm:$0x1]
      %v1528 = vlaneseq
      %v1529 = vshrl.u32 %v1528, 7
      %v1530 = vsub.s32 0, %v1529
      %v1531 = vrot.slane %v1527, %v1530
      %v1532 = vmul.f32 %v1495, %v1531
      %v1533 = vmul.f32 %v1496, %v1531
      %v1534 = vmul.f32 %v1497, %v1531
      %v1535 = vmul.f32 %v1498, %v1531
      %v1536 = vmul.f32 %v1499, %v1531
      %v1537 = vmul.f32 %v1500, %v1531
      %v1538 = vmul.f32 %v1501, %v1531
      %v1539 = vmul.f32 %v1502, %v1531
      %v1540 = vmul.f32 %v1503, %v1531
      %v1541 = vmul.f32 %v1504, %v1531
      %v1542 = vmul.f32 %v1505, %v1531
      %v1543 = vmul.f32 %v1506, %v1531
      %v1544 = vmul.f32 %v1507, %v1531
      %v1545 = vmul.f32 %v1508, %v1531
      %v1546 = vmul.f32 %v1509, %v1531
      %v1547 = vmul.f32 %v1510, %v1531
      %v1548 = vmul.f32 %v1511, %v1531
      %v1549 = vmul.f32 %v1512, %v1531
      %v1550 = vmul.f32 %v1513, %v1531
      %v1551 = vmul.f32 %v1514, %v1531
      %v1552 = vmul.f32 %v1515, %v1531
      %v1553 = vmul.f32 %v1516, %v1531
      %v1554 = vmul.f32 %v1517, %v1531
      %v1555 = vmul.f32 %v1518, %v1531
      %v1556 = vmul.f32 %v1519, %v1531
      %v1557 = vmul.f32 %v1520, %v1531
      %v1558 = vmul.f32 %v1521, %v1531
      %v1559 = vmul.f32 %v1522, %v1531
      %v1560 = vmul.f32 %v1523, %v1531
      %v1561 = vmul.f32 %v1524, %v1531
      %v1562 = vmul.f32 %v1525, %v1531
      %v1563 = vmul.f32 %v1526, %v1531
      %v1564 = vadd.f32 %v1463, %v1532
      %v1565 = vadd.f32 %v1464, %v1533
      %v1566 = vadd.f32 %v1465, %v1534
      %v1567 = vadd.f32 %v1466, %v1535
      %v1568 = vadd.f32 %v1467, %v1536
      %v1569 = vadd.f32 %v1468, %v1537
      %v1570 = vadd.f32 %v1469, %v1538
      %v1571 = vadd.f32 %v1470, %v1539
      %v1572 = vadd.f32 %v1471, %v1540
      %v1573 = vadd.f32 %v1472, %v1541
      %v1574 = vadd.f32 %v1473, %v1542
      %v1575 = vadd.f32 %v1474, %v1543
      %v1576 = vadd.f32 %v1475, %v1544
      %v1577 = vadd.f32 %v1476, %v1545
      %v1578 = vadd.f32 %v1477, %v1546
      %v1579 = vadd.f32 %v1478, %v1547
      %v1580 = vadd.f32 %v1479, %v1548
      %v1581 = vadd.f32 %v1480, %v1549
      %v1582 = vadd.f32 %v1481, %v1550
      %v1583 = vadd.f32 %v1482, %v1551
      %v1584 = vadd.f32 %v1483, %v1552
      %v1585 = vadd.f32 %v1484, %v1553
      %v1586 = vadd.f32 %v1485, %v1554
      %v1587 = vadd.f32 %v1486, %v1555
      %v1588 = vadd.f32 %v1487, %v1556
      %v1589 = vadd.f32 %v1488, %v1557
      %v1590 = vadd.f32 %v1489, %v1558
      %v1591 = vadd.f32 %v1490, %v1559
      %v1592 = vadd.f32 %v1491, %v1560
      %v1593 = vadd.f32 %v1492, %v1561
      %v1594 = vadd.f32 %v1493, %v1562
      %v1595 = vadd.f32 %v1494, %v1563
      %1628 = vrot.lane.b32.xlu0 %v1495, 112
      %v1629 = vpop.permute.xlu0 %1628
      %1630 = vrot.lane.b32.xlu0 %v1496, 112
      %v1631 = vpop.permute.xlu0 %1630
      %1632 = vrot.lane.b32.xlu0 %v1497, 112
      %v1633 = vpop.permute.xlu0 %1632
      %1634 = vrot.lane.b32.xlu0 %v1498, 112
      %v1635 = vpop.permute.xlu0 %1634
      %1636 = vrot.lane.b32.xlu0 %v1499, 112
      %v1637 = vpop.permute.xlu0 %1636
      %1638 = vrot.lane.b32.xlu0 %v1500, 112
      %v1639 = vpop.permute.xlu0 %1638
      %1640 = vrot.lane.b32.xlu0 %v1501, 112
      %v1641 = vpop.permute.xlu0 %1640
      %1642 = vrot.lane.b32.xlu0 %v1502, 112
      %v1643 = vpop.permute.xlu0 %1642
      %1644 = vrot.lane.b32.xlu0 %v1503, 112
      %v1645 = vpop.permute.xlu0 %1644
      %1646 = vrot.lane.b32.xlu0 %v1504, 112
      %v1647 = vpop.permute.xlu0 %1646
      %1648 = vrot.lane.b32.xlu0 %v1505, 112
      %v1649 = vpop.permute.xlu0 %1648
      %1650 = vrot.lane.b32.xlu0 %v1506, 112
      %v1651 = vpop.permute.xlu0 %1650
      %1652 = vrot.lane.b32.xlu0 %v1507, 112
      %v1653 = vpop.permute.xlu0 %1652
      %1654 = vrot.lane.b32.xlu0 %v1508, 112
      %v1655 = vpop.permute.xlu0 %1654
      %1656 = vrot.lane.b32.xlu0 %v1509, 112
      %v1657 = vpop.permute.xlu0 %1656
      %1658 = vrot.lane.b32.xlu0 %v1510, 112
      %v1659 = vpop.permute.xlu0 %1658
      %1660 = vrot.lane.b32.xlu0 %v1511, 112
      %v1661 = vpop.permute.xlu0 %1660
      %1662 = vrot.lane.b32.xlu0 %v1512, 112
      %v1663 = vpop.permute.xlu0 %1662
      %1664 = vrot.lane.b32.xlu0 %v1513, 112
      %v1665 = vpop.permute.xlu0 %1664
      %1666 = vrot.lane.b32.xlu0 %v1514, 112
      %v1667 = vpop.permute.xlu0 %1666
      %1668 = vrot.lane.b32.xlu0 %v1515, 112
      %v1669 = vpop.permute.xlu0 %1668
      %1670 = vrot.lane.b32.xlu0 %v1516, 112
      %v1671 = vpop.permute.xlu0 %1670
      %1672 = vrot.lane.b32.xlu0 %v1517, 112
      %v1673 = vpop.permute.xlu0 %1672
      %1674 = vrot.lane.b32.xlu0 %v1518, 112
      %v1675 = vpop.permute.xlu0 %1674
      %1676 = vrot.lane.b32.xlu0 %v1519, 112
      %v1677 = vpop.permute.xlu0 %1676
      %1678 = vrot.lane.b32.xlu0 %v1520, 112
      %v1679 = vpop.permute.xlu0 %1678
      %1680 = vrot.lane.b32.xlu0 %v1521, 112
      %v1681 = vpop.permute.xlu0 %1680
      %1682 = vrot.lane.b32.xlu0 %v1522, 112
      %v1683 = vpop.permute.xlu0 %1682
      %1684 = vrot.lane.b32.xlu0 %v1523, 112
      %v1685 = vpop.permute.xlu0 %1684
      %1686 = vrot.lane.b32.xlu0 %v1524, 112
      %v1687 = vpop.permute.xlu0 %1686
      %1688 = vrot.lane.b32.xlu0 %v1525, 112
      %v1689 = vpop.permute.xlu0 %1688
      %1690 = vrot.lane.b32.xlu0 %v1526, 112
      %v1691 = vpop.permute.xlu0 %1690
      %1724 = vrot.lane.b32.xlu0 %v1495, 16
      %v1725 = vpop.permute.xlu0 %1724
      %1726 = vrot.lane.b32.xlu0 %v1496, 16
      %v1727 = vpop.permute.xlu0 %1726
      %1728 = vrot.lane.b32.xlu0 %v1497, 16
      %v1729 = vpop.permute.xlu0 %1728
      %1730 = vrot.lane.b32.xlu0 %v1498, 16
      %v1731 = vpop.permute.xlu0 %1730
      %1732 = vrot.lane.b32.xlu0 %v1499, 16
      %v1733 = vpop.permute.xlu0 %1732
      %1734 = vrot.lane.b32.xlu0 %v1500, 16
      %v1735 = vpop.permute.xlu0 %1734
      %1736 = vrot.lane.b32.xlu0 %v1501, 16
      %v1737 = vpop.permute.xlu0 %1736
      %1738 = vrot.lane.b32.xlu0 %v1502, 16
      %v1739 = vpop.permute.xlu0 %1738
      %1740 = vrot.lane.b32.xlu0 %v1503, 16
      %v1741 = vpop.permute.xlu0 %1740
      %1742 = vrot.lane.b32.xlu0 %v1504, 16
      %v1743 = vpop.permute.xlu0 %1742
      %1744 = vrot.lane.b32.xlu0 %v1505, 16
      %v1745 = vpop.permute.xlu0 %1744
      %1746 = vrot.lane.b32.xlu0 %v1506, 16
      %v1747 = vpop.permute.xlu0 %1746
      %1748 = vrot.lane.b32.xlu0 %v1507, 16
      %v1749 = vpop.permute.xlu0 %1748
      %1750 = vrot.lane.b32.xlu0 %v1508, 16
      %v1751 = vpop.permute.xlu0 %1750
      %1752 = vrot.lane.b32.xlu0 %v1509, 16
      %v1753 = vpop.permute.xlu0 %1752
      %1754 = vrot.lane.b32.xlu0 %v1510, 16
      %v1755 = vpop.permute.xlu0 %1754
      %1756 = vrot.lane.b32.xlu0 %v1511, 16
      %v1757 = vpop.permute.xlu0 %1756
      %1758 = vrot.lane.b32.xlu0 %v1512, 16
      %v1759 = vpop.permute.xlu0 %1758
      %1760 = vrot.lane.b32.xlu0 %v1513, 16
      %v1761 = vpop.permute.xlu0 %1760
      %1762 = vrot.lane.b32.xlu0 %v1514, 16
      %v1763 = vpop.permute.xlu0 %1762
      %1764 = vrot.lane.b32.xlu0 %v1515, 16
      %v1765 = vpop.permute.xlu0 %1764
      %1766 = vrot.lane.b32.xlu0 %v1516, 16
      %v1767 = vpop.permute.xlu0 %1766
      %1768 = vrot.lane.b32.xlu0 %v1517, 16
      %v1769 = vpop.permute.xlu0 %1768
      %1770 = vrot.lane.b32.xlu0 %v1518, 16
      %v1771 = vpop.permute.xlu0 %1770
      %1772 = vrot.lane.b32.xlu0 %v1519, 16
      %v1773 = vpop.permute.xlu0 %1772
      %1774 = vrot.lane.b32.xlu0 %v1520, 16
      %v1775 = vpop.permute.xlu0 %1774
      %1776 = vrot.lane.b32.xlu0 %v1521, 16
      %v1777 = vpop.permute.xlu0 %1776
      %1778 = vrot.lane.b32.xlu0 %v1522, 16
      %v1779 = vpop.permute.xlu0 %1778
      %1780 = vrot.lane.b32.xlu0 %v1523, 16
      %v1781 = vpop.permute.xlu0 %1780
      %1782 = vrot.lane.b32.xlu0 %v1524, 16
      %v1783 = vpop.permute.xlu0 %1782
      %1784 = vrot.lane.b32.xlu0 %v1525, 16
      %v1785 = vpop.permute.xlu0 %1784
      %1786 = vrot.lane.b32.xlu0 %v1526, 16
      %v1787 = vpop.permute.xlu0 %1786
      %v1820 = vsel %vm967, %v1629, %v1725
      %v1821 = vsel %vm967, %v1631, %v1727
      %v1822 = vsel %vm967, %v1633, %v1729
      %v1823 = vsel %vm967, %v1635, %v1731
      %v1824 = vsel %vm967, %v1637, %v1733
      %v1825 = vsel %vm967, %v1639, %v1735
      %v1826 = vsel %vm967, %v1641, %v1737
      %v1827 = vsel %vm967, %v1643, %v1739
      %v1828 = vsel %vm967, %v1645, %v1741
      %v1829 = vsel %vm967, %v1647, %v1743
      %v1830 = vsel %vm967, %v1649, %v1745
      %v1831 = vsel %vm967, %v1651, %v1747
      %v1832 = vsel %vm967, %v1653, %v1749
      %v1833 = vsel %vm967, %v1655, %v1751
      %v1834 = vsel %vm967, %v1657, %v1753
      %v1835 = vsel %vm967, %v1659, %v1755
      %v1836 = vsel %vm967, %v1661, %v1757
      %v1837 = vsel %vm967, %v1663, %v1759
      %v1838 = vsel %vm967, %v1665, %v1761
      %v1839 = vsel %vm967, %v1667, %v1763
      %v1840 = vsel %vm967, %v1669, %v1765
      %v1841 = vsel %vm967, %v1671, %v1767
      %v1842 = vsel %vm967, %v1673, %v1769
      %v1843 = vsel %vm967, %v1675, %v1771
      %v1844 = vsel %vm967, %v1677, %v1773
      %v1845 = vsel %vm967, %v1679, %v1775
      %v1846 = vsel %vm967, %v1681, %v1777
      %v1847 = vsel %vm967, %v1683, %v1779
      %v1848 = vsel %vm967, %v1685, %v1781
      %v1849 = vsel %vm967, %v1687, %v1783
      %v1850 = vsel %vm967, %v1689, %v1785
      %v1851 = vsel %vm967, %v1691, %v1787
      %v1852 = vld [vmem:[%s3 + $0x5] sm:$0x1]
      %v1853 = vlaneseq
      %v1854 = vshrl.u32 %v1853, 7
      %v1855 = vsub.s32 0, %v1854
      %v1856 = vrot.slane %v1852, %v1855
      %v1857 = vmul.f32 %v1820, %v1856
      %v1858 = vmul.f32 %v1821, %v1856
      %v1859 = vmul.f32 %v1822, %v1856
      %v1860 = vmul.f32 %v1823, %v1856
      %v1861 = vmul.f32 %v1824, %v1856
      %v1862 = vmul.f32 %v1825, %v1856
      %v1863 = vmul.f32 %v1826, %v1856
      %v1864 = vmul.f32 %v1827, %v1856
      %v1865 = vmul.f32 %v1828, %v1856
      %v1866 = vmul.f32 %v1829, %v1856
      %v1867 = vmul.f32 %v1830, %v1856
      %v1868 = vmul.f32 %v1831, %v1856
      %v1869 = vmul.f32 %v1832, %v1856
      %v1870 = vmul.f32 %v1833, %v1856
      %v1871 = vmul.f32 %v1834, %v1856
      %v1872 = vmul.f32 %v1835, %v1856
      %v1873 = vmul.f32 %v1836, %v1856
      %v1874 = vmul.f32 %v1837, %v1856
      %v1875 = vmul.f32 %v1838, %v1856
      %v1876 = vmul.f32 %v1839, %v1856
      %v1877 = vmul.f32 %v1840, %v1856
      %v1878 = vmul.f32 %v1841, %v1856
      %v1879 = vmul.f32 %v1842, %v1856
      %v1880 = vmul.f32 %v1843, %v1856
      %v1881 = vmul.f32 %v1844, %v1856
      %v1882 = vmul.f32 %v1845, %v1856
      %v1883 = vmul.f32 %v1846, %v1856
      %v1884 = vmul.f32 %v1847, %v1856
      %v1885 = vmul.f32 %v1848, %v1856
      %v1886 = vmul.f32 %v1849, %v1856
      %v1887 = vmul.f32 %v1850, %v1856
      %v1888 = vmul.f32 %v1851, %v1856
      %v1889 = vadd.f32 %v1564, %v1857
      %v1890 = vadd.f32 %v1565, %v1858
      %v1891 = vadd.f32 %v1566, %v1859
      %v1892 = vadd.f32 %v1567, %v1860
      %v1893 = vadd.f32 %v1568, %v1861
      %v1894 = vadd.f32 %v1569, %v1862
      %v1895 = vadd.f32 %v1570, %v1863
      %v1896 = vadd.f32 %v1571, %v1864
      %v1897 = vadd.f32 %v1572, %v1865
      %v1898 = vadd.f32 %v1573, %v1866
      %v1899 = vadd.f32 %v1574, %v1867
      %v1900 = vadd.f32 %v1575, %v1868
      %v1901 = vadd.f32 %v1576, %v1869
      %v1902 = vadd.f32 %v1577, %v1870
      %v1903 = vadd.f32 %v1578, %v1871
      %v1904 = vadd.f32 %v1579, %v1872
      %v1905 = vadd.f32 %v1580, %v1873
      %v1906 = vadd.f32 %v1581, %v1874
      %v1907 = vadd.f32 %v1582, %v1875
      %v1908 = vadd.f32 %v1583, %v1876
      %v1909 = vadd.f32 %v1584, %v1877
      %v1910 = vadd.f32 %v1585, %v1878
      %v1911 = vadd.f32 %v1586, %v1879
      %v1912 = vadd.f32 %v1587, %v1880
      %v1913 = vadd.f32 %v1588, %v1881
      %v1914 = vadd.f32 %v1589, %v1882
      %v1915 = vadd.f32 %v1590, %v1883
      %v1916 = vadd.f32 %v1591, %v1884
      %v1917 = vadd.f32 %v1592, %v1885
      %v1918 = vadd.f32 %v1593, %v1886
      %v1919 = vadd.f32 %v1594, %v1887
      %v1920 = vadd.f32 %v1595, %v1888
      %v1921 = vld [vmem:[%s576 + $0x7] sm:$0xff]
      %v1922 = vld [vmem:[%s576 + $0xf] sm:$0xff]
      %v1923 = vld [vmem:[%s576 + $0x27] sm:$0xff]
      %v1924 = vld [vmem:[%s576 + $0x2f] sm:$0xff]
      %v1925 = vld [vmem:[%s576 + $0x47] sm:$0xff]
      %v1926 = vld [vmem:[%s576 + $0x4f] sm:$0xff]
      %v1927 = vld [vmem:[%s576 + $0x67] sm:$0xff]
      %v1928 = vld [vmem:[%s576 + $0x6f] sm:$0xff]
      %v1929 = vld [vmem:[%s576 + $0x87] sm:$0xff]
      %v1930 = vld [vmem:[%s576 + $0x8f] sm:$0xff]
      %v1931 = vld [vmem:[%s576 + $0xa7] sm:$0xff]
      %v1932 = vld [vmem:[%s576 + $0xaf] sm:$0xff]
      %v1933 = vld [vmem:[%s576 + $0xc7] sm:$0xff]
      %v1934 = vld [vmem:[%s576 + $0xcf] sm:$0xff]
      %v1935 = vld [vmem:[%s576 + $0xe7] sm:$0xff]
      %v1936 = vld [vmem:[%s576 + $0xef] sm:$0xff]
      %v1937 = vld [vmem:[%s576 + $0x107] sm:$0xff]
      %v1938 = vld [vmem:[%s576 + $0x10f] sm:$0xff]
      %v1939 = vld [vmem:[%s576 + $0x127] sm:$0xff]
      %v1940 = vld [vmem:[%s576 + $0x12f] sm:$0xff]
      %v1941 = vld [vmem:[%s576 + $0x147] sm:$0xff]
      %v1942 = vld [vmem:[%s576 + $0x14f] sm:$0xff]
      %v1943 = vld [vmem:[%s576 + $0x167] sm:$0xff]
      %v1944 = vld [vmem:[%s576 + $0x16f] sm:$0xff]
      %v1945 = vld [vmem:[%s576 + $0x187] sm:$0xff]
      %v1946 = vld [vmem:[%s576 + $0x18f] sm:$0xff]
      %v1947 = vld [vmem:[%s576 + $0x1a7] sm:$0xff]
      %v1948 = vld [vmem:[%s576 + $0x1af] sm:$0xff]
      %v1949 = vld [vmem:[%s576 + $0x1c7] sm:$0xff]
      %v1950 = vld [vmem:[%s576 + $0x1cf] sm:$0xff]
      %v1951 = vld [vmem:[%s576 + $0x1e7] sm:$0xff]
      %v1952 = vld [vmem:[%s576 + $0x1ef] sm:$0xff]
      %v1953 = vld [vmem:[%s3 + $0x6] sm:$0x1]
      %v1954 = vlaneseq
      %v1955 = vshrl.u32 %v1954, 7
      %v1956 = vsub.s32 0, %v1955
      %v1957 = vrot.slane %v1953, %v1956
      %v1958 = vmul.f32 %v1921, %v1957
      %v1959 = vmul.f32 %v1922, %v1957
      %v1960 = vmul.f32 %v1923, %v1957
      %v1961 = vmul.f32 %v1924, %v1957
      %v1962 = vmul.f32 %v1925, %v1957
      %v1963 = vmul.f32 %v1926, %v1957
      %v1964 = vmul.f32 %v1927, %v1957
      %v1965 = vmul.f32 %v1928, %v1957
      %v1966 = vmul.f32 %v1929, %v1957
      %v1967 = vmul.f32 %v1930, %v1957
      %v1968 = vmul.f32 %v1931, %v1957
      %v1969 = vmul.f32 %v1932, %v1957
      %v1970 = vmul.f32 %v1933, %v1957
      %v1971 = vmul.f32 %v1934, %v1957
      %v1972 = vmul.f32 %v1935, %v1957
      %v1973 = vmul.f32 %v1936, %v1957
      %v1974 = vmul.f32 %v1937, %v1957
      %v1975 = vmul.f32 %v1938, %v1957
      %v1976 = vmul.f32 %v1939, %v1957
      %v1977 = vmul.f32 %v1940, %v1957
      %v1978 = vmul.f32 %v1941, %v1957
      %v1979 = vmul.f32 %v1942, %v1957
      %v1980 = vmul.f32 %v1943, %v1957
      %v1981 = vmul.f32 %v1944, %v1957
      %v1982 = vmul.f32 %v1945, %v1957
      %v1983 = vmul.f32 %v1946, %v1957
      %v1984 = vmul.f32 %v1947, %v1957
      %v1985 = vmul.f32 %v1948, %v1957
      %v1986 = vmul.f32 %v1949, %v1957
      %v1987 = vmul.f32 %v1950, %v1957
      %v1988 = vmul.f32 %v1951, %v1957
      %v1989 = vmul.f32 %v1952, %v1957
      %v1990 = vadd.f32 %v1889, %v1958
      %v1991 = vadd.f32 %v1890, %v1959
      %v1992 = vadd.f32 %v1891, %v1960
      %v1993 = vadd.f32 %v1892, %v1961
      %v1994 = vadd.f32 %v1893, %v1962
      %v1995 = vadd.f32 %v1894, %v1963
      %v1996 = vadd.f32 %v1895, %v1964
      %v1997 = vadd.f32 %v1896, %v1965
      %v1998 = vadd.f32 %v1897, %v1966
      %v1999 = vadd.f32 %v1898, %v1967
      %v2000 = vadd.f32 %v1899, %v1968
      %v2001 = vadd.f32 %v1900, %v1969
      %v2002 = vadd.f32 %v1901, %v1970
      %v2003 = vadd.f32 %v1902, %v1971
      %v2004 = vadd.f32 %v1903, %v1972
      %v2005 = vadd.f32 %v1904, %v1973
      %v2006 = vadd.f32 %v1905, %v1974
      %v2007 = vadd.f32 %v1906, %v1975
      %v2008 = vadd.f32 %v1907, %v1976
      %v2009 = vadd.f32 %v1908, %v1977
      %v2010 = vadd.f32 %v1909, %v1978
      %v2011 = vadd.f32 %v1910, %v1979
      %v2012 = vadd.f32 %v1911, %v1980
      %v2013 = vadd.f32 %v1912, %v1981
      %v2014 = vadd.f32 %v1913, %v1982
      %v2015 = vadd.f32 %v1914, %v1983
      %v2016 = vadd.f32 %v1915, %v1984
      %v2017 = vadd.f32 %v1916, %v1985
      %v2018 = vadd.f32 %v1917, %v1986
      %v2019 = vadd.f32 %v1918, %v1987
      %v2020 = vadd.f32 %v1919, %v1988
      %v2021 = vadd.f32 %v1920, %v1989
      %2054 = vrot.lane.b32.xlu0 %v1921, 112
      %v2055 = vpop.permute.xlu0 %2054
      %2056 = vrot.lane.b32.xlu0 %v1922, 112
      %v2057 = vpop.permute.xlu0 %2056
      %2058 = vrot.lane.b32.xlu0 %v1923, 112
      %v2059 = vpop.permute.xlu0 %2058
      %2060 = vrot.lane.b32.xlu0 %v1924, 112
      %v2061 = vpop.permute.xlu0 %2060
      %2062 = vrot.lane.b32.xlu0 %v1925, 112
      %v2063 = vpop.permute.xlu0 %2062
      %2064 = vrot.lane.b32.xlu0 %v1926, 112
      %v2065 = vpop.permute.xlu0 %2064
      %2066 = vrot.lane.b32.xlu0 %v1927, 112
      %v2067 = vpop.permute.xlu0 %2066
      %2068 = vrot.lane.b32.xlu0 %v1928, 112
      %v2069 = vpop.permute.xlu0 %2068
      %2070 = vrot.lane.b32.xlu0 %v1929, 112
      %v2071 = vpop.permute.xlu0 %2070
      %2072 = vrot.lane.b32.xlu0 %v1930, 112
      %v2073 = vpop.permute.xlu0 %2072
      %2074 = vrot.lane.b32.xlu0 %v1931, 112
      %v2075 = vpop.permute.xlu0 %2074
      %2076 = vrot.lane.b32.xlu0 %v1932, 112
      %v2077 = vpop.permute.xlu0 %2076
      %2078 = vrot.lane.b32.xlu0 %v1933, 112
      %v2079 = vpop.permute.xlu0 %2078
      %2080 = vrot.lane.b32.xlu0 %v1934, 112
      %v2081 = vpop.permute.xlu0 %2080
      %2082 = vrot.lane.b32.xlu0 %v1935, 112
      %v2083 = vpop.permute.xlu0 %2082
      %2084 = vrot.lane.b32.xlu0 %v1936, 112
      %v2085 = vpop.permute.xlu0 %2084
      %2086 = vrot.lane.b32.xlu0 %v1937, 112
      %v2087 = vpop.permute.xlu0 %2086
      %2088 = vrot.lane.b32.xlu0 %v1938, 112
      %v2089 = vpop.permute.xlu0 %2088
      %2090 = vrot.lane.b32.xlu0 %v1939, 112
      %v2091 = vpop.permute.xlu0 %2090
      %2092 = vrot.lane.b32.xlu0 %v1940, 112
      %v2093 = vpop.permute.xlu0 %2092
      %2094 = vrot.lane.b32.xlu0 %v1941, 112
      %v2095 = vpop.permute.xlu0 %2094
      %2096 = vrot.lane.b32.xlu0 %v1942, 112
      %v2097 = vpop.permute.xlu0 %2096
      %2098 = vrot.lane.b32.xlu0 %v1943, 112
      %v2099 = vpop.permute.xlu0 %2098
      %2100 = vrot.lane.b32.xlu0 %v1944, 112
      %v2101 = vpop.permute.xlu0 %2100
      %2102 = vrot.lane.b32.xlu0 %v1945, 112
      %v2103 = vpop.permute.xlu0 %2102
      %2104 = vrot.lane.b32.xlu0 %v1946, 112
      %v2105 = vpop.permute.xlu0 %2104
      %2106 = vrot.lane.b32.xlu0 %v1947, 112
      %v2107 = vpop.permute.xlu0 %2106
      %2108 = vrot.lane.b32.xlu0 %v1948, 112
      %v2109 = vpop.permute.xlu0 %2108
      %2110 = vrot.lane.b32.xlu0 %v1949, 112
      %v2111 = vpop.permute.xlu0 %2110
      %2112 = vrot.lane.b32.xlu0 %v1950, 112
      %v2113 = vpop.permute.xlu0 %2112
      %2114 = vrot.lane.b32.xlu0 %v1951, 112
      %v2115 = vpop.permute.xlu0 %2114
      %2116 = vrot.lane.b32.xlu0 %v1952, 112
      %v2117 = vpop.permute.xlu0 %2116
      %2150 = vrot.lane.b32.xlu0 %v1921, 16
      %v2151 = vpop.permute.xlu0 %2150
      %2152 = vrot.lane.b32.xlu0 %v1922, 16
      %v2153 = vpop.permute.xlu0 %2152
      %2154 = vrot.lane.b32.xlu0 %v1923, 16
      %v2155 = vpop.permute.xlu0 %2154
      %2156 = vrot.lane.b32.xlu0 %v1924, 16
      %v2157 = vpop.permute.xlu0 %2156
      %2158 = vrot.lane.b32.xlu0 %v1925, 16
      %v2159 = vpop.permute.xlu0 %2158
      %2160 = vrot.lane.b32.xlu0 %v1926, 16
      %v2161 = vpop.permute.xlu0 %2160
      %2162 = vrot.lane.b32.xlu0 %v1927, 16
      %v2163 = vpop.permute.xlu0 %2162
      %2164 = vrot.lane.b32.xlu0 %v1928, 16
      %v2165 = vpop.permute.xlu0 %2164
      %2166 = vrot.lane.b32.xlu0 %v1929, 16
      %v2167 = vpop.permute.xlu0 %2166
      %2168 = vrot.lane.b32.xlu0 %v1930, 16
      %v2169 = vpop.permute.xlu0 %2168
      %2170 = vrot.lane.b32.xlu0 %v1931, 16
      %v2171 = vpop.permute.xlu0 %2170
      %2172 = vrot.lane.b32.xlu0 %v1932, 16
      %v2173 = vpop.permute.xlu0 %2172
      %2174 = vrot.lane.b32.xlu0 %v1933, 16
      %v2175 = vpop.permute.xlu0 %2174
      %2176 = vrot.lane.b32.xlu0 %v1934, 16
      %v2177 = vpop.permute.xlu0 %2176
      %2178 = vrot.lane.b32.xlu0 %v1935, 16
      %v2179 = vpop.permute.xlu0 %2178
      %2180 = vrot.lane.b32.xlu0 %v1936, 16
      %v2181 = vpop.permute.xlu0 %2180
      %2182 = vrot.lane.b32.xlu0 %v1937, 16
      %v2183 = vpop.permute.xlu0 %2182
      %2184 = vrot.lane.b32.xlu0 %v1938, 16
      %v2185 = vpop.permute.xlu0 %2184
      %2186 = vrot.lane.b32.xlu0 %v1939, 16
      %v2187 = vpop.permute.xlu0 %2186
      %2188 = vrot.lane.b32.xlu0 %v1940, 16
      %v2189 = vpop.permute.xlu0 %2188
      %2190 = vrot.lane.b32.xlu0 %v1941, 16
      %v2191 = vpop.permute.xlu0 %2190
      %2192 = vrot.lane.b32.xlu0 %v1942, 16
      %v2193 = vpop.permute.xlu0 %2192
      %2194 = vrot.lane.b32.xlu0 %v1943, 16
      %v2195 = vpop.permute.xlu0 %2194
      %2196 = vrot.lane.b32.xlu0 %v1944, 16
      %v2197 = vpop.permute.xlu0 %2196
      %2198 = vrot.lane.b32.xlu0 %v1945, 16
      %v2199 = vpop.permute.xlu0 %2198
      %2200 = vrot.lane.b32.xlu0 %v1946, 16
      %v2201 = vpop.permute.xlu0 %2200
      %2202 = vrot.lane.b32.xlu0 %v1947, 16
      %v2203 = vpop.permute.xlu0 %2202
      %2204 = vrot.lane.b32.xlu0 %v1948, 16
      %v2205 = vpop.permute.xlu0 %2204
      %2206 = vrot.lane.b32.xlu0 %v1949, 16
      %v2207 = vpop.permute.xlu0 %2206
      %2208 = vrot.lane.b32.xlu0 %v1950, 16
      %v2209 = vpop.permute.xlu0 %2208
      %2210 = vrot.lane.b32.xlu0 %v1951, 16
      %v2211 = vpop.permute.xlu0 %2210
      %2212 = vrot.lane.b32.xlu0 %v1952, 16
      %v2213 = vpop.permute.xlu0 %2212
      %v2246 = vsel %vm967, %v2055, %v2151
      %v2247 = vsel %vm967, %v2057, %v2153
      %v2248 = vsel %vm967, %v2059, %v2155
      %v2249 = vsel %vm967, %v2061, %v2157
      %v2250 = vsel %vm967, %v2063, %v2159
      %v2251 = vsel %vm967, %v2065, %v2161
      %v2252 = vsel %vm967, %v2067, %v2163
      %v2253 = vsel %vm967, %v2069, %v2165
      %v2254 = vsel %vm967, %v2071, %v2167
      %v2255 = vsel %vm967, %v2073, %v2169
      %v2256 = vsel %vm967, %v2075, %v2171
      %v2257 = vsel %vm967, %v2077, %v2173
      %v2258 = vsel %vm967, %v2079, %v2175
      %v2259 = vsel %vm967, %v2081, %v2177
      %v2260 = vsel %vm967, %v2083, %v2179
      %v2261 = vsel %vm967, %v2085, %v2181
      %v2262 = vsel %vm967, %v2087, %v2183
      %v2263 = vsel %vm967, %v2089, %v2185
      %v2264 = vsel %vm967, %v2091, %v2187
      %v2265 = vsel %vm967, %v2093, %v2189
      %v2266 = vsel %vm967, %v2095, %v2191
      %v2267 = vsel %vm967, %v2097, %v2193
      %v2268 = vsel %vm967, %v2099, %v2195
      %v2269 = vsel %vm967, %v2101, %v2197
      %v2270 = vsel %vm967, %v2103, %v2199
      %v2271 = vsel %vm967, %v2105, %v2201
      %v2272 = vsel %vm967, %v2107, %v2203
      %v2273 = vsel %vm967, %v2109, %v2205
      %v2274 = vsel %vm967, %v2111, %v2207
      %v2275 = vsel %vm967, %v2113, %v2209
      %v2276 = vsel %vm967, %v2115, %v2211
      %v2277 = vsel %vm967, %v2117, %v2213
      %v2278 = vld [vmem:[%s3 + $0x7] sm:$0x1]
      %v2279 = vlaneseq
      %v2280 = vshrl.u32 %v2279, 7
      %v2281 = vsub.s32 0, %v2280
      %v2282 = vrot.slane %v2278, %v2281
      %v2283 = vmul.f32 %v2246, %v2282
      %v2284 = vmul.f32 %v2247, %v2282
      %v2285 = vmul.f32 %v2248, %v2282
      %v2286 = vmul.f32 %v2249, %v2282
      %v2287 = vmul.f32 %v2250, %v2282
      %v2288 = vmul.f32 %v2251, %v2282
      %v2289 = vmul.f32 %v2252, %v2282
      %v2290 = vmul.f32 %v2253, %v2282
      %v2291 = vmul.f32 %v2254, %v2282
      %v2292 = vmul.f32 %v2255, %v2282
      %v2293 = vmul.f32 %v2256, %v2282
      %v2294 = vmul.f32 %v2257, %v2282
      %v2295 = vmul.f32 %v2258, %v2282
      %v2296 = vmul.f32 %v2259, %v2282
      %v2297 = vmul.f32 %v2260, %v2282
      %v2298 = vmul.f32 %v2261, %v2282
      %v2299 = vmul.f32 %v2262, %v2282
      %v2300 = vmul.f32 %v2263, %v2282
      %v2301 = vmul.f32 %v2264, %v2282
      %v2302 = vmul.f32 %v2265, %v2282
      %v2303 = vmul.f32 %v2266, %v2282
      %v2304 = vmul.f32 %v2267, %v2282
      %v2305 = vmul.f32 %v2268, %v2282
      %v2306 = vmul.f32 %v2269, %v2282
      %v2307 = vmul.f32 %v2270, %v2282
      %v2308 = vmul.f32 %v2271, %v2282
      %v2309 = vmul.f32 %v2272, %v2282
      %v2310 = vmul.f32 %v2273, %v2282
      %v2311 = vmul.f32 %v2274, %v2282
      %v2312 = vmul.f32 %v2275, %v2282
      %v2313 = vmul.f32 %v2276, %v2282
      %v2314 = vmul.f32 %v2277, %v2282
      %v2315 = vadd.f32 %v1990, %v2283
      %v2316 = vadd.f32 %v1991, %v2284
      %v2317 = vadd.f32 %v1992, %v2285
      %v2318 = vadd.f32 %v1993, %v2286
      %v2319 = vadd.f32 %v1994, %v2287
      %v2320 = vadd.f32 %v1995, %v2288
      %v2321 = vadd.f32 %v1996, %v2289
      %v2322 = vadd.f32 %v1997, %v2290
      %v2323 = vadd.f32 %v1998, %v2291
      %v2324 = vadd.f32 %v1999, %v2292
      %v2325 = vadd.f32 %v2000, %v2293
      %v2326 = vadd.f32 %v2001, %v2294
      %v2327 = vadd.f32 %v2002, %v2295
      %v2328 = vadd.f32 %v2003, %v2296
      %v2329 = vadd.f32 %v2004, %v2297
      %v2330 = vadd.f32 %v2005, %v2298
      %v2331 = vadd.f32 %v2006, %v2299
      %v2332 = vadd.f32 %v2007, %v2300
      %v2333 = vadd.f32 %v2008, %v2301
      %v2334 = vadd.f32 %v2009, %v2302
      %v2335 = vadd.f32 %v2010, %v2303
      %v2336 = vadd.f32 %v2011, %v2304
      %v2337 = vadd.f32 %v2012, %v2305
      %v2338 = vadd.f32 %v2013, %v2306
      %v2339 = vadd.f32 %v2014, %v2307
      %v2340 = vadd.f32 %v2015, %v2308
      %v2341 = vadd.f32 %v2016, %v2309
      %v2342 = vadd.f32 %v2017, %v2310
      %v2343 = vadd.f32 %v2018, %v2311
      %v2344 = vadd.f32 %v2019, %v2312
      %v2345 = vadd.f32 %v2020, %v2313
      %v2346 = vadd.f32 %v2021, %v2314
      %v2347 = vld [vmem:[%s576 + $0x8] sm:$0xff]
      %v2348 = vld [vmem:[%s576 + $0x10] sm:$0xff]
      %v2349 = vld [vmem:[%s576 + $0x28] sm:$0xff]
      %v2350 = vld [vmem:[%s576 + $0x30] sm:$0xff]
      %v2351 = vld [vmem:[%s576 + $0x48] sm:$0xff]
      %v2352 = vld [vmem:[%s576 + $0x50] sm:$0xff]
      %v2353 = vld [vmem:[%s576 + $0x68] sm:$0xff]
      %v2354 = vld [vmem:[%s576 + $0x70] sm:$0xff]
      %v2355 = vld [vmem:[%s576 + $0x88] sm:$0xff]
      %v2356 = vld [vmem:[%s576 + $0x90] sm:$0xff]
      %v2357 = vld [vmem:[%s576 + $0xa8] sm:$0xff]
      %v2358 = vld [vmem:[%s576 + $0xb0] sm:$0xff]
      %v2359 = vld [vmem:[%s576 + $0xc8] sm:$0xff]
      %v2360 = vld [vmem:[%s576 + $0xd0] sm:$0xff]
      %v2361 = vld [vmem:[%s576 + $0xe8] sm:$0xff]
      %v2362 = vld [vmem:[%s576 + $0xf0] sm:$0xff]
      %v2363 = vld [vmem:[%s576 + $0x108] sm:$0xff]
      %v2364 = vld [vmem:[%s576 + $0x110] sm:$0xff]
      %v2365 = vld [vmem:[%s576 + $0x128] sm:$0xff]
      %v2366 = vld [vmem:[%s576 + $0x130] sm:$0xff]
      %v2367 = vld [vmem:[%s576 + $0x148] sm:$0xff]
      %v2368 = vld [vmem:[%s576 + $0x150] sm:$0xff]
      %v2369 = vld [vmem:[%s576 + $0x168] sm:$0xff]
      %v2370 = vld [vmem:[%s576 + $0x170] sm:$0xff]
      %v2371 = vld [vmem:[%s576 + $0x188] sm:$0xff]
      %v2372 = vld [vmem:[%s576 + $0x190] sm:$0xff]
      %v2373 = vld [vmem:[%s576 + $0x1a8] sm:$0xff]
      %v2374 = vld [vmem:[%s576 + $0x1b0] sm:$0xff]
      %v2375 = vld [vmem:[%s576 + $0x1c8] sm:$0xff]
      %v2376 = vld [vmem:[%s576 + $0x1d0] sm:$0xff]
      %v2377 = vld [vmem:[%s576 + $0x1e8] sm:$0xff]
      %v2378 = vld [vmem:[%s576 + $0x1f0] sm:$0xff]
      %v2379 = vld [vmem:[%s3 + $0x8] sm:$0x1]
      %v2380 = vlaneseq
      %v2381 = vshrl.u32 %v2380, 7
      %v2382 = vsub.s32 0, %v2381
      %v2383 = vrot.slane %v2379, %v2382
      %v2384 = vmul.f32 %v2347, %v2383
      %v2385 = vmul.f32 %v2348, %v2383
      %v2386 = vmul.f32 %v2349, %v2383
      %v2387 = vmul.f32 %v2350, %v2383
      %v2388 = vmul.f32 %v2351, %v2383
      %v2389 = vmul.f32 %v2352, %v2383
      %v2390 = vmul.f32 %v2353, %v2383
      %v2391 = vmul.f32 %v2354, %v2383
      %v2392 = vmul.f32 %v2355, %v2383
      %v2393 = vmul.f32 %v2356, %v2383
      %v2394 = vmul.f32 %v2357, %v2383
      %v2395 = vmul.f32 %v2358, %v2383
      %v2396 = vmul.f32 %v2359, %v2383
      %v2397 = vmul.f32 %v2360, %v2383
      %v2398 = vmul.f32 %v2361, %v2383
      %v2399 = vmul.f32 %v2362, %v2383
      %v2400 = vmul.f32 %v2363, %v2383
      %v2401 = vmul.f32 %v2364, %v2383
      %v2402 = vmul.f32 %v2365, %v2383
      %v2403 = vmul.f32 %v2366, %v2383
      %v2404 = vmul.f32 %v2367, %v2383
      %v2405 = vmul.f32 %v2368, %v2383
      %v2406 = vmul.f32 %v2369, %v2383
      %v2407 = vmul.f32 %v2370, %v2383
      %v2408 = vmul.f32 %v2371, %v2383
      %v2409 = vmul.f32 %v2372, %v2383
      %v2410 = vmul.f32 %v2373, %v2383
      %v2411 = vmul.f32 %v2374, %v2383
      %v2412 = vmul.f32 %v2375, %v2383
      %v2413 = vmul.f32 %v2376, %v2383
      %v2414 = vmul.f32 %v2377, %v2383
      %v2415 = vmul.f32 %v2378, %v2383
      %v2416 = vadd.f32 %v2315, %v2384
      %v2417 = vadd.f32 %v2316, %v2385
      %v2418 = vadd.f32 %v2317, %v2386
      %v2419 = vadd.f32 %v2318, %v2387
      %v2420 = vadd.f32 %v2319, %v2388
      %v2421 = vadd.f32 %v2320, %v2389
      %v2422 = vadd.f32 %v2321, %v2390
      %v2423 = vadd.f32 %v2322, %v2391
      %v2424 = vadd.f32 %v2323, %v2392
      %v2425 = vadd.f32 %v2324, %v2393
      %v2426 = vadd.f32 %v2325, %v2394
      %v2427 = vadd.f32 %v2326, %v2395
      %v2428 = vadd.f32 %v2327, %v2396
      %v2429 = vadd.f32 %v2328, %v2397
      %v2430 = vadd.f32 %v2329, %v2398
      %v2431 = vadd.f32 %v2330, %v2399
      %v2432 = vadd.f32 %v2331, %v2400
      %v2433 = vadd.f32 %v2332, %v2401
      %v2434 = vadd.f32 %v2333, %v2402
      %v2435 = vadd.f32 %v2334, %v2403
      %v2436 = vadd.f32 %v2335, %v2404
      %v2437 = vadd.f32 %v2336, %v2405
      %v2438 = vadd.f32 %v2337, %v2406
      %v2439 = vadd.f32 %v2338, %v2407
      %v2440 = vadd.f32 %v2339, %v2408
      %v2441 = vadd.f32 %v2340, %v2409
      %v2442 = vadd.f32 %v2341, %v2410
      %v2443 = vadd.f32 %v2342, %v2411
      %v2444 = vadd.f32 %v2343, %v2412
      %v2445 = vadd.f32 %v2344, %v2413
      %v2446 = vadd.f32 %v2345, %v2414
      %v2447 = vadd.f32 %v2346, %v2415
      %2480 = vrot.lane.b32.xlu0 %v2347, 112
      %v2481 = vpop.permute.xlu0 %2480
      %2482 = vrot.lane.b32.xlu0 %v2348, 112
      %v2483 = vpop.permute.xlu0 %2482
      %2484 = vrot.lane.b32.xlu0 %v2349, 112
      %v2485 = vpop.permute.xlu0 %2484
      %2486 = vrot.lane.b32.xlu0 %v2350, 112
      %v2487 = vpop.permute.xlu0 %2486
      %2488 = vrot.lane.b32.xlu0 %v2351, 112
      %v2489 = vpop.permute.xlu0 %2488
      %2490 = vrot.lane.b32.xlu0 %v2352, 112
      %v2491 = vpop.permute.xlu0 %2490
      %2492 = vrot.lane.b32.xlu0 %v2353, 112
      %v2493 = vpop.permute.xlu0 %2492
      %2494 = vrot.lane.b32.xlu0 %v2354, 112
      %v2495 = vpop.permute.xlu0 %2494
      %2496 = vrot.lane.b32.xlu0 %v2355, 112
      %v2497 = vpop.permute.xlu0 %2496
      %2498 = vrot.lane.b32.xlu0 %v2356, 112
      %v2499 = vpop.permute.xlu0 %2498
      %2500 = vrot.lane.b32.xlu0 %v2357, 112
      %v2501 = vpop.permute.xlu0 %2500
      %2502 = vrot.lane.b32.xlu0 %v2358, 112
      %v2503 = vpop.permute.xlu0 %2502
      %2504 = vrot.lane.b32.xlu0 %v2359, 112
      %v2505 = vpop.permute.xlu0 %2504
      %2506 = vrot.lane.b32.xlu0 %v2360, 112
      %v2507 = vpop.permute.xlu0 %2506
      %2508 = vrot.lane.b32.xlu0 %v2361, 112
      %v2509 = vpop.permute.xlu0 %2508
      %2510 = vrot.lane.b32.xlu0 %v2362, 112
      %v2511 = vpop.permute.xlu0 %2510
      %2512 = vrot.lane.b32.xlu0 %v2363, 112
      %v2513 = vpop.permute.xlu0 %2512
      %2514 = vrot.lane.b32.xlu0 %v2364, 112
      %v2515 = vpop.permute.xlu0 %2514
      %2516 = vrot.lane.b32.xlu0 %v2365, 112
      %v2517 = vpop.permute.xlu0 %2516
      %2518 = vrot.lane.b32.xlu0 %v2366, 112
      %v2519 = vpop.permute.xlu0 %2518
      %2520 = vrot.lane.b32.xlu0 %v2367, 112
      %v2521 = vpop.permute.xlu0 %2520
      %2522 = vrot.lane.b32.xlu0 %v2368, 112
      %v2523 = vpop.permute.xlu0 %2522
      %2524 = vrot.lane.b32.xlu0 %v2369, 112
      %v2525 = vpop.permute.xlu0 %2524
      %2526 = vrot.lane.b32.xlu0 %v2370, 112
      %v2527 = vpop.permute.xlu0 %2526
      %2528 = vrot.lane.b32.xlu0 %v2371, 112
      %v2529 = vpop.permute.xlu0 %2528
      %2530 = vrot.lane.b32.xlu0 %v2372, 112
      %v2531 = vpop.permute.xlu0 %2530
      %2532 = vrot.lane.b32.xlu0 %v2373, 112
      %v2533 = vpop.permute.xlu0 %2532
      %2534 = vrot.lane.b32.xlu0 %v2374, 112
      %v2535 = vpop.permute.xlu0 %2534
      %2536 = vrot.lane.b32.xlu0 %v2375, 112
      %v2537 = vpop.permute.xlu0 %2536
      %2538 = vrot.lane.b32.xlu0 %v2376, 112
      %v2539 = vpop.permute.xlu0 %2538
      %2540 = vrot.lane.b32.xlu0 %v2377, 112
      %v2541 = vpop.permute.xlu0 %2540
      %2542 = vrot.lane.b32.xlu0 %v2378, 112
      %v2543 = vpop.permute.xlu0 %2542
      %2576 = vrot.lane.b32.xlu0 %v2347, 16
      %v2577 = vpop.permute.xlu0 %2576
      %2578 = vrot.lane.b32.xlu0 %v2348, 16
      %v2579 = vpop.permute.xlu0 %2578
      %2580 = vrot.lane.b32.xlu0 %v2349, 16
      %v2581 = vpop.permute.xlu0 %2580
      %2582 = vrot.lane.b32.xlu0 %v2350, 16
      %v2583 = vpop.permute.xlu0 %2582
      %2584 = vrot.lane.b32.xlu0 %v2351, 16
      %v2585 = vpop.permute.xlu0 %2584
      %2586 = vrot.lane.b32.xlu0 %v2352, 16
      %v2587 = vpop.permute.xlu0 %2586
      %2588 = vrot.lane.b32.xlu0 %v2353, 16
      %v2589 = vpop.permute.xlu0 %2588
      %2590 = vrot.lane.b32.xlu0 %v2354, 16
      %v2591 = vpop.permute.xlu0 %2590
      %2592 = vrot.lane.b32.xlu0 %v2355, 16
      %v2593 = vpop.permute.xlu0 %2592
      %2594 = vrot.lane.b32.xlu0 %v2356, 16
      %v2595 = vpop.permute.xlu0 %2594
      %2596 = vrot.lane.b32.xlu0 %v2357, 16
      %v2597 = vpop.permute.xlu0 %2596
      %2598 = vrot.lane.b32.xlu0 %v2358, 16
      %v2599 = vpop.permute.xlu0 %2598
      %2600 = vrot.lane.b32.xlu0 %v2359, 16
      %v2601 = vpop.permute.xlu0 %2600
      %2602 = vrot.lane.b32.xlu0 %v2360, 16
      %v2603 = vpop.permute.xlu0 %2602
      %2604 = vrot.lane.b32.xlu0 %v2361, 16
      %v2605 = vpop.permute.xlu0 %2604
      %2606 = vrot.lane.b32.xlu0 %v2362, 16
      %v2607 = vpop.permute.xlu0 %2606
      %2608 = vrot.lane.b32.xlu0 %v2363, 16
      %v2609 = vpop.permute.xlu0 %2608
      %2610 = vrot.lane.b32.xlu0 %v2364, 16
      %v2611 = vpop.permute.xlu0 %2610
      %2612 = vrot.lane.b32.xlu0 %v2365, 16
      %v2613 = vpop.permute.xlu0 %2612
      %2614 = vrot.lane.b32.xlu0 %v2366, 16
      %v2615 = vpop.permute.xlu0 %2614
      %2616 = vrot.lane.b32.xlu0 %v2367, 16
      %v2617 = vpop.permute.xlu0 %2616
      %2618 = vrot.lane.b32.xlu0 %v2368, 16
      %v2619 = vpop.permute.xlu0 %2618
      %2620 = vrot.lane.b32.xlu0 %v2369, 16
      %v2621 = vpop.permute.xlu0 %2620
      %2622 = vrot.lane.b32.xlu0 %v2370, 16
      %v2623 = vpop.permute.xlu0 %2622
      %2624 = vrot.lane.b32.xlu0 %v2371, 16
      %v2625 = vpop.permute.xlu0 %2624
      %2626 = vrot.lane.b32.xlu0 %v2372, 16
      %v2627 = vpop.permute.xlu0 %2626
      %2628 = vrot.lane.b32.xlu0 %v2373, 16
      %v2629 = vpop.permute.xlu0 %2628
      %2630 = vrot.lane.b32.xlu0 %v2374, 16
      %v2631 = vpop.permute.xlu0 %2630
      %2632 = vrot.lane.b32.xlu0 %v2375, 16
      %v2633 = vpop.permute.xlu0 %2632
      %2634 = vrot.lane.b32.xlu0 %v2376, 16
      %v2635 = vpop.permute.xlu0 %2634
      %2636 = vrot.lane.b32.xlu0 %v2377, 16
      %v2637 = vpop.permute.xlu0 %2636
      %2638 = vrot.lane.b32.xlu0 %v2378, 16
      %v2639 = vpop.permute.xlu0 %2638
      %v2672 = vsel %vm967, %v2481, %v2577
      %v2673 = vsel %vm967, %v2483, %v2579
      %v2674 = vsel %vm967, %v2485, %v2581
      %v2675 = vsel %vm967, %v2487, %v2583
      %v2676 = vsel %vm967, %v2489, %v2585
      %v2677 = vsel %vm967, %v2491, %v2587
      %v2678 = vsel %vm967, %v2493, %v2589
      %v2679 = vsel %vm967, %v2495, %v2591
      %v2680 = vsel %vm967, %v2497, %v2593
      %v2681 = vsel %vm967, %v2499, %v2595
      %v2682 = vsel %vm967, %v2501, %v2597
      %v2683 = vsel %vm967, %v2503, %v2599
      %v2684 = vsel %vm967, %v2505, %v2601
      %v2685 = vsel %vm967, %v2507, %v2603
      %v2686 = vsel %vm967, %v2509, %v2605
      %v2687 = vsel %vm967, %v2511, %v2607
      %v2688 = vsel %vm967, %v2513, %v2609
      %v2689 = vsel %vm967, %v2515, %v2611
      %v2690 = vsel %vm967, %v2517, %v2613
      %v2691 = vsel %vm967, %v2519, %v2615
      %v2692 = vsel %vm967, %v2521, %v2617
      %v2693 = vsel %vm967, %v2523, %v2619
      %v2694 = vsel %vm967, %v2525, %v2621
      %v2695 = vsel %vm967, %v2527, %v2623
      %v2696 = vsel %vm967, %v2529, %v2625
      %v2697 = vsel %vm967, %v2531, %v2627
      %v2698 = vsel %vm967, %v2533, %v2629
      %v2699 = vsel %vm967, %v2535, %v2631
      %v2700 = vsel %vm967, %v2537, %v2633
      %v2701 = vsel %vm967, %v2539, %v2635
      %v2702 = vsel %vm967, %v2541, %v2637
      %v2703 = vsel %vm967, %v2543, %v2639
      %v2704 = vld [vmem:[%s3 + $0x9] sm:$0x1]
      %v2705 = vlaneseq
      %v2706 = vshrl.u32 %v2705, 7
      %v2707 = vsub.s32 0, %v2706
      %v2708 = vrot.slane %v2704, %v2707
      %v2709 = vmul.f32 %v2672, %v2708
      %v2710 = vmul.f32 %v2673, %v2708
      %v2711 = vmul.f32 %v2674, %v2708
      %v2712 = vmul.f32 %v2675, %v2708
      %v2713 = vmul.f32 %v2676, %v2708
      %v2714 = vmul.f32 %v2677, %v2708
      %v2715 = vmul.f32 %v2678, %v2708
      %v2716 = vmul.f32 %v2679, %v2708
      %v2717 = vmul.f32 %v2680, %v2708
      %v2718 = vmul.f32 %v2681, %v2708
      %v2719 = vmul.f32 %v2682, %v2708
      %v2720 = vmul.f32 %v2683, %v2708
      %v2721 = vmul.f32 %v2684, %v2708
      %v2722 = vmul.f32 %v2685, %v2708
      %v2723 = vmul.f32 %v2686, %v2708
      %v2724 = vmul.f32 %v2687, %v2708
      %v2725 = vmul.f32 %v2688, %v2708
      %v2726 = vmul.f32 %v2689, %v2708
      %v2727 = vmul.f32 %v2690, %v2708
      %v2728 = vmul.f32 %v2691, %v2708
      %v2729 = vmul.f32 %v2692, %v2708
      %v2730 = vmul.f32 %v2693, %v2708
      %v2731 = vmul.f32 %v2694, %v2708
      %v2732 = vmul.f32 %v2695, %v2708
      %v2733 = vmul.f32 %v2696, %v2708
      %v2734 = vmul.f32 %v2697, %v2708
      %v2735 = vmul.f32 %v2698, %v2708
      %v2736 = vmul.f32 %v2699, %v2708
      %v2737 = vmul.f32 %v2700, %v2708
      %v2738 = vmul.f32 %v2701, %v2708
      %v2739 = vmul.f32 %v2702, %v2708
      %v2740 = vmul.f32 %v2703, %v2708
      %v2741 = vadd.f32 %v2416, %v2709
      %v2742 = vadd.f32 %v2417, %v2710
      %v2743 = vadd.f32 %v2418, %v2711
      %v2744 = vadd.f32 %v2419, %v2712
      %v2745 = vadd.f32 %v2420, %v2713
      %v2746 = vadd.f32 %v2421, %v2714
      %v2747 = vadd.f32 %v2422, %v2715
      %v2748 = vadd.f32 %v2423, %v2716
      %v2749 = vadd.f32 %v2424, %v2717
      %v2750 = vadd.f32 %v2425, %v2718
      %v2751 = vadd.f32 %v2426, %v2719
      %v2752 = vadd.f32 %v2427, %v2720
      %v2753 = vadd.f32 %v2428, %v2721
      %v2754 = vadd.f32 %v2429, %v2722
      %v2755 = vadd.f32 %v2430, %v2723
      %v2756 = vadd.f32 %v2431, %v2724
      %v2757 = vadd.f32 %v2432, %v2725
      %v2758 = vadd.f32 %v2433, %v2726
      %v2759 = vadd.f32 %v2434, %v2727
      %v2760 = vadd.f32 %v2435, %v2728
      %v2761 = vadd.f32 %v2436, %v2729
      %v2762 = vadd.f32 %v2437, %v2730
      %v2763 = vadd.f32 %v2438, %v2731
      %v2764 = vadd.f32 %v2439, %v2732
      %v2765 = vadd.f32 %v2440, %v2733
      %v2766 = vadd.f32 %v2441, %v2734
      %v2767 = vadd.f32 %v2442, %v2735
      %v2768 = vadd.f32 %v2443, %v2736
      %v2769 = vadd.f32 %v2444, %v2737
      %v2770 = vadd.f32 %v2445, %v2738
      %v2771 = vadd.f32 %v2446, %v2739
      %v2772 = vadd.f32 %v2447, %v2740
      %v2773 = vld [vmem:[%s576 + $0x9] sm:$0xff]
      %v2774 = vld [vmem:[%s576 + $0x11] sm:$0xff]
      %v2775 = vld [vmem:[%s576 + $0x29] sm:$0xff]
      %v2776 = vld [vmem:[%s576 + $0x31] sm:$0xff]
      %v2777 = vld [vmem:[%s576 + $0x49] sm:$0xff]
      %v2778 = vld [vmem:[%s576 + $0x51] sm:$0xff]
      %v2779 = vld [vmem:[%s576 + $0x69] sm:$0xff]
      %v2780 = vld [vmem:[%s576 + $0x71] sm:$0xff]
      %v2781 = vld [vmem:[%s576 + $0x89] sm:$0xff]
      %v2782 = vld [vmem:[%s576 + $0x91] sm:$0xff]
      %v2783 = vld [vmem:[%s576 + $0xa9] sm:$0xff]
      %v2784 = vld [vmem:[%s576 + $0xb1] sm:$0xff]
      %v2785 = vld [vmem:[%s576 + $0xc9] sm:$0xff]
      %v2786 = vld [vmem:[%s576 + $0xd1] sm:$0xff]
      %v2787 = vld [vmem:[%s576 + $0xe9] sm:$0xff]
      %v2788 = vld [vmem:[%s576 + $0xf1] sm:$0xff]
      %v2789 = vld [vmem:[%s576 + $0x109] sm:$0xff]
      %v2790 = vld [vmem:[%s576 + $0x111] sm:$0xff]
      %v2791 = vld [vmem:[%s576 + $0x129] sm:$0xff]
      %v2792 = vld [vmem:[%s576 + $0x131] sm:$0xff]
      %v2793 = vld [vmem:[%s576 + $0x149] sm:$0xff]
      %v2794 = vld [vmem:[%s576 + $0x151] sm:$0xff]
      %v2795 = vld [vmem:[%s576 + $0x169] sm:$0xff]
      %v2796 = vld [vmem:[%s576 + $0x171] sm:$0xff]
      %v2797 = vld [vmem:[%s576 + $0x189] sm:$0xff]
      %v2798 = vld [vmem:[%s576 + $0x191] sm:$0xff]
      %v2799 = vld [vmem:[%s576 + $0x1a9] sm:$0xff]
      %v2800 = vld [vmem:[%s576 + $0x1b1] sm:$0xff]
      %v2801 = vld [vmem:[%s576 + $0x1c9] sm:$0xff]
      %v2802 = vld [vmem:[%s576 + $0x1d1] sm:$0xff]
      %v2803 = vld [vmem:[%s576 + $0x1e9] sm:$0xff]
      %v2804 = vld [vmem:[%s576 + $0x1f1] sm:$0xff]
      %v2805 = vld [vmem:[%s3 + $0xa] sm:$0x1]
      %v2806 = vlaneseq
      %v2807 = vshrl.u32 %v2806, 7
      %v2808 = vsub.s32 0, %v2807
      %v2809 = vrot.slane %v2805, %v2808
      %v2810 = vmul.f32 %v2773, %v2809
      %v2811 = vmul.f32 %v2774, %v2809
      %v2812 = vmul.f32 %v2775, %v2809
      %v2813 = vmul.f32 %v2776, %v2809
      %v2814 = vmul.f32 %v2777, %v2809
      %v2815 = vmul.f32 %v2778, %v2809
      %v2816 = vmul.f32 %v2779, %v2809
      %v2817 = vmul.f32 %v2780, %v2809
      %v2818 = vmul.f32 %v2781, %v2809
      %v2819 = vmul.f32 %v2782, %v2809
      %v2820 = vmul.f32 %v2783, %v2809
      %v2821 = vmul.f32 %v2784, %v2809
      %v2822 = vmul.f32 %v2785, %v2809
      %v2823 = vmul.f32 %v2786, %v2809
      %v2824 = vmul.f32 %v2787, %v2809
      %v2825 = vmul.f32 %v2788, %v2809
      %v2826 = vmul.f32 %v2789, %v2809
      %v2827 = vmul.f32 %v2790, %v2809
      %v2828 = vmul.f32 %v2791, %v2809
      %v2829 = vmul.f32 %v2792, %v2809
      %v2830 = vmul.f32 %v2793, %v2809
      %v2831 = vmul.f32 %v2794, %v2809
      %v2832 = vmul.f32 %v2795, %v2809
      %v2833 = vmul.f32 %v2796, %v2809
      %v2834 = vmul.f32 %v2797, %v2809
      %v2835 = vmul.f32 %v2798, %v2809
      %v2836 = vmul.f32 %v2799, %v2809
      %v2837 = vmul.f32 %v2800, %v2809
      %v2838 = vmul.f32 %v2801, %v2809
      %v2839 = vmul.f32 %v2802, %v2809
      %v2840 = vmul.f32 %v2803, %v2809
      %v2841 = vmul.f32 %v2804, %v2809
      %v2842 = vadd.f32 %v2741, %v2810
      %v2843 = vadd.f32 %v2742, %v2811
      %v2844 = vadd.f32 %v2743, %v2812
      %v2845 = vadd.f32 %v2744, %v2813
      %v2846 = vadd.f32 %v2745, %v2814
      %v2847 = vadd.f32 %v2746, %v2815
      %v2848 = vadd.f32 %v2747, %v2816
      %v2849 = vadd.f32 %v2748, %v2817
      %v2850 = vadd.f32 %v2749, %v2818
      %v2851 = vadd.f32 %v2750, %v2819
      %v2852 = vadd.f32 %v2751, %v2820
      %v2853 = vadd.f32 %v2752, %v2821
      %v2854 = vadd.f32 %v2753, %v2822
      %v2855 = vadd.f32 %v2754, %v2823
      %v2856 = vadd.f32 %v2755, %v2824
      %v2857 = vadd.f32 %v2756, %v2825
      %v2858 = vadd.f32 %v2757, %v2826
      %v2859 = vadd.f32 %v2758, %v2827
      %v2860 = vadd.f32 %v2759, %v2828
      %v2861 = vadd.f32 %v2760, %v2829
      %v2862 = vadd.f32 %v2761, %v2830
      %v2863 = vadd.f32 %v2762, %v2831
      %v2864 = vadd.f32 %v2763, %v2832
      %v2865 = vadd.f32 %v2764, %v2833
      %v2866 = vadd.f32 %v2765, %v2834
      %v2867 = vadd.f32 %v2766, %v2835
      %v2868 = vadd.f32 %v2767, %v2836
      %v2869 = vadd.f32 %v2768, %v2837
      %v2870 = vadd.f32 %v2769, %v2838
      %v2871 = vadd.f32 %v2770, %v2839
      %v2872 = vadd.f32 %v2771, %v2840
      %v2873 = vadd.f32 %v2772, %v2841
      %2906 = vrot.lane.b32.xlu0 %v2773, 112
      %v2907 = vpop.permute.xlu0 %2906
      %2908 = vrot.lane.b32.xlu0 %v2774, 112
      %v2909 = vpop.permute.xlu0 %2908
      %2910 = vrot.lane.b32.xlu0 %v2775, 112
      %v2911 = vpop.permute.xlu0 %2910
      %2912 = vrot.lane.b32.xlu0 %v2776, 112
      %v2913 = vpop.permute.xlu0 %2912
      %2914 = vrot.lane.b32.xlu0 %v2777, 112
      %v2915 = vpop.permute.xlu0 %2914
      %2916 = vrot.lane.b32.xlu0 %v2778, 112
      %v2917 = vpop.permute.xlu0 %2916
      %2918 = vrot.lane.b32.xlu0 %v2779, 112
      %v2919 = vpop.permute.xlu0 %2918
      %2920 = vrot.lane.b32.xlu0 %v2780, 112
      %v2921 = vpop.permute.xlu0 %2920
      %2922 = vrot.lane.b32.xlu0 %v2781, 112
      %v2923 = vpop.permute.xlu0 %2922
      %2924 = vrot.lane.b32.xlu0 %v2782, 112
      %v2925 = vpop.permute.xlu0 %2924
      %2926 = vrot.lane.b32.xlu0 %v2783, 112
      %v2927 = vpop.permute.xlu0 %2926
      %2928 = vrot.lane.b32.xlu0 %v2784, 112
      %v2929 = vpop.permute.xlu0 %2928
      %2930 = vrot.lane.b32.xlu0 %v2785, 112
      %v2931 = vpop.permute.xlu0 %2930
      %2932 = vrot.lane.b32.xlu0 %v2786, 112
      %v2933 = vpop.permute.xlu0 %2932
      %2934 = vrot.lane.b32.xlu0 %v2787, 112
      %v2935 = vpop.permute.xlu0 %2934
      %2936 = vrot.lane.b32.xlu0 %v2788, 112
      %v2937 = vpop.permute.xlu0 %2936
      %2938 = vrot.lane.b32.xlu0 %v2789, 112
      %v2939 = vpop.permute.xlu0 %2938
      %2940 = vrot.lane.b32.xlu0 %v2790, 112
      %v2941 = vpop.permute.xlu0 %2940
      %2942 = vrot.lane.b32.xlu0 %v2791, 112
      %v2943 = vpop.permute.xlu0 %2942
      %2944 = vrot.lane.b32.xlu0 %v2792, 112
      %v2945 = vpop.permute.xlu0 %2944
      %2946 = vrot.lane.b32.xlu0 %v2793, 112
      %v2947 = vpop.permute.xlu0 %2946
      %2948 = vrot.lane.b32.xlu0 %v2794, 112
      %v2949 = vpop.permute.xlu0 %2948
      %2950 = vrot.lane.b32.xlu0 %v2795, 112
      %v2951 = vpop.permute.xlu0 %2950
      %2952 = vrot.lane.b32.xlu0 %v2796, 112
      %v2953 = vpop.permute.xlu0 %2952
      %2954 = vrot.lane.b32.xlu0 %v2797, 112
      %v2955 = vpop.permute.xlu0 %2954
      %2956 = vrot.lane.b32.xlu0 %v2798, 112
      %v2957 = vpop.permute.xlu0 %2956
      %2958 = vrot.lane.b32.xlu0 %v2799, 112
      %v2959 = vpop.permute.xlu0 %2958
      %2960 = vrot.lane.b32.xlu0 %v2800, 112
      %v2961 = vpop.permute.xlu0 %2960
      %2962 = vrot.lane.b32.xlu0 %v2801, 112
      %v2963 = vpop.permute.xlu0 %2962
      %2964 = vrot.lane.b32.xlu0 %v2802, 112
      %v2965 = vpop.permute.xlu0 %2964
      %2966 = vrot.lane.b32.xlu0 %v2803, 112
      %v2967 = vpop.permute.xlu0 %2966
      %2968 = vrot.lane.b32.xlu0 %v2804, 112
      %v2969 = vpop.permute.xlu0 %2968
      %3002 = vrot.lane.b32.xlu0 %v2773, 16
      %v3003 = vpop.permute.xlu0 %3002
      %3004 = vrot.lane.b32.xlu0 %v2774, 16
      %v3005 = vpop.permute.xlu0 %3004
      %3006 = vrot.lane.b32.xlu0 %v2775, 16
      %v3007 = vpop.permute.xlu0 %3006
      %3008 = vrot.lane.b32.xlu0 %v2776, 16
      %v3009 = vpop.permute.xlu0 %3008
      %3010 = vrot.lane.b32.xlu0 %v2777, 16
      %v3011 = vpop.permute.xlu0 %3010
      %3012 = vrot.lane.b32.xlu0 %v2778, 16
      %v3013 = vpop.permute.xlu0 %3012
      %3014 = vrot.lane.b32.xlu0 %v2779, 16
      %v3015 = vpop.permute.xlu0 %3014
      %3016 = vrot.lane.b32.xlu0 %v2780, 16
      %v3017 = vpop.permute.xlu0 %3016
      %3018 = vrot.lane.b32.xlu0 %v2781, 16
      %v3019 = vpop.permute.xlu0 %3018
      %3020 = vrot.lane.b32.xlu0 %v2782, 16
      %v3021 = vpop.permute.xlu0 %3020
      %3022 = vrot.lane.b32.xlu0 %v2783, 16
      %v3023 = vpop.permute.xlu0 %3022
      %3024 = vrot.lane.b32.xlu0 %v2784, 16
      %v3025 = vpop.permute.xlu0 %3024
      %3026 = vrot.lane.b32.xlu0 %v2785, 16
      %v3027 = vpop.permute.xlu0 %3026
      %3028 = vrot.lane.b32.xlu0 %v2786, 16
      %v3029 = vpop.permute.xlu0 %3028
      %3030 = vrot.lane.b32.xlu0 %v2787, 16
      %v3031 = vpop.permute.xlu0 %3030
      %3032 = vrot.lane.b32.xlu0 %v2788, 16
      %v3033 = vpop.permute.xlu0 %3032
      %3034 = vrot.lane.b32.xlu0 %v2789, 16
      %v3035 = vpop.permute.xlu0 %3034
      %3036 = vrot.lane.b32.xlu0 %v2790, 16
      %v3037 = vpop.permute.xlu0 %3036
      %3038 = vrot.lane.b32.xlu0 %v2791, 16
      %v3039 = vpop.permute.xlu0 %3038
      %3040 = vrot.lane.b32.xlu0 %v2792, 16
      %v3041 = vpop.permute.xlu0 %3040
      %3042 = vrot.lane.b32.xlu0 %v2793, 16
      %v3043 = vpop.permute.xlu0 %3042
      %3044 = vrot.lane.b32.xlu0 %v2794, 16
      %v3045 = vpop.permute.xlu0 %3044
      %3046 = vrot.lane.b32.xlu0 %v2795, 16
      %v3047 = vpop.permute.xlu0 %3046
      %3048 = vrot.lane.b32.xlu0 %v2796, 16
      %v3049 = vpop.permute.xlu0 %3048
      %3050 = vrot.lane.b32.xlu0 %v2797, 16
      %v3051 = vpop.permute.xlu0 %3050
      %3052 = vrot.lane.b32.xlu0 %v2798, 16
      %v3053 = vpop.permute.xlu0 %3052
      %3054 = vrot.lane.b32.xlu0 %v2799, 16
      %v3055 = vpop.permute.xlu0 %3054
      %3056 = vrot.lane.b32.xlu0 %v2800, 16
      %v3057 = vpop.permute.xlu0 %3056
      %3058 = vrot.lane.b32.xlu0 %v2801, 16
      %v3059 = vpop.permute.xlu0 %3058
      %3060 = vrot.lane.b32.xlu0 %v2802, 16
      %v3061 = vpop.permute.xlu0 %3060
      %3062 = vrot.lane.b32.xlu0 %v2803, 16
      %v3063 = vpop.permute.xlu0 %3062
      %3064 = vrot.lane.b32.xlu0 %v2804, 16
      %v3065 = vpop.permute.xlu0 %3064
      %v3098 = vsel %vm967, %v2907, %v3003
      %v3099 = vsel %vm967, %v2909, %v3005
      %v3100 = vsel %vm967, %v2911, %v3007
      %v3101 = vsel %vm967, %v2913, %v3009
      %v3102 = vsel %vm967, %v2915, %v3011
      %v3103 = vsel %vm967, %v2917, %v3013
      %v3104 = vsel %vm967, %v2919, %v3015
      %v3105 = vsel %vm967, %v2921, %v3017
      %v3106 = vsel %vm967, %v2923, %v3019
      %v3107 = vsel %vm967, %v2925, %v3021
      %v3108 = vsel %vm967, %v2927, %v3023
      %v3109 = vsel %vm967, %v2929, %v3025
      %v3110 = vsel %vm967, %v2931, %v3027
      %v3111 = vsel %vm967, %v2933, %v3029
      %v3112 = vsel %vm967, %v2935, %v3031
      %v3113 = vsel %vm967, %v2937, %v3033
      %v3114 = vsel %vm967, %v2939, %v3035
      %v3115 = vsel %vm967, %v2941, %v3037
      %v3116 = vsel %vm967, %v2943, %v3039
      %v3117 = vsel %vm967, %v2945, %v3041
      %v3118 = vsel %vm967, %v2947, %v3043
      %v3119 = vsel %vm967, %v2949, %v3045
      %v3120 = vsel %vm967, %v2951, %v3047
      %v3121 = vsel %vm967, %v2953, %v3049
      %v3122 = vsel %vm967, %v2955, %v3051
      %v3123 = vsel %vm967, %v2957, %v3053
      %v3124 = vsel %vm967, %v2959, %v3055
      %v3125 = vsel %vm967, %v2961, %v3057
      %v3126 = vsel %vm967, %v2963, %v3059
      %v3127 = vsel %vm967, %v2965, %v3061
      %v3128 = vsel %vm967, %v2967, %v3063
      %v3129 = vsel %vm967, %v2969, %v3065
      %v3130 = vld [vmem:[%s3 + $0xb] sm:$0x1]
      %v3131 = vlaneseq
      %v3132 = vshrl.u32 %v3131, 7
      %v3133 = vsub.s32 0, %v3132
      %v3134 = vrot.slane %v3130, %v3133
      %v3135 = vmul.f32 %v3098, %v3134
      %v3136 = vmul.f32 %v3099, %v3134
      %v3137 = vmul.f32 %v3100, %v3134
      %v3138 = vmul.f32 %v3101, %v3134
      %v3139 = vmul.f32 %v3102, %v3134
      %v3140 = vmul.f32 %v3103, %v3134
      %v3141 = vmul.f32 %v3104, %v3134
      %v3142 = vmul.f32 %v3105, %v3134
      %v3143 = vmul.f32 %v3106, %v3134
      %v3144 = vmul.f32 %v3107, %v3134
      %v3145 = vmul.f32 %v3108, %v3134
      %v3146 = vmul.f32 %v3109, %v3134
      %v3147 = vmul.f32 %v3110, %v3134
      %v3148 = vmul.f32 %v3111, %v3134
      %v3149 = vmul.f32 %v3112, %v3134
      %v3150 = vmul.f32 %v3113, %v3134
      %v3151 = vmul.f32 %v3114, %v3134
      %v3152 = vmul.f32 %v3115, %v3134
      %v3153 = vmul.f32 %v3116, %v3134
      %v3154 = vmul.f32 %v3117, %v3134
      %v3155 = vmul.f32 %v3118, %v3134
      %v3156 = vmul.f32 %v3119, %v3134
      %v3157 = vmul.f32 %v3120, %v3134
      %v3158 = vmul.f32 %v3121, %v3134
      %v3159 = vmul.f32 %v3122, %v3134
      %v3160 = vmul.f32 %v3123, %v3134
      %v3161 = vmul.f32 %v3124, %v3134
      %v3162 = vmul.f32 %v3125, %v3134
      %v3163 = vmul.f32 %v3126, %v3134
      %v3164 = vmul.f32 %v3127, %v3134
      %v3165 = vmul.f32 %v3128, %v3134
      %v3166 = vmul.f32 %v3129, %v3134
      %v3167 = vadd.f32 %v2842, %v3135
      %v3168 = vadd.f32 %v2843, %v3136
      %v3169 = vadd.f32 %v2844, %v3137
      %v3170 = vadd.f32 %v2845, %v3138
      %v3171 = vadd.f32 %v2846, %v3139
      %v3172 = vadd.f32 %v2847, %v3140
      %v3173 = vadd.f32 %v2848, %v3141
      %v3174 = vadd.f32 %v2849, %v3142
      %v3175 = vadd.f32 %v2850, %v3143
      %v3176 = vadd.f32 %v2851, %v3144
      %v3177 = vadd.f32 %v2852, %v3145
      %v3178 = vadd.f32 %v2853, %v3146
      %v3179 = vadd.f32 %v2854, %v3147
      %v3180 = vadd.f32 %v2855, %v3148
      %v3181 = vadd.f32 %v2856, %v3149
      %v3182 = vadd.f32 %v2857, %v3150
      %v3183 = vadd.f32 %v2858, %v3151
      %v3184 = vadd.f32 %v2859, %v3152
      %v3185 = vadd.f32 %v2860, %v3153
      %v3186 = vadd.f32 %v2861, %v3154
      %v3187 = vadd.f32 %v2862, %v3155
      %v3188 = vadd.f32 %v2863, %v3156
      %v3189 = vadd.f32 %v2864, %v3157
      %v3190 = vadd.f32 %v2865, %v3158
      %v3191 = vadd.f32 %v2866, %v3159
      %v3192 = vadd.f32 %v2867, %v3160
      %v3193 = vadd.f32 %v2868, %v3161
      %v3194 = vadd.f32 %v2869, %v3162
      %v3195 = vadd.f32 %v2870, %v3163
      %v3196 = vadd.f32 %v2871, %v3164
      %v3197 = vadd.f32 %v2872, %v3165
      %v3198 = vadd.f32 %v2873, %v3166
      %s3199 = scalar_lea.vmem [#allocation2], 64
      %v3200 = vld [vmem:[%s3199 + $0x7] sm:$0xff]
      %v3201 = vld [vmem:[%s3199 + $0xf] sm:$0xff]
      %v3202 = vld [vmem:[%s3199 + $0x27] sm:$0xff]
      %v3203 = vld [vmem:[%s3199 + $0x2f] sm:$0xff]
      %v3204 = vld [vmem:[%s3199 + $0x47] sm:$0xff]
      %v3205 = vld [vmem:[%s3199 + $0x4f] sm:$0xff]
      %v3206 = vld [vmem:[%s3199 + $0x67] sm:$0xff]
      %v3207 = vld [vmem:[%s3199 + $0x6f] sm:$0xff]
      %v3208 = vld [vmem:[%s3199 + $0x87] sm:$0xff]
      %v3209 = vld [vmem:[%s3199 + $0x8f] sm:$0xff]
      %v3210 = vld [vmem:[%s3199 + $0xa7] sm:$0xff]
      %v3211 = vld [vmem:[%s3199 + $0xaf] sm:$0xff]
      %v3212 = vld [vmem:[%s3199 + $0xc7] sm:$0xff]
      %v3213 = vld [vmem:[%s3199 + $0xcf] sm:$0xff]
      %v3214 = vld [vmem:[%s3199 + $0xe7] sm:$0xff]
      %v3215 = vld [vmem:[%s3199 + $0xef] sm:$0xff]
      %v3216 = vld [vmem:[%s3199 + $0x107] sm:$0xff]
      %v3217 = vld [vmem:[%s3199 + $0x10f] sm:$0xff]
      %v3218 = vld [vmem:[%s3199 + $0x127] sm:$0xff]
      %v3219 = vld [vmem:[%s3199 + $0x12f] sm:$0xff]
      %v3220 = vld [vmem:[%s3199 + $0x147] sm:$0xff]
      %v3221 = vld [vmem:[%s3199 + $0x14f] sm:$0xff]
      %v3222 = vld [vmem:[%s3199 + $0x167] sm:$0xff]
      %v3223 = vld [vmem:[%s3199 + $0x16f] sm:$0xff]
      %v3224 = vld [vmem:[%s3199 + $0x187] sm:$0xff]
      %v3225 = vld [vmem:[%s3199 + $0x18f] sm:$0xff]
      %v3226 = vld [vmem:[%s3199 + $0x1a7] sm:$0xff]
      %v3227 = vld [vmem:[%s3199 + $0x1af] sm:$0xff]
      %v3228 = vld [vmem:[%s3199 + $0x1c7] sm:$0xff]
      %v3229 = vld [vmem:[%s3199 + $0x1cf] sm:$0xff]
      %v3230 = vld [vmem:[%s3199 + $0x1e7] sm:$0xff]
      %v3231 = vld [vmem:[%s3199 + $0x1ef] sm:$0xff]
      %v3232 = vld [vmem:[%s3 + $0xc] sm:$0x1]
      %v3233 = vlaneseq
      %v3234 = vshrl.u32 %v3233, 7
      %v3235 = vsub.s32 0, %v3234
      %v3236 = vrot.slane %v3232, %v3235
      %v3237 = vmul.f32 %v3200, %v3236
      %v3238 = vmul.f32 %v3201, %v3236
      %v3239 = vmul.f32 %v3202, %v3236
      %v3240 = vmul.f32 %v3203, %v3236
      %v3241 = vmul.f32 %v3204, %v3236
      %v3242 = vmul.f32 %v3205, %v3236
      %v3243 = vmul.f32 %v3206, %v3236
      %v3244 = vmul.f32 %v3207, %v3236
      %v3245 = vmul.f32 %v3208, %v3236
      %v3246 = vmul.f32 %v3209, %v3236
      %v3247 = vmul.f32 %v3210, %v3236
      %v3248 = vmul.f32 %v3211, %v3236
      %v3249 = vmul.f32 %v3212, %v3236
      %v3250 = vmul.f32 %v3213, %v3236
      %v3251 = vmul.f32 %v3214, %v3236
      %v3252 = vmul.f32 %v3215, %v3236
      %v3253 = vmul.f32 %v3216, %v3236
      %v3254 = vmul.f32 %v3217, %v3236
      %v3255 = vmul.f32 %v3218, %v3236
      %v3256 = vmul.f32 %v3219, %v3236
      %v3257 = vmul.f32 %v3220, %v3236
      %v3258 = vmul.f32 %v3221, %v3236
      %v3259 = vmul.f32 %v3222, %v3236
      %v3260 = vmul.f32 %v3223, %v3236
      %v3261 = vmul.f32 %v3224, %v3236
      %v3262 = vmul.f32 %v3225, %v3236
      %v3263 = vmul.f32 %v3226, %v3236
      %v3264 = vmul.f32 %v3227, %v3236
      %v3265 = vmul.f32 %v3228, %v3236
      %v3266 = vmul.f32 %v3229, %v3236
      %v3267 = vmul.f32 %v3230, %v3236
      %v3268 = vmul.f32 %v3231, %v3236
      %v3269 = vadd.f32 %v3167, %v3237
      %v3270 = vadd.f32 %v3168, %v3238
      %v3271 = vadd.f32 %v3169, %v3239
      %v3272 = vadd.f32 %v3170, %v3240
      %v3273 = vadd.f32 %v3171, %v3241
      %v3274 = vadd.f32 %v3172, %v3242
      %v3275 = vadd.f32 %v3173, %v3243
      %v3276 = vadd.f32 %v3174, %v3244
      %v3277 = vadd.f32 %v3175, %v3245
      %v3278 = vadd.f32 %v3176, %v3246
      %v3279 = vadd.f32 %v3177, %v3247
      %v3280 = vadd.f32 %v3178, %v3248
      %v3281 = vadd.f32 %v3179, %v3249
      %v3282 = vadd.f32 %v3180, %v3250
      %v3283 = vadd.f32 %v3181, %v3251
      %v3284 = vadd.f32 %v3182, %v3252
      %v3285 = vadd.f32 %v3183, %v3253
      %v3286 = vadd.f32 %v3184, %v3254
      %v3287 = vadd.f32 %v3185, %v3255
      %v3288 = vadd.f32 %v3186, %v3256
      %v3289 = vadd.f32 %v3187, %v3257
      %v3290 = vadd.f32 %v3188, %v3258
      %v3291 = vadd.f32 %v3189, %v3259
      %v3292 = vadd.f32 %v3190, %v3260
      %v3293 = vadd.f32 %v3191, %v3261
      %v3294 = vadd.f32 %v3192, %v3262
      %v3295 = vadd.f32 %v3193, %v3263
      %v3296 = vadd.f32 %v3194, %v3264
      %v3297 = vadd.f32 %v3195, %v3265
      %v3298 = vadd.f32 %v3196, %v3266
      %v3299 = vadd.f32 %v3197, %v3267
      %v3300 = vadd.f32 %v3198, %v3268
      %3333 = vrot.lane.b32.xlu0 %v3200, 112
      %v3334 = vpop.permute.xlu0 %3333
      %3335 = vrot.lane.b32.xlu0 %v3201, 112
      %v3336 = vpop.permute.xlu0 %3335
      %3337 = vrot.lane.b32.xlu0 %v3202, 112
      %v3338 = vpop.permute.xlu0 %3337
      %3339 = vrot.lane.b32.xlu0 %v3203, 112
      %v3340 = vpop.permute.xlu0 %3339
      %3341 = vrot.lane.b32.xlu0 %v3204, 112
      %v3342 = vpop.permute.xlu0 %3341
      %3343 = vrot.lane.b32.xlu0 %v3205, 112
      %v3344 = vpop.permute.xlu0 %3343
      %3345 = vrot.lane.b32.xlu0 %v3206, 112
      %v3346 = vpop.permute.xlu0 %3345
      %3347 = vrot.lane.b32.xlu0 %v3207, 112
      %v3348 = vpop.permute.xlu0 %3347
      %3349 = vrot.lane.b32.xlu0 %v3208, 112
      %v3350 = vpop.permute.xlu0 %3349
      %3351 = vrot.lane.b32.xlu0 %v3209, 112
      %v3352 = vpop.permute.xlu0 %3351
      %3353 = vrot.lane.b32.xlu0 %v3210, 112
      %v3354 = vpop.permute.xlu0 %3353
      %3355 = vrot.lane.b32.xlu0 %v3211, 112
      %v3356 = vpop.permute.xlu0 %3355
      %3357 = vrot.lane.b32.xlu0 %v3212, 112
      %v3358 = vpop.permute.xlu0 %3357
      %3359 = vrot.lane.b32.xlu0 %v3213, 112
      %v3360 = vpop.permute.xlu0 %3359
      %3361 = vrot.lane.b32.xlu0 %v3214, 112
      %v3362 = vpop.permute.xlu0 %3361
      %3363 = vrot.lane.b32.xlu0 %v3215, 112
      %v3364 = vpop.permute.xlu0 %3363
      %3365 = vrot.lane.b32.xlu0 %v3216, 112
      %v3366 = vpop.permute.xlu0 %3365
      %3367 = vrot.lane.b32.xlu0 %v3217, 112
      %v3368 = vpop.permute.xlu0 %3367
      %3369 = vrot.lane.b32.xlu0 %v3218, 112
      %v3370 = vpop.permute.xlu0 %3369
      %3371 = vrot.lane.b32.xlu0 %v3219, 112
      %v3372 = vpop.permute.xlu0 %3371
      %3373 = vrot.lane.b32.xlu0 %v3220, 112
      %v3374 = vpop.permute.xlu0 %3373
      %3375 = vrot.lane.b32.xlu0 %v3221, 112
      %v3376 = vpop.permute.xlu0 %3375
      %3377 = vrot.lane.b32.xlu0 %v3222, 112
      %v3378 = vpop.permute.xlu0 %3377
      %3379 = vrot.lane.b32.xlu0 %v3223, 112
      %v3380 = vpop.permute.xlu0 %3379
      %3381 = vrot.lane.b32.xlu0 %v3224, 112
      %v3382 = vpop.permute.xlu0 %3381
      %3383 = vrot.lane.b32.xlu0 %v3225, 112
      %v3384 = vpop.permute.xlu0 %3383
      %3385 = vrot.lane.b32.xlu0 %v3226, 112
      %v3386 = vpop.permute.xlu0 %3385
      %3387 = vrot.lane.b32.xlu0 %v3227, 112
      %v3388 = vpop.permute.xlu0 %3387
      %3389 = vrot.lane.b32.xlu0 %v3228, 112
      %v3390 = vpop.permute.xlu0 %3389
      %3391 = vrot.lane.b32.xlu0 %v3229, 112
      %v3392 = vpop.permute.xlu0 %3391
      %3393 = vrot.lane.b32.xlu0 %v3230, 112
      %v3394 = vpop.permute.xlu0 %3393
      %3395 = vrot.lane.b32.xlu0 %v3231, 112
      %v3396 = vpop.permute.xlu0 %3395
      %3429 = vrot.lane.b32.xlu0 %v3200, 16
      %v3430 = vpop.permute.xlu0 %3429
      %3431 = vrot.lane.b32.xlu0 %v3201, 16
      %v3432 = vpop.permute.xlu0 %3431
      %3433 = vrot.lane.b32.xlu0 %v3202, 16
      %v3434 = vpop.permute.xlu0 %3433
      %3435 = vrot.lane.b32.xlu0 %v3203, 16
      %v3436 = vpop.permute.xlu0 %3435
      %3437 = vrot.lane.b32.xlu0 %v3204, 16
      %v3438 = vpop.permute.xlu0 %3437
      %3439 = vrot.lane.b32.xlu0 %v3205, 16
      %v3440 = vpop.permute.xlu0 %3439
      %3441 = vrot.lane.b32.xlu0 %v3206, 16
      %v3442 = vpop.permute.xlu0 %3441
      %3443 = vrot.lane.b32.xlu0 %v3207, 16
      %v3444 = vpop.permute.xlu0 %3443
      %3445 = vrot.lane.b32.xlu0 %v3208, 16
      %v3446 = vpop.permute.xlu0 %3445
      %3447 = vrot.lane.b32.xlu0 %v3209, 16
      %v3448 = vpop.permute.xlu0 %3447
      %3449 = vrot.lane.b32.xlu0 %v3210, 16
      %v3450 = vpop.permute.xlu0 %3449
      %3451 = vrot.lane.b32.xlu0 %v3211, 16
      %v3452 = vpop.permute.xlu0 %3451
      %3453 = vrot.lane.b32.xlu0 %v3212, 16
      %v3454 = vpop.permute.xlu0 %3453
      %3455 = vrot.lane.b32.xlu0 %v3213, 16
      %v3456 = vpop.permute.xlu0 %3455
      %3457 = vrot.lane.b32.xlu0 %v3214, 16
      %v3458 = vpop.permute.xlu0 %3457
      %3459 = vrot.lane.b32.xlu0 %v3215, 16
      %v3460 = vpop.permute.xlu0 %3459
      %3461 = vrot.lane.b32.xlu0 %v3216, 16
      %v3462 = vpop.permute.xlu0 %3461
      %3463 = vrot.lane.b32.xlu0 %v3217, 16
      %v3464 = vpop.permute.xlu0 %3463
      %3465 = vrot.lane.b32.xlu0 %v3218, 16
      %v3466 = vpop.permute.xlu0 %3465
      %3467 = vrot.lane.b32.xlu0 %v3219, 16
      %v3468 = vpop.permute.xlu0 %3467
      %3469 = vrot.lane.b32.xlu0 %v3220, 16
      %v3470 = vpop.permute.xlu0 %3469
      %3471 = vrot.lane.b32.xlu0 %v3221, 16
      %v3472 = vpop.permute.xlu0 %3471
      %3473 = vrot.lane.b32.xlu0 %v3222, 16
      %v3474 = vpop.permute.xlu0 %3473
      %3475 = vrot.lane.b32.xlu0 %v3223, 16
      %v3476 = vpop.permute.xlu0 %3475
      %3477 = vrot.lane.b32.xlu0 %v3224, 16
      %v3478 = vpop.permute.xlu0 %3477
      %3479 = vrot.lane.b32.xlu0 %v3225, 16
      %v3480 = vpop.permute.xlu0 %3479
      %3481 = vrot.lane.b32.xlu0 %v3226, 16
      %v3482 = vpop.permute.xlu0 %3481
      %3483 = vrot.lane.b32.xlu0 %v3227, 16
      %v3484 = vpop.permute.xlu0 %3483
      %3485 = vrot.lane.b32.xlu0 %v3228, 16
      %v3486 = vpop.permute.xlu0 %3485
      %3487 = vrot.lane.b32.xlu0 %v3229, 16
      %v3488 = vpop.permute.xlu0 %3487
      %3489 = vrot.lane.b32.xlu0 %v3230, 16
      %v3490 = vpop.permute.xlu0 %3489
      %3491 = vrot.lane.b32.xlu0 %v3231, 16
      %v3492 = vpop.permute.xlu0 %3491
      %v3525 = vsel %vm967, %v3334, %v3430
      %v3526 = vsel %vm967, %v3336, %v3432
      %v3527 = vsel %vm967, %v3338, %v3434
      %v3528 = vsel %vm967, %v3340, %v3436
      %v3529 = vsel %vm967, %v3342, %v3438
      %v3530 = vsel %vm967, %v3344, %v3440
      %v3531 = vsel %vm967, %v3346, %v3442
      %v3532 = vsel %vm967, %v3348, %v3444
      %v3533 = vsel %vm967, %v3350, %v3446
      %v3534 = vsel %vm967, %v3352, %v3448
      %v3535 = vsel %vm967, %v3354, %v3450
      %v3536 = vsel %vm967, %v3356, %v3452
      %v3537 = vsel %vm967, %v3358, %v3454
      %v3538 = vsel %vm967, %v3360, %v3456
      %v3539 = vsel %vm967, %v3362, %v3458
      %v3540 = vsel %vm967, %v3364, %v3460
      %v3541 = vsel %vm967, %v3366, %v3462
      %v3542 = vsel %vm967, %v3368, %v3464
      %v3543 = vsel %vm967, %v3370, %v3466
      %v3544 = vsel %vm967, %v3372, %v3468
      %v3545 = vsel %vm967, %v3374, %v3470
      %v3546 = vsel %vm967, %v3376, %v3472
      %v3547 = vsel %vm967, %v3378, %v3474
      %v3548 = vsel %vm967, %v3380, %v3476
      %v3549 = vsel %vm967, %v3382, %v3478
      %v3550 = vsel %vm967, %v3384, %v3480
      %v3551 = vsel %vm967, %v3386, %v3482
      %v3552 = vsel %vm967, %v3388, %v3484
      %v3553 = vsel %vm967, %v3390, %v3486
      %v3554 = vsel %vm967, %v3392, %v3488
      %v3555 = vsel %vm967, %v3394, %v3490
      %v3556 = vsel %vm967, %v3396, %v3492
      %v3557 = vld [vmem:[%s3 + $0xd] sm:$0x1]
      %v3558 = vlaneseq
      %v3559 = vshrl.u32 %v3558, 7
      %v3560 = vsub.s32 0, %v3559
      %v3561 = vrot.slane %v3557, %v3560
      %v3562 = vmul.f32 %v3525, %v3561
      %v3563 = vmul.f32 %v3526, %v3561
      %v3564 = vmul.f32 %v3527, %v3561
      %v3565 = vmul.f32 %v3528, %v3561
      %v3566 = vmul.f32 %v3529, %v3561
      %v3567 = vmul.f32 %v3530, %v3561
      %v3568 = vmul.f32 %v3531, %v3561
      %v3569 = vmul.f32 %v3532, %v3561
      %v3570 = vmul.f32 %v3533, %v3561
      %v3571 = vmul.f32 %v3534, %v3561
      %v3572 = vmul.f32 %v3535, %v3561
      %v3573 = vmul.f32 %v3536, %v3561
      %v3574 = vmul.f32 %v3537, %v3561
      %v3575 = vmul.f32 %v3538, %v3561
      %v3576 = vmul.f32 %v3539, %v3561
      %v3577 = vmul.f32 %v3540, %v3561
      %v3578 = vmul.f32 %v3541, %v3561
      %v3579 = vmul.f32 %v3542, %v3561
      %v3580 = vmul.f32 %v3543, %v3561
      %v3581 = vmul.f32 %v3544, %v3561
      %v3582 = vmul.f32 %v3545, %v3561
      %v3583 = vmul.f32 %v3546, %v3561
      %v3584 = vmul.f32 %v3547, %v3561
      %v3585 = vmul.f32 %v3548, %v3561
      %v3586 = vmul.f32 %v3549, %v3561
      %v3587 = vmul.f32 %v3550, %v3561
      %v3588 = vmul.f32 %v3551, %v3561
      %v3589 = vmul.f32 %v3552, %v3561
      %v3590 = vmul.f32 %v3553, %v3561
      %v3591 = vmul.f32 %v3554, %v3561
      %v3592 = vmul.f32 %v3555, %v3561
      %v3593 = vmul.f32 %v3556, %v3561
      %v3594 = vadd.f32 %v3269, %v3562
      %v3595 = vadd.f32 %v3270, %v3563
      %v3596 = vadd.f32 %v3271, %v3564
      %v3597 = vadd.f32 %v3272, %v3565
      %v3598 = vadd.f32 %v3273, %v3566
      %v3599 = vadd.f32 %v3274, %v3567
      %v3600 = vadd.f32 %v3275, %v3568
      %v3601 = vadd.f32 %v3276, %v3569
      %v3602 = vadd.f32 %v3277, %v3570
      %v3603 = vadd.f32 %v3278, %v3571
      %v3604 = vadd.f32 %v3279, %v3572
      %v3605 = vadd.f32 %v3280, %v3573
      %v3606 = vadd.f32 %v3281, %v3574
      %v3607 = vadd.f32 %v3282, %v3575
      %v3608 = vadd.f32 %v3283, %v3576
      %v3609 = vadd.f32 %v3284, %v3577
      %v3610 = vadd.f32 %v3285, %v3578
      %v3611 = vadd.f32 %v3286, %v3579
      %v3612 = vadd.f32 %v3287, %v3580
      %v3613 = vadd.f32 %v3288, %v3581
      %v3614 = vadd.f32 %v3289, %v3582
      %v3615 = vadd.f32 %v3290, %v3583
      %v3616 = vadd.f32 %v3291, %v3584
      %v3617 = vadd.f32 %v3292, %v3585
      %v3618 = vadd.f32 %v3293, %v3586
      %v3619 = vadd.f32 %v3294, %v3587
      %v3620 = vadd.f32 %v3295, %v3588
      %v3621 = vadd.f32 %v3296, %v3589
      %v3622 = vadd.f32 %v3297, %v3590
      %v3623 = vadd.f32 %v3298, %v3591
      %v3624 = vadd.f32 %v3299, %v3592
      %v3625 = vadd.f32 %v3300, %v3593
      %v3626 = vld [vmem:[%s3199 + $0x8] sm:$0xff]
      %v3627 = vld [vmem:[%s3199 + $0x10] sm:$0xff]
      %v3628 = vld [vmem:[%s3199 + $0x28] sm:$0xff]
      %v3629 = vld [vmem:[%s3199 + $0x30] sm:$0xff]
      %v3630 = vld [vmem:[%s3199 + $0x48] sm:$0xff]
      %v3631 = vld [vmem:[%s3199 + $0x50] sm:$0xff]
      %v3632 = vld [vmem:[%s3199 + $0x68] sm:$0xff]
      %v3633 = vld [vmem:[%s3199 + $0x70] sm:$0xff]
      %v3634 = vld [vmem:[%s3199 + $0x88] sm:$0xff]
      %v3635 = vld [vmem:[%s3199 + $0x90] sm:$0xff]
      %v3636 = vld [vmem:[%s3199 + $0xa8] sm:$0xff]
      %v3637 = vld [vmem:[%s3199 + $0xb0] sm:$0xff]
      %v3638 = vld [vmem:[%s3199 + $0xc8] sm:$0xff]
      %v3639 = vld [vmem:[%s3199 + $0xd0] sm:$0xff]
      %v3640 = vld [vmem:[%s3199 + $0xe8] sm:$0xff]
      %v3641 = vld [vmem:[%s3199 + $0xf0] sm:$0xff]
      %v3642 = vld [vmem:[%s3199 + $0x108] sm:$0xff]
      %v3643 = vld [vmem:[%s3199 + $0x110] sm:$0xff]
      %v3644 = vld [vmem:[%s3199 + $0x128] sm:$0xff]
      %v3645 = vld [vmem:[%s3199 + $0x130] sm:$0xff]
      %v3646 = vld [vmem:[%s3199 + $0x148] sm:$0xff]
      %v3647 = vld [vmem:[%s3199 + $0x150] sm:$0xff]
      %v3648 = vld [vmem:[%s3199 + $0x168] sm:$0xff]
      %v3649 = vld [vmem:[%s3199 + $0x170] sm:$0xff]
      %v3650 = vld [vmem:[%s3199 + $0x188] sm:$0xff]
      %v3651 = vld [vmem:[%s3199 + $0x190] sm:$0xff]
      %v3652 = vld [vmem:[%s3199 + $0x1a8] sm:$0xff]
      %v3653 = vld [vmem:[%s3199 + $0x1b0] sm:$0xff]
      %v3654 = vld [vmem:[%s3199 + $0x1c8] sm:$0xff]
      %v3655 = vld [vmem:[%s3199 + $0x1d0] sm:$0xff]
      %v3656 = vld [vmem:[%s3199 + $0x1e8] sm:$0xff]
      %v3657 = vld [vmem:[%s3199 + $0x1f0] sm:$0xff]
      %v3658 = vld [vmem:[%s3 + $0xe] sm:$0x1]
      %v3659 = vlaneseq
      %v3660 = vshrl.u32 %v3659, 7
      %v3661 = vsub.s32 0, %v3660
      %v3662 = vrot.slane %v3658, %v3661
      %v3663 = vmul.f32 %v3626, %v3662
      %v3664 = vmul.f32 %v3627, %v3662
      %v3665 = vmul.f32 %v3628, %v3662
      %v3666 = vmul.f32 %v3629, %v3662
      %v3667 = vmul.f32 %v3630, %v3662
      %v3668 = vmul.f32 %v3631, %v3662
      %v3669 = vmul.f32 %v3632, %v3662
      %v3670 = vmul.f32 %v3633, %v3662
      %v3671 = vmul.f32 %v3634, %v3662
      %v3672 = vmul.f32 %v3635, %v3662
      %v3673 = vmul.f32 %v3636, %v3662
      %v3674 = vmul.f32 %v3637, %v3662
      %v3675 = vmul.f32 %v3638, %v3662
      %v3676 = vmul.f32 %v3639, %v3662
      %v3677 = vmul.f32 %v3640, %v3662
      %v3678 = vmul.f32 %v3641, %v3662
      %v3679 = vmul.f32 %v3642, %v3662
      %v3680 = vmul.f32 %v3643, %v3662
      %v3681 = vmul.f32 %v3644, %v3662
      %v3682 = vmul.f32 %v3645, %v3662
      %v3683 = vmul.f32 %v3646, %v3662
      %v3684 = vmul.f32 %v3647, %v3662
      %v3685 = vmul.f32 %v3648, %v3662
      %v3686 = vmul.f32 %v3649, %v3662
      %v3687 = vmul.f32 %v3650, %v3662
      %v3688 = vmul.f32 %v3651, %v3662
      %v3689 = vmul.f32 %v3652, %v3662
      %v3690 = vmul.f32 %v3653, %v3662
      %v3691 = vmul.f32 %v3654, %v3662
      %v3692 = vmul.f32 %v3655, %v3662
      %v3693 = vmul.f32 %v3656, %v3662
      %v3694 = vmul.f32 %v3657, %v3662
      %v3695 = vadd.f32 %v3594, %v3663
      %v3696 = vadd.f32 %v3595, %v3664
      %v3697 = vadd.f32 %v3596, %v3665
      %v3698 = vadd.f32 %v3597, %v3666
      %v3699 = vadd.f32 %v3598, %v3667
      %v3700 = vadd.f32 %v3599, %v3668
      %v3701 = vadd.f32 %v3600, %v3669
      %v3702 = vadd.f32 %v3601, %v3670
      %v3703 = vadd.f32 %v3602, %v3671
      %v3704 = vadd.f32 %v3603, %v3672
      %v3705 = vadd.f32 %v3604, %v3673
      %v3706 = vadd.f32 %v3605, %v3674
      %v3707 = vadd.f32 %v3606, %v3675
      %v3708 = vadd.f32 %v3607, %v3676
      %v3709 = vadd.f32 %v3608, %v3677
      %v3710 = vadd.f32 %v3609, %v3678
      %v3711 = vadd.f32 %v3610, %v3679
      %v3712 = vadd.f32 %v3611, %v3680
      %v3713 = vadd.f32 %v3612, %v3681
      %v3714 = vadd.f32 %v3613, %v3682
      %v3715 = vadd.f32 %v3614, %v3683
      %v3716 = vadd.f32 %v3615, %v3684
      %v3717 = vadd.f32 %v3616, %v3685
      %v3718 = vadd.f32 %v3617, %v3686
      %v3719 = vadd.f32 %v3618, %v3687
      %v3720 = vadd.f32 %v3619, %v3688
      %v3721 = vadd.f32 %v3620, %v3689
      %v3722 = vadd.f32 %v3621, %v3690
      %v3723 = vadd.f32 %v3622, %v3691
      %v3724 = vadd.f32 %v3623, %v3692
      %v3725 = vadd.f32 %v3624, %v3693
      %v3726 = vadd.f32 %v3625, %v3694
      %3759 = vrot.lane.b32.xlu0 %v3626, 112
      %v3760 = vpop.permute.xlu0 %3759
      %3761 = vrot.lane.b32.xlu0 %v3627, 112
      %v3762 = vpop.permute.xlu0 %3761
      %3763 = vrot.lane.b32.xlu0 %v3628, 112
      %v3764 = vpop.permute.xlu0 %3763
      %3765 = vrot.lane.b32.xlu0 %v3629, 112
      %v3766 = vpop.permute.xlu0 %3765
      %3767 = vrot.lane.b32.xlu0 %v3630, 112
      %v3768 = vpop.permute.xlu0 %3767
      %3769 = vrot.lane.b32.xlu0 %v3631, 112
      %v3770 = vpop.permute.xlu0 %3769
      %3771 = vrot.lane.b32.xlu0 %v3632, 112
      %v3772 = vpop.permute.xlu0 %3771
      %3773 = vrot.lane.b32.xlu0 %v3633, 112
      %v3774 = vpop.permute.xlu0 %3773
      %3775 = vrot.lane.b32.xlu0 %v3634, 112
      %v3776 = vpop.permute.xlu0 %3775
      %3777 = vrot.lane.b32.xlu0 %v3635, 112
      %v3778 = vpop.permute.xlu0 %3777
      %3779 = vrot.lane.b32.xlu0 %v3636, 112
      %v3780 = vpop.permute.xlu0 %3779
      %3781 = vrot.lane.b32.xlu0 %v3637, 112
      %v3782 = vpop.permute.xlu0 %3781
      %3783 = vrot.lane.b32.xlu0 %v3638, 112
      %v3784 = vpop.permute.xlu0 %3783
      %3785 = vrot.lane.b32.xlu0 %v3639, 112
      %v3786 = vpop.permute.xlu0 %3785
      %3787 = vrot.lane.b32.xlu0 %v3640, 112
      %v3788 = vpop.permute.xlu0 %3787
      %3789 = vrot.lane.b32.xlu0 %v3641, 112
      %v3790 = vpop.permute.xlu0 %3789
      %3791 = vrot.lane.b32.xlu0 %v3642, 112
      %v3792 = vpop.permute.xlu0 %3791
      %3793 = vrot.lane.b32.xlu0 %v3643, 112
      %v3794 = vpop.permute.xlu0 %3793
      %3795 = vrot.lane.b32.xlu0 %v3644, 112
      %v3796 = vpop.permute.xlu0 %3795
      %3797 = vrot.lane.b32.xlu0 %v3645, 112
      %v3798 = vpop.permute.xlu0 %3797
      %3799 = vrot.lane.b32.xlu0 %v3646, 112
      %v3800 = vpop.permute.xlu0 %3799
      %3801 = vrot.lane.b32.xlu0 %v3647, 112
      %v3802 = vpop.permute.xlu0 %3801
      %3803 = vrot.lane.b32.xlu0 %v3648, 112
      %v3804 = vpop.permute.xlu0 %3803
      %3805 = vrot.lane.b32.xlu0 %v3649, 112
      %v3806 = vpop.permute.xlu0 %3805
      %3807 = vrot.lane.b32.xlu0 %v3650, 112
      %v3808 = vpop.permute.xlu0 %3807
      %3809 = vrot.lane.b32.xlu0 %v3651, 112
      %v3810 = vpop.permute.xlu0 %3809
      %3811 = vrot.lane.b32.xlu0 %v3652, 112
      %v3812 = vpop.permute.xlu0 %3811
      %3813 = vrot.lane.b32.xlu0 %v3653, 112
      %v3814 = vpop.permute.xlu0 %3813
      %3815 = vrot.lane.b32.xlu0 %v3654, 112
      %v3816 = vpop.permute.xlu0 %3815
      %3817 = vrot.lane.b32.xlu0 %v3655, 112
      %v3818 = vpop.permute.xlu0 %3817
      %3819 = vrot.lane.b32.xlu0 %v3656, 112
      %v3820 = vpop.permute.xlu0 %3819
      %3821 = vrot.lane.b32.xlu0 %v3657, 112
      %v3822 = vpop.permute.xlu0 %3821
      %3855 = vrot.lane.b32.xlu0 %v3626, 16
      %v3856 = vpop.permute.xlu0 %3855
      %3857 = vrot.lane.b32.xlu0 %v3627, 16
      %v3858 = vpop.permute.xlu0 %3857
      %3859 = vrot.lane.b32.xlu0 %v3628, 16
      %v3860 = vpop.permute.xlu0 %3859
      %3861 = vrot.lane.b32.xlu0 %v3629, 16
      %v3862 = vpop.permute.xlu0 %3861
      %3863 = vrot.lane.b32.xlu0 %v3630, 16
      %v3864 = vpop.permute.xlu0 %3863
      %3865 = vrot.lane.b32.xlu0 %v3631, 16
      %v3866 = vpop.permute.xlu0 %3865
      %3867 = vrot.lane.b32.xlu0 %v3632, 16
      %v3868 = vpop.permute.xlu0 %3867
      %3869 = vrot.lane.b32.xlu0 %v3633, 16
      %v3870 = vpop.permute.xlu0 %3869
      %3871 = vrot.lane.b32.xlu0 %v3634, 16
      %v3872 = vpop.permute.xlu0 %3871
      %3873 = vrot.lane.b32.xlu0 %v3635, 16
      %v3874 = vpop.permute.xlu0 %3873
      %3875 = vrot.lane.b32.xlu0 %v3636, 16
      %v3876 = vpop.permute.xlu0 %3875
      %3877 = vrot.lane.b32.xlu0 %v3637, 16
      %v3878 = vpop.permute.xlu0 %3877
      %3879 = vrot.lane.b32.xlu0 %v3638, 16
      %v3880 = vpop.permute.xlu0 %3879
      %3881 = vrot.lane.b32.xlu0 %v3639, 16
      %v3882 = vpop.permute.xlu0 %3881
      %3883 = vrot.lane.b32.xlu0 %v3640, 16
      %v3884 = vpop.permute.xlu0 %3883
      %3885 = vrot.lane.b32.xlu0 %v3641, 16
      %v3886 = vpop.permute.xlu0 %3885
      %3887 = vrot.lane.b32.xlu0 %v3642, 16
      %v3888 = vpop.permute.xlu0 %3887
      %3889 = vrot.lane.b32.xlu0 %v3643, 16
      %v3890 = vpop.permute.xlu0 %3889
      %3891 = vrot.lane.b32.xlu0 %v3644, 16
      %v3892 = vpop.permute.xlu0 %3891
      %3893 = vrot.lane.b32.xlu0 %v3645, 16
      %v3894 = vpop.permute.xlu0 %3893
      %3895 = vrot.lane.b32.xlu0 %v3646, 16
      %v3896 = vpop.permute.xlu0 %3895
      %3897 = vrot.lane.b32.xlu0 %v3647, 16
      %v3898 = vpop.permute.xlu0 %3897
      %3899 = vrot.lane.b32.xlu0 %v3648, 16
      %v3900 = vpop.permute.xlu0 %3899
      %3901 = vrot.lane.b32.xlu0 %v3649, 16
      %v3902 = vpop.permute.xlu0 %3901
      %3903 = vrot.lane.b32.xlu0 %v3650, 16
      %v3904 = vpop.permute.xlu0 %3903
      %3905 = vrot.lane.b32.xlu0 %v3651, 16
      %v3906 = vpop.permute.xlu0 %3905
      %3907 = vrot.lane.b32.xlu0 %v3652, 16
      %v3908 = vpop.permute.xlu0 %3907
      %3909 = vrot.lane.b32.xlu0 %v3653, 16
      %v3910 = vpop.permute.xlu0 %3909
      %3911 = vrot.lane.b32.xlu0 %v3654, 16
      %v3912 = vpop.permute.xlu0 %3911
      %3913 = vrot.lane.b32.xlu0 %v3655, 16
      %v3914 = vpop.permute.xlu0 %3913
      %3915 = vrot.lane.b32.xlu0 %v3656, 16
      %v3916 = vpop.permute.xlu0 %3915
      %3917 = vrot.lane.b32.xlu0 %v3657, 16
      %v3918 = vpop.permute.xlu0 %3917
      %v3951 = vsel %vm967, %v3760, %v3856
      %v3952 = vsel %vm967, %v3762, %v3858
      %v3953 = vsel %vm967, %v3764, %v3860
      %v3954 = vsel %vm967, %v3766, %v3862
      %v3955 = vsel %vm967, %v3768, %v3864
      %v3956 = vsel %vm967, %v3770, %v3866
      %v3957 = vsel %vm967, %v3772, %v3868
      %v3958 = vsel %vm967, %v3774, %v3870
      %v3959 = vsel %vm967, %v3776, %v3872
      %v3960 = vsel %vm967, %v3778, %v3874
      %v3961 = vsel %vm967, %v3780, %v3876
      %v3962 = vsel %vm967, %v3782, %v3878
      %v3963 = vsel %vm967, %v3784, %v3880
      %v3964 = vsel %vm967, %v3786, %v3882
      %v3965 = vsel %vm967, %v3788, %v3884
      %v3966 = vsel %vm967, %v3790, %v3886
      %v3967 = vsel %vm967, %v3792, %v3888
      %v3968 = vsel %vm967, %v3794, %v3890
      %v3969 = vsel %vm967, %v3796, %v3892
      %v3970 = vsel %vm967, %v3798, %v3894
      %v3971 = vsel %vm967, %v3800, %v3896
      %v3972 = vsel %vm967, %v3802, %v3898
      %v3973 = vsel %vm967, %v3804, %v3900
      %v3974 = vsel %vm967, %v3806, %v3902
      %v3975 = vsel %vm967, %v3808, %v3904
      %v3976 = vsel %vm967, %v3810, %v3906
      %v3977 = vsel %vm967, %v3812, %v3908
      %v3978 = vsel %vm967, %v3814, %v3910
      %v3979 = vsel %vm967, %v3816, %v3912
      %v3980 = vsel %vm967, %v3818, %v3914
      %v3981 = vsel %vm967, %v3820, %v3916
      %v3982 = vsel %vm967, %v3822, %v3918
      %v3983 = vld [vmem:[%s3 + $0xf] sm:$0x1]
      %v3984 = vlaneseq
      %v3985 = vshrl.u32 %v3984, 7
      %v3986 = vsub.s32 0, %v3985
      %v3987 = vrot.slane %v3983, %v3986
      %v3988 = vmul.f32 %v3951, %v3987
      %v3989 = vmul.f32 %v3952, %v3987
      %v3990 = vmul.f32 %v3953, %v3987
      %v3991 = vmul.f32 %v3954, %v3987
      %v3992 = vmul.f32 %v3955, %v3987
      %v3993 = vmul.f32 %v3956, %v3987
      %v3994 = vmul.f32 %v3957, %v3987
      %v3995 = vmul.f32 %v3958, %v3987
      %v3996 = vmul.f32 %v3959, %v3987
      %v3997 = vmul.f32 %v3960, %v3987
      %v3998 = vmul.f32 %v3961, %v3987
      %v3999 = vmul.f32 %v3962, %v3987
      %v4000 = vmul.f32 %v3963, %v3987
      %v4001 = vmul.f32 %v3964, %v3987
      %v4002 = vmul.f32 %v3965, %v3987
      %v4003 = vmul.f32 %v3966, %v3987
      %v4004 = vmul.f32 %v3967, %v3987
      %v4005 = vmul.f32 %v3968, %v3987
      %v4006 = vmul.f32 %v3969, %v3987
      %v4007 = vmul.f32 %v3970, %v3987
      %v4008 = vmul.f32 %v3971, %v3987
      %v4009 = vmul.f32 %v3972, %v3987
      %v4010 = vmul.f32 %v3973, %v3987
      %v4011 = vmul.f32 %v3974, %v3987
      %v4012 = vmul.f32 %v3975, %v3987
      %v4013 = vmul.f32 %v3976, %v3987
      %v4014 = vmul.f32 %v3977, %v3987
      %v4015 = vmul.f32 %v3978, %v3987
      %v4016 = vmul.f32 %v3979, %v3987
      %v4017 = vmul.f32 %v3980, %v3987
      %v4018 = vmul.f32 %v3981, %v3987
      %v4019 = vmul.f32 %v3982, %v3987
      %v4020 = vadd.f32 %v3695, %v3988
      %v4021 = vadd.f32 %v3696, %v3989
      %v4022 = vadd.f32 %v3697, %v3990
      %v4023 = vadd.f32 %v3698, %v3991
      %v4024 = vadd.f32 %v3699, %v3992
      %v4025 = vadd.f32 %v3700, %v3993
      %v4026 = vadd.f32 %v3701, %v3994
      %v4027 = vadd.f32 %v3702, %v3995
      %v4028 = vadd.f32 %v3703, %v3996
      %v4029 = vadd.f32 %v3704, %v3997
      %v4030 = vadd.f32 %v3705, %v3998
      %v4031 = vadd.f32 %v3706, %v3999
      %v4032 = vadd.f32 %v3707, %v4000
      %v4033 = vadd.f32 %v3708, %v4001
      %v4034 = vadd.f32 %v3709, %v4002
      %v4035 = vadd.f32 %v3710, %v4003
      %v4036 = vadd.f32 %v3711, %v4004
      %v4037 = vadd.f32 %v3712, %v4005
      %v4038 = vadd.f32 %v3713, %v4006
      %v4039 = vadd.f32 %v3714, %v4007
      %v4040 = vadd.f32 %v3715, %v4008
      %v4041 = vadd.f32 %v3716, %v4009
      %v4042 = vadd.f32 %v3717, %v4010
      %v4043 = vadd.f32 %v3718, %v4011
      %v4044 = vadd.f32 %v3719, %v4012
      %v4045 = vadd.f32 %v3720, %v4013
      %v4046 = vadd.f32 %v3721, %v4014
      %v4047 = vadd.f32 %v3722, %v4015
      %v4048 = vadd.f32 %v3723, %v4016
      %v4049 = vadd.f32 %v3724, %v4017
      %v4050 = vadd.f32 %v3725, %v4018
      %v4051 = vadd.f32 %v3726, %v4019
      %v4052 = vld [vmem:[%s3199 + $0x9] sm:$0xff]
      %v4053 = vld [vmem:[%s3199 + $0x11] sm:$0xff]
      %v4054 = vld [vmem:[%s3199 + $0x29] sm:$0xff]
      %v4055 = vld [vmem:[%s3199 + $0x31] sm:$0xff]
      %v4056 = vld [vmem:[%s3199 + $0x49] sm:$0xff]
      %v4057 = vld [vmem:[%s3199 + $0x51] sm:$0xff]
      %v4058 = vld [vmem:[%s3199 + $0x69] sm:$0xff]
      %v4059 = vld [vmem:[%s3199 + $0x71] sm:$0xff]
      %v4060 = vld [vmem:[%s3199 + $0x89] sm:$0xff]
      %v4061 = vld [vmem:[%s3199 + $0x91] sm:$0xff]
      %v4062 = vld [vmem:[%s3199 + $0xa9] sm:$0xff]
      %v4063 = vld [vmem:[%s3199 + $0xb1] sm:$0xff]
      %v4064 = vld [vmem:[%s3199 + $0xc9] sm:$0xff]
      %v4065 = vld [vmem:[%s3199 + $0xd1] sm:$0xff]
      %v4066 = vld [vmem:[%s3199 + $0xe9] sm:$0xff]
      %v4067 = vld [vmem:[%s3199 + $0xf1] sm:$0xff]
      %v4068 = vld [vmem:[%s3199 + $0x109] sm:$0xff]
      %v4069 = vld [vmem:[%s3199 + $0x111] sm:$0xff]
      %v4070 = vld [vmem:[%s3199 + $0x129] sm:$0xff]
      %v4071 = vld [vmem:[%s3199 + $0x131] sm:$0xff]
      %v4072 = vld [vmem:[%s3199 + $0x149] sm:$0xff]
      %v4073 = vld [vmem:[%s3199 + $0x151] sm:$0xff]
      %v4074 = vld [vmem:[%s3199 + $0x169] sm:$0xff]
      %v4075 = vld [vmem:[%s3199 + $0x171] sm:$0xff]
      %v4076 = vld [vmem:[%s3199 + $0x189] sm:$0xff]
      %v4077 = vld [vmem:[%s3199 + $0x191] sm:$0xff]
      %v4078 = vld [vmem:[%s3199 + $0x1a9] sm:$0xff]
      %v4079 = vld [vmem:[%s3199 + $0x1b1] sm:$0xff]
      %v4080 = vld [vmem:[%s3199 + $0x1c9] sm:$0xff]
      %v4081 = vld [vmem:[%s3199 + $0x1d1] sm:$0xff]
      %v4082 = vld [vmem:[%s3199 + $0x1e9] sm:$0xff]
      %v4083 = vld [vmem:[%s3199 + $0x1f1] sm:$0xff]
      %v4084 = vld [vmem:[%s3 + $0x10] sm:$0x1]
      %v4085 = vlaneseq
      %v4086 = vshrl.u32 %v4085, 7
      %v4087 = vsub.s32 0, %v4086
      %v4088 = vrot.slane %v4084, %v4087
      %v4089 = vmul.f32 %v4052, %v4088
      %v4090 = vmul.f32 %v4053, %v4088
      %v4091 = vmul.f32 %v4054, %v4088
      %v4092 = vmul.f32 %v4055, %v4088
      %v4093 = vmul.f32 %v4056, %v4088
      %v4094 = vmul.f32 %v4057, %v4088
      %v4095 = vmul.f32 %v4058, %v4088
      %v4096 = vmul.f32 %v4059, %v4088
      %v4097 = vmul.f32 %v4060, %v4088
      %v4098 = vmul.f32 %v4061, %v4088
      %v4099 = vmul.f32 %v4062, %v4088
      %v4100 = vmul.f32 %v4063, %v4088
      %v4101 = vmul.f32 %v4064, %v4088
      %v4102 = vmul.f32 %v4065, %v4088
      %v4103 = vmul.f32 %v4066, %v4088
      %v4104 = vmul.f32 %v4067, %v4088
      %v4105 = vmul.f32 %v4068, %v4088
      %v4106 = vmul.f32 %v4069, %v4088
      %v4107 = vmul.f32 %v4070, %v4088
      %v4108 = vmul.f32 %v4071, %v4088
      %v4109 = vmul.f32 %v4072, %v4088
      %v4110 = vmul.f32 %v4073, %v4088
      %v4111 = vmul.f32 %v4074, %v4088
      %v4112 = vmul.f32 %v4075, %v4088
      %v4113 = vmul.f32 %v4076, %v4088
      %v4114 = vmul.f32 %v4077, %v4088
      %v4115 = vmul.f32 %v4078, %v4088
      %v4116 = vmul.f32 %v4079, %v4088
      %v4117 = vmul.f32 %v4080, %v4088
      %v4118 = vmul.f32 %v4081, %v4088
      %v4119 = vmul.f32 %v4082, %v4088
      %v4120 = vmul.f32 %v4083, %v4088
      %v4121 = vadd.f32 %v4020, %v4089
      %v4122 = vadd.f32 %v4021, %v4090
      %v4123 = vadd.f32 %v4022, %v4091
      %v4124 = vadd.f32 %v4023, %v4092
      %v4125 = vadd.f32 %v4024, %v4093
      %v4126 = vadd.f32 %v4025, %v4094
      %v4127 = vadd.f32 %v4026, %v4095
      %v4128 = vadd.f32 %v4027, %v4096
      %v4129 = vadd.f32 %v4028, %v4097
      %v4130 = vadd.f32 %v4029, %v4098
      %v4131 = vadd.f32 %v4030, %v4099
      %v4132 = vadd.f32 %v4031, %v4100
      %v4133 = vadd.f32 %v4032, %v4101
      %v4134 = vadd.f32 %v4033, %v4102
      %v4135 = vadd.f32 %v4034, %v4103
      %v4136 = vadd.f32 %v4035, %v4104
      %v4137 = vadd.f32 %v4036, %v4105
      %v4138 = vadd.f32 %v4037, %v4106
      %v4139 = vadd.f32 %v4038, %v4107
      %v4140 = vadd.f32 %v4039, %v4108
      %v4141 = vadd.f32 %v4040, %v4109
      %v4142 = vadd.f32 %v4041, %v4110
      %v4143 = vadd.f32 %v4042, %v4111
      %v4144 = vadd.f32 %v4043, %v4112
      %v4145 = vadd.f32 %v4044, %v4113
      %v4146 = vadd.f32 %v4045, %v4114
      %v4147 = vadd.f32 %v4046, %v4115
      %v4148 = vadd.f32 %v4047, %v4116
      %v4149 = vadd.f32 %v4048, %v4117
      %v4150 = vadd.f32 %v4049, %v4118
      %v4151 = vadd.f32 %v4050, %v4119
      %v4152 = vadd.f32 %v4051, %v4120
      %4185 = vrot.lane.b32.xlu0 %v4052, 112
      %v4186 = vpop.permute.xlu0 %4185
      %4187 = vrot.lane.b32.xlu0 %v4053, 112
      %v4188 = vpop.permute.xlu0 %4187
      %4189 = vrot.lane.b32.xlu0 %v4054, 112
      %v4190 = vpop.permute.xlu0 %4189
      %4191 = vrot.lane.b32.xlu0 %v4055, 112
      %v4192 = vpop.permute.xlu0 %4191
      %4193 = vrot.lane.b32.xlu0 %v4056, 112
      %v4194 = vpop.permute.xlu0 %4193
      %4195 = vrot.lane.b32.xlu0 %v4057, 112
      %v4196 = vpop.permute.xlu0 %4195
      %4197 = vrot.lane.b32.xlu0 %v4058, 112
      %v4198 = vpop.permute.xlu0 %4197
      %4199 = vrot.lane.b32.xlu0 %v4059, 112
      %v4200 = vpop.permute.xlu0 %4199
      %4201 = vrot.lane.b32.xlu0 %v4060, 112
      %v4202 = vpop.permute.xlu0 %4201
      %4203 = vrot.lane.b32.xlu0 %v4061, 112
      %v4204 = vpop.permute.xlu0 %4203
      %4205 = vrot.lane.b32.xlu0 %v4062, 112
      %v4206 = vpop.permute.xlu0 %4205
      %4207 = vrot.lane.b32.xlu0 %v4063, 112
      %v4208 = vpop.permute.xlu0 %4207
      %4209 = vrot.lane.b32.xlu0 %v4064, 112
      %v4210 = vpop.permute.xlu0 %4209
      %4211 = vrot.lane.b32.xlu0 %v4065, 112
      %v4212 = vpop.permute.xlu0 %4211
      %4213 = vrot.lane.b32.xlu0 %v4066, 112
      %v4214 = vpop.permute.xlu0 %4213
      %4215 = vrot.lane.b32.xlu0 %v4067, 112
      %v4216 = vpop.permute.xlu0 %4215
      %4217 = vrot.lane.b32.xlu0 %v4068, 112
      %v4218 = vpop.permute.xlu0 %4217
      %4219 = vrot.lane.b32.xlu0 %v4069, 112
      %v4220 = vpop.permute.xlu0 %4219
      %4221 = vrot.lane.b32.xlu0 %v4070, 112
      %v4222 = vpop.permute.xlu0 %4221
      %4223 = vrot.lane.b32.xlu0 %v4071, 112
      %v4224 = vpop.permute.xlu0 %4223
      %4225 = vrot.lane.b32.xlu0 %v4072, 112
      %v4226 = vpop.permute.xlu0 %4225
      %4227 = vrot.lane.b32.xlu0 %v4073, 112
      %v4228 = vpop.permute.xlu0 %4227
      %4229 = vrot.lane.b32.xlu0 %v4074, 112
      %v4230 = vpop.permute.xlu0 %4229
      %4231 = vrot.lane.b32.xlu0 %v4075, 112
      %v4232 = vpop.permute.xlu0 %4231
      %4233 = vrot.lane.b32.xlu0 %v4076, 112
      %v4234 = vpop.permute.xlu0 %4233
      %4235 = vrot.lane.b32.xlu0 %v4077, 112
      %v4236 = vpop.permute.xlu0 %4235
      %4237 = vrot.lane.b32.xlu0 %v4078, 112
      %v4238 = vpop.permute.xlu0 %4237
      %4239 = vrot.lane.b32.xlu0 %v4079, 112
      %v4240 = vpop.permute.xlu0 %4239
      %4241 = vrot.lane.b32.xlu0 %v4080, 112
      %v4242 = vpop.permute.xlu0 %4241
      %4243 = vrot.lane.b32.xlu0 %v4081, 112
      %v4244 = vpop.permute.xlu0 %4243
      %4245 = vrot.lane.b32.xlu0 %v4082, 112
      %v4246 = vpop.permute.xlu0 %4245
      %4247 = vrot.lane.b32.xlu0 %v4083, 112
      %v4248 = vpop.permute.xlu0 %4247
      %4281 = vrot.lane.b32.xlu0 %v4052, 16
      %v4282 = vpop.permute.xlu0 %4281
      %4283 = vrot.lane.b32.xlu0 %v4053, 16
      %v4284 = vpop.permute.xlu0 %4283
      %4285 = vrot.lane.b32.xlu0 %v4054, 16
      %v4286 = vpop.permute.xlu0 %4285
      %4287 = vrot.lane.b32.xlu0 %v4055, 16
      %v4288 = vpop.permute.xlu0 %4287
      %4289 = vrot.lane.b32.xlu0 %v4056, 16
      %v4290 = vpop.permute.xlu0 %4289
      %4291 = vrot.lane.b32.xlu0 %v4057, 16
      %v4292 = vpop.permute.xlu0 %4291
      %4293 = vrot.lane.b32.xlu0 %v4058, 16
      %v4294 = vpop.permute.xlu0 %4293
      %4295 = vrot.lane.b32.xlu0 %v4059, 16
      %v4296 = vpop.permute.xlu0 %4295
      %4297 = vrot.lane.b32.xlu0 %v4060, 16
      %v4298 = vpop.permute.xlu0 %4297
      %4299 = vrot.lane.b32.xlu0 %v4061, 16
      %v4300 = vpop.permute.xlu0 %4299
      %4301 = vrot.lane.b32.xlu0 %v4062, 16
      %v4302 = vpop.permute.xlu0 %4301
      %4303 = vrot.lane.b32.xlu0 %v4063, 16
      %v4304 = vpop.permute.xlu0 %4303
      %4305 = vrot.lane.b32.xlu0 %v4064, 16
      %v4306 = vpop.permute.xlu0 %4305
      %4307 = vrot.lane.b32.xlu0 %v4065, 16
      %v4308 = vpop.permute.xlu0 %4307
      %4309 = vrot.lane.b32.xlu0 %v4066, 16
      %v4310 = vpop.permute.xlu0 %4309
      %4311 = vrot.lane.b32.xlu0 %v4067, 16
      %v4312 = vpop.permute.xlu0 %4311
      %4313 = vrot.lane.b32.xlu0 %v4068, 16
      %v4314 = vpop.permute.xlu0 %4313
      %4315 = vrot.lane.b32.xlu0 %v4069, 16
      %v4316 = vpop.permute.xlu0 %4315
      %4317 = vrot.lane.b32.xlu0 %v4070, 16
      %v4318 = vpop.permute.xlu0 %4317
      %4319 = vrot.lane.b32.xlu0 %v4071, 16
      %v4320 = vpop.permute.xlu0 %4319
      %4321 = vrot.lane.b32.xlu0 %v4072, 16
      %v4322 = vpop.permute.xlu0 %4321
      %4323 = vrot.lane.b32.xlu0 %v4073, 16
      %v4324 = vpop.permute.xlu0 %4323
      %4325 = vrot.lane.b32.xlu0 %v4074, 16
      %v4326 = vpop.permute.xlu0 %4325
      %4327 = vrot.lane.b32.xlu0 %v4075, 16
      %v4328 = vpop.permute.xlu0 %4327
      %4329 = vrot.lane.b32.xlu0 %v4076, 16
      %v4330 = vpop.permute.xlu0 %4329
      %4331 = vrot.lane.b32.xlu0 %v4077, 16
      %v4332 = vpop.permute.xlu0 %4331
      %4333 = vrot.lane.b32.xlu0 %v4078, 16
      %v4334 = vpop.permute.xlu0 %4333
      %4335 = vrot.lane.b32.xlu0 %v4079, 16
      %v4336 = vpop.permute.xlu0 %4335
      %4337 = vrot.lane.b32.xlu0 %v4080, 16
      %v4338 = vpop.permute.xlu0 %4337
      %4339 = vrot.lane.b32.xlu0 %v4081, 16
      %v4340 = vpop.permute.xlu0 %4339
      %4341 = vrot.lane.b32.xlu0 %v4082, 16
      %v4342 = vpop.permute.xlu0 %4341
      %4343 = vrot.lane.b32.xlu0 %v4083, 16
      %v4344 = vpop.permute.xlu0 %4343
      %v4377 = vsel %vm967, %v4186, %v4282
      %v4378 = vsel %vm967, %v4188, %v4284
      %v4379 = vsel %vm967, %v4190, %v4286
      %v4380 = vsel %vm967, %v4192, %v4288
      %v4381 = vsel %vm967, %v4194, %v4290
      %v4382 = vsel %vm967, %v4196, %v4292
      %v4383 = vsel %vm967, %v4198, %v4294
      %v4384 = vsel %vm967, %v4200, %v4296
      %v4385 = vsel %vm967, %v4202, %v4298
      %v4386 = vsel %vm967, %v4204, %v4300
      %v4387 = vsel %vm967, %v4206, %v4302
      %v4388 = vsel %vm967, %v4208, %v4304
      %v4389 = vsel %vm967, %v4210, %v4306
      %v4390 = vsel %vm967, %v4212, %v4308
      %v4391 = vsel %vm967, %v4214, %v4310
      %v4392 = vsel %vm967, %v4216, %v4312
      %v4393 = vsel %vm967, %v4218, %v4314
      %v4394 = vsel %vm967, %v4220, %v4316
      %v4395 = vsel %vm967, %v4222, %v4318
      %v4396 = vsel %vm967, %v4224, %v4320
      %v4397 = vsel %vm967, %v4226, %v4322
      %v4398 = vsel %vm967, %v4228, %v4324
      %v4399 = vsel %vm967, %v4230, %v4326
      %v4400 = vsel %vm967, %v4232, %v4328
      %v4401 = vsel %vm967, %v4234, %v4330
      %v4402 = vsel %vm967, %v4236, %v4332
      %v4403 = vsel %vm967, %v4238, %v4334
      %v4404 = vsel %vm967, %v4240, %v4336
      %v4405 = vsel %vm967, %v4242, %v4338
      %v4406 = vsel %vm967, %v4244, %v4340
      %v4407 = vsel %vm967, %v4246, %v4342
      %v4408 = vsel %vm967, %v4248, %v4344
      %v4409 = vld [vmem:[%s3 + $0x11] sm:$0x1]
      %v4410 = vlaneseq
      %v4411 = vshrl.u32 %v4410, 7
      %v4412 = vsub.s32 0, %v4411
      %v4413 = vrot.slane %v4409, %v4412
      %v4414 = vmul.f32 %v4377, %v4413
      %v4415 = vmul.f32 %v4378, %v4413
      %v4416 = vmul.f32 %v4379, %v4413
      %v4417 = vmul.f32 %v4380, %v4413
      %v4418 = vmul.f32 %v4381, %v4413
      %v4419 = vmul.f32 %v4382, %v4413
      %v4420 = vmul.f32 %v4383, %v4413
      %v4421 = vmul.f32 %v4384, %v4413
      %v4422 = vmul.f32 %v4385, %v4413
      %v4423 = vmul.f32 %v4386, %v4413
      %v4424 = vmul.f32 %v4387, %v4413
      %v4425 = vmul.f32 %v4388, %v4413
      %v4426 = vmul.f32 %v4389, %v4413
      %v4427 = vmul.f32 %v4390, %v4413
      %v4428 = vmul.f32 %v4391, %v4413
      %v4429 = vmul.f32 %v4392, %v4413
      %v4430 = vmul.f32 %v4393, %v4413
      %v4431 = vmul.f32 %v4394, %v4413
      %v4432 = vmul.f32 %v4395, %v4413
      %v4433 = vmul.f32 %v4396, %v4413
      %v4434 = vmul.f32 %v4397, %v4413
      %v4435 = vmul.f32 %v4398, %v4413
      %v4436 = vmul.f32 %v4399, %v4413
      %v4437 = vmul.f32 %v4400, %v4413
      %v4438 = vmul.f32 %v4401, %v4413
      %v4439 = vmul.f32 %v4402, %v4413
      %v4440 = vmul.f32 %v4403, %v4413
      %v4441 = vmul.f32 %v4404, %v4413
      %v4442 = vmul.f32 %v4405, %v4413
      %v4443 = vmul.f32 %v4406, %v4413
      %v4444 = vmul.f32 %v4407, %v4413
      %v4445 = vmul.f32 %v4408, %v4413
      %v4446 = vadd.f32 %v4121, %v4414
      %v4447 = vadd.f32 %v4122, %v4415
      %v4448 = vadd.f32 %v4123, %v4416
      %v4449 = vadd.f32 %v4124, %v4417
      %v4450 = vadd.f32 %v4125, %v4418
      %v4451 = vadd.f32 %v4126, %v4419
      %v4452 = vadd.f32 %v4127, %v4420
      %v4453 = vadd.f32 %v4128, %v4421
      %v4454 = vadd.f32 %v4129, %v4422
      %v4455 = vadd.f32 %v4130, %v4423
      %v4456 = vadd.f32 %v4131, %v4424
      %v4457 = vadd.f32 %v4132, %v4425
      %v4458 = vadd.f32 %v4133, %v4426
      %v4459 = vadd.f32 %v4134, %v4427
      %v4460 = vadd.f32 %v4135, %v4428
      %v4461 = vadd.f32 %v4136, %v4429
      %v4462 = vadd.f32 %v4137, %v4430
      %v4463 = vadd.f32 %v4138, %v4431
      %v4464 = vadd.f32 %v4139, %v4432
      %v4465 = vadd.f32 %v4140, %v4433
      %v4466 = vadd.f32 %v4141, %v4434
      %v4467 = vadd.f32 %v4142, %v4435
      %v4468 = vadd.f32 %v4143, %v4436
      %v4469 = vadd.f32 %v4144, %v4437
      %v4470 = vadd.f32 %v4145, %v4438
      %v4471 = vadd.f32 %v4146, %v4439
      %v4472 = vadd.f32 %v4147, %v4440
      %v4473 = vadd.f32 %v4148, %v4441
      %v4474 = vadd.f32 %v4149, %v4442
      %v4475 = vadd.f32 %v4150, %v4443
      %v4476 = vadd.f32 %v4151, %v4444
      %v4477 = vadd.f32 %v4152, %v4445
      %v4478 = vld [vmem:[%s4] sm:$0x1]
      %v4480 = vlaneseq
      %v4481 = vshrl.u32 %v4480, 7
      %v4482 = vsub.s32 0, %v4481
      %v4483 = vrot.slane %v4478, %v4482
      %v4485 = vadd.f32 %v4446, %v4483
      %v4486 = vadd.f32 %v4447, %v4483
      %v4487 = vadd.f32 %v4448, %v4483
      %v4488 = vadd.f32 %v4449, %v4483
      %v4489 = vadd.f32 %v4450, %v4483
      %v4490 = vadd.f32 %v4451, %v4483
      %v4491 = vadd.f32 %v4452, %v4483
      %v4492 = vadd.f32 %v4453, %v4483
      %v4493 = vadd.f32 %v4454, %v4483
      %v4494 = vadd.f32 %v4455, %v4483
      %v4495 = vadd.f32 %v4456, %v4483
      %v4496 = vadd.f32 %v4457, %v4483
      %v4497 = vadd.f32 %v4458, %v4483
      %v4498 = vadd.f32 %v4459, %v4483
      %v4499 = vadd.f32 %v4460, %v4483
      %v4500 = vadd.f32 %v4461, %v4483
      %v4501 = vadd.f32 %v4462, %v4483
      %v4502 = vadd.f32 %v4463, %v4483
      %v4503 = vadd.f32 %v4464, %v4483
      %v4504 = vadd.f32 %v4465, %v4483
      %v4505 = vadd.f32 %v4466, %v4483
      %v4506 = vadd.f32 %v4467, %v4483
      %v4507 = vadd.f32 %v4468, %v4483
      %v4508 = vadd.f32 %v4469, %v4483
      %v4509 = vadd.f32 %v4470, %v4483
      %v4510 = vadd.f32 %v4471, %v4483
      %v4511 = vadd.f32 %v4472, %v4483
      %v4512 = vadd.f32 %v4473, %v4483
      %v4513 = vadd.f32 %v4474, %v4483
      %v4514 = vadd.f32 %v4475, %v4483
      %v4515 = vadd.f32 %v4476, %v4483
      %v4516 = vadd.f32 %v4477, %v4483
      %v4517 = vpack.c.bf16 %v4486, %v4485
      %v4518 = vpack.c.bf16 %v4488, %v4487
      %v4519 = vpack.c.bf16 %v4490, %v4489
      %v4520 = vpack.c.bf16 %v4492, %v4491
      %v4521 = vpack.c.bf16 %v4494, %v4493
      %v4522 = vpack.c.bf16 %v4496, %v4495
      %v4523 = vpack.c.bf16 %v4498, %v4497
      %v4524 = vpack.c.bf16 %v4500, %v4499
      %v4525 = vpack.c.bf16 %v4502, %v4501
      %v4526 = vpack.c.bf16 %v4504, %v4503
      %v4527 = vpack.c.bf16 %v4506, %v4505
      %v4528 = vpack.c.bf16 %v4508, %v4507
      %v4529 = vpack.c.bf16 %v4510, %v4509
      %v4530 = vpack.c.bf16 %v4512, %v4511
      %v4531 = vpack.c.bf16 %v4514, %v4513
      %v4532 = vpack.c.bf16 %v4516, %v4515
      %v4549 = vunpack.c.l.b16 %v4517
      %v4550 = vunpack.c.h.b16 %v4517
      %v4551 = vunpack.c.l.b16 %v4518
      %v4552 = vunpack.c.h.b16 %v4518
      %v4553 = vunpack.c.l.b16 %v4519
      %v4554 = vunpack.c.h.b16 %v4519
      %v4555 = vunpack.c.l.b16 %v4520
      %v4556 = vunpack.c.h.b16 %v4520
      %v4557 = vunpack.c.l.b16 %v4521
      %v4558 = vunpack.c.h.b16 %v4521
      %v4559 = vunpack.c.l.b16 %v4522
      %v4560 = vunpack.c.h.b16 %v4522
      %v4561 = vunpack.c.l.b16 %v4523
      %v4562 = vunpack.c.h.b16 %v4523
      %v4563 = vunpack.c.l.b16 %v4524
      %v4564 = vunpack.c.h.b16 %v4524
      %v4565 = vunpack.c.l.b16 %v4525
      %v4566 = vunpack.c.h.b16 %v4525
      %v4567 = vunpack.c.l.b16 %v4526
      %v4568 = vunpack.c.h.b16 %v4526
      %v4569 = vunpack.c.l.b16 %v4527
      %v4570 = vunpack.c.h.b16 %v4527
      %v4571 = vunpack.c.l.b16 %v4528
      %v4572 = vunpack.c.h.b16 %v4528
      %v4573 = vunpack.c.l.b16 %v4529
      %v4574 = vunpack.c.h.b16 %v4529
      %v4575 = vunpack.c.l.b16 %v4530
      %v4576 = vunpack.c.h.b16 %v4530
      %v4577 = vunpack.c.l.b16 %v4531
      %v4578 = vunpack.c.h.b16 %v4531
      %v4579 = vunpack.c.l.b16 %v4532
      %v4580 = vunpack.c.h.b16 %v4532
      %v4581 = vpack.c.b16 %v4549, %v4549
      %v4582 = vpack.c.b16 %v4550, %v4550
      %v4583 = vpack.c.b16 %v4551, %v4551
      %v4584 = vpack.c.b16 %v4552, %v4552
      %v4585 = vpack.c.b16 %v4553, %v4553
      %v4586 = vpack.c.b16 %v4554, %v4554
      %v4587 = vpack.c.b16 %v4555, %v4555
      %v4588 = vpack.c.b16 %v4556, %v4556
      %v4589 = vpack.c.b16 %v4557, %v4557
      %v4590 = vpack.c.b16 %v4558, %v4558
      %v4591 = vpack.c.b16 %v4559, %v4559
      %v4592 = vpack.c.b16 %v4560, %v4560
      %v4593 = vpack.c.b16 %v4561, %v4561
      %v4594 = vpack.c.b16 %v4562, %v4562
      %v4595 = vpack.c.b16 %v4563, %v4563
      %v4596 = vpack.c.b16 %v4564, %v4564
      %v4597 = vpack.c.b16 %v4565, %v4565
      %v4598 = vpack.c.b16 %v4566, %v4566
      %v4599 = vpack.c.b16 %v4567, %v4567
      %v4600 = vpack.c.b16 %v4568, %v4568
      %v4601 = vpack.c.b16 %v4569, %v4569
      %v4602 = vpack.c.b16 %v4570, %v4570
      %v4603 = vpack.c.b16 %v4571, %v4571
      %v4604 = vpack.c.b16 %v4572, %v4572
      %v4605 = vpack.c.b16 %v4573, %v4573
      %v4606 = vpack.c.b16 %v4574, %v4574
      %v4607 = vpack.c.b16 %v4575, %v4575
      %v4608 = vpack.c.b16 %v4576, %v4576
      %v4609 = vpack.c.b16 %v4577, %v4577
      %v4610 = vpack.c.b16 %v4578, %v4578
      %v4611 = vpack.c.b16 %v4579, %v4579
      %v4612 = vpack.c.b16 %v4580, %v4580
      %vm4645 = vcmask 257024
      %4646 = vst.msk [vmem:[%s258] sm:$0xf] %vm4645, %v4581
      %4647 = vst.msk [vmem:[%s258 + $0x4] sm:$0xf] %vm4645, %v4582
      %4648 = vst.msk [vmem:[%s258 + $0x8] sm:$0xf] %vm4645, %v4583
      %4649 = vst.msk [vmem:[%s258 + $0xc] sm:$0xf] %vm4645, %v4584
      %4650 = vst.msk [vmem:[%s258 + $0x10] sm:$0xf] %vm4645, %v4585
      %4651 = vst.msk [vmem:[%s258 + $0x14] sm:$0xf] %vm4645, %v4586
      %4652 = vst.msk [vmem:[%s258 + $0x18] sm:$0xf] %vm4645, %v4587
      %4653 = vst.msk [vmem:[%s258 + $0x1c] sm:$0xf] %vm4645, %v4588
      %4654 = vst.msk [vmem:[%s258 + $0x20] sm:$0xf] %vm4645, %v4589
      %4655 = vst.msk [vmem:[%s258 + $0x24] sm:$0xf] %vm4645, %v4590
      %4656 = vst.msk [vmem:[%s258 + $0x28] sm:$0xf] %vm4645, %v4591
      %4657 = vst.msk [vmem:[%s258 + $0x2c] sm:$0xf] %vm4645, %v4592
      %4658 = vst.msk [vmem:[%s258 + $0x30] sm:$0xf] %vm4645, %v4593
      %4659 = vst.msk [vmem:[%s258 + $0x34] sm:$0xf] %vm4645, %v4594
      %4660 = vst.msk [vmem:[%s258 + $0x38] sm:$0xf] %vm4645, %v4595
      %4661 = vst.msk [vmem:[%s258 + $0x3c] sm:$0xf] %vm4645, %v4596
      %4662 = vst.msk [vmem:[%s258 + $0x40] sm:$0xf] %vm4645, %v4597
      %4663 = vst.msk [vmem:[%s258 + $0x44] sm:$0xf] %vm4645, %v4598
      %4664 = vst.msk [vmem:[%s258 + $0x48] sm:$0xf] %vm4645, %v4599
      %4665 = vst.msk [vmem:[%s258 + $0x4c] sm:$0xf] %vm4645, %v4600
      %4666 = vst.msk [vmem:[%s258 + $0x50] sm:$0xf] %vm4645, %v4601
      %4667 = vst.msk [vmem:[%s258 + $0x54] sm:$0xf] %vm4645, %v4602
      %4668 = vst.msk [vmem:[%s258 + $0x58] sm:$0xf] %vm4645, %v4603
      %4669 = vst.msk [vmem:[%s258 + $0x5c] sm:$0xf] %vm4645, %v4604
      %4670 = vst.msk [vmem:[%s258 + $0x60] sm:$0xf] %vm4645, %v4605
      %4671 = vst.msk [vmem:[%s258 + $0x64] sm:$0xf] %vm4645, %v4606
      %4672 = vst.msk [vmem:[%s258 + $0x68] sm:$0xf] %vm4645, %v4607
      %4673 = vst.msk [vmem:[%s258 + $0x6c] sm:$0xf] %vm4645, %v4608
      %4674 = vst.msk [vmem:[%s258 + $0x70] sm:$0xf] %vm4645, %v4609
      %4675 = vst.msk [vmem:[%s258 + $0x74] sm:$0xf] %vm4645, %v4610
      %4676 = vst.msk [vmem:[%s258 + $0x78] sm:$0xf] %vm4645, %v4611
      %4677 = vst.msk [vmem:[%s258 + $0x7c] sm:$0xf] %vm4645, %v4612
      %v4678 = vsel %vm566, %v4485, 0.0
      %v4679 = vsel %vm566, %v4487, 0.0
      %v4680 = vadd.f32 %v4678, %v4679
      %v4681 = vsel %vm566, %v4489, 0.0
      %v4682 = vadd.f32 %v4680, %v4681
      %v4683 = vsel %vm566, %v4491, 0.0
      %v4684 = vadd.f32 %v4682, %v4683
      %v4685 = vsel %vm566, %v4493, 0.0
      %v4686 = vadd.f32 %v4684, %v4685
      %v4687 = vsel %vm566, %v4495, 0.0
      %v4688 = vadd.f32 %v4686, %v4687
      %v4689 = vsel %vm566, %v4497, 0.0
      %v4690 = vadd.f32 %v4688, %v4689
      %v4691 = vsel %vm566, %v4499, 0.0
      %v4692 = vadd.f32 %v4690, %v4691
      %v4693 = vsel %vm566, %v4501, 0.0
      %v4694 = vadd.f32 %v4692, %v4693
      %v4695 = vsel %vm566, %v4503, 0.0
      %v4696 = vadd.f32 %v4694, %v4695
      %v4697 = vsel %vm566, %v4505, 0.0
      %v4698 = vadd.f32 %v4696, %v4697
      %v4699 = vsel %vm566, %v4507, 0.0
      %v4700 = vadd.f32 %v4698, %v4699
      %v4701 = vsel %vm566, %v4509, 0.0
      %v4702 = vadd.f32 %v4700, %v4701
      %v4703 = vsel %vm566, %v4511, 0.0
      %v4704 = vadd.f32 %v4702, %v4703
      %v4705 = vsel %vm566, %v4513, 0.0
      %v4706 = vadd.f32 %v4704, %v4705
      %v4707 = vsel %vm566, %v4515, 0.0
      %v4708 = vadd.f32 %v4706, %v4707
      %v4709 = vsel %vm566, %v4486, 0.0
      %v4710 = vsel %vm566, %v4488, 0.0
      %v4711 = vadd.f32 %v4709, %v4710
      %v4712 = vsel %vm566, %v4490, 0.0
      %v4713 = vadd.f32 %v4711, %v4712
      %v4714 = vsel %vm566, %v4492, 0.0
      %v4715 = vadd.f32 %v4713, %v4714
      %v4716 = vsel %vm566, %v4494, 0.0
      %v4717 = vadd.f32 %v4715, %v4716
      %v4718 = vsel %vm566, %v4496, 0.0
      %v4719 = vadd.f32 %v4717, %v4718
      %v4720 = vsel %vm566, %v4498, 0.0
      %v4721 = vadd.f32 %v4719, %v4720
      %v4722 = vsel %vm566, %v4500, 0.0
      %v4723 = vadd.f32 %v4721, %v4722
      %v4724 = vsel %vm566, %v4502, 0.0
      %v4725 = vadd.f32 %v4723, %v4724
      %v4726 = vsel %vm566, %v4504, 0.0
      %v4727 = vadd.f32 %v4725, %v4726
      %v4728 = vsel %vm566, %v4506, 0.0
      %v4729 = vadd.f32 %v4727, %v4728
      %v4730 = vsel %vm566, %v4508, 0.0
      %v4731 = vadd.f32 %v4729, %v4730
      %v4732 = vsel %vm566, %v4510, 0.0
      %v4733 = vadd.f32 %v4731, %v4732
      %v4734 = vsel %vm566, %v4512, 0.0
      %v4735 = vadd.f32 %v4733, %v4734
      %v4736 = vsel %vm566, %v4514, 0.0
      %v4737 = vadd.f32 %v4735, %v4736
      %v4738 = vsel %vm566, %v4516, 0.0
      %v4739 = vadd.f32 %v4737, %v4738
      %v4740 = vsel %vm566, %v4708, 0.0
      %v4741 = vsel %vm566, %v4739, 0.0
      %v4742 = vadd.f32 %v4740, %v4741
      %v4743 = vrot.slane %v4742, 4
      %v4744 = vadd.f32 %v4742, %v4743
      %v4745 = vrot.slane %v4744, 2
      %v4746 = vadd.f32 %v4744, %v4745
      %v4747 = vrot.slane %v4746, 1
      %v4748 = vadd.f32 %v4746, %v4747
      %v4749 = vmul.f32 %v4485, %v4485
      %v4750 = vmul.f32 %v4486, %v4486
      %v4751 = vmul.f32 %v4487, %v4487
      %v4752 = vmul.f32 %v4488, %v4488
      %v4753 = vmul.f32 %v4489, %v4489
      %v4754 = vmul.f32 %v4490, %v4490
      %v4755 = vmul.f32 %v4491, %v4491
      %v4756 = vmul.f32 %v4492, %v4492
      %v4757 = vmul.f32 %v4493, %v4493
      %v4758 = vmul.f32 %v4494, %v4494
      %v4759 = vmul.f32 %v4495, %v4495
      %v4760 = vmul.f32 %v4496, %v4496
      %v4761 = vmul.f32 %v4497, %v4497
      %v4762 = vmul.f32 %v4498, %v4498
      %v4763 = vmul.f32 %v4499, %v4499
      %v4764 = vmul.f32 %v4500, %v4500
      %v4765 = vmul.f32 %v4501, %v4501
      %v4766 = vmul.f32 %v4502, %v4502
      %v4767 = vmul.f32 %v4503, %v4503
      %v4768 = vmul.f32 %v4504, %v4504
      %v4769 = vmul.f32 %v4505, %v4505
      %v4770 = vmul.f32 %v4506, %v4506
      %v4771 = vmul.f32 %v4507, %v4507
      %v4772 = vmul.f32 %v4508, %v4508
      %v4773 = vmul.f32 %v4509, %v4509
      %v4774 = vmul.f32 %v4510, %v4510
      %v4775 = vmul.f32 %v4511, %v4511
      %v4776 = vmul.f32 %v4512, %v4512
      %v4777 = vmul.f32 %v4513, %v4513
      %v4778 = vmul.f32 %v4514, %v4514
      %v4779 = vmul.f32 %v4515, %v4515
      %v4780 = vmul.f32 %v4516, %v4516
      %v4781 = vsel %vm566, %v4749, 0.0
      %v4782 = vsel %vm566, %v4751, 0.0
      %v4783 = vadd.f32 %v4781, %v4782
      %v4784 = vsel %vm566, %v4753, 0.0
      %v4785 = vadd.f32 %v4783, %v4784
      %v4786 = vsel %vm566, %v4755, 0.0
      %v4787 = vadd.f32 %v4785, %v4786
      %v4788 = vsel %vm566, %v4757, 0.0
      %v4789 = vadd.f32 %v4787, %v4788
      %v4790 = vsel %vm566, %v4759, 0.0
      %v4791 = vadd.f32 %v4789, %v4790
      %v4792 = vsel %vm566, %v4761, 0.0
      %v4793 = vadd.f32 %v4791, %v4792
      %v4794 = vsel %vm566, %v4763, 0.0
      %v4795 = vadd.f32 %v4793, %v4794
      %v4796 = vsel %vm566, %v4765, 0.0
      %v4797 = vadd.f32 %v4795, %v4796
      %v4798 = vsel %vm566, %v4767, 0.0
      %v4799 = vadd.f32 %v4797, %v4798
      %v4800 = vsel %vm566, %v4769, 0.0
      %v4801 = vadd.f32 %v4799, %v4800
      %v4802 = vsel %vm566, %v4771, 0.0
      %v4803 = vadd.f32 %v4801, %v4802
      %v4804 = vsel %vm566, %v4773, 0.0
      %v4805 = vadd.f32 %v4803, %v4804
      %v4806 = vsel %vm566, %v4775, 0.0
      %v4807 = vadd.f32 %v4805, %v4806
      %v4808 = vsel %vm566, %v4777, 0.0
      %v4809 = vadd.f32 %v4807, %v4808
      %v4810 = vsel %vm566, %v4779, 0.0
      %v4811 = vadd.f32 %v4809, %v4810
      %v4812 = vsel %vm566, %v4750, 0.0
      %v4813 = vsel %vm566, %v4752, 0.0
      %v4814 = vadd.f32 %v4812, %v4813
      %v4815 = vsel %vm566, %v4754, 0.0
      %v4816 = vadd.f32 %v4814, %v4815
      %v4817 = vsel %vm566, %v4756, 0.0
      %v4818 = vadd.f32 %v4816, %v4817
      %v4819 = vsel %vm566, %v4758, 0.0
      %v4820 = vadd.f32 %v4818, %v4819
      %v4821 = vsel %vm566, %v4760, 0.0
      %v4822 = vadd.f32 %v4820, %v4821
      %v4823 = vsel %vm566, %v4762, 0.0
      %v4824 = vadd.f32 %v4822, %v4823
      %v4825 = vsel %vm566, %v4764, 0.0
      %v4826 = vadd.f32 %v4824, %v4825
      %v4827 = vsel %vm566, %v4766, 0.0
      %v4828 = vadd.f32 %v4826, %v4827
      %v4829 = vsel %vm566, %v4768, 0.0
      %v4830 = vadd.f32 %v4828, %v4829
      %v4831 = vsel %vm566, %v4770, 0.0
      %v4832 = vadd.f32 %v4830, %v4831
      %v4833 = vsel %vm566, %v4772, 0.0
      %v4834 = vadd.f32 %v4832, %v4833
      %v4835 = vsel %vm566, %v4774, 0.0
      %v4836 = vadd.f32 %v4834, %v4835
      %v4837 = vsel %vm566, %v4776, 0.0
      %v4838 = vadd.f32 %v4836, %v4837
      %v4839 = vsel %vm566, %v4778, 0.0
      %v4840 = vadd.f32 %v4838, %v4839
      %v4841 = vsel %vm566, %v4780, 0.0
      %v4842 = vadd.f32 %v4840, %v4841
      %v4843 = vsel %vm566, %v4811, 0.0
      %v4844 = vsel %vm566, %v4842, 0.0
      %v4845 = vadd.f32 %v4843, %v4844
      %v4846 = vrot.slane %v4845, 4
      %v4847 = vadd.f32 %v4845, %v4846
      %v4848 = vrot.slane %v4847, 2
      %v4849 = vadd.f32 %v4847, %v4848
      %v4850 = vrot.slane %v4849, 1
      %v4851 = vadd.f32 %v4849, %v4850
      %vm4852 = vcmask 1040384
      %v4853 = vsel %vm4852, %v4748, %v4851
      %vm4854 = vcmask 254976
      %4855 = vst.msk [vmem:[%s262] sm:$0x3] %vm4854, %v4853
      %p4856 = scmp.lt.s32.totalorder %s18, 1
      %s4857 = scalar_select %p4856, %s18, 1
      %s4858 = smul.addr %s4857, 32
      %s4859 = smul.addr %s4858, 4
      %s4860 = scalar_lea.vmem %s5, %s4859
      %p4861 = scmp.lt.s32.totalorder %s18, 1
      %s4862 = scalar_select %p4861, %s18, 1
      %s4863 = smul.addr %s4862, 2
      %s4864 = scalar_lea.vmem %s6, %s4863
      // Predicated region
      $region41: #{mbconv_forward.5} parent=39 // pred_check
        %p4865 = pneg %p146
      $region42: #{mbconv_forward.5} parent=39 // pred_check_branch
        %4867 = sbr.rel (%p4865) target = $region44
      $region43: #{mbconv_forward.5} parent=39 // pred_region
        _
      $region44: #{mbconv_forward.5} parent=39 // pred_fallthru
        _
      // Predicated region
      $region45: #{mbconv_forward.5} parent=39 // pred_check
        %p4868 = pneg %p172
      $region46: #{mbconv_forward.5} parent=39 // pred_check_branch
        %4870 = sbr.rel (%p4868) target = $region48
      $region47: #{mbconv_forward.5} parent=39 // pred_region
        _
      $region48: #{mbconv_forward.5} parent=39 // pred_fallthru
        _
    $region40: #{mbconv_forward.5} parent=5 // pred_fallthru
      _
    %p4871 = scmp.le.s32.totalorder 2, %s13
    // Predicated region
    $region49: #{mbconv_forward.5} parent=5 // pred_check
      %p4872 = pneg %p4871
    $region50: #{mbconv_forward.5} parent=5 // pred_check_branch
      %4874 = sbr.rel (%p4872) target = $region52
    $region51: #{mbconv_forward.5} parent=5 // pred_region
      %s4875 = ssub.s32 %s13, 2
      // Predicated region
      $region53: #{mbconv_forward.5} parent=51 // pred_check
        %p4876 = pneg %p152
      $region54: #{mbconv_forward.5} parent=51 // pred_check_branch
        %4878 = sbr.rel (%p4876) target = $region56
      $region55: #{mbconv_forward.5} parent=51 // pred_region
        %p4879 = scmp.lt.s32.totalorder %s19, 1
        %s4880 = scalar_select %p4879, %s19, 1
        %s4881 = smul.addr %s4880, 32
        %s4882 = smul.addr %s4881, 4
        %s4883 = scalar_lea.vmem %s5, %s4882
      $region56: #{mbconv_forward.5} parent=51 // pred_fallthru
        _
      // Predicated region
      $region57: #{mbconv_forward.5} parent=51 // pred_check
        %p4884 = pneg %p178
      $region58: #{mbconv_forward.5} parent=51 // pred_check_branch
        %4886 = sbr.rel (%p4884) target = $region60
      $region59: #{mbconv_forward.5} parent=51 // pred_region
        %p4887 = scmp.lt.s32.totalorder %s19, 1
        %s4888 = scalar_select %p4887, %s19, 1
        %s4889 = smul.addr %s4888, 2
        %s4890 = scalar_lea.vmem %s6, %s4889
      $region60: #{mbconv_forward.5} parent=51 // pred_fallthru
        _
    $region52: #{mbconv_forward.5} parent=5 // pred_fallthru
      _
  $region6: #{mbconv_forward.5} parent=0 // loop_footer
    %s17 = sadd.s32 1, %s13
  $region7: #{mbconv_forward.5} parent=0 // loop_footer_branch
    %12 = sbr.rel target = $region3
  $region8: #{mbconv_forward.5} parent=0 // loop_exit
    _

</llo_original>
